<compile_context>
chip_gen: v7x
topology: tpu7x:2x2x1
jax: 0.10.0
libtpu: 0.0.40
codegen_flags: <defaults>
</compile_context>

<pallas_src>
import functools

import jax
import jax.numpy as jnp
from jax.experimental import pallas as pl
from jax.experimental.pallas import tpu as pltpu

# ----------------------------- configuration ---------------------------------
DIM = 64
DEPTH = 2
HEADS = 4
DIM_HEAD = 32
INNER = HEADS * DIM_HEAD          # 128 -> exactly one vreg lane width
HALF = DIM_HEAD // 2              # 16
COORS_HIDDEN = 16
FF_MULT = 4
FF_INNER = DIM * FF_MULT

ROTARY_THETA = 10000.0
REL_DIST_CUTOFF = 5000.0
REL_DIST_SCALE = 100.0
INIT_EPS = 1e-3
NORM_COORS_SCALE_INIT = 1.0
LN_EPS = 1e-5
COORS_NORM_EPS = 1e-8


# ----------------------------- small helpers ---------------------------------
def _gelu(x):
    # tanh-approximate GELU (see TODO above)
    return 0.5 * x * (1.0 + jnp.tanh(0.7978845608028654 * (x + 0.044715 * x * x * x)))


def _layernorm(x, g, b):
    mu = jnp.mean(x, axis=-1, keepdims=True)
    var = jnp.mean(jnp.square(x - mu), axis=-1, keepdims=True)
    return (x - mu) * jax.lax.rsqrt(var + LN_EPS) * g + b


def _rep_spec(shape):
    # parameter shared across the batch grid: full-array block, always block (0, ...)
    nd = len(shape)
    return pl.BlockSpec(shape, lambda i, _nd=nd: (0,) * _nd)


def _pick_batch_block(b, n):
    """Largest divisor of b with bt*n <= ~128 rows, keeping >=2 grid steps if b >= 2."""
    target = max(1, (128 + n - 1) // n)
    bt = 1
    for cand in range(1, b + 1):
        if b % cand != 0:
            continue
        if b >= 2 and (b // cand) < 2:
            continue                      # keep both v7x TensorCores busy
        if cand <= target:
            bt = cand
    return bt


# ------------------------------ fused kernel ----------------------------------
def _fused_kernel(feats_ref, coords_ref,
                  bsel_ref, rotp_ref, tile_ref, inv_freq_ref,
                  a_ln_g_ref, a_ln_b_ref, w_qkv_ref, w_out_ref, b_out_ref,
                  cw1_eff_ref, cw2_comb_ref,
                  f_ln_g_ref, f_ln_b_ref, ff_w1_ref, ff_b1_ref, ff_w2_ref, ff_b2_ref,
                  feats_out_ref, coords_out_ref, *, bt, n, heads, dh, depth):
    inner = heads * dh
    half = dh // 2
    dim = feats_ref.shape[-1]
    rows = bt * n                 # per-node rows (matmul M dimension)
    prows = rows * n              # pairwise rows

    x = feats_ref[...].reshape(rows, dim)            # (bt*n, dim)
    coords = coords_ref[...]                          # (bt, n, 3)

    bsel = bsel_ref[...]                               # (inner, inner), has 1/sqrt(dh)
    rotp = rotp_ref[...]                               # (inner, inner) signed permutation
    tile = tile_ref[...]                               # (half, inner) 0/1 duplicate+tile
    inv_freq = inv_freq_ref[...].reshape(1, 1, 1, half)

    # self-pair (diagonal) mask, shared by all layers
    eye = (jax.lax.broadcasted_iota(jnp.int32, (1, n, n), 1)
           == jax.lax.broadcasted_iota(jnp.int32, (1, n, n), 2))

    for layer in range(depth):                        # static unrolled (depth=2)
        # -------- attention sublayer: Residual(PreNorm(EquivariantAttention)) --------
        xn = _layernorm(x, a_ln_g_ref[layer], a_ln_b_ref[layer])
        qkv = jnp.dot(xn, w_qkv_ref[layer], preferred_element_type=jnp.float32)
        q = qkv[:, :inner]                             # (rows, inner)
        k = qkv[:, inner:2 * inner].reshape(bt, n, inner)
        v = qkv[:, 2 * inner:3 * inner].reshape(bt, n, inner)

        # rotate_half(q) via one constant signed-permutation matmul (heads in lanes)
        rq = jnp.dot(q, rotp, preferred_element_type=jnp.float32)
        q = q.reshape(bt, n, inner)
        rq = rq.reshape(bt, n, inner)

        # pairwise squared distance via Gram expansion (coords change every layer)
        gram = jnp.einsum('bic,bjc->bij', coords, coords,
                          preferred_element_type=jnp.float32)      # (bt, n, n)
        sq = jnp.sum(coords * coords, axis=-1)                     # (bt, n)
        d2 = sq[:, :, None] + sq[:, None, :] - 2.0 * gram
        d2 = jnp.maximum(d2, COORS_NORM_EPS * COORS_NORM_EPS)      # keep clamp (cancellation)
        inv_d = jax.lax.rsqrt(d2)
        rel_dist = d2 * inv_d                                      # == sqrt(d2)

        # rotary angles on the half width only, then tiled to 128 lanes on the MXU
        pos = jnp.clip(rel_dist * REL_DIST_SCALE, 0.0, REL_DIST_CUTOFF)
        fr = pos[:, :, :, None] * inv_freq                         # (bt, n, n, half)
        cosf = jnp.dot(jnp.cos(fr).reshape(prows, half), tile,
                       preferred_element_type=jnp.float32).reshape(bt, n, n, inner)
        sinf = jnp.dot(jnp.sin(fr).reshape(prows, half), tile,
                       preferred_element_type=jnp.float32).reshape(bt, n, n, inner)

        # pairwise-rotated q; per-head logits broadcast across each head's 32 lanes
        q_rot = q[:, :, None, :] * cosf + rq[:, :, None, :] * sinf  # (bt, n, n, inner)
        prod = q_rot * k[:, None, :, :]
        sims = jnp.dot(prod.reshape(prows, inner), bsel,
                       preferred_element_type=jnp.float32).reshape(bt, n, n, inner)

        # per-head softmax over keys (axis=2), fully lane-dense
        m = jnp.max(sims, axis=2, keepdims=True)
        e = jnp.exp(sims - m)
        attn = e * pl.reciprocal(jnp.sum(e, axis=2, keepdims=True), approx=True)

        # feature aggregation: broadcast attention multiplies v directly
        out = jnp.sum(attn * v[:, None, :, :], axis=2).reshape(rows, inner)
        x = (x + jnp.dot(out, w_out_ref[layer], preferred_element_type=jnp.float32)
             + b_out_ref[layer])                                    # residual

        # -------- coordinate update (coors_mlp on logits, algebraic aggregation) --------
        h1 = _gelu(jnp.dot(sims.reshape(prows, inner), cw1_eff_ref[layer],
                           preferred_element_type=jnp.float32))     # (prows, ch)
        wcomb = jnp.sum(h1.reshape(bt, n, n, COORS_HIDDEN) * cw2_comb_ref[layer],
                        axis=-1)                                    # (bt, n, n)
        # ws = wcomb * inv_d (CoorsNorm scale folded into cw2); zero the self-pair term
        ws = jnp.where(eye, 0.0, wcomb * inv_d)
        row = jnp.sum(ws, axis=2, keepdims=True)                    # (bt, n, 1)
        coords = coords + coords * row - jnp.einsum(
            'bij,bjc->bic', ws, coords, preferred_element_type=jnp.float32)

        # -------- feed-forward sublayer: Residual(PreNorm(FeedForward)) --------
        xn2 = _layernorm(x, f_ln_g_ref[layer], f_ln_b_ref[layer])
        hff = _gelu(jnp.dot(xn2, ff_w1_ref[layer], preferred_element_type=jnp.float32)
                    + ff_b1_ref[layer])
        x = (x + jnp.dot(hff, ff_w2_ref[layer], preferred_element_type=jnp.float32)
             + ff_b2_ref[layer])                                    # residual

    feats_out_ref[...] = x.reshape(bt, n, dim)
    coords_out_ref[...] = coords


# ------------------------------- wrapper ---------------------------------------
_PARAM_ORDER = ["bsel", "rotp", "tile", "inv_freq",
                "a_ln_g", "a_ln_b", "w_qkv", "w_out", "b_out",
                "coors_w1_eff", "cw2_comb",
                "f_ln_g", "f_ln_b", "ff_w1", "ff_b1", "ff_w2", "ff_b2"]


def en_transformer_forward(h, coords, params, batch_block=None):
    # Reference builds adj_mat = zeros(n, n); with num_adj_degrees=1 and adj_dim=0 it
    # carries no information (no adj embedding, full dense attention) -> not materialized.
    b, n, dim = h.shape
    assert dim == DIM

    bt = batch_block if batch_block is not None else _pick_batch_block(b, n)
    assert b % bt == 0
    grid_b = b // bt

    kern = functools.partial(_fused_kernel, bt=bt, n=n, heads=HEADS, dh=DIM_HEAD,
                             depth=DEPTH)
    param_arrays = [params[name] for name in _PARAM_ORDER]

    in_specs = ([pl.BlockSpec((bt, n, dim), lambda i: (i, 0, 0)),   # feats
                 pl.BlockSpec((bt, n, 3), lambda i: (i, 0, 0))]     # coords
                + [_rep_spec(a.shape) for a in param_arrays])
    out_specs = (pl.BlockSpec((bt, n, dim), lambda i: (i, 0, 0)),
                 pl.BlockSpec((bt, n, 3), lambda i: (i, 0, 0)))
    out_shape = (jax.ShapeDtypeStruct((b, n, dim), jnp.float32),
                 jax.ShapeDtypeStruct((b, n, 3), jnp.float32))

    # VMEM budget: ~a dozen (bt, n, n, 128) f32 intermediates live at peak + params.
    pairwise_bytes = 4 * bt * n * n * INNER
    vmem_limit = int(min(100 * 1024 * 1024,
                         max(32 * 1024 * 1024, 12 * pairwise_bytes + (6 << 20))))

    return pl.pallas_call(
        kern,
        grid=(grid_b,),
        in_specs=in_specs,
        out_specs=out_specs,
        out_shape=out_shape,
        compiler_params=pltpu.CompilerParams(
            dimension_semantics=("parallel",),        # batch grid steps split across TCs
            vmem_limit_bytes=vmem_limit),
    )(h, coords, *param_arrays)


# ------------------------------- parameters -----------------------------------
def init_params(key):
    inv_freq = (1.0 / (ROTARY_THETA ** (jnp.arange(0, DIM_HEAD, 2, dtype=jnp.float32)
                                        / DIM_HEAD))).reshape(1, HALF)

    # ---- structural constants (hoisted out of the kernel, MXU "plumbing" matrices) ----
    lane = jnp.arange(INNER)
    head = lane // DIM_HEAD
    within = lane % DIM_HEAD
    # block-diagonal per-head reduce+broadcast selector, pre-scaled by 1/sqrt(dh)
    bsel = (head[:, None] == head[None, :]).astype(jnp.float32) * (DIM_HEAD ** -0.5)
    # rotate_half as a signed permutation: rq = q @ rotp
    src = jnp.where(within < HALF, lane + HALF, lane - HALF)
    sgn = jnp.where(within < HALF, -1.0, 1.0).astype(jnp.float32)
    rotp = (lane[:, None] == src[None, :]).astype(jnp.float32) * sgn[None, :]
    # duplicate+tile half-width cos/sin across all 128 lanes: full = half @ tile
    tile = (jnp.arange(HALF)[:, None] == (lane % HALF)[None, :]).astype(jnp.float32)

    ks = jax.random.split(key, DEPTH * 7)
    w_qkv, w_out, cw1_eff, cw2_comb, ff_w1, ff_w2 = [], [], [], [], [], []
    for l in range(DEPTH):
        k0, k1, k2, k3, k4, k5, k6 = (ks[7 * l + j] for j in range(7))
        # en_transformer initializes attention Linear weights ~ N(0, init_eps)
        w_qkv.append(INIT_EPS * jax.random.normal(k0, (DIM, 3 * INNER), jnp.float32))
        w_out.append(INIT_EPS * jax.random.normal(k1, (INNER, DIM), jnp.float32))
        coors_w1 = INIT_EPS * jax.random.normal(k2, (HEADS, COORS_HIDDEN), jnp.float32)
        # logits arrive head-broadcast over dh lanes -> replicate rows and divide by dh
        cw1_eff.append(jnp.repeat(coors_w1, DIM_HEAD, axis=0) / DIM_HEAD)  # (INNER, ch)
        cw2 = INIT_EPS * jax.random.normal(k3, (COORS_HIDDEN, HEADS), jnp.float32)
        combine = jax.random.normal(k4, (1, HEADS), jnp.float32)
        # fold Linear(ch->heads), head-combine vector, and CoorsNorm scale (param algebra)
        cw2_comb.append(jnp.dot(combine, cw2.T) * NORM_COORS_SCALE_INIT)   # (1, ch)
        ff_w1.append((DIM ** -0.5) * jax.random.normal(k5, (DIM, FF_INNER), jnp.float32))
        ff_w2.append((FF_INNER ** -0.5) * jax.random.normal(k6, (FF_INNER, DIM), jnp.float32))

    return dict(
        bsel=bsel, rotp=rotp, tile=tile, inv_freq=inv_freq,
        a_ln_g=jnp.ones((DEPTH, 1, DIM), jnp.float32),
        a_ln_b=jnp.zeros((DEPTH, 1, DIM), jnp.float32),
        w_qkv=jnp.stack(w_qkv),
        w_out=jnp.stack(w_out),
        b_out=jnp.zeros((DEPTH, 1, DIM), jnp.float32),
        coors_w1_eff=jnp.stack(cw1_eff),
        cw2_comb=jnp.stack(cw2_comb),
        f_ln_g=jnp.ones((DEPTH, 1, DIM), jnp.float32),
        f_ln_b=jnp.zeros((DEPTH, 1, DIM), jnp.float32),
        ff_w1=jnp.stack(ff_w1),
        ff_b1=jnp.zeros((DEPTH, 1, FF_INNER), jnp.float32),
        ff_w2=jnp.stack(ff_w2),
        ff_b2=jnp.zeros((DEPTH, 1, DIM), jnp.float32),
    )


# ----------------------------------- main --------------------------------------
if __name__ == "__main__":
    key = jax.random.PRNGKey(0)
    k_h, k_c, k_p = jax.random.split(key, 3)

    B, N = 2, 8
    h = jax.random.normal(k_h, (B, N, DIM), jnp.float32)
    coords = jax.random.normal(k_c, (B, N, 3), jnp.float32)

    params = init_params(k_p)

    feats_out, coors_out = en_transformer_forward(h, coords, params)
    jax.block_until_ready((feats_out, coors_out))

    assert feats_out.shape == (B, N, DIM)
    assert coors_out.shape == (B, N, 3)
    assert bool(jnp.all(jnp.isfinite(feats_out))) and bool(jnp.all(jnp.isfinite(coors_out)))
    print("KERNEL_OK")
</pallas_src>

<mosaic_0001>
module attributes {stable_mosaic.version = 11 : i64} {
  func.func @_fused_kernel(%arg0: i32, %arg1: memref<1x8x64xf32, #tpu.memory_space<vmem>>, %arg2: memref<1x8x3xf32, #tpu.memory_space<vmem>>, %arg3: memref<128x128xf32, #tpu.memory_space<vmem>>, %arg4: memref<128x128xf32, #tpu.memory_space<vmem>>, %arg5: memref<16x128xf32, #tpu.memory_space<vmem>>, %arg6: memref<1x16xf32, #tpu.memory_space<vmem>>, %arg7: memref<2x1x64xf32, #tpu.memory_space<vmem>>, %arg8: memref<2x1x64xf32, #tpu.memory_space<vmem>>, %arg9: memref<2x64x384xf32, #tpu.memory_space<vmem>>, %arg10: memref<2x128x64xf32, #tpu.memory_space<vmem>>, %arg11: memref<2x1x64xf32, #tpu.memory_space<vmem>>, %arg12: memref<2x128x16xf32, #tpu.memory_space<vmem>>, %arg13: memref<2x1x16xf32, #tpu.memory_space<vmem>>, %arg14: memref<2x1x64xf32, #tpu.memory_space<vmem>>, %arg15: memref<2x1x64xf32, #tpu.memory_space<vmem>>, %arg16: memref<2x64x256xf32, #tpu.memory_space<vmem>>, %arg17: memref<2x1x256xf32, #tpu.memory_space<vmem>>, %arg18: memref<2x256x64xf32, #tpu.memory_space<vmem>>, %arg19: memref<2x1x64xf32, #tpu.memory_space<vmem>>, %arg20: memref<1x8x64xf32, #tpu.memory_space<vmem>>, %arg21: memref<1x8x3xf32, #tpu.memory_space<vmem>>) attributes {dimension_semantics = [#tpu.dimension_semantics<parallel>], iteration_bounds = array<i64: 2>, scalar_prefetch = 0 : i64, scratch_operands = 0 : i64, tpu.core_type = #tpu.core_type<tc>, window_params = [{transform_indices = @transform_0, window_bounds = array<i64: 1, 8, 64>}, {transform_indices = @transform_1, window_bounds = array<i64: 1, 8, 3>}, {pipeline_mode = #tpu.pipeline_mode<synchronous>, transform_indices = @transform_2, window_bounds = array<i64: 128, 128>}, {pipeline_mode = #tpu.pipeline_mode<synchronous>, transform_indices = @transform_3, window_bounds = array<i64: 128, 128>}, {pipeline_mode = #tpu.pipeline_mode<synchronous>, transform_indices = @transform_4, window_bounds = array<i64: 16, 128>}, {pipeline_mode = #tpu.pipeline_mode<synchronous>, transform_indices = @transform_5, window_bounds = array<i64: 1, 16>}, {pipeline_mode = #tpu.pipeline_mode<synchronous>, transform_indices = @transform_6, window_bounds = array<i64: 2, 1, 64>}, {pipeline_mode = #tpu.pipeline_mode<synchronous>, transform_indices = @transform_7, window_bounds = array<i64: 2, 1, 64>}, {pipeline_mode = #tpu.pipeline_mode<synchronous>, transform_indices = @transform_8, window_bounds = array<i64: 2, 64, 384>}, {pipeline_mode = #tpu.pipeline_mode<synchronous>, transform_indices = @transform_9, window_bounds = array<i64: 2, 128, 64>}, {pipeline_mode = #tpu.pipeline_mode<synchronous>, transform_indices = @transform_10, window_bounds = array<i64: 2, 1, 64>}, {pipeline_mode = #tpu.pipeline_mode<synchronous>, transform_indices = @transform_11, window_bounds = array<i64: 2, 128, 16>}, {pipeline_mode = #tpu.pipeline_mode<synchronous>, transform_indices = @transform_12, window_bounds = array<i64: 2, 1, 16>}, {pipeline_mode = #tpu.pipeline_mode<synchronous>, transform_indices = @transform_13, window_bounds = array<i64: 2, 1, 64>}, {pipeline_mode = #tpu.pipeline_mode<synchronous>, transform_indices = @transform_14, window_bounds = array<i64: 2, 1, 64>}, {pipeline_mode = #tpu.pipeline_mode<synchronous>, transform_indices = @transform_15, window_bounds = array<i64: 2, 64, 256>}, {pipeline_mode = #tpu.pipeline_mode<synchronous>, transform_indices = @transform_16, window_bounds = array<i64: 2, 1, 256>}, {pipeline_mode = #tpu.pipeline_mode<synchronous>, transform_indices = @transform_17, window_bounds = array<i64: 2, 256, 64>}, {pipeline_mode = #tpu.pipeline_mode<synchronous>, transform_indices = @transform_18, window_bounds = array<i64: 2, 1, 64>}, {transform_indices = @transform_19, window_bounds = array<i64: 1, 8, 64>}, {transform_indices = @transform_20, window_bounds = array<i64: 1, 8, 3>}]} {
    %c0 = arith.constant 0 : index
    %c0_0 = arith.constant 0 : index
    %c0_1 = arith.constant 0 : index
    %0 = vector.load %arg1[%c0, %c0_0, %c0_1] : memref<1x8x64xf32, #tpu.memory_space<vmem>>, vector<1x8x64xf32>
    %1 = vector.shape_cast %0 : vector<1x8x64xf32> to vector<8x64xf32>
    %c0_2 = arith.constant 0 : index
    %c0_3 = arith.constant 0 : index
    %c0_4 = arith.constant 0 : index
    %2 = vector.load %arg2[%c0_2, %c0_3, %c0_4] : memref<1x8x3xf32, #tpu.memory_space<vmem>>, vector<1x8x3xf32>
    %c0_5 = arith.constant 0 : index
    %c0_6 = arith.constant 0 : index
    %3 = vector.load %arg3[%c0_5, %c0_6] : memref<128x128xf32, #tpu.memory_space<vmem>>, vector<128x128xf32>
    %c0_7 = arith.constant 0 : index
    %c0_8 = arith.constant 0 : index
    %4 = vector.load %arg4[%c0_7, %c0_8] : memref<128x128xf32, #tpu.memory_space<vmem>>, vector<128x128xf32>
    %c0_9 = arith.constant 0 : index
    %c0_10 = arith.constant 0 : index
    %5 = vector.load %arg5[%c0_9, %c0_10] : memref<16x128xf32, #tpu.memory_space<vmem>>, vector<16x128xf32>
    %c0_11 = arith.constant 0 : index
    %c0_12 = arith.constant 0 : index
    %6 = vector.load %arg6[%c0_11, %c0_12] : memref<1x16xf32, #tpu.memory_space<vmem>>, vector<1x16xf32>
    %7 = vector.shape_cast %6 : vector<1x16xf32> to vector<1x1x1x16xf32>
    %8 = tpu.iota {dimensions = array<i32: 1>} : vector<1x8x8xi32>
    %9 = tpu.iota {dimensions = array<i32: 2>} : vector<1x8x8xi32>
    %10 = arith.cmpi eq, %8, %9 : vector<1x8x8xi32>
    %c0_13 = arith.constant 0 : index
    %c0_14 = arith.constant 0 : index
    %c0_15 = arith.constant 0 : index
    %11 = vector.load %arg7[%c0_13, %c0_14, %c0_15] : memref<2x1x64xf32, #tpu.memory_space<vmem>>, vector<1x1x64xf32>
    %12 = vector.shape_cast %11 : vector<1x1x64xf32> to vector<1x64xf32>
    %c0_16 = arith.constant 0 : index
    %c0_17 = arith.constant 0 : index
    %c0_18 = arith.constant 0 : index
    %13 = vector.load %arg8[%c0_16, %c0_17, %c0_18] : memref<2x1x64xf32, #tpu.memory_space<vmem>>, vector<1x1x64xf32>
    %14 = vector.shape_cast %13 : vector<1x1x64xf32> to vector<1x64xf32>
    %cst = arith.constant dense<0.000000e+00> : vector<8xf32>
    %15 = vector.multi_reduction <add>, %1, %cst [1] : vector<8x64xf32> to vector<8xf32>
    %16 = vector.shape_cast %15 : vector<8xf32> to vector<8x1xf32>
    %cst_19 = arith.constant 6.400000e+01 : f32
    %17 = vector.broadcast %cst_19 : f32 to vector<8x1xf32>
    %18 = arith.divf %16, %17 : vector<8x1xf32>
    %19 = vector.broadcast %18 : vector<8x1xf32> to vector<8x64xf32>
    %20 = arith.subf %1, %19 : vector<8x64xf32>
    %21 = arith.mulf %20, %20 : vector<8x64xf32>
    %cst_20 = arith.constant dense<0.000000e+00> : vector<8xf32>
    %22 = vector.multi_reduction <add>, %21, %cst_20 [1] : vector<8x64xf32> to vector<8xf32>
    %23 = vector.shape_cast %22 : vector<8xf32> to vector<8x1xf32>
    %cst_21 = arith.constant 6.400000e+01 : f32
    %24 = vector.broadcast %cst_21 : f32 to vector<8x1xf32>
    %25 = arith.divf %23, %24 : vector<8x1xf32>
    %26 = vector.broadcast %18 : vector<8x1xf32> to vector<8x64xf32>
    %27 = arith.subf %1, %26 : vector<8x64xf32>
    %cst_22 = arith.constant 9.99999974E-6 : f32
    %28 = vector.broadcast %cst_22 : f32 to vector<8x1xf32>
    %29 = arith.addf %25, %28 : vector<8x1xf32>
    %30 = math.rsqrt %29 : vector<8x1xf32>
    %31 = vector.broadcast %30 : vector<8x1xf32> to vector<8x64xf32>
    %32 = arith.mulf %27, %31 : vector<8x64xf32>
    %33 = vector.broadcast %12 : vector<1x64xf32> to vector<8x64xf32>
    %34 = arith.mulf %32, %33 : vector<8x64xf32>
    %35 = vector.broadcast %14 : vector<1x64xf32> to vector<8x64xf32>
    %36 = arith.addf %34, %35 : vector<8x64xf32>
    %c0_23 = arith.constant 0 : index
    %c0_24 = arith.constant 0 : index
    %c0_25 = arith.constant 0 : index
    %37 = vector.load %arg9[%c0_23, %c0_24, %c0_25] : memref<2x64x384xf32, #tpu.memory_space<vmem>>, vector<1x64x384xf32>
    %38 = vector.shape_cast %37 : vector<1x64x384xf32> to vector<64x384xf32>
    %cst_26 = arith.constant dense<0.000000e+00> : vector<8x384xf32>
    %39 = tpu.matmul %36, %38, %cst_26 {dimension_numbers = #tpu.dot_dimension_numbers<[1], [0], [0], [1], [0, 0, 1, 1], [], []>} : vector<8x64xf32>, vector<64x384xf32>, vector<8x384xf32> -> vector<8x384xf32>
    %40 = vector.extract_strided_slice %39 {offsets = [0, 0], sizes = [8, 128], strides = [1, 1]} : vector<8x384xf32> to vector<8x128xf32>
    %41 = vector.extract_strided_slice %39 {offsets = [0, 128], sizes = [8, 128], strides = [1, 1]} : vector<8x384xf32> to vector<8x128xf32>
    %42 = vector.shape_cast %41 : vector<8x128xf32> to vector<1x8x128xf32>
    %43 = vector.extract_strided_slice %39 {offsets = [0, 256], sizes = [8, 128], strides = [1, 1]} : vector<8x384xf32> to vector<8x128xf32>
    %44 = vector.shape_cast %43 : vector<8x128xf32> to vector<1x8x128xf32>
    %cst_27 = arith.constant dense<0.000000e+00> : vector<8x128xf32>
    %45 = tpu.matmul %40, %4, %cst_27 {dimension_numbers = #tpu.dot_dimension_numbers<[1], [0], [0], [1], [0, 0, 1, 1], [], []>} : vector<8x128xf32>, vector<128x128xf32>, vector<8x128xf32> -> vector<8x128xf32>
    %46 = vector.shape_cast %40 : vector<8x128xf32> to vector<1x8x128xf32>
    %47 = vector.shape_cast %45 : vector<8x128xf32> to vector<1x8x128xf32>
    "tpu.trace_start"() <{level = 10 : i32, message = "bic,bjc->bij"}> : () -> ()
    %cst_28 = arith.constant dense<0.000000e+00> : vector<1x8x8xf32>
    %48 = tpu.matmul %2, %2, %cst_28 {dimension_numbers = #tpu.dot_dimension_numbers<[2], [2], [1], [1], [0, 0, 0, 1, 1, 1], [0], [0]>} : vector<1x8x3xf32>, vector<1x8x3xf32>, vector<1x8x8xf32> -> vector<1x8x8xf32>
    "tpu.trace_stop"() : () -> ()
    %49 = arith.mulf %2, %2 : vector<1x8x3xf32>
    %cst_29 = arith.constant dense<0.000000e+00> : vector<1x8xf32>
    %50 = vector.multi_reduction <add>, %49, %cst_29 [2] : vector<1x8x3xf32> to vector<1x8xf32>
    %51 = vector.shape_cast %50 : vector<1x8xf32> to vector<1x8x1xf32>
    %52 = vector.shape_cast %50 : vector<1x8xf32> to vector<1x1x8xf32>
    %53 = vector.broadcast %51 : vector<1x8x1xf32> to vector<1x8x8xf32>
    %54 = vector.broadcast %52 : vector<1x1x8xf32> to vector<1x8x8xf32>
    %55 = arith.addf %53, %54 : vector<1x8x8xf32>
    %cst_30 = arith.constant 2.000000e+00 : f32
    %56 = vector.broadcast %cst_30 : f32 to vector<1x8x8xf32>
    %57 = arith.mulf %56, %48 : vector<1x8x8xf32>
    %58 = arith.subf %55, %57 : vector<1x8x8xf32>
    %cst_31 = arith.constant 1.000000e-16 : f32
    %59 = vector.broadcast %cst_31 : f32 to vector<1x8x8xf32>
    %60 = arith.maximumf %58, %59 : vector<1x8x8xf32>
    %61 = math.rsqrt %60 : vector<1x8x8xf32>
    %62 = arith.mulf %60, %61 : vector<1x8x8xf32>
    %cst_32 = arith.constant 1.000000e+02 : f32
    %63 = vector.broadcast %cst_32 : f32 to vector<1x8x8xf32>
    %64 = arith.mulf %62, %63 : vector<1x8x8xf32>
    %cst_33 = arith.constant 0.000000e+00 : f32
    %cst_34 = arith.constant 5.000000e+03 : f32
    %65 = vector.broadcast %cst_33 : f32 to vector<1x8x8xf32>
    %66 = arith.maximumf %65, %64 : vector<1x8x8xf32>
    %67 = vector.broadcast %cst_34 : f32 to vector<1x8x8xf32>
    %68 = arith.minimumf %67, %66 : vector<1x8x8xf32>
    %69 = vector.shape_cast %68 : vector<1x8x8xf32> to vector<1x8x8x1xf32>
    %70 = vector.broadcast %69 : vector<1x8x8x1xf32> to vector<1x8x8x16xf32>
    %71 = vector.broadcast %7 : vector<1x1x1x16xf32> to vector<1x8x8x16xf32>
    %72 = arith.mulf %70, %71 : vector<1x8x8x16xf32>
    %73 = math.cos %72 : vector<1x8x8x16xf32>
    %74 = vector.shape_cast %73 : vector<1x8x8x16xf32> to vector<64x16xf32>
    %cst_35 = arith.constant dense<0.000000e+00> : vector<64x128xf32>
    %75 = tpu.matmul %74, %5, %cst_35 {dimension_numbers = #tpu.dot_dimension_numbers<[1], [0], [0], [1], [0, 0, 1, 1], [], []>} : vector<64x16xf32>, vector<16x128xf32>, vector<64x128xf32> -> vector<64x128xf32>
    %76 = vector.shape_cast %75 : vector<64x128xf32> to vector<1x8x8x128xf32>
    %77 = math.sin %72 : vector<1x8x8x16xf32>
    %78 = vector.shape_cast %77 : vector<1x8x8x16xf32> to vector<64x16xf32>
    %cst_36 = arith.constant dense<0.000000e+00> : vector<64x128xf32>
    %79 = tpu.matmul %78, %5, %cst_36 {dimension_numbers = #tpu.dot_dimension_numbers<[1], [0], [0], [1], [0, 0, 1, 1], [], []>} : vector<64x16xf32>, vector<16x128xf32>, vector<64x128xf32> -> vector<64x128xf32>
    %80 = vector.shape_cast %79 : vector<64x128xf32> to vector<1x8x8x128xf32>
    %81 = vector.shape_cast %46 : vector<1x8x128xf32> to vector<1x8x1x128xf32>
    %82 = vector.broadcast %81 : vector<1x8x1x128xf32> to vector<1x8x8x128xf32>
    %83 = arith.mulf %82, %76 : vector<1x8x8x128xf32>
    %84 = vector.shape_cast %47 : vector<1x8x128xf32> to vector<1x8x1x128xf32>
    %85 = vector.broadcast %84 : vector<1x8x1x128xf32> to vector<1x8x8x128xf32>
    %86 = arith.mulf %85, %80 : vector<1x8x8x128xf32>
    %87 = arith.addf %83, %86 : vector<1x8x8x128xf32>
    %88 = vector.shape_cast %42 : vector<1x8x128xf32> to vector<1x1x8x128xf32>
    %89 = vector.broadcast %88 : vector<1x1x8x128xf32> to vector<1x8x8x128xf32>
    %90 = arith.mulf %87, %89 : vector<1x8x8x128xf32>
    %91 = vector.shape_cast %90 : vector<1x8x8x128xf32> to vector<64x128xf32>
    %cst_37 = arith.constant dense<0.000000e+00> : vector<64x128xf32>
    %92 = tpu.matmul %91, %3, %cst_37 {dimension_numbers = #tpu.dot_dimension_numbers<[1], [0], [0], [1], [0, 0, 1, 1], [], []>} : vector<64x128xf32>, vector<128x128xf32>, vector<64x128xf32> -> vector<64x128xf32>
    %93 = vector.shape_cast %92 : vector<64x128xf32> to vector<1x8x8x128xf32>
    %cst_38 = arith.constant dense<0xFF800000> : vector<1x8x128xf32>
    %94 = vector.multi_reduction <maximumf>, %93, %cst_38 [2] : vector<1x8x8x128xf32> to vector<1x8x128xf32>
    %95 = vector.shape_cast %94 : vector<1x8x128xf32> to vector<1x8x1x128xf32>
    %96 = vector.broadcast %95 : vector<1x8x1x128xf32> to vector<1x8x8x128xf32>
    %97 = arith.subf %93, %96 : vector<1x8x8x128xf32>
    %98 = math.exp %97 : vector<1x8x8x128xf32>
    %cst_39 = arith.constant dense<0.000000e+00> : vector<1x8x128xf32>
    %99 = vector.multi_reduction <add>, %98, %cst_39 [2] : vector<1x8x8x128xf32> to vector<1x8x128xf32>
    %100 = vector.shape_cast %99 : vector<1x8x128xf32> to vector<1x8x1x128xf32>
    %101 = tpu.reciprocal %100 {approx = true} : vector<1x8x1x128xf32> -> vector<1x8x1x128xf32>
    %102 = vector.broadcast %101 : vector<1x8x1x128xf32> to vector<1x8x8x128xf32>
    %103 = arith.mulf %98, %102 : vector<1x8x8x128xf32>
    %104 = vector.shape_cast %44 : vector<1x8x128xf32> to vector<1x1x8x128xf32>
    %105 = vector.broadcast %104 : vector<1x1x8x128xf32> to vector<1x8x8x128xf32>
    %106 = arith.mulf %103, %105 : vector<1x8x8x128xf32>
    %cst_40 = arith.constant dense<0.000000e+00> : vector<1x8x128xf32>
    %107 = vector.multi_reduction <add>, %106, %cst_40 [2] : vector<1x8x8x128xf32> to vector<1x8x128xf32>
    %108 = vector.shape_cast %107 : vector<1x8x128xf32> to vector<8x128xf32>
    %c0_41 = arith.constant 0 : index
    %c0_42 = arith.constant 0 : index
    %c0_43 = arith.constant 0 : index
    %109 = vector.load %arg10[%c0_41, %c0_42, %c0_43] : memref<2x128x64xf32, #tpu.memory_space<vmem>>, vector<1x128x64xf32>
    %110 = vector.shape_cast %109 : vector<1x128x64xf32> to vector<128x64xf32>
    %cst_44 = arith.constant dense<0.000000e+00> : vector<8x64xf32>
    %111 = tpu.matmul %108, %110, %cst_44 {dimension_numbers = #tpu.dot_dimension_numbers<[1], [0], [0], [1], [0, 0, 1, 1], [], []>} : vector<8x128xf32>, vector<128x64xf32>, vector<8x64xf32> -> vector<8x64xf32>
    %112 = arith.addf %1, %111 : vector<8x64xf32>
    %c0_45 = arith.constant 0 : index
    %c0_46 = arith.constant 0 : index
    %c0_47 = arith.constant 0 : index
    %113 = vector.load %arg11[%c0_45, %c0_46, %c0_47] : memref<2x1x64xf32, #tpu.memory_space<vmem>>, vector<1x1x64xf32>
    %114 = vector.shape_cast %113 : vector<1x1x64xf32> to vector<1x64xf32>
    %115 = vector.broadcast %114 : vector<1x64xf32> to vector<8x64xf32>
    %116 = arith.addf %112, %115 : vector<8x64xf32>
    %117 = vector.shape_cast %93 : vector<1x8x8x128xf32> to vector<64x128xf32>
    %c0_48 = arith.constant 0 : index
    %c0_49 = arith.constant 0 : index
    %c0_50 = arith.constant 0 : index
    %118 = vector.load %arg12[%c0_48, %c0_49, %c0_50] : memref<2x128x16xf32, #tpu.memory_space<vmem>>, vector<1x128x16xf32>
    %119 = vector.shape_cast %118 : vector<1x128x16xf32> to vector<128x16xf32>
    %cst_51 = arith.constant dense<0.000000e+00> : vector<64x16xf32>
    %120 = tpu.matmul %117, %119, %cst_51 {dimension_numbers = #tpu.dot_dimension_numbers<[1], [0], [0], [1], [0, 0, 1, 1], [], []>} : vector<64x128xf32>, vector<128x16xf32>, vector<64x16xf32> -> vector<64x16xf32>
    %cst_52 = arith.constant 5.000000e-01 : f32
    %121 = vector.broadcast %cst_52 : f32 to vector<64x16xf32>
    %122 = arith.mulf %121, %120 : vector<64x16xf32>
    %cst_53 = arith.constant 4.471500e-02 : f32
    %123 = vector.broadcast %cst_53 : f32 to vector<64x16xf32>
    %124 = arith.mulf %123, %120 : vector<64x16xf32>
    %125 = arith.mulf %124, %120 : vector<64x16xf32>
    %126 = arith.mulf %125, %120 : vector<64x16xf32>
    %127 = arith.addf %120, %126 : vector<64x16xf32>
    %cst_54 = arith.constant 0.797884583 : f32
    %128 = vector.broadcast %cst_54 : f32 to vector<64x16xf32>
    %129 = arith.mulf %128, %127 : vector<64x16xf32>
    %130 = math.tanh %129 : vector<64x16xf32>
    %cst_55 = arith.constant 1.000000e+00 : f32
    %131 = vector.broadcast %cst_55 : f32 to vector<64x16xf32>
    %132 = arith.addf %131, %130 : vector<64x16xf32>
    %133 = arith.mulf %122, %132 : vector<64x16xf32>
    %134 = vector.shape_cast %133 : vector<64x16xf32> to vector<1x8x8x16xf32>
    %c0_56 = arith.constant 0 : index
    %c0_57 = arith.constant 0 : index
    %c0_58 = arith.constant 0 : index
    %135 = vector.load %arg13[%c0_56, %c0_57, %c0_58] : memref<2x1x16xf32, #tpu.memory_space<vmem>>, vector<1x1x16xf32>
    %136 = vector.shape_cast %135 : vector<1x1x16xf32> to vector<1x16xf32>
    %137 = vector.shape_cast %136 : vector<1x16xf32> to vector<1x1x1x16xf32>
    %138 = vector.broadcast %137 : vector<1x1x1x16xf32> to vector<1x8x8x16xf32>
    %139 = arith.mulf %134, %138 : vector<1x8x8x16xf32>
    %cst_59 = arith.constant dense<0.000000e+00> : vector<1x8x8xf32>
    %140 = vector.multi_reduction <add>, %139, %cst_59 [3] : vector<1x8x8x16xf32> to vector<1x8x8xf32>
    %141 = arith.mulf %140, %61 : vector<1x8x8xf32>
    %cst_60 = arith.constant 0.000000e+00 : f32
    %142 = vector.broadcast %cst_60 : f32 to vector<1x8x8xf32>
    %143 = arith.select %10, %142, %141 : vector<1x8x8xi1>, vector<1x8x8xf32>
    %cst_61 = arith.constant dense<0.000000e+00> : vector<1x8xf32>
    %144 = vector.multi_reduction <add>, %143, %cst_61 [2] : vector<1x8x8xf32> to vector<1x8xf32>
    %145 = vector.shape_cast %144 : vector<1x8xf32> to vector<1x8x1xf32>
    %146 = vector.broadcast %145 : vector<1x8x1xf32> to vector<1x8x3xf32>
    %147 = arith.mulf %2, %146 : vector<1x8x3xf32>
    %148 = arith.addf %2, %147 : vector<1x8x3xf32>
    "tpu.trace_start"() <{level = 10 : i32, message = "bij,bjc->bic"}> : () -> ()
    %cst_62 = arith.constant dense<0.000000e+00> : vector<1x8x3xf32>
    %149 = tpu.matmul %143, %2, %cst_62 {dimension_numbers = #tpu.dot_dimension_numbers<[2], [1], [1], [2], [0, 0, 0, 1, 1, 2], [0], [0]>} : vector<1x8x8xf32>, vector<1x8x3xf32>, vector<1x8x3xf32> -> vector<1x8x3xf32>
    "tpu.trace_stop"() : () -> ()
    %150 = arith.subf %148, %149 : vector<1x8x3xf32>
    %c0_63 = arith.constant 0 : index
    %c0_64 = arith.constant 0 : index
    %c0_65 = arith.constant 0 : index
    %151 = vector.load %arg14[%c0_63, %c0_64, %c0_65] : memref<2x1x64xf32, #tpu.memory_space<vmem>>, vector<1x1x64xf32>
    %152 = vector.shape_cast %151 : vector<1x1x64xf32> to vector<1x64xf32>
    %c0_66 = arith.constant 0 : index
    %c0_67 = arith.constant 0 : index
    %c0_68 = arith.constant 0 : index
    %153 = vector.load %arg15[%c0_66, %c0_67, %c0_68] : memref<2x1x64xf32, #tpu.memory_space<vmem>>, vector<1x1x64xf32>
    %154 = vector.shape_cast %153 : vector<1x1x64xf32> to vector<1x64xf32>
    %cst_69 = arith.constant dense<0.000000e+00> : vector<8xf32>
    %155 = vector.multi_reduction <add>, %116, %cst_69 [1] : vector<8x64xf32> to vector<8xf32>
    %156 = vector.shape_cast %155 : vector<8xf32> to vector<8x1xf32>
    %cst_70 = arith.constant 6.400000e+01 : f32
    %157 = vector.broadcast %cst_70 : f32 to vector<8x1xf32>
    %158 = arith.divf %156, %157 : vector<8x1xf32>
    %159 = vector.broadcast %158 : vector<8x1xf32> to vector<8x64xf32>
    %160 = arith.subf %116, %159 : vector<8x64xf32>
    %161 = arith.mulf %160, %160 : vector<8x64xf32>
    %cst_71 = arith.constant dense<0.000000e+00> : vector<8xf32>
    %162 = vector.multi_reduction <add>, %161, %cst_71 [1] : vector<8x64xf32> to vector<8xf32>
    %163 = vector.shape_cast %162 : vector<8xf32> to vector<8x1xf32>
    %cst_72 = arith.constant 6.400000e+01 : f32
    %164 = vector.broadcast %cst_72 : f32 to vector<8x1xf32>
    %165 = arith.divf %163, %164 : vector<8x1xf32>
    %166 = vector.broadcast %158 : vector<8x1xf32> to vector<8x64xf32>
    %167 = arith.subf %116, %166 : vector<8x64xf32>
    %cst_73 = arith.constant 9.99999974E-6 : f32
    %168 = vector.broadcast %cst_73 : f32 to vector<8x1xf32>
    %169 = arith.addf %165, %168 : vector<8x1xf32>
    %170 = math.rsqrt %169 : vector<8x1xf32>
    %171 = vector.broadcast %170 : vector<8x1xf32> to vector<8x64xf32>
    %172 = arith.mulf %167, %171 : vector<8x64xf32>
    %173 = vector.broadcast %152 : vector<1x64xf32> to vector<8x64xf32>
    %174 = arith.mulf %172, %173 : vector<8x64xf32>
    %175 = vector.broadcast %154 : vector<1x64xf32> to vector<8x64xf32>
    %176 = arith.addf %174, %175 : vector<8x64xf32>
    %c0_74 = arith.constant 0 : index
    %c0_75 = arith.constant 0 : index
    %c0_76 = arith.constant 0 : index
    %177 = vector.load %arg16[%c0_74, %c0_75, %c0_76] : memref<2x64x256xf32, #tpu.memory_space<vmem>>, vector<1x64x256xf32>
    %178 = vector.shape_cast %177 : vector<1x64x256xf32> to vector<64x256xf32>
    %cst_77 = arith.constant dense<0.000000e+00> : vector<8x256xf32>
    %179 = tpu.matmul %176, %178, %cst_77 {dimension_numbers = #tpu.dot_dimension_numbers<[1], [0], [0], [1], [0, 0, 1, 1], [], []>} : vector<8x64xf32>, vector<64x256xf32>, vector<8x256xf32> -> vector<8x256xf32>
    %c0_78 = arith.constant 0 : index
    %c0_79 = arith.constant 0 : index
    %c0_80 = arith.constant 0 : index
    %180 = vector.load %arg17[%c0_78, %c0_79, %c0_80] : memref<2x1x256xf32, #tpu.memory_space<vmem>>, vector<1x1x256xf32>
    %181 = vector.shape_cast %180 : vector<1x1x256xf32> to vector<1x256xf32>
    %182 = vector.broadcast %181 : vector<1x256xf32> to vector<8x256xf32>
    %183 = arith.addf %179, %182 : vector<8x256xf32>
    %cst_81 = arith.constant 5.000000e-01 : f32
    %184 = vector.broadcast %cst_81 : f32 to vector<8x256xf32>
    %185 = arith.mulf %184, %183 : vector<8x256xf32>
    %cst_82 = arith.constant 4.471500e-02 : f32
    %186 = vector.broadcast %cst_82 : f32 to vector<8x256xf32>
    %187 = arith.mulf %186, %183 : vector<8x256xf32>
    %188 = arith.mulf %187, %183 : vector<8x256xf32>
    %189 = arith.mulf %188, %183 : vector<8x256xf32>
    %190 = arith.addf %183, %189 : vector<8x256xf32>
    %cst_83 = arith.constant 0.797884583 : f32
    %191 = vector.broadcast %cst_83 : f32 to vector<8x256xf32>
    %192 = arith.mulf %191, %190 : vector<8x256xf32>
    %193 = math.tanh %192 : vector<8x256xf32>
    %cst_84 = arith.constant 1.000000e+00 : f32
    %194 = vector.broadcast %cst_84 : f32 to vector<8x256xf32>
    %195 = arith.addf %194, %193 : vector<8x256xf32>
    %196 = arith.mulf %185, %195 : vector<8x256xf32>
    %c0_85 = arith.constant 0 : index
    %c0_86 = arith.constant 0 : index
    %c0_87 = arith.constant 0 : index
    %197 = vector.load %arg18[%c0_85, %c0_86, %c0_87] : memref<2x256x64xf32, #tpu.memory_space<vmem>>, vector<1x256x64xf32>
    %198 = vector.shape_cast %197 : vector<1x256x64xf32> to vector<256x64xf32>
    %cst_88 = arith.constant dense<0.000000e+00> : vector<8x64xf32>
    %199 = tpu.matmul %196, %198, %cst_88 {dimension_numbers = #tpu.dot_dimension_numbers<[1], [0], [0], [1], [0, 0, 1, 1], [], []>} : vector<8x256xf32>, vector<256x64xf32>, vector<8x64xf32> -> vector<8x64xf32>
    %200 = arith.addf %116, %199 : vector<8x64xf32>
    %c0_89 = arith.constant 0 : index
    %c0_90 = arith.constant 0 : index
    %c0_91 = arith.constant 0 : index
    %201 = vector.load %arg19[%c0_89, %c0_90, %c0_91] : memref<2x1x64xf32, #tpu.memory_space<vmem>>, vector<1x1x64xf32>
    %202 = vector.shape_cast %201 : vector<1x1x64xf32> to vector<1x64xf32>
    %203 = vector.broadcast %202 : vector<1x64xf32> to vector<8x64xf32>
    %204 = arith.addf %200, %203 : vector<8x64xf32>
    %c1 = arith.constant 1 : index
    %c0_92 = arith.constant 0 : index
    %c0_93 = arith.constant 0 : index
    %205 = vector.load %arg7[%c1, %c0_92, %c0_93] : memref<2x1x64xf32, #tpu.memory_space<vmem>>, vector<1x1x64xf32>
    %206 = vector.shape_cast %205 : vector<1x1x64xf32> to vector<1x64xf32>
    %c1_94 = arith.constant 1 : index
    %c0_95 = arith.constant 0 : index
    %c0_96 = arith.constant 0 : index
    %207 = vector.load %arg8[%c1_94, %c0_95, %c0_96] : memref<2x1x64xf32, #tpu.memory_space<vmem>>, vector<1x1x64xf32>
    %208 = vector.shape_cast %207 : vector<1x1x64xf32> to vector<1x64xf32>
    %cst_97 = arith.constant dense<0.000000e+00> : vector<8xf32>
    %209 = vector.multi_reduction <add>, %204, %cst_97 [1] : vector<8x64xf32> to vector<8xf32>
    %210 = vector.shape_cast %209 : vector<8xf32> to vector<8x1xf32>
    %cst_98 = arith.constant 6.400000e+01 : f32
    %211 = vector.broadcast %cst_98 : f32 to vector<8x1xf32>
    %212 = arith.divf %210, %211 : vector<8x1xf32>
    %213 = vector.broadcast %212 : vector<8x1xf32> to vector<8x64xf32>
    %214 = arith.subf %204, %213 : vector<8x64xf32>
    %215 = arith.mulf %214, %214 : vector<8x64xf32>
    %cst_99 = arith.constant dense<0.000000e+00> : vector<8xf32>
    %216 = vector.multi_reduction <add>, %215, %cst_99 [1] : vector<8x64xf32> to vector<8xf32>
    %217 = vector.shape_cast %216 : vector<8xf32> to vector<8x1xf32>
    %cst_100 = arith.constant 6.400000e+01 : f32
    %218 = vector.broadcast %cst_100 : f32 to vector<8x1xf32>
    %219 = arith.divf %217, %218 : vector<8x1xf32>
    %220 = vector.broadcast %212 : vector<8x1xf32> to vector<8x64xf32>
    %221 = arith.subf %204, %220 : vector<8x64xf32>
    %cst_101 = arith.constant 9.99999974E-6 : f32
    %222 = vector.broadcast %cst_101 : f32 to vector<8x1xf32>
    %223 = arith.addf %219, %222 : vector<8x1xf32>
    %224 = math.rsqrt %223 : vector<8x1xf32>
    %225 = vector.broadcast %224 : vector<8x1xf32> to vector<8x64xf32>
    %226 = arith.mulf %221, %225 : vector<8x64xf32>
    %227 = vector.broadcast %206 : vector<1x64xf32> to vector<8x64xf32>
    %228 = arith.mulf %226, %227 : vector<8x64xf32>
    %229 = vector.broadcast %208 : vector<1x64xf32> to vector<8x64xf32>
    %230 = arith.addf %228, %229 : vector<8x64xf32>
    %c1_102 = arith.constant 1 : index
    %c0_103 = arith.constant 0 : index
    %c0_104 = arith.constant 0 : index
    %231 = vector.load %arg9[%c1_102, %c0_103, %c0_104] : memref<2x64x384xf32, #tpu.memory_space<vmem>>, vector<1x64x384xf32>
    %232 = vector.shape_cast %231 : vector<1x64x384xf32> to vector<64x384xf32>
    %cst_105 = arith.constant dense<0.000000e+00> : vector<8x384xf32>
    %233 = tpu.matmul %230, %232, %cst_105 {dimension_numbers = #tpu.dot_dimension_numbers<[1], [0], [0], [1], [0, 0, 1, 1], [], []>} : vector<8x64xf32>, vector<64x384xf32>, vector<8x384xf32> -> vector<8x384xf32>
    %234 = vector.extract_strided_slice %233 {offsets = [0, 0], sizes = [8, 128], strides = [1, 1]} : vector<8x384xf32> to vector<8x128xf32>
    %235 = vector.extract_strided_slice %233 {offsets = [0, 128], sizes = [8, 128], strides = [1, 1]} : vector<8x384xf32> to vector<8x128xf32>
    %236 = vector.shape_cast %235 : vector<8x128xf32> to vector<1x8x128xf32>
    %237 = vector.extract_strided_slice %233 {offsets = [0, 256], sizes = [8, 128], strides = [1, 1]} : vector<8x384xf32> to vector<8x128xf32>
    %238 = vector.shape_cast %237 : vector<8x128xf32> to vector<1x8x128xf32>
    %cst_106 = arith.constant dense<0.000000e+00> : vector<8x128xf32>
    %239 = tpu.matmul %234, %4, %cst_106 {dimension_numbers = #tpu.dot_dimension_numbers<[1], [0], [0], [1], [0, 0, 1, 1], [], []>} : vector<8x128xf32>, vector<128x128xf32>, vector<8x128xf32> -> vector<8x128xf32>
    %240 = vector.shape_cast %234 : vector<8x128xf32> to vector<1x8x128xf32>
    %241 = vector.shape_cast %239 : vector<8x128xf32> to vector<1x8x128xf32>
    "tpu.trace_start"() <{level = 10 : i32, message = "bic,bjc->bij"}> : () -> ()
    %cst_107 = arith.constant dense<0.000000e+00> : vector<1x8x8xf32>
    %242 = tpu.matmul %150, %150, %cst_107 {dimension_numbers = #tpu.dot_dimension_numbers<[2], [2], [1], [1], [0, 0, 0, 1, 1, 1], [0], [0]>} : vector<1x8x3xf32>, vector<1x8x3xf32>, vector<1x8x8xf32> -> vector<1x8x8xf32>
    "tpu.trace_stop"() : () -> ()
    %243 = arith.mulf %150, %150 : vector<1x8x3xf32>
    %cst_108 = arith.constant dense<0.000000e+00> : vector<1x8xf32>
    %244 = vector.multi_reduction <add>, %243, %cst_108 [2] : vector<1x8x3xf32> to vector<1x8xf32>
    %245 = vector.shape_cast %244 : vector<1x8xf32> to vector<1x8x1xf32>
    %246 = vector.shape_cast %244 : vector<1x8xf32> to vector<1x1x8xf32>
    %247 = vector.broadcast %245 : vector<1x8x1xf32> to vector<1x8x8xf32>
    %248 = vector.broadcast %246 : vector<1x1x8xf32> to vector<1x8x8xf32>
    %249 = arith.addf %247, %248 : vector<1x8x8xf32>
    %cst_109 = arith.constant 2.000000e+00 : f32
    %250 = vector.broadcast %cst_109 : f32 to vector<1x8x8xf32>
    %251 = arith.mulf %250, %242 : vector<1x8x8xf32>
    %252 = arith.subf %249, %251 : vector<1x8x8xf32>
    %cst_110 = arith.constant 1.000000e-16 : f32
    %253 = vector.broadcast %cst_110 : f32 to vector<1x8x8xf32>
    %254 = arith.maximumf %252, %253 : vector<1x8x8xf32>
    %255 = math.rsqrt %254 : vector<1x8x8xf32>
    %256 = arith.mulf %254, %255 : vector<1x8x8xf32>
    %cst_111 = arith.constant 1.000000e+02 : f32
    %257 = vector.broadcast %cst_111 : f32 to vector<1x8x8xf32>
    %258 = arith.mulf %256, %257 : vector<1x8x8xf32>
    %cst_112 = arith.constant 0.000000e+00 : f32
    %cst_113 = arith.constant 5.000000e+03 : f32
    %259 = vector.broadcast %cst_112 : f32 to vector<1x8x8xf32>
    %260 = arith.maximumf %259, %258 : vector<1x8x8xf32>
    %261 = vector.broadcast %cst_113 : f32 to vector<1x8x8xf32>
    %262 = arith.minimumf %261, %260 : vector<1x8x8xf32>
    %263 = vector.shape_cast %262 : vector<1x8x8xf32> to vector<1x8x8x1xf32>
    %264 = vector.broadcast %263 : vector<1x8x8x1xf32> to vector<1x8x8x16xf32>
    %265 = vector.broadcast %7 : vector<1x1x1x16xf32> to vector<1x8x8x16xf32>
    %266 = arith.mulf %264, %265 : vector<1x8x8x16xf32>
    %267 = math.cos %266 : vector<1x8x8x16xf32>
    %268 = vector.shape_cast %267 : vector<1x8x8x16xf32> to vector<64x16xf32>
    %cst_114 = arith.constant dense<0.000000e+00> : vector<64x128xf32>
    %269 = tpu.matmul %268, %5, %cst_114 {dimension_numbers = #tpu.dot_dimension_numbers<[1], [0], [0], [1], [0, 0, 1, 1], [], []>} : vector<64x16xf32>, vector<16x128xf32>, vector<64x128xf32> -> vector<64x128xf32>
    %270 = vector.shape_cast %269 : vector<64x128xf32> to vector<1x8x8x128xf32>
    %271 = math.sin %266 : vector<1x8x8x16xf32>
    %272 = vector.shape_cast %271 : vector<1x8x8x16xf32> to vector<64x16xf32>
    %cst_115 = arith.constant dense<0.000000e+00> : vector<64x128xf32>
    %273 = tpu.matmul %272, %5, %cst_115 {dimension_numbers = #tpu.dot_dimension_numbers<[1], [0], [0], [1], [0, 0, 1, 1], [], []>} : vector<64x16xf32>, vector<16x128xf32>, vector<64x128xf32> -> vector<64x128xf32>
    %274 = vector.shape_cast %273 : vector<64x128xf32> to vector<1x8x8x128xf32>
    %275 = vector.shape_cast %240 : vector<1x8x128xf32> to vector<1x8x1x128xf32>
    %276 = vector.broadcast %275 : vector<1x8x1x128xf32> to vector<1x8x8x128xf32>
    %277 = arith.mulf %276, %270 : vector<1x8x8x128xf32>
    %278 = vector.shape_cast %241 : vector<1x8x128xf32> to vector<1x8x1x128xf32>
    %279 = vector.broadcast %278 : vector<1x8x1x128xf32> to vector<1x8x8x128xf32>
    %280 = arith.mulf %279, %274 : vector<1x8x8x128xf32>
    %281 = arith.addf %277, %280 : vector<1x8x8x128xf32>
    %282 = vector.shape_cast %236 : vector<1x8x128xf32> to vector<1x1x8x128xf32>
    %283 = vector.broadcast %282 : vector<1x1x8x128xf32> to vector<1x8x8x128xf32>
    %284 = arith.mulf %281, %283 : vector<1x8x8x128xf32>
    %285 = vector.shape_cast %284 : vector<1x8x8x128xf32> to vector<64x128xf32>
    %cst_116 = arith.constant dense<0.000000e+00> : vector<64x128xf32>
    %286 = tpu.matmul %285, %3, %cst_116 {dimension_numbers = #tpu.dot_dimension_numbers<[1], [0], [0], [1], [0, 0, 1, 1], [], []>} : vector<64x128xf32>, vector<128x128xf32>, vector<64x128xf32> -> vector<64x128xf32>
    %287 = vector.shape_cast %286 : vector<64x128xf32> to vector<1x8x8x128xf32>
    %cst_117 = arith.constant dense<0xFF800000> : vector<1x8x128xf32>
    %288 = vector.multi_reduction <maximumf>, %287, %cst_117 [2] : vector<1x8x8x128xf32> to vector<1x8x128xf32>
    %289 = vector.shape_cast %288 : vector<1x8x128xf32> to vector<1x8x1x128xf32>
    %290 = vector.broadcast %289 : vector<1x8x1x128xf32> to vector<1x8x8x128xf32>
    %291 = arith.subf %287, %290 : vector<1x8x8x128xf32>
    %292 = math.exp %291 : vector<1x8x8x128xf32>
    %cst_118 = arith.constant dense<0.000000e+00> : vector<1x8x128xf32>
    %293 = vector.multi_reduction <add>, %292, %cst_118 [2] : vector<1x8x8x128xf32> to vector<1x8x128xf32>
    %294 = vector.shape_cast %293 : vector<1x8x128xf32> to vector<1x8x1x128xf32>
    %295 = tpu.reciprocal %294 {approx = true} : vector<1x8x1x128xf32> -> vector<1x8x1x128xf32>
    %296 = vector.broadcast %295 : vector<1x8x1x128xf32> to vector<1x8x8x128xf32>
    %297 = arith.mulf %292, %296 : vector<1x8x8x128xf32>
    %298 = vector.shape_cast %238 : vector<1x8x128xf32> to vector<1x1x8x128xf32>
    %299 = vector.broadcast %298 : vector<1x1x8x128xf32> to vector<1x8x8x128xf32>
    %300 = arith.mulf %297, %299 : vector<1x8x8x128xf32>
    %cst_119 = arith.constant dense<0.000000e+00> : vector<1x8x128xf32>
    %301 = vector.multi_reduction <add>, %300, %cst_119 [2] : vector<1x8x8x128xf32> to vector<1x8x128xf32>
    %302 = vector.shape_cast %301 : vector<1x8x128xf32> to vector<8x128xf32>
    %c1_120 = arith.constant 1 : index
    %c0_121 = arith.constant 0 : index
    %c0_122 = arith.constant 0 : index
    %303 = vector.load %arg10[%c1_120, %c0_121, %c0_122] : memref<2x128x64xf32, #tpu.memory_space<vmem>>, vector<1x128x64xf32>
    %304 = vector.shape_cast %303 : vector<1x128x64xf32> to vector<128x64xf32>
    %cst_123 = arith.constant dense<0.000000e+00> : vector<8x64xf32>
    %305 = tpu.matmul %302, %304, %cst_123 {dimension_numbers = #tpu.dot_dimension_numbers<[1], [0], [0], [1], [0, 0, 1, 1], [], []>} : vector<8x128xf32>, vector<128x64xf32>, vector<8x64xf32> -> vector<8x64xf32>
    %306 = arith.addf %204, %305 : vector<8x64xf32>
    %c1_124 = arith.constant 1 : index
    %c0_125 = arith.constant 0 : index
    %c0_126 = arith.constant 0 : index
    %307 = vector.load %arg11[%c1_124, %c0_125, %c0_126] : memref<2x1x64xf32, #tpu.memory_space<vmem>>, vector<1x1x64xf32>
    %308 = vector.shape_cast %307 : vector<1x1x64xf32> to vector<1x64xf32>
    %309 = vector.broadcast %308 : vector<1x64xf32> to vector<8x64xf32>
    %310 = arith.addf %306, %309 : vector<8x64xf32>
    %311 = vector.shape_cast %287 : vector<1x8x8x128xf32> to vector<64x128xf32>
    %c1_127 = arith.constant 1 : index
    %c0_128 = arith.constant 0 : index
    %c0_129 = arith.constant 0 : index
    %312 = vector.load %arg12[%c1_127, %c0_128, %c0_129] : memref<2x128x16xf32, #tpu.memory_space<vmem>>, vector<1x128x16xf32>
    %313 = vector.shape_cast %312 : vector<1x128x16xf32> to vector<128x16xf32>
    %cst_130 = arith.constant dense<0.000000e+00> : vector<64x16xf32>
    %314 = tpu.matmul %311, %313, %cst_130 {dimension_numbers = #tpu.dot_dimension_numbers<[1], [0], [0], [1], [0, 0, 1, 1], [], []>} : vector<64x128xf32>, vector<128x16xf32>, vector<64x16xf32> -> vector<64x16xf32>
    %cst_131 = arith.constant 5.000000e-01 : f32
    %315 = vector.broadcast %cst_131 : f32 to vector<64x16xf32>
    %316 = arith.mulf %315, %314 : vector<64x16xf32>
    %cst_132 = arith.constant 4.471500e-02 : f32
    %317 = vector.broadcast %cst_132 : f32 to vector<64x16xf32>
    %318 = arith.mulf %317, %314 : vector<64x16xf32>
    %319 = arith.mulf %318, %314 : vector<64x16xf32>
    %320 = arith.mulf %319, %314 : vector<64x16xf32>
    %321 = arith.addf %314, %320 : vector<64x16xf32>
    %cst_133 = arith.constant 0.797884583 : f32
    %322 = vector.broadcast %cst_133 : f32 to vector<64x16xf32>
    %323 = arith.mulf %322, %321 : vector<64x16xf32>
    %324 = math.tanh %323 : vector<64x16xf32>
    %cst_134 = arith.constant 1.000000e+00 : f32
    %325 = vector.broadcast %cst_134 : f32 to vector<64x16xf32>
    %326 = arith.addf %325, %324 : vector<64x16xf32>
    %327 = arith.mulf %316, %326 : vector<64x16xf32>
    %328 = vector.shape_cast %327 : vector<64x16xf32> to vector<1x8x8x16xf32>
    %c1_135 = arith.constant 1 : index
    %c0_136 = arith.constant 0 : index
    %c0_137 = arith.constant 0 : index
    %329 = vector.load %arg13[%c1_135, %c0_136, %c0_137] : memref<2x1x16xf32, #tpu.memory_space<vmem>>, vector<1x1x16xf32>
    %330 = vector.shape_cast %329 : vector<1x1x16xf32> to vector<1x16xf32>
    %331 = vector.shape_cast %330 : vector<1x16xf32> to vector<1x1x1x16xf32>
    %332 = vector.broadcast %331 : vector<1x1x1x16xf32> to vector<1x8x8x16xf32>
    %333 = arith.mulf %328, %332 : vector<1x8x8x16xf32>
    %cst_138 = arith.constant dense<0.000000e+00> : vector<1x8x8xf32>
    %334 = vector.multi_reduction <add>, %333, %cst_138 [3] : vector<1x8x8x16xf32> to vector<1x8x8xf32>
    %335 = arith.mulf %334, %255 : vector<1x8x8xf32>
    %cst_139 = arith.constant 0.000000e+00 : f32
    %336 = vector.broadcast %cst_139 : f32 to vector<1x8x8xf32>
    %337 = arith.select %10, %336, %335 : vector<1x8x8xi1>, vector<1x8x8xf32>
    %cst_140 = arith.constant dense<0.000000e+00> : vector<1x8xf32>
    %338 = vector.multi_reduction <add>, %337, %cst_140 [2] : vector<1x8x8xf32> to vector<1x8xf32>
    %339 = vector.shape_cast %338 : vector<1x8xf32> to vector<1x8x1xf32>
    %340 = vector.broadcast %339 : vector<1x8x1xf32> to vector<1x8x3xf32>
    %341 = arith.mulf %150, %340 : vector<1x8x3xf32>
    %342 = arith.addf %150, %341 : vector<1x8x3xf32>
    "tpu.trace_start"() <{level = 10 : i32, message = "bij,bjc->bic"}> : () -> ()
    %cst_141 = arith.constant dense<0.000000e+00> : vector<1x8x3xf32>
    %343 = tpu.matmul %337, %150, %cst_141 {dimension_numbers = #tpu.dot_dimension_numbers<[2], [1], [1], [2], [0, 0, 0, 1, 1, 2], [0], [0]>} : vector<1x8x8xf32>, vector<1x8x3xf32>, vector<1x8x3xf32> -> vector<1x8x3xf32>
    "tpu.trace_stop"() : () -> ()
    %344 = arith.subf %342, %343 : vector<1x8x3xf32>
    %c1_142 = arith.constant 1 : index
    %c0_143 = arith.constant 0 : index
    %c0_144 = arith.constant 0 : index
    %345 = vector.load %arg14[%c1_142, %c0_143, %c0_144] : memref<2x1x64xf32, #tpu.memory_space<vmem>>, vector<1x1x64xf32>
    %346 = vector.shape_cast %345 : vector<1x1x64xf32> to vector<1x64xf32>
    %c1_145 = arith.constant 1 : index
    %c0_146 = arith.constant 0 : index
    %c0_147 = arith.constant 0 : index
    %347 = vector.load %arg15[%c1_145, %c0_146, %c0_147] : memref<2x1x64xf32, #tpu.memory_space<vmem>>, vector<1x1x64xf32>
    %348 = vector.shape_cast %347 : vector<1x1x64xf32> to vector<1x64xf32>
    %cst_148 = arith.constant dense<0.000000e+00> : vector<8xf32>
    %349 = vector.multi_reduction <add>, %310, %cst_148 [1] : vector<8x64xf32> to vector<8xf32>
    %350 = vector.shape_cast %349 : vector<8xf32> to vector<8x1xf32>
    %cst_149 = arith.constant 6.400000e+01 : f32
    %351 = vector.broadcast %cst_149 : f32 to vector<8x1xf32>
    %352 = arith.divf %350, %351 : vector<8x1xf32>
    %353 = vector.broadcast %352 : vector<8x1xf32> to vector<8x64xf32>
    %354 = arith.subf %310, %353 : vector<8x64xf32>
    %355 = arith.mulf %354, %354 : vector<8x64xf32>
    %cst_150 = arith.constant dense<0.000000e+00> : vector<8xf32>
    %356 = vector.multi_reduction <add>, %355, %cst_150 [1] : vector<8x64xf32> to vector<8xf32>
    %357 = vector.shape_cast %356 : vector<8xf32> to vector<8x1xf32>
    %cst_151 = arith.constant 6.400000e+01 : f32
    %358 = vector.broadcast %cst_151 : f32 to vector<8x1xf32>
    %359 = arith.divf %357, %358 : vector<8x1xf32>
    %360 = vector.broadcast %352 : vector<8x1xf32> to vector<8x64xf32>
    %361 = arith.subf %310, %360 : vector<8x64xf32>
    %cst_152 = arith.constant 9.99999974E-6 : f32
    %362 = vector.broadcast %cst_152 : f32 to vector<8x1xf32>
    %363 = arith.addf %359, %362 : vector<8x1xf32>
    %364 = math.rsqrt %363 : vector<8x1xf32>
    %365 = vector.broadcast %364 : vector<8x1xf32> to vector<8x64xf32>
    %366 = arith.mulf %361, %365 : vector<8x64xf32>
    %367 = vector.broadcast %346 : vector<1x64xf32> to vector<8x64xf32>
    %368 = arith.mulf %366, %367 : vector<8x64xf32>
    %369 = vector.broadcast %348 : vector<1x64xf32> to vector<8x64xf32>
    %370 = arith.addf %368, %369 : vector<8x64xf32>
    %c1_153 = arith.constant 1 : index
    %c0_154 = arith.constant 0 : index
    %c0_155 = arith.constant 0 : index
    %371 = vector.load %arg16[%c1_153, %c0_154, %c0_155] : memref<2x64x256xf32, #tpu.memory_space<vmem>>, vector<1x64x256xf32>
    %372 = vector.shape_cast %371 : vector<1x64x256xf32> to vector<64x256xf32>
    %cst_156 = arith.constant dense<0.000000e+00> : vector<8x256xf32>
    %373 = tpu.matmul %370, %372, %cst_156 {dimension_numbers = #tpu.dot_dimension_numbers<[1], [0], [0], [1], [0, 0, 1, 1], [], []>} : vector<8x64xf32>, vector<64x256xf32>, vector<8x256xf32> -> vector<8x256xf32>
    %c1_157 = arith.constant 1 : index
    %c0_158 = arith.constant 0 : index
    %c0_159 = arith.constant 0 : index
    %374 = vector.load %arg17[%c1_157, %c0_158, %c0_159] : memref<2x1x256xf32, #tpu.memory_space<vmem>>, vector<1x1x256xf32>
    %375 = vector.shape_cast %374 : vector<1x1x256xf32> to vector<1x256xf32>
    %376 = vector.broadcast %375 : vector<1x256xf32> to vector<8x256xf32>
    %377 = arith.addf %373, %376 : vector<8x256xf32>
    %cst_160 = arith.constant 5.000000e-01 : f32
    %378 = vector.broadcast %cst_160 : f32 to vector<8x256xf32>
    %379 = arith.mulf %378, %377 : vector<8x256xf32>
    %cst_161 = arith.constant 4.471500e-02 : f32
    %380 = vector.broadcast %cst_161 : f32 to vector<8x256xf32>
    %381 = arith.mulf %380, %377 : vector<8x256xf32>
    %382 = arith.mulf %381, %377 : vector<8x256xf32>
    %383 = arith.mulf %382, %377 : vector<8x256xf32>
    %384 = arith.addf %377, %383 : vector<8x256xf32>
    %cst_162 = arith.constant 0.797884583 : f32
    %385 = vector.broadcast %cst_162 : f32 to vector<8x256xf32>
    %386 = arith.mulf %385, %384 : vector<8x256xf32>
    %387 = math.tanh %386 : vector<8x256xf32>
    %cst_163 = arith.constant 1.000000e+00 : f32
    %388 = vector.broadcast %cst_163 : f32 to vector<8x256xf32>
    %389 = arith.addf %388, %387 : vector<8x256xf32>
    %390 = arith.mulf %379, %389 : vector<8x256xf32>
    %c1_164 = arith.constant 1 : index
    %c0_165 = arith.constant 0 : index
    %c0_166 = arith.constant 0 : index
    %391 = vector.load %arg18[%c1_164, %c0_165, %c0_166] : memref<2x256x64xf32, #tpu.memory_space<vmem>>, vector<1x256x64xf32>
    %392 = vector.shape_cast %391 : vector<1x256x64xf32> to vector<256x64xf32>
    %cst_167 = arith.constant dense<0.000000e+00> : vector<8x64xf32>
    %393 = tpu.matmul %390, %392, %cst_167 {dimension_numbers = #tpu.dot_dimension_numbers<[1], [0], [0], [1], [0, 0, 1, 1], [], []>} : vector<8x256xf32>, vector<256x64xf32>, vector<8x64xf32> -> vector<8x64xf32>
    %394 = arith.addf %310, %393 : vector<8x64xf32>
    %c1_168 = arith.constant 1 : index
    %c0_169 = arith.constant 0 : index
    %c0_170 = arith.constant 0 : index
    %395 = vector.load %arg19[%c1_168, %c0_169, %c0_170] : memref<2x1x64xf32, #tpu.memory_space<vmem>>, vector<1x1x64xf32>
    %396 = vector.shape_cast %395 : vector<1x1x64xf32> to vector<1x64xf32>
    %397 = vector.broadcast %396 : vector<1x64xf32> to vector<8x64xf32>
    %398 = arith.addf %394, %397 : vector<8x64xf32>
    %399 = vector.shape_cast %398 : vector<8x64xf32> to vector<1x8x64xf32>
    %c0_171 = arith.constant 0 : index
    %c0_172 = arith.constant 0 : index
    %c0_173 = arith.constant 0 : index
    %400 = vector.load %arg20[%c0_171, %c0_172, %c0_173] : memref<1x8x64xf32, #tpu.memory_space<vmem>>, vector<1x8x64xf32>
    tpu.vector_store %arg20[%c0_171, %c0_172, %c0_173], %399 {strides = array<i32>} : memref<1x8x64xf32, #tpu.memory_space<vmem>>, vector<1x8x64xf32>,
    %c0_174 = arith.constant 0 : index
    %c0_175 = arith.constant 0 : index
    %c0_176 = arith.constant 0 : index
    %401 = vector.load %arg21[%c0_174, %c0_175, %c0_176] : memref<1x8x3xf32, #tpu.memory_space<vmem>>, vector<1x8x3xf32>
    tpu.vector_store %arg21[%c0_174, %c0_175, %c0_176], %344 {strides = array<i32>} : memref<1x8x3xf32, #tpu.memory_space<vmem>>, vector<1x8x3xf32>,
    return
  }
  func.func @transform_0(%arg0: i32) -> (i32, i32, i32) {
    %c0_i32 = arith.constant 0 : i32
    %c0_i32_0 = arith.constant 0 : i32
    %c0_i32_1 = arith.constant 0 : i32
    return %arg0, %c0_i32, %c0_i32_0 : i32, i32, i32
  }
  func.func @transform_1(%arg0: i32) -> (i32, i32, i32) {
    %c0_i32 = arith.constant 0 : i32
    %c0_i32_0 = arith.constant 0 : i32
    %c0_i32_1 = arith.constant 0 : i32
    return %arg0, %c0_i32, %c0_i32_0 : i32, i32, i32
  }
  func.func @transform_2(%arg0: i32) -> (i32, i32) {
    %c0_i32 = arith.constant 0 : i32
    %c0_i32_0 = arith.constant 0 : i32
    %c0_i32_1 = arith.constant 0 : i32
    return %c0_i32, %c0_i32_0 : i32, i32
  }
  func.func @transform_3(%arg0: i32) -> (i32, i32) {
    %c0_i32 = arith.constant 0 : i32
    %c0_i32_0 = arith.constant 0 : i32
    %c0_i32_1 = arith.constant 0 : i32
    return %c0_i32, %c0_i32_0 : i32, i32
  }
  func.func @transform_4(%arg0: i32) -> (i32, i32) {
    %c0_i32 = arith.constant 0 : i32
    %c0_i32_0 = arith.constant 0 : i32
    %c0_i32_1 = arith.constant 0 : i32
    return %c0_i32, %c0_i32_0 : i32, i32
  }
  func.func @transform_5(%arg0: i32) -> (i32, i32) {
    %c0_i32 = arith.constant 0 : i32
    %c0_i32_0 = arith.constant 0 : i32
    %c0_i32_1 = arith.constant 0 : i32
    return %c0_i32, %c0_i32_0 : i32, i32
  }
  func.func @transform_6(%arg0: i32) -> (i32, i32, i32) {
    %c0_i32 = arith.constant 0 : i32
    %c0_i32_0 = arith.constant 0 : i32
    %c0_i32_1 = arith.constant 0 : i32
    %c0_i32_2 = arith.constant 0 : i32
    return %c0_i32, %c0_i32_0, %c0_i32_1 : i32, i32, i32
  }
  func.func @transform_7(%arg0: i32) -> (i32, i32, i32) {
    %c0_i32 = arith.constant 0 : i32
    %c0_i32_0 = arith.constant 0 : i32
    %c0_i32_1 = arith.constant 0 : i32
    %c0_i32_2 = arith.constant 0 : i32
    return %c0_i32, %c0_i32_0, %c0_i32_1 : i32, i32, i32
  }
  func.func @transform_8(%arg0: i32) -> (i32, i32, i32) {
    %c0_i32 = arith.constant 0 : i32
    %c0_i32_0 = arith.constant 0 : i32
    %c0_i32_1 = arith.constant 0 : i32
    %c0_i32_2 = arith.constant 0 : i32
    return %c0_i32, %c0_i32_0, %c0_i32_1 : i32, i32, i32
  }
  func.func @transform_9(%arg0: i32) -> (i32, i32, i32) {
    %c0_i32 = arith.constant 0 : i32
    %c0_i32_0 = arith.constant 0 : i32
    %c0_i32_1 = arith.constant 0 : i32
    %c0_i32_2 = arith.constant 0 : i32
    return %c0_i32, %c0_i32_0, %c0_i32_1 : i32, i32, i32
  }
  func.func @transform_10(%arg0: i32) -> (i32, i32, i32) {
    %c0_i32 = arith.constant 0 : i32
    %c0_i32_0 = arith.constant 0 : i32
    %c0_i32_1 = arith.constant 0 : i32
    %c0_i32_2 = arith.constant 0 : i32
    return %c0_i32, %c0_i32_0, %c0_i32_1 : i32, i32, i32
  }
  func.func @transform_11(%arg0: i32) -> (i32, i32, i32) {
    %c0_i32 = arith.constant 0 : i32
    %c0_i32_0 = arith.constant 0 : i32
    %c0_i32_1 = arith.constant 0 : i32
    %c0_i32_2 = arith.constant 0 : i32
    return %c0_i32, %c0_i32_0, %c0_i32_1 : i32, i32, i32
  }
  func.func @transform_12(%arg0: i32) -> (i32, i32, i32) {
    %c0_i32 = arith.constant 0 : i32
    %c0_i32_0 = arith.constant 0 : i32
    %c0_i32_1 = arith.constant 0 : i32
    %c0_i32_2 = arith.constant 0 : i32
    return %c0_i32, %c0_i32_0, %c0_i32_1 : i32, i32, i32
  }
  func.func @transform_13(%arg0: i32) -> (i32, i32, i32) {
    %c0_i32 = arith.constant 0 : i32
    %c0_i32_0 = arith.constant 0 : i32
    %c0_i32_1 = arith.constant 0 : i32
    %c0_i32_2 = arith.constant 0 : i32
    return %c0_i32, %c0_i32_0, %c0_i32_1 : i32, i32, i32
  }
  func.func @transform_14(%arg0: i32) -> (i32, i32, i32) {
    %c0_i32 = arith.constant 0 : i32
    %c0_i32_0 = arith.constant 0 : i32
    %c0_i32_1 = arith.constant 0 : i32
    %c0_i32_2 = arith.constant 0 : i32
    return %c0_i32, %c0_i32_0, %c0_i32_1 : i32, i32, i32
  }
  func.func @transform_15(%arg0: i32) -> (i32, i32, i32) {
    %c0_i32 = arith.constant 0 : i32
    %c0_i32_0 = arith.constant 0 : i32
    %c0_i32_1 = arith.constant 0 : i32
    %c0_i32_2 = arith.constant 0 : i32
    return %c0_i32, %c0_i32_0, %c0_i32_1 : i32, i32, i32
  }
  func.func @transform_16(%arg0: i32) -> (i32, i32, i32) {
    %c0_i32 = arith.constant 0 : i32
    %c0_i32_0 = arith.constant 0 : i32
    %c0_i32_1 = arith.constant 0 : i32
    %c0_i32_2 = arith.constant 0 : i32
    return %c0_i32, %c0_i32_0, %c0_i32_1 : i32, i32, i32
  }
  func.func @transform_17(%arg0: i32) -> (i32, i32, i32) {
    %c0_i32 = arith.constant 0 : i32
    %c0_i32_0 = arith.constant 0 : i32
    %c0_i32_1 = arith.constant 0 : i32
    %c0_i32_2 = arith.constant 0 : i32
    return %c0_i32, %c0_i32_0, %c0_i32_1 : i32, i32, i32
  }
  func.func @transform_18(%arg0: i32) -> (i32, i32, i32) {
    %c0_i32 = arith.constant 0 : i32
    %c0_i32_0 = arith.constant 0 : i32
    %c0_i32_1 = arith.constant 0 : i32
    %c0_i32_2 = arith.constant 0 : i32
    return %c0_i32, %c0_i32_0, %c0_i32_1 : i32, i32, i32
  }
  func.func @transform_19(%arg0: i32) -> (i32, i32, i32) {
    %c0_i32 = arith.constant 0 : i32
    %c0_i32_0 = arith.constant 0 : i32
    %c0_i32_1 = arith.constant 0 : i32
    return %arg0, %c0_i32, %c0_i32_0 : i32, i32, i32
  }
  func.func @transform_20(%arg0: i32) -> (i32, i32, i32) {
    %c0_i32 = arith.constant 0 : i32
    %c0_i32_0 = arith.constant 0 : i32
    %c0_i32_1 = arith.constant 0 : i32
    return %arg0, %c0_i32, %c0_i32_0 : i32, i32, i32
  }
}

</mosaic_0001>

<llo_original>
// kernel: tpu_custom_call.1
$region0: #{tpu_custom_call.1}
  #allocation0 [shape = 'u32[]', space=smem, size = 0x4, offset = 0x4, fixed_abs, tag = 'smem constant byte address 0x4 - core index']
  #allocation1 [shape = 'u32[144,128]{1,0:T(1,128)}', space=vmem, size = 0x12000, scoped, tag = 'internal scratch']
  %s0 = inlined_call_operand.vmem [shape: f32[2,8,64], index: 0, kind: input, shape index: {}]
  %s1 = inlined_call_operand.vmem [shape: f32[2,8,3], index: 1, kind: input, shape index: {}]
  %s2 = inlined_call_operand.vmem [shape: f32[128,128], index: 2, kind: input, shape index: {}]
  %s3 = inlined_call_operand.vmem [shape: f32[128,128], index: 3, kind: input, shape index: {}]
  %s4 = inlined_call_operand.vmem [shape: f32[16,128], index: 4, kind: input, shape index: {}]
  %s5 = inlined_call_operand.vmem [shape: f32[1,16], index: 5, kind: input, shape index: {}]
  %s6 = inlined_call_operand.vmem [shape: f32[2,1,64], index: 6, kind: input, shape index: {}]
  %s7 = inlined_call_operand.vmem [shape: f32[2,1,64], index: 7, kind: input, shape index: {}]
  %s8 = inlined_call_operand.vmem [shape: f32[2,64,384], index: 8, kind: input, shape index: {}]
  %s9 = inlined_call_operand.vmem [shape: f32[2,128,64], index: 9, kind: input, shape index: {}]
  %s10 = inlined_call_operand.vmem [shape: f32[2,1,64], index: 10, kind: input, shape index: {}]
  %s11 = inlined_call_operand.vmem [shape: f32[2,128,16], index: 11, kind: input, shape index: {}]
  %s12 = inlined_call_operand.vmem [shape: f32[2,1,16], index: 12, kind: input, shape index: {}]
  %s13 = inlined_call_operand.vmem [shape: f32[2,1,64], index: 13, kind: input, shape index: {}]
  %s14 = inlined_call_operand.vmem [shape: f32[2,1,64], index: 14, kind: input, shape index: {}]
  %s15 = inlined_call_operand.vmem [shape: f32[2,64,256], index: 15, kind: input, shape index: {}]
  %s16 = inlined_call_operand.vmem [shape: f32[2,1,256], index: 16, kind: input, shape index: {}]
  %s17 = inlined_call_operand.vmem [shape: f32[2,256,64], index: 17, kind: input, shape index: {}]
  %s18 = inlined_call_operand.vmem [shape: f32[2,1,64], index: 18, kind: input, shape index: {}]
  %s19 = inlined_call_operand.hbm [shape: f32[2,8,64], index: 19, kind: output, shape index: {0}]
  %s20 = inlined_call_operand.vmem [shape: f32[2,8,3], index: 20, kind: output, shape index: {1}]
  %21 = xla_tuple %s19, %s20
  %s22 = sld [smem:[#allocation0]]
  $region117: #{tpu_custom_call.1} parent=0
    _
  %s24 = ssub.s32 1, %s22
  %s25 = scalar_select 0, %s24, %s22
  $region1: #{tpu_custom_call.1} parent=0
    #allocation2 [shape = 'u8[8192]{0}', space=vmem, size = 0x2000, scoped, tag = 'output window, operand 0']
    #allocation3 [shape = 's32[2]{0}', space=sflag, size = 0x8, scoped, tag = 'scoped memory for tpu_custom_call.1']
    %26 = vsyncpa [#allocation3], 0
    %s27 = scalar_lea.sflag [#allocation3], 1
    %28 = vsyncpa %s27, 0
    loop: start=0, step=1, limit=4
    $region2: #{tpu_custom_call.1} parent=1 // loop_pre_header
      _
    $region3: #{tpu_custom_call.1} parent=1 // loop_header
      %s30 = sphi 0, %s34
      %p31 = scmp.ge.s32.totalorder %s30, 4
      %s40 = sphi 0, %s42
      %s43 = sphi 0, %s40
      %s44 = sphi 0, %s43
      %s60 = sphi 0, %s44
      %s66 = sphi 0, %s68
      %s69 = sphi 0, %s66
      %s70 = sphi 0, %s69
      %s86 = sphi 0, %s70
      %s90 = sphi 0, %s90
      %s92 = sphi 0, %s90
      %s93 = sphi 0, %s92
      %s107 = sphi 0, %s93
      %s111 = sphi 0, %s111
      %s113 = sphi 0, %s111
      %s114 = sphi 0, %s113
      %s128 = sphi 0, %s114
      %s132 = sphi 0, %s132
      %s134 = sphi 0, %s132
      %s135 = sphi 0, %s134
      %s149 = sphi 0, %s135
      %s153 = sphi 0, %s153
      %s155 = sphi 0, %s153
      %s156 = sphi 0, %s155
      %s170 = sphi 0, %s156
      %s174 = sphi 0, %s174
      %s176 = sphi 0, %s174
      %s177 = sphi 0, %s176
      %s191 = sphi 0, %s177
      %s195 = sphi 0, %s195
      %s197 = sphi 0, %s195
      %s198 = sphi 0, %s197
      %s212 = sphi 0, %s198
      %s216 = sphi 0, %s216
      %s218 = sphi 0, %s216
      %s219 = sphi 0, %s218
      %s233 = sphi 0, %s219
      %s237 = sphi 0, %s237
      %s239 = sphi 0, %s237
      %s240 = sphi 0, %s239
      %s254 = sphi 0, %s240
      %s258 = sphi 0, %s258
      %s260 = sphi 0, %s258
      %s261 = sphi 0, %s260
      %s275 = sphi 0, %s261
      %s279 = sphi 0, %s279
      %s281 = sphi 0, %s279
      %s282 = sphi 0, %s281
      %s296 = sphi 0, %s282
      %s300 = sphi 0, %s300
      %s302 = sphi 0, %s300
      %s303 = sphi 0, %s302
      %s317 = sphi 0, %s303
      %s321 = sphi 0, %s321
      %s323 = sphi 0, %s321
      %s324 = sphi 0, %s323
      %s338 = sphi 0, %s324
      %s342 = sphi 0, %s342
      %s344 = sphi 0, %s342
      %s345 = sphi 0, %s344
      %s359 = sphi 0, %s345
      %s363 = sphi 0, %s363
      %s365 = sphi 0, %s363
      %s366 = sphi 0, %s365
      %s380 = sphi 0, %s366
      %s384 = sphi 0, %s384
      %s386 = sphi 0, %s384
      %s387 = sphi 0, %s386
      %s401 = sphi 0, %s387
      %s405 = sphi 0, %s405
      %s407 = sphi 0, %s405
      %s408 = sphi 0, %s407
      %s422 = sphi 0, %s408
      %s426 = sphi 0, %s426
      %s428 = sphi 0, %s426
      %s429 = sphi 0, %s428
      %s443 = sphi 0, %s429
      %s449 = sphi 0, %s451
      %s452 = sphi 0, %s449
      %s453 = sphi 0, %s452
      %s469 = sphi 0, %s453
      %s475 = sphi 0, %s477
      %s478 = sphi 0, %s475
      %s479 = sphi 0, %s478
      %s495 = sphi 0, %s479
    $region4: #{tpu_custom_call.1} parent=1 // loop_header_branch
      %33 = sbr.rel (%p31) target = $region8
    $region5: #{tpu_custom_call.1} parent=1 // loop_body
      %s35 = ssub.s32 %s30, 1
      %s36 = ssub.s32 %s30, 2
      %s37 = sadd.s32 %s30, 1
      %s38 = ssub.s32 %s30, %s37
      %p39 = scmp.eq.s32.totalorder %s38, 0
      %s41 = sadd.s32 %s40, 1
      %s42 = scalar_select %p39, %s40, %s41
      %p45 = pneg %p39
      %p46 = scmp.eq.s32.totalorder %s30, 1
      %p47 = por %p45, %p46
      %p48 = scmp.ne.s32.totalorder %s40, %s43
      %p49 = scmp.eq.s32.totalorder %s30, 0
      %p50 = por %p48, %p49
      %p51 = scmp.ne.s32.totalorder %s40, %s43
      %p52 = scmp.eq.s32.totalorder %s35, 1
      %p53 = por %p51, %p52
      %p54 = scmp.ne.s32.totalorder %s43, %s44
      %p55 = scmp.eq.s32.totalorder %s35, 0
      %p56 = por %p54, %p55
      %p57 = scmp.ne.s32.totalorder %s43, %s44
      %p58 = scmp.eq.s32.totalorder %s36, 1
      %p59 = por %p57, %p58
      %p61 = scmp.ne.s32.totalorder %s44, %s60
      %p62 = scmp.eq.s32.totalorder %s36, 0
      %p63 = por %p61, %p62
      %s64 = ssub.s32 %s30, %s37
      %p65 = scmp.eq.s32.totalorder %s64, 0
      %s67 = sadd.s32 %s66, 1
      %s68 = scalar_select %p65, %s66, %s67
      %p71 = pneg %p65
      %p72 = scmp.eq.s32.totalorder %s30, 1
      %p73 = por %p71, %p72
      %p74 = scmp.ne.s32.totalorder %s66, %s69
      %p75 = scmp.eq.s32.totalorder %s30, 0
      %p76 = por %p74, %p75
      %p77 = scmp.ne.s32.totalorder %s66, %s69
      %p78 = scmp.eq.s32.totalorder %s35, 1
      %p79 = por %p77, %p78
      %p80 = scmp.ne.s32.totalorder %s69, %s70
      %p81 = scmp.eq.s32.totalorder %s35, 0
      %p82 = por %p80, %p81
      %p83 = scmp.ne.s32.totalorder %s69, %s70
      %p84 = scmp.eq.s32.totalorder %s36, 1
      %p85 = por %p83, %p84
      %p87 = scmp.ne.s32.totalorder %s70, %s86
      %p88 = scmp.eq.s32.totalorder %s36, 0
      %p89 = por %p87, %p88
      %s91 = sadd.s32 %s90, 1
      %p94 = scmp.eq.s32.totalorder %s30, 1
      %p95 = scmp.ne.s32.totalorder %s90, %s92
      %p96 = scmp.eq.s32.totalorder %s30, 0
      %p97 = por %p95, %p96
      %p98 = scmp.ne.s32.totalorder %s90, %s92
      %p99 = scmp.eq.s32.totalorder %s35, 1
      %p100 = por %p98, %p99
      %p101 = scmp.ne.s32.totalorder %s92, %s93
      %p102 = scmp.eq.s32.totalorder %s35, 0
      %p103 = por %p101, %p102
      %p104 = scmp.ne.s32.totalorder %s92, %s93
      %p105 = scmp.eq.s32.totalorder %s36, 1
      %p106 = por %p104, %p105
      %p108 = scmp.ne.s32.totalorder %s93, %s107
      %p109 = scmp.eq.s32.totalorder %s36, 0
      %p110 = por %p108, %p109
      %s112 = sadd.s32 %s111, 1
      %p115 = scmp.eq.s32.totalorder %s30, 1
      %p116 = scmp.ne.s32.totalorder %s111, %s113
      %p117 = scmp.eq.s32.totalorder %s30, 0
      %p118 = por %p116, %p117
      %p119 = scmp.ne.s32.totalorder %s111, %s113
      %p120 = scmp.eq.s32.totalorder %s35, 1
      %p121 = por %p119, %p120
      %p122 = scmp.ne.s32.totalorder %s113, %s114
      %p123 = scmp.eq.s32.totalorder %s35, 0
      %p124 = por %p122, %p123
      %p125 = scmp.ne.s32.totalorder %s113, %s114
      %p126 = scmp.eq.s32.totalorder %s36, 1
      %p127 = por %p125, %p126
      %p129 = scmp.ne.s32.totalorder %s114, %s128
      %p130 = scmp.eq.s32.totalorder %s36, 0
      %p131 = por %p129, %p130
      %s133 = sadd.s32 %s132, 1
      %p136 = scmp.eq.s32.totalorder %s30, 1
      %p137 = scmp.ne.s32.totalorder %s132, %s134
      %p138 = scmp.eq.s32.totalorder %s30, 0
      %p139 = por %p137, %p138
      %p140 = scmp.ne.s32.totalorder %s132, %s134
      %p141 = scmp.eq.s32.totalorder %s35, 1
      %p142 = por %p140, %p141
      %p143 = scmp.ne.s32.totalorder %s134, %s135
      %p144 = scmp.eq.s32.totalorder %s35, 0
      %p145 = por %p143, %p144
      %p146 = scmp.ne.s32.totalorder %s134, %s135
      %p147 = scmp.eq.s32.totalorder %s36, 1
      %p148 = por %p146, %p147
      %p150 = scmp.ne.s32.totalorder %s135, %s149
      %p151 = scmp.eq.s32.totalorder %s36, 0
      %p152 = por %p150, %p151
      %s154 = sadd.s32 %s153, 1
      %p157 = scmp.eq.s32.totalorder %s30, 1
      %p158 = scmp.ne.s32.totalorder %s153, %s155
      %p159 = scmp.eq.s32.totalorder %s30, 0
      %p160 = por %p158, %p159
      %p161 = scmp.ne.s32.totalorder %s153, %s155
      %p162 = scmp.eq.s32.totalorder %s35, 1
      %p163 = por %p161, %p162
      %p164 = scmp.ne.s32.totalorder %s155, %s156
      %p165 = scmp.eq.s32.totalorder %s35, 0
      %p166 = por %p164, %p165
      %p167 = scmp.ne.s32.totalorder %s155, %s156
      %p168 = scmp.eq.s32.totalorder %s36, 1
      %p169 = por %p167, %p168
      %p171 = scmp.ne.s32.totalorder %s156, %s170
      %p172 = scmp.eq.s32.totalorder %s36, 0
      %p173 = por %p171, %p172
      %s175 = sadd.s32 %s174, 1
      %p178 = scmp.eq.s32.totalorder %s30, 1
      %p179 = scmp.ne.s32.totalorder %s174, %s176
      %p180 = scmp.eq.s32.totalorder %s30, 0
      %p181 = por %p179, %p180
      %p182 = scmp.ne.s32.totalorder %s174, %s176
      %p183 = scmp.eq.s32.totalorder %s35, 1
      %p184 = por %p182, %p183
      %p185 = scmp.ne.s32.totalorder %s176, %s177
      %p186 = scmp.eq.s32.totalorder %s35, 0
      %p187 = por %p185, %p186
      %p188 = scmp.ne.s32.totalorder %s176, %s177
      %p189 = scmp.eq.s32.totalorder %s36, 1
      %p190 = por %p188, %p189
      %p192 = scmp.ne.s32.totalorder %s177, %s191
      %p193 = scmp.eq.s32.totalorder %s36, 0
      %p194 = por %p192, %p193
      %s196 = sadd.s32 %s195, 1
      %p199 = scmp.eq.s32.totalorder %s30, 1
      %p200 = scmp.ne.s32.totalorder %s195, %s197
      %p201 = scmp.eq.s32.totalorder %s30, 0
      %p202 = por %p200, %p201
      %p203 = scmp.ne.s32.totalorder %s195, %s197
      %p204 = scmp.eq.s32.totalorder %s35, 1
      %p205 = por %p203, %p204
      %p206 = scmp.ne.s32.totalorder %s197, %s198
      %p207 = scmp.eq.s32.totalorder %s35, 0
      %p208 = por %p206, %p207
      %p209 = scmp.ne.s32.totalorder %s197, %s198
      %p210 = scmp.eq.s32.totalorder %s36, 1
      %p211 = por %p209, %p210
      %p213 = scmp.ne.s32.totalorder %s198, %s212
      %p214 = scmp.eq.s32.totalorder %s36, 0
      %p215 = por %p213, %p214
      %s217 = sadd.s32 %s216, 1
      %p220 = scmp.eq.s32.totalorder %s30, 1
      %p221 = scmp.ne.s32.totalorder %s216, %s218
      %p222 = scmp.eq.s32.totalorder %s30, 0
      %p223 = por %p221, %p222
      %p224 = scmp.ne.s32.totalorder %s216, %s218
      %p225 = scmp.eq.s32.totalorder %s35, 1
      %p226 = por %p224, %p225
      %p227 = scmp.ne.s32.totalorder %s218, %s219
      %p228 = scmp.eq.s32.totalorder %s35, 0
      %p229 = por %p227, %p228
      %p230 = scmp.ne.s32.totalorder %s218, %s219
      %p231 = scmp.eq.s32.totalorder %s36, 1
      %p232 = por %p230, %p231
      %p234 = scmp.ne.s32.totalorder %s219, %s233
      %p235 = scmp.eq.s32.totalorder %s36, 0
      %p236 = por %p234, %p235
      %s238 = sadd.s32 %s237, 1
      %p241 = scmp.eq.s32.totalorder %s30, 1
      %p242 = scmp.ne.s32.totalorder %s237, %s239
      %p243 = scmp.eq.s32.totalorder %s30, 0
      %p244 = por %p242, %p243
      %p245 = scmp.ne.s32.totalorder %s237, %s239
      %p246 = scmp.eq.s32.totalorder %s35, 1
      %p247 = por %p245, %p246
      %p248 = scmp.ne.s32.totalorder %s239, %s240
      %p249 = scmp.eq.s32.totalorder %s35, 0
      %p250 = por %p248, %p249
      %p251 = scmp.ne.s32.totalorder %s239, %s240
      %p252 = scmp.eq.s32.totalorder %s36, 1
      %p253 = por %p251, %p252
      %p255 = scmp.ne.s32.totalorder %s240, %s254
      %p256 = scmp.eq.s32.totalorder %s36, 0
      %p257 = por %p255, %p256
      %s259 = sadd.s32 %s258, 1
      %p262 = scmp.eq.s32.totalorder %s30, 1
      %p263 = scmp.ne.s32.totalorder %s258, %s260
      %p264 = scmp.eq.s32.totalorder %s30, 0
      %p265 = por %p263, %p264
      %p266 = scmp.ne.s32.totalorder %s258, %s260
      %p267 = scmp.eq.s32.totalorder %s35, 1
      %p268 = por %p266, %p267
      %p269 = scmp.ne.s32.totalorder %s260, %s261
      %p270 = scmp.eq.s32.totalorder %s35, 0
      %p271 = por %p269, %p270
      %p272 = scmp.ne.s32.totalorder %s260, %s261
      %p273 = scmp.eq.s32.totalorder %s36, 1
      %p274 = por %p272, %p273
      %p276 = scmp.ne.s32.totalorder %s261, %s275
      %p277 = scmp.eq.s32.totalorder %s36, 0
      %p278 = por %p276, %p277
      %s280 = sadd.s32 %s279, 1
      %p283 = scmp.eq.s32.totalorder %s30, 1
      %p284 = scmp.ne.s32.totalorder %s279, %s281
      %p285 = scmp.eq.s32.totalorder %s30, 0
      %p286 = por %p284, %p285
      %p287 = scmp.ne.s32.totalorder %s279, %s281
      %p288 = scmp.eq.s32.totalorder %s35, 1
      %p289 = por %p287, %p288
      %p290 = scmp.ne.s32.totalorder %s281, %s282
      %p291 = scmp.eq.s32.totalorder %s35, 0
      %p292 = por %p290, %p291
      %p293 = scmp.ne.s32.totalorder %s281, %s282
      %p294 = scmp.eq.s32.totalorder %s36, 1
      %p295 = por %p293, %p294
      %p297 = scmp.ne.s32.totalorder %s282, %s296
      %p298 = scmp.eq.s32.totalorder %s36, 0
      %p299 = por %p297, %p298
      %s301 = sadd.s32 %s300, 1
      %p304 = scmp.eq.s32.totalorder %s30, 1
      %p305 = scmp.ne.s32.totalorder %s300, %s302
      %p306 = scmp.eq.s32.totalorder %s30, 0
      %p307 = por %p305, %p306
      %p308 = scmp.ne.s32.totalorder %s300, %s302
      %p309 = scmp.eq.s32.totalorder %s35, 1
      %p310 = por %p308, %p309
      %p311 = scmp.ne.s32.totalorder %s302, %s303
      %p312 = scmp.eq.s32.totalorder %s35, 0
      %p313 = por %p311, %p312
      %p314 = scmp.ne.s32.totalorder %s302, %s303
      %p315 = scmp.eq.s32.totalorder %s36, 1
      %p316 = por %p314, %p315
      %p318 = scmp.ne.s32.totalorder %s303, %s317
      %p319 = scmp.eq.s32.totalorder %s36, 0
      %p320 = por %p318, %p319
      %s322 = sadd.s32 %s321, 1
      %p325 = scmp.eq.s32.totalorder %s30, 1
      %p326 = scmp.ne.s32.totalorder %s321, %s323
      %p327 = scmp.eq.s32.totalorder %s30, 0
      %p328 = por %p326, %p327
      %p329 = scmp.ne.s32.totalorder %s321, %s323
      %p330 = scmp.eq.s32.totalorder %s35, 1
      %p331 = por %p329, %p330
      %p332 = scmp.ne.s32.totalorder %s323, %s324
      %p333 = scmp.eq.s32.totalorder %s35, 0
      %p334 = por %p332, %p333
      %p335 = scmp.ne.s32.totalorder %s323, %s324
      %p336 = scmp.eq.s32.totalorder %s36, 1
      %p337 = por %p335, %p336
      %p339 = scmp.ne.s32.totalorder %s324, %s338
      %p340 = scmp.eq.s32.totalorder %s36, 0
      %p341 = por %p339, %p340
      %s343 = sadd.s32 %s342, 1
      %p346 = scmp.eq.s32.totalorder %s30, 1
      %p347 = scmp.ne.s32.totalorder %s342, %s344
      %p348 = scmp.eq.s32.totalorder %s30, 0
      %p349 = por %p347, %p348
      %p350 = scmp.ne.s32.totalorder %s342, %s344
      %p351 = scmp.eq.s32.totalorder %s35, 1
      %p352 = por %p350, %p351
      %p353 = scmp.ne.s32.totalorder %s344, %s345
      %p354 = scmp.eq.s32.totalorder %s35, 0
      %p355 = por %p353, %p354
      %p356 = scmp.ne.s32.totalorder %s344, %s345
      %p357 = scmp.eq.s32.totalorder %s36, 1
      %p358 = por %p356, %p357
      %p360 = scmp.ne.s32.totalorder %s345, %s359
      %p361 = scmp.eq.s32.totalorder %s36, 0
      %p362 = por %p360, %p361
      %s364 = sadd.s32 %s363, 1
      %p367 = scmp.eq.s32.totalorder %s30, 1
      %p368 = scmp.ne.s32.totalorder %s363, %s365
      %p369 = scmp.eq.s32.totalorder %s30, 0
      %p370 = por %p368, %p369
      %p371 = scmp.ne.s32.totalorder %s363, %s365
      %p372 = scmp.eq.s32.totalorder %s35, 1
      %p373 = por %p371, %p372
      %p374 = scmp.ne.s32.totalorder %s365, %s366
      %p375 = scmp.eq.s32.totalorder %s35, 0
      %p376 = por %p374, %p375
      %p377 = scmp.ne.s32.totalorder %s365, %s366
      %p378 = scmp.eq.s32.totalorder %s36, 1
      %p379 = por %p377, %p378
      %p381 = scmp.ne.s32.totalorder %s366, %s380
      %p382 = scmp.eq.s32.totalorder %s36, 0
      %p383 = por %p381, %p382
      %s385 = sadd.s32 %s384, 1
      %p388 = scmp.eq.s32.totalorder %s30, 1
      %p389 = scmp.ne.s32.totalorder %s384, %s386
      %p390 = scmp.eq.s32.totalorder %s30, 0
      %p391 = por %p389, %p390
      %p392 = scmp.ne.s32.totalorder %s384, %s386
      %p393 = scmp.eq.s32.totalorder %s35, 1
      %p394 = por %p392, %p393
      %p395 = scmp.ne.s32.totalorder %s386, %s387
      %p396 = scmp.eq.s32.totalorder %s35, 0
      %p397 = por %p395, %p396
      %p398 = scmp.ne.s32.totalorder %s386, %s387
      %p399 = scmp.eq.s32.totalorder %s36, 1
      %p400 = por %p398, %p399
      %p402 = scmp.ne.s32.totalorder %s387, %s401
      %p403 = scmp.eq.s32.totalorder %s36, 0
      %p404 = por %p402, %p403
      %s406 = sadd.s32 %s405, 1
      %p409 = scmp.eq.s32.totalorder %s30, 1
      %p410 = scmp.ne.s32.totalorder %s405, %s407
      %p411 = scmp.eq.s32.totalorder %s30, 0
      %p412 = por %p410, %p411
      %p413 = scmp.ne.s32.totalorder %s405, %s407
      %p414 = scmp.eq.s32.totalorder %s35, 1
      %p415 = por %p413, %p414
      %p416 = scmp.ne.s32.totalorder %s407, %s408
      %p417 = scmp.eq.s32.totalorder %s35, 0
      %p418 = por %p416, %p417
      %p419 = scmp.ne.s32.totalorder %s407, %s408
      %p420 = scmp.eq.s32.totalorder %s36, 1
      %p421 = por %p419, %p420
      %p423 = scmp.ne.s32.totalorder %s408, %s422
      %p424 = scmp.eq.s32.totalorder %s36, 0
      %p425 = por %p423, %p424
      %s427 = sadd.s32 %s426, 1
      %p430 = scmp.eq.s32.totalorder %s30, 1
      %p431 = scmp.ne.s32.totalorder %s426, %s428
      %p432 = scmp.eq.s32.totalorder %s30, 0
      %p433 = por %p431, %p432
      %p434 = scmp.ne.s32.totalorder %s426, %s428
      %p435 = scmp.eq.s32.totalorder %s35, 1
      %p436 = por %p434, %p435
      %p437 = scmp.ne.s32.totalorder %s428, %s429
      %p438 = scmp.eq.s32.totalorder %s35, 0
      %p439 = por %p437, %p438
      %p440 = scmp.ne.s32.totalorder %s428, %s429
      %p441 = scmp.eq.s32.totalorder %s36, 1
      %p442 = por %p440, %p441
      %p444 = scmp.ne.s32.totalorder %s429, %s443
      %p445 = scmp.eq.s32.totalorder %s36, 0
      %p446 = por %p444, %p445
      %s447 = ssub.s32 %s30, %s37
      %p448 = scmp.eq.s32.totalorder %s447, 0
      %s450 = sadd.s32 %s449, 1
      %s451 = scalar_select %p448, %s449, %s450
      %p454 = pneg %p448
      %p455 = scmp.eq.s32.totalorder %s30, 1
      %p456 = por %p454, %p455
      %p457 = scmp.ne.s32.totalorder %s449, %s452
      %p458 = scmp.eq.s32.totalorder %s30, 0
      %p459 = por %p457, %p458
      %p460 = scmp.ne.s32.totalorder %s449, %s452
      %p461 = scmp.eq.s32.totalorder %s35, 1
      %p462 = por %p460, %p461
      %p463 = scmp.ne.s32.totalorder %s452, %s453
      %p464 = scmp.eq.s32.totalorder %s35, 0
      %p465 = por %p463, %p464
      %p466 = scmp.ne.s32.totalorder %s452, %s453
      %p467 = scmp.eq.s32.totalorder %s36, 1
      %p468 = por %p466, %p467
      %p470 = scmp.ne.s32.totalorder %s453, %s469
      %p471 = scmp.eq.s32.totalorder %s36, 0
      %p472 = por %p470, %p471
      %s473 = ssub.s32 %s30, %s37
      %p474 = scmp.eq.s32.totalorder %s473, 0
      %s476 = sadd.s32 %s475, 1
      %s477 = scalar_select %p474, %s475, %s476
      %p480 = pneg %p474
      %p481 = scmp.eq.s32.totalorder %s30, 1
      %p482 = por %p480, %p481
      %p483 = scmp.ne.s32.totalorder %s475, %s478
      %p484 = scmp.eq.s32.totalorder %s30, 0
      %p485 = por %p483, %p484
      %p486 = scmp.ne.s32.totalorder %s475, %s478
      %p487 = scmp.eq.s32.totalorder %s35, 1
      %p488 = por %p486, %p487
      %p489 = scmp.ne.s32.totalorder %s478, %s479
      %p490 = scmp.eq.s32.totalorder %s35, 0
      %p491 = por %p489, %p490
      %p492 = scmp.ne.s32.totalorder %s478, %s479
      %p493 = scmp.eq.s32.totalorder %s36, 1
      %p494 = por %p492, %p493
      %p496 = scmp.ne.s32.totalorder %s479, %s495
      %p497 = scmp.eq.s32.totalorder %s36, 0
      %p498 = por %p496, %p497
      %p499 = scmp.le.s32.totalorder 1, %s30
      %p500 = scmp.lt.s32.totalorder %s30, 3
      %p501 = pnand %p499, %p500
      %p502 = pneg %p501
      // Predicated region
      $region9: #{tpu_custom_call.1} parent=5 // pred_check
        _
      $region10: #{tpu_custom_call.1} parent=5 // pred_check_branch
        %504 = sbr.rel (%p501) target = $region12
      $region11: #{tpu_custom_call.1} parent=5 // pred_region
        %s505 = ssub.s32 %s30, 1
        // Predicated region
        $region13: #{tpu_custom_call.1} parent=11 // pred_check
          %p506 = pneg %p103
        $region14: #{tpu_custom_call.1} parent=11 // pred_check_branch
          %508 = sbr.rel (%p506) target = $region16
        $region15: #{tpu_custom_call.1} parent=11 // pred_region
          _
        $region16: #{tpu_custom_call.1} parent=11 // pred_fallthru
          _
        // Predicated region
        $region17: #{tpu_custom_call.1} parent=11 // pred_check
          %p509 = pneg %p124
        $region18: #{tpu_custom_call.1} parent=11 // pred_check_branch
          %511 = sbr.rel (%p509) target = $region20
        $region19: #{tpu_custom_call.1} parent=11 // pred_region
          _
        $region20: #{tpu_custom_call.1} parent=11 // pred_fallthru
          _
        // Predicated region
        $region21: #{tpu_custom_call.1} parent=11 // pred_check
          %p512 = pneg %p145
        $region22: #{tpu_custom_call.1} parent=11 // pred_check_branch
          %514 = sbr.rel (%p512) target = $region24
        $region23: #{tpu_custom_call.1} parent=11 // pred_region
          _
        $region24: #{tpu_custom_call.1} parent=11 // pred_fallthru
          _
        // Predicated region
        $region25: #{tpu_custom_call.1} parent=11 // pred_check
          %p515 = pneg %p166
        $region26: #{tpu_custom_call.1} parent=11 // pred_check_branch
          %517 = sbr.rel (%p515) target = $region28
        $region27: #{tpu_custom_call.1} parent=11 // pred_region
          _
        $region28: #{tpu_custom_call.1} parent=11 // pred_fallthru
          _
        // Predicated region
        $region29: #{tpu_custom_call.1} parent=11 // pred_check
          %p518 = pneg %p187
        $region30: #{tpu_custom_call.1} parent=11 // pred_check_branch
          %520 = sbr.rel (%p518) target = $region32
        $region31: #{tpu_custom_call.1} parent=11 // pred_region
          _
        $region32: #{tpu_custom_call.1} parent=11 // pred_fallthru
          _
        // Predicated region
        $region33: #{tpu_custom_call.1} parent=11 // pred_check
          %p521 = pneg %p208
        $region34: #{tpu_custom_call.1} parent=11 // pred_check_branch
          %523 = sbr.rel (%p521) target = $region36
        $region35: #{tpu_custom_call.1} parent=11 // pred_region
          _
        $region36: #{tpu_custom_call.1} parent=11 // pred_fallthru
          _
        // Predicated region
        $region37: #{tpu_custom_call.1} parent=11 // pred_check
          %p524 = pneg %p229
        $region38: #{tpu_custom_call.1} parent=11 // pred_check_branch
          %526 = sbr.rel (%p524) target = $region40
        $region39: #{tpu_custom_call.1} parent=11 // pred_region
          _
        $region40: #{tpu_custom_call.1} parent=11 // pred_fallthru
          _
        // Predicated region
        $region41: #{tpu_custom_call.1} parent=11 // pred_check
          %p527 = pneg %p250
        $region42: #{tpu_custom_call.1} parent=11 // pred_check_branch
          %529 = sbr.rel (%p527) target = $region44
        $region43: #{tpu_custom_call.1} parent=11 // pred_region
          _
        $region44: #{tpu_custom_call.1} parent=11 // pred_fallthru
          _
        // Predicated region
        $region45: #{tpu_custom_call.1} parent=11 // pred_check
          %p530 = pneg %p271
        $region46: #{tpu_custom_call.1} parent=11 // pred_check_branch
          %532 = sbr.rel (%p530) target = $region48
        $region47: #{tpu_custom_call.1} parent=11 // pred_region
          _
        $region48: #{tpu_custom_call.1} parent=11 // pred_fallthru
          _
        // Predicated region
        $region49: #{tpu_custom_call.1} parent=11 // pred_check
          %p533 = pneg %p292
        $region50: #{tpu_custom_call.1} parent=11 // pred_check_branch
          %535 = sbr.rel (%p533) target = $region52
        $region51: #{tpu_custom_call.1} parent=11 // pred_region
          _
        $region52: #{tpu_custom_call.1} parent=11 // pred_fallthru
          _
        // Predicated region
        $region53: #{tpu_custom_call.1} parent=11 // pred_check
          %p536 = pneg %p313
        $region54: #{tpu_custom_call.1} parent=11 // pred_check_branch
          %538 = sbr.rel (%p536) target = $region56
        $region55: #{tpu_custom_call.1} parent=11 // pred_region
          _
        $region56: #{tpu_custom_call.1} parent=11 // pred_fallthru
          _
        // Predicated region
        $region57: #{tpu_custom_call.1} parent=11 // pred_check
          %p539 = pneg %p334
        $region58: #{tpu_custom_call.1} parent=11 // pred_check_branch
          %541 = sbr.rel (%p539) target = $region60
        $region59: #{tpu_custom_call.1} parent=11 // pred_region
          _
        $region60: #{tpu_custom_call.1} parent=11 // pred_fallthru
          _
        // Predicated region
        $region61: #{tpu_custom_call.1} parent=11 // pred_check
          %p542 = pneg %p355
        $region62: #{tpu_custom_call.1} parent=11 // pred_check_branch
          %544 = sbr.rel (%p542) target = $region64
        $region63: #{tpu_custom_call.1} parent=11 // pred_region
          _
        $region64: #{tpu_custom_call.1} parent=11 // pred_fallthru
          _
        // Predicated region
        $region65: #{tpu_custom_call.1} parent=11 // pred_check
          %p545 = pneg %p376
        $region66: #{tpu_custom_call.1} parent=11 // pred_check_branch
          %547 = sbr.rel (%p545) target = $region68
        $region67: #{tpu_custom_call.1} parent=11 // pred_region
          _
        $region68: #{tpu_custom_call.1} parent=11 // pred_fallthru
          _
        // Predicated region
        $region69: #{tpu_custom_call.1} parent=11 // pred_check
          %p548 = pneg %p397
        $region70: #{tpu_custom_call.1} parent=11 // pred_check_branch
          %550 = sbr.rel (%p548) target = $region72
        $region71: #{tpu_custom_call.1} parent=11 // pred_region
          _
        $region72: #{tpu_custom_call.1} parent=11 // pred_fallthru
          _
        // Predicated region
        $region73: #{tpu_custom_call.1} parent=11 // pred_check
          %p551 = pneg %p418
        $region74: #{tpu_custom_call.1} parent=11 // pred_check_branch
          %553 = sbr.rel (%p551) target = $region76
        $region75: #{tpu_custom_call.1} parent=11 // pred_region
          _
        $region76: #{tpu_custom_call.1} parent=11 // pred_fallthru
          _
        // Predicated region
        $region77: #{tpu_custom_call.1} parent=11 // pred_check
          %p554 = pneg %p439
        $region78: #{tpu_custom_call.1} parent=11 // pred_check_branch
          %556 = sbr.rel (%p554) target = $region80
        $region79: #{tpu_custom_call.1} parent=11 // pred_region
          _
        $region80: #{tpu_custom_call.1} parent=11 // pred_fallthru
          _
      $region12: #{tpu_custom_call.1} parent=5 // pred_fallthru
        _
      %p557 = scmp.lt.s32.totalorder %s30, 2
      // Predicated region
      $region81: #{tpu_custom_call.1} parent=5 // pred_check
        %p558 = pneg %p557
      $region82: #{tpu_custom_call.1} parent=5 // pred_check_branch
        %560 = sbr.rel (%p558) target = $region84
      $region83: #{tpu_custom_call.1} parent=5 // pred_region
        // Predicated region
        $region85: #{tpu_custom_call.1} parent=83 // pred_check
          %p561 = pneg %p50
        $region86: #{tpu_custom_call.1} parent=83 // pred_check_branch
          %563 = sbr.rel (%p561) target = $region88
        $region87: #{tpu_custom_call.1} parent=83 // pred_region
          %p564 = scmp.lt.s32.totalorder %s30, 1
          %s565 = scalar_select %p564, %s30, 1
          %s566 = smul.addr %s565, 8
          %s567 = scalar_lea.vmem %s0, %s566
        $region88: #{tpu_custom_call.1} parent=83 // pred_fallthru
          _
        // Predicated region
        $region89: #{tpu_custom_call.1} parent=83 // pred_check
          %p568 = pneg %p76
        $region90: #{tpu_custom_call.1} parent=83 // pred_check_branch
          %570 = sbr.rel (%p568) target = $region92
        $region91: #{tpu_custom_call.1} parent=83 // pred_region
          %p571 = scmp.lt.s32.totalorder %s30, 1
          %s572 = scalar_select %p571, %s30, 1
          %s573 = smul.addr %s572, 8
          %s574 = scalar_lea.vmem %s1, %s573
        $region92: #{tpu_custom_call.1} parent=83 // pred_fallthru
          _
      $region84: #{tpu_custom_call.1} parent=5 // pred_fallthru
        _
      %p575 = scmp.le.s32.totalorder 1, %s30
      %p576 = scmp.lt.s32.totalorder %s30, 3
      %p577 = pnand %p575, %p576
      %p578 = pneg %p577
      // Predicated region
      $region93: #{tpu_custom_call.1} parent=5 // pred_check
        _
      $region94: #{tpu_custom_call.1} parent=5 // pred_check_branch
        %580 = sbr.rel (%p577) target = $region96
      $region95: #{tpu_custom_call.1} parent=5 // pred_region
        %s581 = ssub.s32 %s30, 1
        %p582 = scmp.lt.s32.totalorder %s35, 1
        %s583 = scalar_select %p582, %s35, 1
        %s584 = smul.addr %s583, 8
        %s585 = scalar_lea.vmem %s0, %s584
        %p586 = pneg %p56
        %p587 = pneg %p53
        %p588 = scmp.lt.s32.totalorder %s35, 1
        %s589 = scalar_select %p588, %s35, 1
        %s590 = smul.addr %s589, 8
        %s591 = scalar_lea.vmem %s1, %s590
        %p592 = pneg %p82
        %p593 = pneg %p79
        %p594 = pneg %p103
        %p595 = pneg %p100
        %p596 = pneg %p124
        %p597 = pneg %p121
        %p598 = pneg %p145
        %p599 = pneg %p142
        %p600 = pneg %p166
        %p601 = pneg %p163
        %p602 = pneg %p187
        %p603 = pneg %p184
        %p604 = pneg %p208
        %p605 = pneg %p205
        %p606 = pneg %p229
        %p607 = pneg %p226
        %p608 = pneg %p250
        %p609 = pneg %p247
        %p610 = pneg %p271
        %p611 = pneg %p268
        %p612 = pneg %p292
        %p613 = pneg %p289
        %p614 = pneg %p313
        %p615 = pneg %p310
        %p616 = pneg %p334
        %p617 = pneg %p331
        %p618 = pneg %p355
        %p619 = pneg %p352
        %p620 = pneg %p376
        %p621 = pneg %p373
        %p622 = pneg %p397
        %p623 = pneg %p394
        %p624 = pneg %p418
        %p625 = pneg %p415
        %p626 = pneg %p439
        %p627 = pneg %p436
        %p628 = pneg %p465
        %p629 = pneg %p462
        %s630 = sand.u32 %s452, 1
        %s631 = scalar_lea.sflag [#allocation3], %s630
        %s632 = sand.u32 %s452, 1
        %s633 = smul.addr %s632, 8
        %s634 = scalar_lea.vmem [#allocation2], %s633
        %p635 = pneg %p491
        %p636 = pneg %p488
        %p637 = scmp.lt.s32.totalorder %s35, 1
        %s638 = scalar_select %p637, %s35, 1
        %s639 = smul.addr %s638, 8
        %s640 = scalar_lea.vmem %s20, %s639
        %p641 = scmp.lt.s32.totalorder %s35, 1
        %s642 = scalar_select %p641, %s35, 1
        %s643 = smul.addr %s642, 8
        %s644 = scalar_lea.vmem %s0, %s643
        %p645 = scmp.lt.s32.totalorder %s35, 1
        %s646 = scalar_select %p645, %s35, 1
        %s647 = smul.addr %s646, 8
        %s648 = scalar_lea.vmem %s1, %s647
        %p649 = scmp.lt.s32.totalorder %s35, 1
        %s650 = scalar_select %p649, %s35, 1
        %s651 = smul.addr %s650, 8
        %s652 = scalar_lea.vmem %s20, %s651
        %v653 = vld [vmem:[%s644] sm:$0xff]
        %v654 = vld [vmem:[%s648] sm:$0xff]
        %v655 = vld [vmem:[%s2] sm:$0xff]
        %v656 = vld [vmem:[%s2 + $0x8] sm:$0xff]
        %v657 = vld [vmem:[%s2 + $0x10] sm:$0xff]
        %v658 = vld [vmem:[%s2 + $0x18] sm:$0xff]
        %v659 = vld [vmem:[%s2 + $0x20] sm:$0xff]
        %v660 = vld [vmem:[%s2 + $0x28] sm:$0xff]
        %v661 = vld [vmem:[%s2 + $0x30] sm:$0xff]
        %v662 = vld [vmem:[%s2 + $0x38] sm:$0xff]
        %v663 = vld [vmem:[%s2 + $0x40] sm:$0xff]
        %v664 = vld [vmem:[%s2 + $0x48] sm:$0xff]
        %v665 = vld [vmem:[%s2 + $0x50] sm:$0xff]
        %v666 = vld [vmem:[%s2 + $0x58] sm:$0xff]
        %v667 = vld [vmem:[%s2 + $0x60] sm:$0xff]
        %v668 = vld [vmem:[%s2 + $0x68] sm:$0xff]
        %v669 = vld [vmem:[%s2 + $0x70] sm:$0xff]
        %v670 = vld [vmem:[%s2 + $0x78] sm:$0xff]
        %v671 = vld [vmem:[%s3] sm:$0xff]
        %v672 = vld [vmem:[%s3 + $0x8] sm:$0xff]
        %v673 = vld [vmem:[%s3 + $0x10] sm:$0xff]
        %v674 = vld [vmem:[%s3 + $0x18] sm:$0xff]
        %v675 = vld [vmem:[%s3 + $0x20] sm:$0xff]
        %v676 = vld [vmem:[%s3 + $0x28] sm:$0xff]
        %v677 = vld [vmem:[%s3 + $0x30] sm:$0xff]
        %v678 = vld [vmem:[%s3 + $0x38] sm:$0xff]
        %v679 = vld [vmem:[%s3 + $0x40] sm:$0xff]
        %v680 = vld [vmem:[%s3 + $0x48] sm:$0xff]
        %v681 = vld [vmem:[%s3 + $0x50] sm:$0xff]
        %v682 = vld [vmem:[%s3 + $0x58] sm:$0xff]
        %v683 = vld [vmem:[%s3 + $0x60] sm:$0xff]
        %v684 = vld [vmem:[%s3 + $0x68] sm:$0xff]
        %v685 = vld [vmem:[%s3 + $0x70] sm:$0xff]
        %v686 = vld [vmem:[%s3 + $0x78] sm:$0xff]
        %v687 = vld [vmem:[%s4] sm:$0xff]
        %v688 = vld [vmem:[%s4 + $0x8] sm:$0xff]
        %v689 = vld [vmem:[%s5] sm:$0x1]
        %v690 = vlaneseq
        %v691 = vshrl.u32 %v690, 7
        %v692 = vlaneseq
        %v693 = vand.u32 %v692, 127
        %vm694 = vcmp.eq.s32.totalorder %v691, %v693
        %v695 = vld [vmem:[%s6] sm:$0x1]
        %v696 = vld [vmem:[%s7] sm:$0x1]
        %vm697 = vcmask 523264
        %v698 = vsel %vm697, %v653, 0.0
        %699 = vadd.xlane.f32.xlu0 %v698
        %v700 = vpop.xlane.xlu0 %699
        %v701 = vrcp.pop 64.0
        %v702 = vmul.f32 %v700, %v701
        %v703 = vsub.f32 %v653, %v702
        %v704 = vmul.f32 %v703, %v703
        %v705 = vsel %vm697, %v704, 0.0
        %706 = vadd.xlane.f32.xlu0 %v705
        %v707 = vpop.xlane.xlu0 %706
        %v708 = vmul.f32 %v707, %v701
        %v709 = vadd.f32 %v708, 1e-05
        %v710 = vrsqrt.pop %v709
        %v711 = vmul.f32 %v703, %v710
        %v713 = vlaneseq
        %v714 = vshrl.u32 %v713, 7
        %v715 = vsub.s32 0, %v714
        %v716 = vrot.slane %v695, %v715
        %v718 = vmul.f32 %v711, %v716
        %v720 = vlaneseq
        %v721 = vshrl.u32 %v720, 7
        %v722 = vsub.s32 0, %v721
        %v723 = vrot.slane %v696, %v722
        %v725 = vadd.f32 %v718, %v723
        %v726 = vld [vmem:[%s8] sm:$0xff]
        %v727 = vld [vmem:[%s8 + $0x8] sm:$0xff]
        %v728 = vld [vmem:[%s8 + $0x10] sm:$0xff]
        %v729 = vld [vmem:[%s8 + $0x18] sm:$0xff]
        %v730 = vld [vmem:[%s8 + $0x20] sm:$0xff]
        %v731 = vld [vmem:[%s8 + $0x28] sm:$0xff]
        %v732 = vld [vmem:[%s8 + $0x30] sm:$0xff]
        %v733 = vld [vmem:[%s8 + $0x38] sm:$0xff]
        %v734 = vld [vmem:[%s8 + $0x40] sm:$0xff]
        %v735 = vld [vmem:[%s8 + $0x48] sm:$0xff]
        %v736 = vld [vmem:[%s8 + $0x50] sm:$0xff]
        %v737 = vld [vmem:[%s8 + $0x58] sm:$0xff]
        %v738 = vld [vmem:[%s8 + $0x60] sm:$0xff]
        %v739 = vld [vmem:[%s8 + $0x68] sm:$0xff]
        %v740 = vld [vmem:[%s8 + $0x70] sm:$0xff]
        %v741 = vld [vmem:[%s8 + $0x78] sm:$0xff]
        %v742 = vld [vmem:[%s8 + $0x80] sm:$0xff]
        %v743 = vld [vmem:[%s8 + $0x88] sm:$0xff]
        %v744 = vld [vmem:[%s8 + $0x90] sm:$0xff]
        %v745 = vld [vmem:[%s8 + $0x98] sm:$0xff]
        %v746 = vld [vmem:[%s8 + $0xa0] sm:$0xff]
        %v747 = vld [vmem:[%s8 + $0xa8] sm:$0xff]
        %v748 = vld [vmem:[%s8 + $0xb0] sm:$0xff]
        %v749 = vld [vmem:[%s8 + $0xb8] sm:$0xff]
        %v751 = vsel %vm697, %v725, 0
        %753 = vmatprep.subr.mxu0 %v727
        %754 = vmatpush1.msra.mxu0 %v726
        %755 = vmatprep.subr.mxu0 %v730
        %756 = vmatpush1.msra.mxu0 %v729
        %757 = vmatprep.subr.mxu0 %v733
        %758 = vmatpush1.msra.mxu0 %v732
        %759 = vmatprep.subr.mxu0 %v736
        %760 = vmatpush1.msra.mxu0 %v735
        %761 = vmatprep.subr.mxu0 %v739
        %762 = vmatpush1.msra.mxu0 %v738
        %763 = vmatprep.subr.mxu0 %v742
        %764 = vmatpush1.msra.mxu0 %v741
        %765 = vmatprep.subr.mxu0 %v745
        %766 = vmatpush1.msra.mxu0 %v744
        %767 = vmatprep.subr.mxu0 %v748
        %768 = vmatpush1.msra.mxu0 %v747
        %769 = vmatprep.subr.mxu0 0.0
        %770 = vmatpush1.msra.mxu0 0.0
        %771 = vmatprep.subr.mxu0 0.0
        %772 = vmatpush1.msra.mxu0 0.0
        %773 = vmatprep.subr.mxu0 0.0
        %774 = vmatpush1.msra.mxu0 0.0
        %775 = vmatprep.subr.mxu0 0.0
        %776 = vmatpush1.msra.mxu0 0.0
        %777 = vmatprep.subr.mxu0 0.0
        %778 = vmatpush1.msra.mxu0 0.0
        %779 = vmatprep.subr.mxu0 0.0
        %780 = vmatpush1.msra.mxu0 0.0
        %781 = vmatprep.subr.mxu0 0.0
        %782 = vmatpush1.msra.mxu0 0.0
        %783 = vmatprep.subr.mxu0 0.0
        %784 = vmatpush1.msra.mxu0 0.0
        %785 = vmatprep.subr.mxu0 0.0
        %786 = vmatpush1.msra.mxu0 0.0
        %787 = vmatprep.subr.mxu0 0.0
        %788 = vmatpush1.msra.mxu0 0.0
        %789 = vmatprep.subr.mxu0 0.0
        %790 = vmatpush1.msra.mxu0 0.0
        %791 = vmatprep.subr.mxu0 0.0
        %792 = vmatpush1.msra.mxu0 0.0
        %793 = vmatprep.subr.mxu0 0.0
        %794 = vmatpush1.msra.mxu0 0.0
        %795 = vmatprep.subr.mxu0 0.0
        %796 = vmatpush1.msra.mxu0 0.0
        %797 = vmatprep.subr.mxu0 0.0
        %798 = vmatpush1.msra.mxu0 0.0
        %799 = vmatprep.subr.mxu0 0.0
        %800 = vmatpush1.msra.mxu0 0.0
        %801 = vmatprep.subr.mxu0 0.0
        %802 = vmatpush1.msra.mxu0 0.0
        %803 = vmatprep.subr.mxu0 0.0
        %804 = vmatpush1.msra.mxu0 0.0
        %805 = vmatprep.subr.mxu0 0.0
        %806 = vmatpush1.msra.mxu0 0.0
        %807 = vmatprep.subr.mxu0 0.0
        %808 = vmatpush1.msra.mxu0 0.0
        %809 = vmatprep.subr.mxu0 0.0
        %810 = vmatpush1.msra.mxu0 0.0
        %811 = vmatprep.subr.mxu0 0.0
        %812 = vmatpush1.msra.mxu0 0.0
        %813 = vmatprep.subr.mxu0 0.0
        %814 = vmatpush1.msra.mxu0 0.0
        %815 = vmatprep.subr.mxu0 0.0
        %816 = vmatpush1.msra.mxu0 0.0
        %817 = vmatprep.mubr.f32.mxu0 0.0
        %818 = vmatmul.mubr.f32.gmra.mrb[0].mxu0 %v751
        %v819 = vpop.f32.mrb[0].mxu0
        %v820 = vadd.f32 0.0, %v819
        %v821 = vpop.f32.mrb[0].mxu0
        %v822 = vadd.f32 0.0, %v821
        %823 = vdwg.mxu0
        %824 = vmatprep.subr.mxu0 0.0
        %825 = vmatpush1.msra.mxu0 %v728
        %826 = vmatprep.subr.mxu0 0.0
        %827 = vmatpush1.msra.mxu0 %v731
        %828 = vmatprep.subr.mxu0 0.0
        %829 = vmatpush1.msra.mxu0 %v734
        %830 = vmatprep.subr.mxu0 0.0
        %831 = vmatpush1.msra.mxu0 %v737
        %832 = vmatprep.subr.mxu0 0.0
        %833 = vmatpush1.msra.mxu0 %v740
        %834 = vmatprep.subr.mxu0 0.0
        %835 = vmatpush1.msra.mxu0 %v743
        %836 = vmatprep.subr.mxu0 0.0
        %837 = vmatpush1.msra.mxu0 %v746
        %838 = vmatprep.subr.mxu0 0.0
        %839 = vmatpush1.msra.mxu0 %v749
        %840 = vmatprep.subr.mxu0 0.0
        %841 = vmatpush1.msra.mxu0 0.0
        %842 = vmatprep.subr.mxu0 0.0
        %843 = vmatpush1.msra.mxu0 0.0
        %844 = vmatprep.subr.mxu0 0.0
        %845 = vmatpush1.msra.mxu0 0.0
        %846 = vmatprep.subr.mxu0 0.0
        %847 = vmatpush1.msra.mxu0 0.0
        %848 = vmatprep.subr.mxu0 0.0
        %849 = vmatpush1.msra.mxu0 0.0
        %850 = vmatprep.subr.mxu0 0.0
        %851 = vmatpush1.msra.mxu0 0.0
        %852 = vmatprep.subr.mxu0 0.0
        %853 = vmatpush1.msra.mxu0 0.0
        %854 = vmatprep.subr.mxu0 0.0
        %855 = vmatpush1.msra.mxu0 0.0
        %856 = vmatprep.subr.mxu0 0.0
        %857 = vmatpush1.msra.mxu0 0.0
        %858 = vmatprep.subr.mxu0 0.0
        %859 = vmatpush1.msra.mxu0 0.0
        %860 = vmatprep.subr.mxu0 0.0
        %861 = vmatpush1.msra.mxu0 0.0
        %862 = vmatprep.subr.mxu0 0.0
        %863 = vmatpush1.msra.mxu0 0.0
        %864 = vmatprep.subr.mxu0 0.0
        %865 = vmatpush1.msra.mxu0 0.0
        %866 = vmatprep.subr.mxu0 0.0
        %867 = vmatpush1.msra.mxu0 0.0
        %868 = vmatprep.subr.mxu0 0.0
        %869 = vmatpush1.msra.mxu0 0.0
        %870 = vmatprep.subr.mxu0 0.0
        %871 = vmatpush1.msra.mxu0 0.0
        %872 = vmatprep.subr.mxu0 0.0
        %873 = vmatpush1.msra.mxu0 0.0
        %874 = vmatprep.subr.mxu0 0.0
        %875 = vmatpush1.msra.mxu0 0.0
        %876 = vmatprep.subr.mxu0 0.0
        %877 = vmatpush1.msra.mxu0 0.0
        %878 = vmatprep.subr.mxu0 0.0
        %879 = vmatpush1.msra.mxu0 0.0
        %880 = vmatprep.subr.mxu0 0.0
        %881 = vmatpush1.msra.mxu0 0.0
        %882 = vmatprep.subr.mxu0 0.0
        %883 = vmatpush1.msra.mxu0 0.0
        %884 = vmatprep.subr.mxu0 0.0
        %885 = vmatpush1.msra.mxu0 0.0
        %886 = vmatprep.subr.mxu0 0.0
        %887 = vmatpush1.msra.mxu0 0.0
        %888 = vmatprep.mubr.f32.mxu0 0.0
        %889 = vmatmul.mubr.f32.gmra.mrb[0].mxu0 %v751
        %v890 = vpop.f32.mrb[0].mxu0
        %v891 = vadd.f32 0.0, %v890
        %v892 = vpop.f32.mrb[0].mxu0
        %893 = vdwg.mxu0
        %894 = vmatprep.subr.mxu0 0.0
        %895 = vmatpush1.msra.mxu0 %v671
        %896 = vmatprep.subr.mxu0 0.0
        %897 = vmatpush1.msra.mxu0 %v672
        %898 = vmatprep.subr.mxu0 0.0
        %899 = vmatpush1.msra.mxu0 %v673
        %900 = vmatprep.subr.mxu0 0.0
        %901 = vmatpush1.msra.mxu0 %v674
        %902 = vmatprep.subr.mxu0 0.0
        %903 = vmatpush1.msra.mxu0 %v675
        %904 = vmatprep.subr.mxu0 0.0
        %905 = vmatpush1.msra.mxu0 %v676
        %906 = vmatprep.subr.mxu0 0.0
        %907 = vmatpush1.msra.mxu0 %v677
        %908 = vmatprep.subr.mxu0 0.0
        %909 = vmatpush1.msra.mxu0 %v678
        %910 = vmatprep.subr.mxu0 0.0
        %911 = vmatpush1.msra.mxu0 %v679
        %912 = vmatprep.subr.mxu0 0.0
        %913 = vmatpush1.msra.mxu0 %v680
        %914 = vmatprep.subr.mxu0 0.0
        %915 = vmatpush1.msra.mxu0 %v681
        %916 = vmatprep.subr.mxu0 0.0
        %917 = vmatpush1.msra.mxu0 %v682
        %918 = vmatprep.subr.mxu0 0.0
        %919 = vmatpush1.msra.mxu0 %v683
        %920 = vmatprep.subr.mxu0 0.0
        %921 = vmatpush1.msra.mxu0 %v684
        %922 = vmatprep.subr.mxu0 0.0
        %923 = vmatpush1.msra.mxu0 %v685
        %924 = vmatprep.subr.mxu0 0.0
        %925 = vmatpush1.msra.mxu0 %v686
        %926 = vmatprep.subr.mxu0 0.0
        %927 = vmatpush1.msra.mxu0 0.0
        %928 = vmatprep.subr.mxu0 0.0
        %929 = vmatpush1.msra.mxu0 0.0
        %930 = vmatprep.subr.mxu0 0.0
        %931 = vmatpush1.msra.mxu0 0.0
        %932 = vmatprep.subr.mxu0 0.0
        %933 = vmatpush1.msra.mxu0 0.0
        %934 = vmatprep.subr.mxu0 0.0
        %935 = vmatpush1.msra.mxu0 0.0
        %936 = vmatprep.subr.mxu0 0.0
        %937 = vmatpush1.msra.mxu0 0.0
        %938 = vmatprep.subr.mxu0 0.0
        %939 = vmatpush1.msra.mxu0 0.0
        %940 = vmatprep.subr.mxu0 0.0
        %941 = vmatpush1.msra.mxu0 0.0
        %942 = vmatprep.subr.mxu0 0.0
        %943 = vmatpush1.msra.mxu0 0.0
        %944 = vmatprep.subr.mxu0 0.0
        %945 = vmatpush1.msra.mxu0 0.0
        %946 = vmatprep.subr.mxu0 0.0
        %947 = vmatpush1.msra.mxu0 0.0
        %948 = vmatprep.subr.mxu0 0.0
        %949 = vmatpush1.msra.mxu0 0.0
        %950 = vmatprep.subr.mxu0 0.0
        %951 = vmatpush1.msra.mxu0 0.0
        %952 = vmatprep.subr.mxu0 0.0
        %953 = vmatpush1.msra.mxu0 0.0
        %954 = vmatprep.subr.mxu0 0.0
        %955 = vmatpush1.msra.mxu0 0.0
        %956 = vmatprep.subr.mxu0 0.0
        %957 = vmatpush1.msra.mxu0 0.0
        %958 = vmatprep.mubr.f32.mxu0 0.0
        %959 = vmatmul.mubr.f32.gmra.mrb[0].mxu0 %v820
        %v960 = vpop.f32.mrb[0].mxu0
        %v961 = vadd.f32 0.0, %v960
        %v962 = vpop.f32.mrb[0].mxu0
        %963 = vdwg.mxu0
        %vm964 = vcmask 23552
        %v966 = vsel %vm964, %v654, 0
        %968 = vmatprep.subr.mxu0 0.0
        %969 = vmatpush1.xpose.msra.mxu0 %v966
        %970 = vmatprep.subr.mxu0 0.0
        %971 = vmatpush1.xpose.msra.mxu0 0.0
        %972 = vmatprep.subr.mxu0 0.0
        %973 = vmatpush1.xpose.msra.mxu0 0.0
        %974 = vmatprep.subr.mxu0 0.0
        %975 = vmatpush1.xpose.msra.mxu0 0.0
        %976 = vmatprep.subr.mxu0 0.0
        %977 = vmatpush1.xpose.msra.mxu0 0.0
        %978 = vmatprep.subr.mxu0 0.0
        %979 = vmatpush1.xpose.msra.mxu0 0.0
        %980 = vmatprep.subr.mxu0 0.0
        %981 = vmatpush1.xpose.msra.mxu0 0.0
        %982 = vmatprep.subr.mxu0 0.0
        %983 = vmatpush1.xpose.msra.mxu0 0.0
        %984 = vmatprep.subr.mxu0 0.0
        %985 = vmatpush1.xpose.msra.mxu0 0.0
        %986 = vmatprep.subr.mxu0 0.0
        %987 = vmatpush1.xpose.msra.mxu0 0.0
        %988 = vmatprep.subr.mxu0 0.0
        %989 = vmatpush1.xpose.msra.mxu0 0.0
        %990 = vmatprep.subr.mxu0 0.0
        %991 = vmatpush1.xpose.msra.mxu0 0.0
        %992 = vmatprep.subr.mxu0 0.0
        %993 = vmatpush1.xpose.msra.mxu0 0.0
        %994 = vmatprep.subr.mxu0 0.0
        %995 = vmatpush1.xpose.msra.mxu0 0.0
        %996 = vmatprep.subr.mxu0 0.0
        %997 = vmatpush1.xpose.msra.mxu0 0.0
        %998 = vmatprep.subr.mxu0 0.0
        %999 = vmatpush1.xpose.msra.mxu0 0.0
        %1000 = vmatprep.subr.mxu0 0.0
        %1001 = vmatpush1.xpose.msra.mxu0 0.0
        %1002 = vmatprep.subr.mxu0 0.0
        %1003 = vmatpush1.xpose.msra.mxu0 0.0
        %1004 = vmatprep.subr.mxu0 0.0
        %1005 = vmatpush1.xpose.msra.mxu0 0.0
        %1006 = vmatprep.subr.mxu0 0.0
        %1007 = vmatpush1.xpose.msra.mxu0 0.0
        %1008 = vmatprep.subr.mxu0 0.0
        %1009 = vmatpush1.xpose.msra.mxu0 0.0
        %1010 = vmatprep.subr.mxu0 0.0
        %1011 = vmatpush1.xpose.msra.mxu0 0.0
        %1012 = vmatprep.subr.mxu0 0.0
        %1013 = vmatpush1.xpose.msra.mxu0 0.0
        %1014 = vmatprep.subr.mxu0 0.0
        %1015 = vmatpush1.xpose.msra.mxu0 0.0
        %1016 = vmatprep.subr.mxu0 0.0
        %1017 = vmatpush1.xpose.msra.mxu0 0.0
        %1018 = vmatprep.subr.mxu0 0.0
        %1019 = vmatpush1.xpose.msra.mxu0 0.0
        %1020 = vmatprep.subr.mxu0 0.0
        %1021 = vmatpush1.xpose.msra.mxu0 0.0
        %1022 = vmatprep.subr.mxu0 0.0
        %1023 = vmatpush1.xpose.msra.mxu0 0.0
        %1024 = vmatprep.subr.mxu0 0.0
        %1025 = vmatpush1.xpose.msra.mxu0 0.0
        %1026 = vmatprep.subr.mxu0 0.0
        %1027 = vmatpush1.xpose.msra.mxu0 0.0
        %1028 = vmatprep.subr.mxu0 0.0
        %1029 = vmatpush1.xpose.msra.mxu0 0.0
        %1030 = vmatprep.subr.mxu0 0.0
        %1031 = vmatpush1.xpose.msra.mxu0 0.0
        %1032 = vmatprep.mubr.f32.mxu0 0.0
        %1033 = vmatmul.mubr.f32.gmra.mrb[0].mxu0 %v966
        %v1034 = vpop.f32.mrb[0].mxu0
        %v1035 = vadd.f32 0.0, %v1034
        %v1036 = vpop.f32.mrb[0].mxu0
        %1037 = vdwg.mxu0
        %v1038 = vmul.f32 %v654, %v654
        %v1039 = vsel %vm964, %v1038, 0.0
        %1040 = vadd.xlane.f32.xlu0 %v1039
        %v1041 = vpop.xlane.xlu0 %1040
        %v1043 = vlaneseq
        %v1044 = vshrl.u32 %v1043, 7
        %v1045 = vsub.s32 %v693, %v1044
        %v1046 = vrot.slane %v1041, %v1045
        %vm1047 = vcmask 1041409
        %vm1048 = vcmask 1042434
        %v1049 = vsel %vm1048, %v1046, %v1046
        %vm1050 = vcmask 1043459
        %v1051 = vsel %vm1050, %v1046, %v1049
        %vm1052 = vcmask 1044484
        %v1053 = vsel %vm1052, %v1046, %v1051
        %vm1054 = vcmask 1045509
        %v1055 = vsel %vm1054, %v1046, %v1053
        %vm1056 = vcmask 1046534
        %v1057 = vsel %vm1056, %v1046, %v1055
        %vm1058 = vcmask 1047559
        %v1059 = vsel %vm1058, %v1046, %v1057
        %v1061 = vadd.f32 %v1041, %v1059
        %v1062 = vmul.f32 %v1035, 2.0
        %v1063 = vsub.f32 %v1061, %v1062
        %v1064 = vmax.f32 %v1063, 1e-16
        %v1065 = vrsqrt.pop %v1064
        %v1066 = vmul.f32 %v1064, %v1065
        %v1067 = vmul.f32 %v1066, 100.0
        %v1068 = vmax.f32 %v1067, 0.0
        %v1069 = vmin.f32 %v1068, 5000.0
        %v1070 = vlaneseq
        %v1071 = vshrl.u32 %v1070, 7
        %v1072 = vsub.s32 0, %v1071
        %v1073 = vrot.slane %v1069, %v1072
        %1075 = vbcast.lane.b32.xlu0 %v1073, 256
        %v1076 = vpop.permute.xlu0 %1075
        %v1077 = vlaneseq
        %v1078 = vshrl.u32 %v1077, 7
        %v1079 = vsub.s32 1, %v1078
        %v1080 = vrot.slane %v1069, %v1079
        %1082 = vbcast.lane.b32.xlu0 %v1080, 256
        %v1083 = vpop.permute.xlu0 %1082
        %v1084 = vlaneseq
        %v1085 = vshrl.u32 %v1084, 7
        %v1086 = vsub.s32 2, %v1085
        %v1087 = vrot.slane %v1069, %v1086
        %1089 = vbcast.lane.b32.xlu0 %v1087, 256
        %v1090 = vpop.permute.xlu0 %1089
        %v1091 = vlaneseq
        %v1092 = vshrl.u32 %v1091, 7
        %v1093 = vsub.s32 3, %v1092
        %v1094 = vrot.slane %v1069, %v1093
        %1096 = vbcast.lane.b32.xlu0 %v1094, 256
        %v1097 = vpop.permute.xlu0 %1096
        %v1098 = vlaneseq
        %v1099 = vshrl.u32 %v1098, 7
        %v1100 = vsub.s32 4, %v1099
        %v1101 = vrot.slane %v1069, %v1100
        %1103 = vbcast.lane.b32.xlu0 %v1101, 256
        %v1104 = vpop.permute.xlu0 %1103
        %v1105 = vlaneseq
        %v1106 = vshrl.u32 %v1105, 7
        %v1107 = vsub.s32 5, %v1106
        %v1108 = vrot.slane %v1069, %v1107
        %1110 = vbcast.lane.b32.xlu0 %v1108, 256
        %v1111 = vpop.permute.xlu0 %1110
        %v1112 = vlaneseq
        %v1113 = vshrl.u32 %v1112, 7
        %v1114 = vsub.s32 6, %v1113
        %v1115 = vrot.slane %v1069, %v1114
        %1117 = vbcast.lane.b32.xlu0 %v1115, 256
        %v1118 = vpop.permute.xlu0 %1117
        %v1119 = vlaneseq
        %v1120 = vshrl.u32 %v1119, 7
        %v1121 = vsub.s32 7, %v1120
        %v1122 = vrot.slane %v1069, %v1121
        %1124 = vbcast.lane.b32.xlu0 %v1122, 256
        %v1125 = vpop.permute.xlu0 %1124
        %v1127 = vlaneseq
        %v1128 = vshrl.u32 %v1127, 7
        %v1129 = vsub.s32 0, %v1128
        %v1130 = vrot.slane %v689, %v1129
        %v1132 = vmul.f32 %v1076, %v1130
        %v1133 = vmul.f32 %v1083, %v1130
        %v1134 = vmul.f32 %v1090, %v1130
        %v1135 = vmul.f32 %v1097, %v1130
        %v1136 = vmul.f32 %v1104, %v1130
        %v1137 = vmul.f32 %v1111, %v1130
        %v1138 = vmul.f32 %v1118, %v1130
        %v1139 = vmul.f32 %v1125, %v1130
        %v1140 = vand.u32 2147483647, %v1132
        %vm1141 = vcmp.le.f32.partialorder %v1140, 0.7853982
        %vm1142 = vcmp.lt.s32.totalorder %v1132, 0
        %v1143 = vand.u32 %v1132, 2139095040
        %v1144 = vshrl.u32 %v1143, 23
        %v1145 = vsub.s32 %v1144, 127
        %v1146 = vand.u32 2147483647, %v1132
        %v1147 = vand.u32 %v1146, 8388607
        %v1148 = vor.u32 %v1147, 8388608
        %v1149 = vsub.s32 0, %v1148
        %v1150 = vadd.s32 %v1145, 1
        %vm1151 = vcmp.gt.s32.totalorder %v1150, 0
        %v1152 = vsel %vm1151, %v1150, 0
        %v1153 = vshrl.u32 %v1152, 5
        %v1154 = vand.u32 %v1152, 31
        %v1155 = vsub.s32 32, %v1154
        %v1156 = vshrl.u32 683565275, %v1155
        %v1157 = vshll.u32 683565275, %v1154
        %v1158 = vshrl.u32 2475754826, %v1155
        %v1159 = vor.u32 %v1157, %v1158
        %v1160 = vshll.u32 2475754826, %v1154
        %v1161 = vshrl.u32 2131351028, %v1155
        %v1162 = vor.u32 %v1160, %v1161
        %v1163 = vshll.u32 2131351028, %v1154
        %v1164 = vshrl.u32 2102212464, %v1155
        %v1165 = vor.u32 %v1163, %v1164
        %v1166 = vshll.u32 2102212464, %v1154
        %v1167 = vshrl.u32 920167782, %v1155
        %v1168 = vor.u32 %v1166, %v1167
        %v1169 = vshll.u32 920167782, %v1154
        %v1170 = vshrl.u32 1326507024, %v1155
        %v1171 = vor.u32 %v1169, %v1170
        %vm1172 = vcmp.lt.s32.totalorder %v1153, 1
        %vm1173 = vcmp.lt.s32.totalorder %v1153, 2
        %vm1174 = vcmp.lt.s32.totalorder %v1153, 3
        %vm1175 = vcmp.lt.s32.totalorder %v1153, 4
        %v1176 = vsel %vm1172, %v1156, %v1159
        %v1177 = vsel %vm1175, %v1165, 2102212464
        %v1178 = vsel %vm1174, %v1162, %v1177
        %v1179 = vsel %vm1173, %v1176, %v1178
        %v1180 = vsel %vm1172, %v1159, %v1162
        %v1181 = vsel %vm1175, %v1168, 920167782
        %v1182 = vsel %vm1174, %v1165, %v1181
        %v1183 = vsel %vm1173, %v1180, %v1182
        %v1184 = vsel %vm1172, %v1162, %v1165
        %v1185 = vsel %vm1175, %v1171, 1326507024
        %v1186 = vsel %vm1174, %v1168, %v1185
        %v1187 = vsel %vm1173, %v1184, %v1186
        %v1188 = vshll.u32 %v1148, 8
        %v1189 = vmul.u32.u64.compose %v1188, %v1187
        %v1190 = vextract.low.u32 %v1189
        %v1191 = vextract.high.u32 %v1189
        %v1192 = vmul.u32.u64.compose %v1188, %v1183
        %v1193 = vextract.low.u32 %v1192
        %v1194 = vextract.high.u32 %v1192
        %v1195 = vmul.u32 %v1188, %v1179
        %v1196 = vadd.s32 %v1191, %v1193
        %vm1197 = vc.u32 %v1191, %v1193
        %v1198 = vadd.s32 %v1194, 1
        %v1199 = vsel %vm1197, %v1198, %v1194
        %v1200 = vadd.s32 %v1195, %v1199
        %v1201 = vadd.s32 %v1200, 536870912
        %v1202 = vshrl.u32 %v1201, 30
        %v1203 = vshll.u32 %v1202, 30
        %v1204 = vsub.s32 %v1200, %v1203
        %vm1205 = vcmp.lt.s32.totalorder %v1204, 0
        %v1206 = vsub.s32 0, %v1204
        %v1207 = vsel %vm1205, %v1206, %v1204
        %v1208 = vclz %v1207
        %v1209 = vsub.s32 %v1208, 2
        %vm1210 = vcmp.gt.s32.totalorder 0, %v1209
        %v1211 = vsel %vm1210, 0, %v1209
        %v1212 = vsub.s32 32, %v1211
        %v1213 = vshll.u32 %v1204, %v1211
        %v1214 = vshrl.u32 %v1196, %v1212
        %v1215 = vor.u32 %v1213, %v1214
        %v1216 = vsub.s32 4294967266, %v1211
        %v1217 = vadd.s32 %v1216, 127
        %v1218 = vshll.u32 %v1217, 23
        %v1219 = vor.u32 4788187, %v1218
        %v1220 = vand.u32 2147483647, %v1219
        %v1222 = vcvt.s32.f32 %v1215
        %v1223 = vmul.f32 %v1222, %v1220
        %v1224 = vxor.u32 %v1223, 2147483648
        %v1225 = vsel %vm1142, %v1224, %v1223
        %v1226 = vsub.s32 4, %v1202
        %v1227 = vsel %vm1142, %v1226, %v1202
        %v1228 = vsel %vm1141, %v1132, %v1225
        %v1229 = vsel %vm1141, 0, %v1227
        %v1230 = vcosq.f32.pop %v1228
        %v1231 = vsinq.f32.pop %v1228
        %vm1232 = vweird.f32 %v1132
        %v1233 = vand.u32 %v1229, 3
        %vm1234 = vcmp.lt.s32.totalorder %v1233, 2
        %vm1235 = vcmp.eq.s32.totalorder %v1233, 0
        %v1236 = vxor.u32 %v1231, 2147483648
        %v1237 = vsel %vm1235, %v1230, %v1236
        %vm1238 = vcmp.eq.s32.totalorder %v1233, 2
        %v1239 = vxor.u32 %v1230, 2147483648
        %v1240 = vsel %vm1238, %v1239, %v1231
        %v1241 = vsel %vm1234, %v1237, %v1240
        %v1242 = vsel %vm1232, nan, %v1241
        %v1243 = vand.u32 2147483647, %v1133
        %vm1244 = vcmp.le.f32.partialorder %v1243, 0.7853982
        %vm1245 = vcmp.lt.s32.totalorder %v1133, 0
        %v1246 = vand.u32 %v1133, 2139095040
        %v1247 = vshrl.u32 %v1246, 23
        %v1248 = vsub.s32 %v1247, 127
        %v1249 = vand.u32 2147483647, %v1133
        %v1250 = vand.u32 %v1249, 8388607
        %v1251 = vor.u32 %v1250, 8388608
        %v1252 = vsub.s32 0, %v1251
        %v1253 = vadd.s32 %v1248, 1
        %vm1254 = vcmp.gt.s32.totalorder %v1253, 0
        %v1255 = vsel %vm1254, %v1253, 0
        %v1256 = vshrl.u32 %v1255, 5
        %v1257 = vand.u32 %v1255, 31
        %v1258 = vsub.s32 32, %v1257
        %v1259 = vshrl.u32 683565275, %v1258
        %v1260 = vshll.u32 683565275, %v1257
        %v1261 = vshrl.u32 2475754826, %v1258
        %v1262 = vor.u32 %v1260, %v1261
        %v1263 = vshll.u32 2475754826, %v1257
        %v1264 = vshrl.u32 2131351028, %v1258
        %v1265 = vor.u32 %v1263, %v1264
        %v1266 = vshll.u32 2131351028, %v1257
        %v1267 = vshrl.u32 2102212464, %v1258
        %v1268 = vor.u32 %v1266, %v1267
        %v1269 = vshll.u32 2102212464, %v1257
        %v1270 = vshrl.u32 920167782, %v1258
        %v1271 = vor.u32 %v1269, %v1270
        %v1272 = vshll.u32 920167782, %v1257
        %v1273 = vshrl.u32 1326507024, %v1258
        %v1274 = vor.u32 %v1272, %v1273
        %vm1275 = vcmp.lt.s32.totalorder %v1256, 1
        %vm1276 = vcmp.lt.s32.totalorder %v1256, 2
        %vm1277 = vcmp.lt.s32.totalorder %v1256, 3
        %vm1278 = vcmp.lt.s32.totalorder %v1256, 4
        %v1279 = vsel %vm1275, %v1259, %v1262
        %v1280 = vsel %vm1278, %v1268, 2102212464
        %v1281 = vsel %vm1277, %v1265, %v1280
        %v1282 = vsel %vm1276, %v1279, %v1281
        %v1283 = vsel %vm1275, %v1262, %v1265
        %v1284 = vsel %vm1278, %v1271, 920167782
        %v1285 = vsel %vm1277, %v1268, %v1284
        %v1286 = vsel %vm1276, %v1283, %v1285
        %v1287 = vsel %vm1275, %v1265, %v1268
        %v1288 = vsel %vm1278, %v1274, 1326507024
        %v1289 = vsel %vm1277, %v1271, %v1288
        %v1290 = vsel %vm1276, %v1287, %v1289
        %v1291 = vshll.u32 %v1251, 8
        %v1292 = vmul.u32.u64.compose %v1291, %v1290
        %v1293 = vextract.low.u32 %v1292
        %v1294 = vextract.high.u32 %v1292
        %v1295 = vmul.u32.u64.compose %v1291, %v1286
        %v1296 = vextract.low.u32 %v1295
        %v1297 = vextract.high.u32 %v1295
        %v1298 = vmul.u32 %v1291, %v1282
        %v1299 = vadd.s32 %v1294, %v1296
        %vm1300 = vc.u32 %v1294, %v1296
        %v1301 = vadd.s32 %v1297, 1
        %v1302 = vsel %vm1300, %v1301, %v1297
        %v1303 = vadd.s32 %v1298, %v1302
        %v1304 = vadd.s32 %v1303, 536870912
        %v1305 = vshrl.u32 %v1304, 30
        %v1306 = vshll.u32 %v1305, 30
        %v1307 = vsub.s32 %v1303, %v1306
        %vm1308 = vcmp.lt.s32.totalorder %v1307, 0
        %v1309 = vsub.s32 0, %v1307
        %v1310 = vsel %vm1308, %v1309, %v1307
        %v1311 = vclz %v1310
        %v1312 = vsub.s32 %v1311, 2
        %vm1313 = vcmp.gt.s32.totalorder 0, %v1312
        %v1314 = vsel %vm1313, 0, %v1312
        %v1315 = vsub.s32 32, %v1314
        %v1316 = vshll.u32 %v1307, %v1314
        %v1317 = vshrl.u32 %v1299, %v1315
        %v1318 = vor.u32 %v1316, %v1317
        %v1319 = vsub.s32 4294967266, %v1314
        %v1320 = vadd.s32 %v1319, 127
        %v1321 = vshll.u32 %v1320, 23
        %v1322 = vor.u32 4788187, %v1321
        %v1323 = vand.u32 2147483647, %v1322
        %v1325 = vcvt.s32.f32 %v1318
        %v1326 = vmul.f32 %v1325, %v1323
        %v1327 = vxor.u32 %v1326, 2147483648
        %v1328 = vsel %vm1245, %v1327, %v1326
        %v1329 = vsub.s32 4, %v1305
        %v1330 = vsel %vm1245, %v1329, %v1305
        %v1331 = vsel %vm1244, %v1133, %v1328
        %v1332 = vsel %vm1244, 0, %v1330
        %v1333 = vcosq.f32.pop %v1331
        %v1334 = vsinq.f32.pop %v1331
        %vm1335 = vweird.f32 %v1133
        %v1336 = vand.u32 %v1332, 3
        %vm1337 = vcmp.lt.s32.totalorder %v1336, 2
        %vm1338 = vcmp.eq.s32.totalorder %v1336, 0
        %v1339 = vxor.u32 %v1334, 2147483648
        %v1340 = vsel %vm1338, %v1333, %v1339
        %vm1341 = vcmp.eq.s32.totalorder %v1336, 2
        %v1342 = vxor.u32 %v1333, 2147483648
        %v1343 = vsel %vm1341, %v1342, %v1334
        %v1344 = vsel %vm1337, %v1340, %v1343
        %v1345 = vsel %vm1335, nan, %v1344
        %v1346 = vand.u32 2147483647, %v1134
        %vm1347 = vcmp.le.f32.partialorder %v1346, 0.7853982
        %vm1348 = vcmp.lt.s32.totalorder %v1134, 0
        %v1349 = vand.u32 %v1134, 2139095040
        %v1350 = vshrl.u32 %v1349, 23
        %v1351 = vsub.s32 %v1350, 127
        %v1352 = vand.u32 2147483647, %v1134
        %v1353 = vand.u32 %v1352, 8388607
        %v1354 = vor.u32 %v1353, 8388608
        %v1355 = vsub.s32 0, %v1354
        %v1356 = vadd.s32 %v1351, 1
        %vm1357 = vcmp.gt.s32.totalorder %v1356, 0
        %v1358 = vsel %vm1357, %v1356, 0
        %v1359 = vshrl.u32 %v1358, 5
        %v1360 = vand.u32 %v1358, 31
        %v1361 = vsub.s32 32, %v1360
        %v1362 = vshrl.u32 683565275, %v1361
        %v1363 = vshll.u32 683565275, %v1360
        %v1364 = vshrl.u32 2475754826, %v1361
        %v1365 = vor.u32 %v1363, %v1364
        %v1366 = vshll.u32 2475754826, %v1360
        %v1367 = vshrl.u32 2131351028, %v1361
        %v1368 = vor.u32 %v1366, %v1367
        %v1369 = vshll.u32 2131351028, %v1360
        %v1370 = vshrl.u32 2102212464, %v1361
        %v1371 = vor.u32 %v1369, %v1370
        %v1372 = vshll.u32 2102212464, %v1360
        %v1373 = vshrl.u32 920167782, %v1361
        %v1374 = vor.u32 %v1372, %v1373
        %v1375 = vshll.u32 920167782, %v1360
        %v1376 = vshrl.u32 1326507024, %v1361
        %v1377 = vor.u32 %v1375, %v1376
        %vm1378 = vcmp.lt.s32.totalorder %v1359, 1
        %vm1379 = vcmp.lt.s32.totalorder %v1359, 2
        %vm1380 = vcmp.lt.s32.totalorder %v1359, 3
        %vm1381 = vcmp.lt.s32.totalorder %v1359, 4
        %v1382 = vsel %vm1378, %v1362, %v1365
        %v1383 = vsel %vm1381, %v1371, 2102212464
        %v1384 = vsel %vm1380, %v1368, %v1383
        %v1385 = vsel %vm1379, %v1382, %v1384
        %v1386 = vsel %vm1378, %v1365, %v1368
        %v1387 = vsel %vm1381, %v1374, 920167782
        %v1388 = vsel %vm1380, %v1371, %v1387
        %v1389 = vsel %vm1379, %v1386, %v1388
        %v1390 = vsel %vm1378, %v1368, %v1371
        %v1391 = vsel %vm1381, %v1377, 1326507024
        %v1392 = vsel %vm1380, %v1374, %v1391
        %v1393 = vsel %vm1379, %v1390, %v1392
        %v1394 = vshll.u32 %v1354, 8
        %v1395 = vmul.u32.u64.compose %v1394, %v1393
        %v1396 = vextract.low.u32 %v1395
        %v1397 = vextract.high.u32 %v1395
        %v1398 = vmul.u32.u64.compose %v1394, %v1389
        %v1399 = vextract.low.u32 %v1398
        %v1400 = vextract.high.u32 %v1398
        %v1401 = vmul.u32 %v1394, %v1385
        %v1402 = vadd.s32 %v1397, %v1399
        %vm1403 = vc.u32 %v1397, %v1399
        %v1404 = vadd.s32 %v1400, 1
        %v1405 = vsel %vm1403, %v1404, %v1400
        %v1406 = vadd.s32 %v1401, %v1405
        %v1407 = vadd.s32 %v1406, 536870912
        %v1408 = vshrl.u32 %v1407, 30
        %v1409 = vshll.u32 %v1408, 30
        %v1410 = vsub.s32 %v1406, %v1409
        %vm1411 = vcmp.lt.s32.totalorder %v1410, 0
        %v1412 = vsub.s32 0, %v1410
        %v1413 = vsel %vm1411, %v1412, %v1410
        %v1414 = vclz %v1413
        %v1415 = vsub.s32 %v1414, 2
        %vm1416 = vcmp.gt.s32.totalorder 0, %v1415
        %v1417 = vsel %vm1416, 0, %v1415
        %v1418 = vsub.s32 32, %v1417
        %v1419 = vshll.u32 %v1410, %v1417
        %v1420 = vshrl.u32 %v1402, %v1418
        %v1421 = vor.u32 %v1419, %v1420
        %v1422 = vsub.s32 4294967266, %v1417
        %v1423 = vadd.s32 %v1422, 127
        %v1424 = vshll.u32 %v1423, 23
        %v1425 = vor.u32 4788187, %v1424
        %v1426 = vand.u32 2147483647, %v1425
        %v1428 = vcvt.s32.f32 %v1421
        %v1429 = vmul.f32 %v1428, %v1426
        %v1430 = vxor.u32 %v1429, 2147483648
        %v1431 = vsel %vm1348, %v1430, %v1429
        %v1432 = vsub.s32 4, %v1408
        %v1433 = vsel %vm1348, %v1432, %v1408
        %v1434 = vsel %vm1347, %v1134, %v1431
        %v1435 = vsel %vm1347, 0, %v1433
        %v1436 = vcosq.f32.pop %v1434
        %v1437 = vsinq.f32.pop %v1434
        %vm1438 = vweird.f32 %v1134
        %v1439 = vand.u32 %v1435, 3
        %vm1440 = vcmp.lt.s32.totalorder %v1439, 2
        %vm1441 = vcmp.eq.s32.totalorder %v1439, 0
        %v1442 = vxor.u32 %v1437, 2147483648
        %v1443 = vsel %vm1441, %v1436, %v1442
        %vm1444 = vcmp.eq.s32.totalorder %v1439, 2
        %v1445 = vxor.u32 %v1436, 2147483648
        %v1446 = vsel %vm1444, %v1445, %v1437
        %v1447 = vsel %vm1440, %v1443, %v1446
        %v1448 = vsel %vm1438, nan, %v1447
        %v1449 = vand.u32 2147483647, %v1135
        %vm1450 = vcmp.le.f32.partialorder %v1449, 0.7853982
        %vm1451 = vcmp.lt.s32.totalorder %v1135, 0
        %v1452 = vand.u32 %v1135, 2139095040
        %v1453 = vshrl.u32 %v1452, 23
        %v1454 = vsub.s32 %v1453, 127
        %v1455 = vand.u32 2147483647, %v1135
        %v1456 = vand.u32 %v1455, 8388607
        %v1457 = vor.u32 %v1456, 8388608
        %v1458 = vsub.s32 0, %v1457
        %v1459 = vadd.s32 %v1454, 1
        %vm1460 = vcmp.gt.s32.totalorder %v1459, 0
        %v1461 = vsel %vm1460, %v1459, 0
        %v1462 = vshrl.u32 %v1461, 5
        %v1463 = vand.u32 %v1461, 31
        %v1464 = vsub.s32 32, %v1463
        %v1465 = vshrl.u32 683565275, %v1464
        %v1466 = vshll.u32 683565275, %v1463
        %v1467 = vshrl.u32 2475754826, %v1464
        %v1468 = vor.u32 %v1466, %v1467
        %v1469 = vshll.u32 2475754826, %v1463
        %v1470 = vshrl.u32 2131351028, %v1464
        %v1471 = vor.u32 %v1469, %v1470
        %v1472 = vshll.u32 2131351028, %v1463
        %v1473 = vshrl.u32 2102212464, %v1464
        %v1474 = vor.u32 %v1472, %v1473
        %v1475 = vshll.u32 2102212464, %v1463
        %v1476 = vshrl.u32 920167782, %v1464
        %v1477 = vor.u32 %v1475, %v1476
        %v1478 = vshll.u32 920167782, %v1463
        %v1479 = vshrl.u32 1326507024, %v1464
        %v1480 = vor.u32 %v1478, %v1479
        %vm1481 = vcmp.lt.s32.totalorder %v1462, 1
        %vm1482 = vcmp.lt.s32.totalorder %v1462, 2
        %vm1483 = vcmp.lt.s32.totalorder %v1462, 3
        %vm1484 = vcmp.lt.s32.totalorder %v1462, 4
        %v1485 = vsel %vm1481, %v1465, %v1468
        %v1486 = vsel %vm1484, %v1474, 2102212464
        %v1487 = vsel %vm1483, %v1471, %v1486
        %v1488 = vsel %vm1482, %v1485, %v1487
        %v1489 = vsel %vm1481, %v1468, %v1471
        %v1490 = vsel %vm1484, %v1477, 920167782
        %v1491 = vsel %vm1483, %v1474, %v1490
        %v1492 = vsel %vm1482, %v1489, %v1491
        %v1493 = vsel %vm1481, %v1471, %v1474
        %v1494 = vsel %vm1484, %v1480, 1326507024
        %v1495 = vsel %vm1483, %v1477, %v1494
        %v1496 = vsel %vm1482, %v1493, %v1495
        %v1497 = vshll.u32 %v1457, 8
        %v1498 = vmul.u32.u64.compose %v1497, %v1496
        %v1499 = vextract.low.u32 %v1498
        %v1500 = vextract.high.u32 %v1498
        %v1501 = vmul.u32.u64.compose %v1497, %v1492
        %v1502 = vextract.low.u32 %v1501
        %v1503 = vextract.high.u32 %v1501
        %v1504 = vmul.u32 %v1497, %v1488
        %v1505 = vadd.s32 %v1500, %v1502
        %vm1506 = vc.u32 %v1500, %v1502
        %v1507 = vadd.s32 %v1503, 1
        %v1508 = vsel %vm1506, %v1507, %v1503
        %v1509 = vadd.s32 %v1504, %v1508
        %v1510 = vadd.s32 %v1509, 536870912
        %v1511 = vshrl.u32 %v1510, 30
        %v1512 = vshll.u32 %v1511, 30
        %v1513 = vsub.s32 %v1509, %v1512
        %vm1514 = vcmp.lt.s32.totalorder %v1513, 0
        %v1515 = vsub.s32 0, %v1513
        %v1516 = vsel %vm1514, %v1515, %v1513
        %v1517 = vclz %v1516
        %v1518 = vsub.s32 %v1517, 2
        %vm1519 = vcmp.gt.s32.totalorder 0, %v1518
        %v1520 = vsel %vm1519, 0, %v1518
        %v1521 = vsub.s32 32, %v1520
        %v1522 = vshll.u32 %v1513, %v1520
        %v1523 = vshrl.u32 %v1505, %v1521
        %v1524 = vor.u32 %v1522, %v1523
        %v1525 = vsub.s32 4294967266, %v1520
        %v1526 = vadd.s32 %v1525, 127
        %v1527 = vshll.u32 %v1526, 23
        %v1528 = vor.u32 4788187, %v1527
        %v1529 = vand.u32 2147483647, %v1528
        %v1531 = vcvt.s32.f32 %v1524
        %v1532 = vmul.f32 %v1531, %v1529
        %v1533 = vxor.u32 %v1532, 2147483648
        %v1534 = vsel %vm1451, %v1533, %v1532
        %v1535 = vsub.s32 4, %v1511
        %v1536 = vsel %vm1451, %v1535, %v1511
        %v1537 = vsel %vm1450, %v1135, %v1534
        %v1538 = vsel %vm1450, 0, %v1536
        %v1539 = vcosq.f32.pop %v1537
        %v1540 = vsinq.f32.pop %v1537
        %vm1541 = vweird.f32 %v1135
        %v1542 = vand.u32 %v1538, 3
        %vm1543 = vcmp.lt.s32.totalorder %v1542, 2
        %vm1544 = vcmp.eq.s32.totalorder %v1542, 0
        %v1545 = vxor.u32 %v1540, 2147483648
        %v1546 = vsel %vm1544, %v1539, %v1545
        %vm1547 = vcmp.eq.s32.totalorder %v1542, 2
        %v1548 = vxor.u32 %v1539, 2147483648
        %v1549 = vsel %vm1547, %v1548, %v1540
        %v1550 = vsel %vm1543, %v1546, %v1549
        %v1551 = vsel %vm1541, nan, %v1550
        %v1552 = vand.u32 2147483647, %v1136
        %vm1553 = vcmp.le.f32.partialorder %v1552, 0.7853982
        %vm1554 = vcmp.lt.s32.totalorder %v1136, 0
        %v1555 = vand.u32 %v1136, 2139095040
        %v1556 = vshrl.u32 %v1555, 23
        %v1557 = vsub.s32 %v1556, 127
        %v1558 = vand.u32 2147483647, %v1136
        %v1559 = vand.u32 %v1558, 8388607
        %v1560 = vor.u32 %v1559, 8388608
        %v1561 = vsub.s32 0, %v1560
        %v1562 = vadd.s32 %v1557, 1
        %vm1563 = vcmp.gt.s32.totalorder %v1562, 0
        %v1564 = vsel %vm1563, %v1562, 0
        %v1565 = vshrl.u32 %v1564, 5
        %v1566 = vand.u32 %v1564, 31
        %v1567 = vsub.s32 32, %v1566
        %v1568 = vshrl.u32 683565275, %v1567
        %v1569 = vshll.u32 683565275, %v1566
        %v1570 = vshrl.u32 2475754826, %v1567
        %v1571 = vor.u32 %v1569, %v1570
        %v1572 = vshll.u32 2475754826, %v1566
        %v1573 = vshrl.u32 2131351028, %v1567
        %v1574 = vor.u32 %v1572, %v1573
        %v1575 = vshll.u32 2131351028, %v1566
        %v1576 = vshrl.u32 2102212464, %v1567
        %v1577 = vor.u32 %v1575, %v1576
        %v1578 = vshll.u32 2102212464, %v1566
        %v1579 = vshrl.u32 920167782, %v1567
        %v1580 = vor.u32 %v1578, %v1579
        %v1581 = vshll.u32 920167782, %v1566
        %v1582 = vshrl.u32 1326507024, %v1567
        %v1583 = vor.u32 %v1581, %v1582
        %vm1584 = vcmp.lt.s32.totalorder %v1565, 1
        %vm1585 = vcmp.lt.s32.totalorder %v1565, 2
        %vm1586 = vcmp.lt.s32.totalorder %v1565, 3
        %vm1587 = vcmp.lt.s32.totalorder %v1565, 4
        %v1588 = vsel %vm1584, %v1568, %v1571
        %v1589 = vsel %vm1587, %v1577, 2102212464
        %v1590 = vsel %vm1586, %v1574, %v1589
        %v1591 = vsel %vm1585, %v1588, %v1590
        %v1592 = vsel %vm1584, %v1571, %v1574
        %v1593 = vsel %vm1587, %v1580, 920167782
        %v1594 = vsel %vm1586, %v1577, %v1593
        %v1595 = vsel %vm1585, %v1592, %v1594
        %v1596 = vsel %vm1584, %v1574, %v1577
        %v1597 = vsel %vm1587, %v1583, 1326507024
        %v1598 = vsel %vm1586, %v1580, %v1597
        %v1599 = vsel %vm1585, %v1596, %v1598
        %v1600 = vshll.u32 %v1560, 8
        %v1601 = vmul.u32.u64.compose %v1600, %v1599
        %v1602 = vextract.low.u32 %v1601
        %v1603 = vextract.high.u32 %v1601
        %v1604 = vmul.u32.u64.compose %v1600, %v1595
        %v1605 = vextract.low.u32 %v1604
        %v1606 = vextract.high.u32 %v1604
        %v1607 = vmul.u32 %v1600, %v1591
        %v1608 = vadd.s32 %v1603, %v1605
        %vm1609 = vc.u32 %v1603, %v1605
        %v1610 = vadd.s32 %v1606, 1
        %v1611 = vsel %vm1609, %v1610, %v1606
        %v1612 = vadd.s32 %v1607, %v1611
        %v1613 = vadd.s32 %v1612, 536870912
        %v1614 = vshrl.u32 %v1613, 30
        %v1615 = vshll.u32 %v1614, 30
        %v1616 = vsub.s32 %v1612, %v1615
        %vm1617 = vcmp.lt.s32.totalorder %v1616, 0
        %v1618 = vsub.s32 0, %v1616
        %v1619 = vsel %vm1617, %v1618, %v1616
        %v1620 = vclz %v1619
        %v1621 = vsub.s32 %v1620, 2
        %vm1622 = vcmp.gt.s32.totalorder 0, %v1621
        %v1623 = vsel %vm1622, 0, %v1621
        %v1624 = vsub.s32 32, %v1623
        %v1625 = vshll.u32 %v1616, %v1623
        %v1626 = vshrl.u32 %v1608, %v1624
        %v1627 = vor.u32 %v1625, %v1626
        %v1628 = vsub.s32 4294967266, %v1623
        %v1629 = vadd.s32 %v1628, 127
        %v1630 = vshll.u32 %v1629, 23
        %v1631 = vor.u32 4788187, %v1630
        %v1632 = vand.u32 2147483647, %v1631
        %v1634 = vcvt.s32.f32 %v1627
        %v1635 = vmul.f32 %v1634, %v1632
        %v1636 = vxor.u32 %v1635, 2147483648
        %v1637 = vsel %vm1554, %v1636, %v1635
        %v1638 = vsub.s32 4, %v1614
        %v1639 = vsel %vm1554, %v1638, %v1614
        %v1640 = vsel %vm1553, %v1136, %v1637
        %v1641 = vsel %vm1553, 0, %v1639
        %v1642 = vcosq.f32.pop %v1640
        %v1643 = vsinq.f32.pop %v1640
        %vm1644 = vweird.f32 %v1136
        %v1645 = vand.u32 %v1641, 3
        %vm1646 = vcmp.lt.s32.totalorder %v1645, 2
        %vm1647 = vcmp.eq.s32.totalorder %v1645, 0
        %v1648 = vxor.u32 %v1643, 2147483648
        %v1649 = vsel %vm1647, %v1642, %v1648
        %vm1650 = vcmp.eq.s32.totalorder %v1645, 2
        %v1651 = vxor.u32 %v1642, 2147483648
        %v1652 = vsel %vm1650, %v1651, %v1643
        %v1653 = vsel %vm1646, %v1649, %v1652
        %v1654 = vsel %vm1644, nan, %v1653
        %v1655 = vand.u32 2147483647, %v1137
        %vm1656 = vcmp.le.f32.partialorder %v1655, 0.7853982
        %vm1657 = vcmp.lt.s32.totalorder %v1137, 0
        %v1658 = vand.u32 %v1137, 2139095040
        %v1659 = vshrl.u32 %v1658, 23
        %v1660 = vsub.s32 %v1659, 127
        %v1661 = vand.u32 2147483647, %v1137
        %v1662 = vand.u32 %v1661, 8388607
        %v1663 = vor.u32 %v1662, 8388608
        %v1664 = vsub.s32 0, %v1663
        %v1665 = vadd.s32 %v1660, 1
        %vm1666 = vcmp.gt.s32.totalorder %v1665, 0
        %v1667 = vsel %vm1666, %v1665, 0
        %v1668 = vshrl.u32 %v1667, 5
        %v1669 = vand.u32 %v1667, 31
        %v1670 = vsub.s32 32, %v1669
        %v1671 = vshrl.u32 683565275, %v1670
        %v1672 = vshll.u32 683565275, %v1669
        %v1673 = vshrl.u32 2475754826, %v1670
        %v1674 = vor.u32 %v1672, %v1673
        %v1675 = vshll.u32 2475754826, %v1669
        %v1676 = vshrl.u32 2131351028, %v1670
        %v1677 = vor.u32 %v1675, %v1676
        %v1678 = vshll.u32 2131351028, %v1669
        %v1679 = vshrl.u32 2102212464, %v1670
        %v1680 = vor.u32 %v1678, %v1679
        %v1681 = vshll.u32 2102212464, %v1669
        %v1682 = vshrl.u32 920167782, %v1670
        %v1683 = vor.u32 %v1681, %v1682
        %v1684 = vshll.u32 920167782, %v1669
        %v1685 = vshrl.u32 1326507024, %v1670
        %v1686 = vor.u32 %v1684, %v1685
        %vm1687 = vcmp.lt.s32.totalorder %v1668, 1
        %vm1688 = vcmp.lt.s32.totalorder %v1668, 2
        %vm1689 = vcmp.lt.s32.totalorder %v1668, 3
        %vm1690 = vcmp.lt.s32.totalorder %v1668, 4
        %v1691 = vsel %vm1687, %v1671, %v1674
        %v1692 = vsel %vm1690, %v1680, 2102212464
        %v1693 = vsel %vm1689, %v1677, %v1692
        %v1694 = vsel %vm1688, %v1691, %v1693
        %v1695 = vsel %vm1687, %v1674, %v1677
        %v1696 = vsel %vm1690, %v1683, 920167782
        %v1697 = vsel %vm1689, %v1680, %v1696
        %v1698 = vsel %vm1688, %v1695, %v1697
        %v1699 = vsel %vm1687, %v1677, %v1680
        %v1700 = vsel %vm1690, %v1686, 1326507024
        %v1701 = vsel %vm1689, %v1683, %v1700
        %v1702 = vsel %vm1688, %v1699, %v1701
        %v1703 = vshll.u32 %v1663, 8
        %v1704 = vmul.u32.u64.compose %v1703, %v1702
        %v1705 = vextract.low.u32 %v1704
        %v1706 = vextract.high.u32 %v1704
        %v1707 = vmul.u32.u64.compose %v1703, %v1698
        %v1708 = vextract.low.u32 %v1707
        %v1709 = vextract.high.u32 %v1707
        %v1710 = vmul.u32 %v1703, %v1694
        %v1711 = vadd.s32 %v1706, %v1708
        %vm1712 = vc.u32 %v1706, %v1708
        %v1713 = vadd.s32 %v1709, 1
        %v1714 = vsel %vm1712, %v1713, %v1709
        %v1715 = vadd.s32 %v1710, %v1714
        %v1716 = vadd.s32 %v1715, 536870912
        %v1717 = vshrl.u32 %v1716, 30
        %v1718 = vshll.u32 %v1717, 30
        %v1719 = vsub.s32 %v1715, %v1718
        %vm1720 = vcmp.lt.s32.totalorder %v1719, 0
        %v1721 = vsub.s32 0, %v1719
        %v1722 = vsel %vm1720, %v1721, %v1719
        %v1723 = vclz %v1722
        %v1724 = vsub.s32 %v1723, 2
        %vm1725 = vcmp.gt.s32.totalorder 0, %v1724
        %v1726 = vsel %vm1725, 0, %v1724
        %v1727 = vsub.s32 32, %v1726
        %v1728 = vshll.u32 %v1719, %v1726
        %v1729 = vshrl.u32 %v1711, %v1727
        %v1730 = vor.u32 %v1728, %v1729
        %v1731 = vsub.s32 4294967266, %v1726
        %v1732 = vadd.s32 %v1731, 127
        %v1733 = vshll.u32 %v1732, 23
        %v1734 = vor.u32 4788187, %v1733
        %v1735 = vand.u32 2147483647, %v1734
        %v1737 = vcvt.s32.f32 %v1730
        %v1738 = vmul.f32 %v1737, %v1735
        %v1739 = vxor.u32 %v1738, 2147483648
        %v1740 = vsel %vm1657, %v1739, %v1738
        %v1741 = vsub.s32 4, %v1717
        %v1742 = vsel %vm1657, %v1741, %v1717
        %v1743 = vsel %vm1656, %v1137, %v1740
        %v1744 = vsel %vm1656, 0, %v1742
        %v1745 = vcosq.f32.pop %v1743
        %v1746 = vsinq.f32.pop %v1743
        %vm1747 = vweird.f32 %v1137
        %v1748 = vand.u32 %v1744, 3
        %vm1749 = vcmp.lt.s32.totalorder %v1748, 2
        %vm1750 = vcmp.eq.s32.totalorder %v1748, 0
        %v1751 = vxor.u32 %v1746, 2147483648
        %v1752 = vsel %vm1750, %v1745, %v1751
        %vm1753 = vcmp.eq.s32.totalorder %v1748, 2
        %v1754 = vxor.u32 %v1745, 2147483648
        %v1755 = vsel %vm1753, %v1754, %v1746
        %v1756 = vsel %vm1749, %v1752, %v1755
        %v1757 = vsel %vm1747, nan, %v1756
        %v1758 = vand.u32 2147483647, %v1138
        %vm1759 = vcmp.le.f32.partialorder %v1758, 0.7853982
        %vm1760 = vcmp.lt.s32.totalorder %v1138, 0
        %v1761 = vand.u32 %v1138, 2139095040
        %v1762 = vshrl.u32 %v1761, 23
        %v1763 = vsub.s32 %v1762, 127
        %v1764 = vand.u32 2147483647, %v1138
        %v1765 = vand.u32 %v1764, 8388607
        %v1766 = vor.u32 %v1765, 8388608
        %v1767 = vsub.s32 0, %v1766
        %v1768 = vadd.s32 %v1763, 1
        %vm1769 = vcmp.gt.s32.totalorder %v1768, 0
        %v1770 = vsel %vm1769, %v1768, 0
        %v1771 = vshrl.u32 %v1770, 5
        %v1772 = vand.u32 %v1770, 31
        %v1773 = vsub.s32 32, %v1772
        %v1774 = vshrl.u32 683565275, %v1773
        %v1775 = vshll.u32 683565275, %v1772
        %v1776 = vshrl.u32 2475754826, %v1773
        %v1777 = vor.u32 %v1775, %v1776
        %v1778 = vshll.u32 2475754826, %v1772
        %v1779 = vshrl.u32 2131351028, %v1773
        %v1780 = vor.u32 %v1778, %v1779
        %v1781 = vshll.u32 2131351028, %v1772
        %v1782 = vshrl.u32 2102212464, %v1773
        %v1783 = vor.u32 %v1781, %v1782
        %v1784 = vshll.u32 2102212464, %v1772
        %v1785 = vshrl.u32 920167782, %v1773
        %v1786 = vor.u32 %v1784, %v1785
        %v1787 = vshll.u32 920167782, %v1772
        %v1788 = vshrl.u32 1326507024, %v1773
        %v1789 = vor.u32 %v1787, %v1788
        %vm1790 = vcmp.lt.s32.totalorder %v1771, 1
        %vm1791 = vcmp.lt.s32.totalorder %v1771, 2
        %vm1792 = vcmp.lt.s32.totalorder %v1771, 3
        %vm1793 = vcmp.lt.s32.totalorder %v1771, 4
        %v1794 = vsel %vm1790, %v1774, %v1777
        %v1795 = vsel %vm1793, %v1783, 2102212464
        %v1796 = vsel %vm1792, %v1780, %v1795
        %v1797 = vsel %vm1791, %v1794, %v1796
        %v1798 = vsel %vm1790, %v1777, %v1780
        %v1799 = vsel %vm1793, %v1786, 920167782
        %v1800 = vsel %vm1792, %v1783, %v1799
        %v1801 = vsel %vm1791, %v1798, %v1800
        %v1802 = vsel %vm1790, %v1780, %v1783
        %v1803 = vsel %vm1793, %v1789, 1326507024
        %v1804 = vsel %vm1792, %v1786, %v1803
        %v1805 = vsel %vm1791, %v1802, %v1804
        %v1806 = vshll.u32 %v1766, 8
        %v1807 = vmul.u32.u64.compose %v1806, %v1805
        %v1808 = vextract.low.u32 %v1807
        %v1809 = vextract.high.u32 %v1807
        %v1810 = vmul.u32.u64.compose %v1806, %v1801
        %v1811 = vextract.low.u32 %v1810
        %v1812 = vextract.high.u32 %v1810
        %v1813 = vmul.u32 %v1806, %v1797
        %v1814 = vadd.s32 %v1809, %v1811
        %vm1815 = vc.u32 %v1809, %v1811
        %v1816 = vadd.s32 %v1812, 1
        %v1817 = vsel %vm1815, %v1816, %v1812
        %v1818 = vadd.s32 %v1813, %v1817
        %v1819 = vadd.s32 %v1818, 536870912
        %v1820 = vshrl.u32 %v1819, 30
        %v1821 = vshll.u32 %v1820, 30
        %v1822 = vsub.s32 %v1818, %v1821
        %vm1823 = vcmp.lt.s32.totalorder %v1822, 0
        %v1824 = vsub.s32 0, %v1822
        %v1825 = vsel %vm1823, %v1824, %v1822
        %v1826 = vclz %v1825
        %v1827 = vsub.s32 %v1826, 2
        %vm1828 = vcmp.gt.s32.totalorder 0, %v1827
        %v1829 = vsel %vm1828, 0, %v1827
        %v1830 = vsub.s32 32, %v1829
        %v1831 = vshll.u32 %v1822, %v1829
        %v1832 = vshrl.u32 %v1814, %v1830
        %v1833 = vor.u32 %v1831, %v1832
        %v1834 = vsub.s32 4294967266, %v1829
        %v1835 = vadd.s32 %v1834, 127
        %v1836 = vshll.u32 %v1835, 23
        %v1837 = vor.u32 4788187, %v1836
        %v1838 = vand.u32 2147483647, %v1837
        %v1840 = vcvt.s32.f32 %v1833
        %v1841 = vmul.f32 %v1840, %v1838
        %v1842 = vxor.u32 %v1841, 2147483648
        %v1843 = vsel %vm1760, %v1842, %v1841
        %v1844 = vsub.s32 4, %v1820
        %v1845 = vsel %vm1760, %v1844, %v1820
        %v1846 = vsel %vm1759, %v1138, %v1843
        %v1847 = vsel %vm1759, 0, %v1845
        %v1848 = vcosq.f32.pop %v1846
        %v1849 = vsinq.f32.pop %v1846
        %vm1850 = vweird.f32 %v1138
        %v1851 = vand.u32 %v1847, 3
        %vm1852 = vcmp.lt.s32.totalorder %v1851, 2
        %vm1853 = vcmp.eq.s32.totalorder %v1851, 0
        %v1854 = vxor.u32 %v1849, 2147483648
        %v1855 = vsel %vm1853, %v1848, %v1854
        %vm1856 = vcmp.eq.s32.totalorder %v1851, 2
        %v1857 = vxor.u32 %v1848, 2147483648
        %v1858 = vsel %vm1856, %v1857, %v1849
        %v1859 = vsel %vm1852, %v1855, %v1858
        %v1860 = vsel %vm1850, nan, %v1859
        %v1861 = vand.u32 2147483647, %v1139
        %vm1862 = vcmp.le.f32.partialorder %v1861, 0.7853982
        %vm1863 = vcmp.lt.s32.totalorder %v1139, 0
        %v1864 = vand.u32 %v1139, 2139095040
        %v1865 = vshrl.u32 %v1864, 23
        %v1866 = vsub.s32 %v1865, 127
        %v1867 = vand.u32 2147483647, %v1139
        %v1868 = vand.u32 %v1867, 8388607
        %v1869 = vor.u32 %v1868, 8388608
        %v1870 = vsub.s32 0, %v1869
        %v1871 = vadd.s32 %v1866, 1
        %vm1872 = vcmp.gt.s32.totalorder %v1871, 0
        %v1873 = vsel %vm1872, %v1871, 0
        %v1874 = vshrl.u32 %v1873, 5
        %v1875 = vand.u32 %v1873, 31
        %v1876 = vsub.s32 32, %v1875
        %v1877 = vshrl.u32 683565275, %v1876
        %v1878 = vshll.u32 683565275, %v1875
        %v1879 = vshrl.u32 2475754826, %v1876
        %v1880 = vor.u32 %v1878, %v1879
        %v1881 = vshll.u32 2475754826, %v1875
        %v1882 = vshrl.u32 2131351028, %v1876
        %v1883 = vor.u32 %v1881, %v1882
        %v1884 = vshll.u32 2131351028, %v1875
        %v1885 = vshrl.u32 2102212464, %v1876
        %v1886 = vor.u32 %v1884, %v1885
        %v1887 = vshll.u32 2102212464, %v1875
        %v1888 = vshrl.u32 920167782, %v1876
        %v1889 = vor.u32 %v1887, %v1888
        %v1890 = vshll.u32 920167782, %v1875
        %v1891 = vshrl.u32 1326507024, %v1876
        %v1892 = vor.u32 %v1890, %v1891
        %vm1893 = vcmp.lt.s32.totalorder %v1874, 1
        %vm1894 = vcmp.lt.s32.totalorder %v1874, 2
        %vm1895 = vcmp.lt.s32.totalorder %v1874, 3
        %vm1896 = vcmp.lt.s32.totalorder %v1874, 4
        %v1897 = vsel %vm1893, %v1877, %v1880
        %v1898 = vsel %vm1896, %v1886, 2102212464
        %v1899 = vsel %vm1895, %v1883, %v1898
        %v1900 = vsel %vm1894, %v1897, %v1899
        %v1901 = vsel %vm1893, %v1880, %v1883
        %v1902 = vsel %vm1896, %v1889, 920167782
        %v1903 = vsel %vm1895, %v1886, %v1902
        %v1904 = vsel %vm1894, %v1901, %v1903
        %v1905 = vsel %vm1893, %v1883, %v1886
        %v1906 = vsel %vm1896, %v1892, 1326507024
        %v1907 = vsel %vm1895, %v1889, %v1906
        %v1908 = vsel %vm1894, %v1905, %v1907
        %v1909 = vshll.u32 %v1869, 8
        %v1910 = vmul.u32.u64.compose %v1909, %v1908
        %v1911 = vextract.low.u32 %v1910
        %v1912 = vextract.high.u32 %v1910
        %v1913 = vmul.u32.u64.compose %v1909, %v1904
        %v1914 = vextract.low.u32 %v1913
        %v1915 = vextract.high.u32 %v1913
        %v1916 = vmul.u32 %v1909, %v1900
        %v1917 = vadd.s32 %v1912, %v1914
        %vm1918 = vc.u32 %v1912, %v1914
        %v1919 = vadd.s32 %v1915, 1
        %v1920 = vsel %vm1918, %v1919, %v1915
        %v1921 = vadd.s32 %v1916, %v1920
        %v1922 = vadd.s32 %v1921, 536870912
        %v1923 = vshrl.u32 %v1922, 30
        %v1924 = vshll.u32 %v1923, 30
        %v1925 = vsub.s32 %v1921, %v1924
        %vm1926 = vcmp.lt.s32.totalorder %v1925, 0
        %v1927 = vsub.s32 0, %v1925
        %v1928 = vsel %vm1926, %v1927, %v1925
        %v1929 = vclz %v1928
        %v1930 = vsub.s32 %v1929, 2
        %vm1931 = vcmp.gt.s32.totalorder 0, %v1930
        %v1932 = vsel %vm1931, 0, %v1930
        %v1933 = vsub.s32 32, %v1932
        %v1934 = vshll.u32 %v1925, %v1932
        %v1935 = vshrl.u32 %v1917, %v1933
        %v1936 = vor.u32 %v1934, %v1935
        %v1937 = vsub.s32 4294967266, %v1932
        %v1938 = vadd.s32 %v1937, 127
        %v1939 = vshll.u32 %v1938, 23
        %v1940 = vor.u32 4788187, %v1939
        %v1941 = vand.u32 2147483647, %v1940
        %v1943 = vcvt.s32.f32 %v1936
        %v1944 = vmul.f32 %v1943, %v1941
        %v1945 = vxor.u32 %v1944, 2147483648
        %v1946 = vsel %vm1863, %v1945, %v1944
        %v1947 = vsub.s32 4, %v1923
        %v1948 = vsel %vm1863, %v1947, %v1923
        %v1949 = vsel %vm1862, %v1139, %v1946
        %v1950 = vsel %vm1862, 0, %v1948
        %v1951 = vcosq.f32.pop %v1949
        %v1952 = vsinq.f32.pop %v1949
        %vm1953 = vweird.f32 %v1139
        %v1954 = vand.u32 %v1950, 3
        %vm1955 = vcmp.lt.s32.totalorder %v1954, 2
        %vm1956 = vcmp.eq.s32.totalorder %v1954, 0
        %v1957 = vxor.u32 %v1952, 2147483648
        %v1958 = vsel %vm1956, %v1951, %v1957
        %vm1959 = vcmp.eq.s32.totalorder %v1954, 2
        %v1960 = vxor.u32 %v1951, 2147483648
        %v1961 = vsel %vm1959, %v1960, %v1952
        %v1962 = vsel %vm1955, %v1958, %v1961
        %v1963 = vsel %vm1953, nan, %v1962
        %vm1964 = vcmask 130048
        %v1966 = vsel %vm1964, %v1242, 0
        %v1969 = vsel %vm1964, %v1345, 0
        %v1972 = vsel %vm1964, %v1448, 0
        %v1975 = vsel %vm1964, %v1551, 0
        %v1978 = vsel %vm1964, %v1654, 0
        %v1981 = vsel %vm1964, %v1757, 0
        %v1984 = vsel %vm1964, %v1860, 0
        %v1987 = vsel %vm1964, %v1963, 0
        %1989 = vmatprep.subr.mxu0 0.0
        %1990 = vmatpush1.msra.mxu0 %v687
        %1991 = vmatprep.subr.mxu0 0.0
        %1992 = vmatpush1.msra.mxu0 %v688
        %1993 = vmatprep.subr.mxu0 0.0
        %1994 = vmatpush1.msra.mxu0 0.0
        %1995 = vmatprep.subr.mxu0 0.0
        %1996 = vmatpush1.msra.mxu0 0.0
        %1997 = vmatprep.subr.mxu0 0.0
        %1998 = vmatpush1.msra.mxu0 0.0
        %1999 = vmatprep.subr.mxu0 0.0
        %2000 = vmatpush1.msra.mxu0 0.0
        %2001 = vmatprep.subr.mxu0 0.0
        %2002 = vmatpush1.msra.mxu0 0.0
        %2003 = vmatprep.subr.mxu0 0.0
        %2004 = vmatpush1.msra.mxu0 0.0
        %2005 = vmatprep.subr.mxu0 0.0
        %2006 = vmatpush1.msra.mxu0 0.0
        %2007 = vmatprep.subr.mxu0 0.0
        %2008 = vmatpush1.msra.mxu0 0.0
        %2009 = vmatprep.subr.mxu0 0.0
        %2010 = vmatpush1.msra.mxu0 0.0
        %2011 = vmatprep.subr.mxu0 0.0
        %2012 = vmatpush1.msra.mxu0 0.0
        %2013 = vmatprep.subr.mxu0 0.0
        %2014 = vmatpush1.msra.mxu0 0.0
        %2015 = vmatprep.subr.mxu0 0.0
        %2016 = vmatpush1.msra.mxu0 0.0
        %2017 = vmatprep.subr.mxu0 0.0
        %2018 = vmatpush1.msra.mxu0 0.0
        %2019 = vmatprep.subr.mxu0 0.0
        %2020 = vmatpush1.msra.mxu0 0.0
        %2021 = vmatprep.subr.mxu0 0.0
        %2022 = vmatpush1.msra.mxu0 0.0
        %2023 = vmatprep.subr.mxu0 0.0
        %2024 = vmatpush1.msra.mxu0 0.0
        %2025 = vmatprep.subr.mxu0 0.0
        %2026 = vmatpush1.msra.mxu0 0.0
        %2027 = vmatprep.subr.mxu0 0.0
        %2028 = vmatpush1.msra.mxu0 0.0
        %2029 = vmatprep.subr.mxu0 0.0
        %2030 = vmatpush1.msra.mxu0 0.0
        %2031 = vmatprep.subr.mxu0 0.0
        %2032 = vmatpush1.msra.mxu0 0.0
        %2033 = vmatprep.subr.mxu0 0.0
        %2034 = vmatpush1.msra.mxu0 0.0
        %2035 = vmatprep.subr.mxu0 0.0
        %2036 = vmatpush1.msra.mxu0 0.0
        %2037 = vmatprep.subr.mxu0 0.0
        %2038 = vmatpush1.msra.mxu0 0.0
        %2039 = vmatprep.subr.mxu0 0.0
        %2040 = vmatpush1.msra.mxu0 0.0
        %2041 = vmatprep.subr.mxu0 0.0
        %2042 = vmatpush1.msra.mxu0 0.0
        %2043 = vmatprep.subr.mxu0 0.0
        %2044 = vmatpush1.msra.mxu0 0.0
        %2045 = vmatprep.subr.mxu0 0.0
        %2046 = vmatpush1.msra.mxu0 0.0
        %2047 = vmatprep.subr.mxu0 0.0
        %2048 = vmatpush1.msra.mxu0 0.0
        %2049 = vmatprep.subr.mxu0 0.0
        %2050 = vmatpush1.msra.mxu0 0.0
        %2051 = vmatprep.subr.mxu0 0.0
        %2052 = vmatpush1.msra.mxu0 0.0
        %2053 = vmatprep.mubr.f32.mxu0 0.0
        %2054 = vmatmul.mubr.f32.gmra.mrb[0].mxu0 %v1966
        %v2055 = vpop.f32.mrb[0].mxu0
        %v2056 = vadd.f32 0.0, %v2055
        %v2057 = vpop.f32.mrb[0].mxu0
        %2058 = vmatprep.mubr.f32.mxu0 0.0
        %2059 = vmatmul.mubr.f32.gmra.mrb[0].mxu0 %v1969
        %v2060 = vpop.f32.mrb[0].mxu0
        %v2061 = vadd.f32 0.0, %v2060
        %v2062 = vpop.f32.mrb[0].mxu0
        %2063 = vmatprep.mubr.f32.mxu0 0.0
        %2064 = vmatmul.mubr.f32.gmra.mrb[0].mxu0 %v1972
        %v2065 = vpop.f32.mrb[0].mxu0
        %v2066 = vadd.f32 0.0, %v2065
        %v2067 = vpop.f32.mrb[0].mxu0
        %2068 = vmatprep.mubr.f32.mxu0 0.0
        %2069 = vmatmul.mubr.f32.gmra.mrb[0].mxu0 %v1975
        %v2070 = vpop.f32.mrb[0].mxu0
        %v2071 = vadd.f32 0.0, %v2070
        %v2072 = vpop.f32.mrb[0].mxu0
        %2073 = vmatprep.mubr.f32.mxu0 0.0
        %2074 = vmatmul.mubr.f32.gmra.mrb[0].mxu0 %v1978
        %v2075 = vpop.f32.mrb[0].mxu0
        %v2076 = vadd.f32 0.0, %v2075
        %v2077 = vpop.f32.mrb[0].mxu0
        %2078 = vmatprep.mubr.f32.mxu0 0.0
        %2079 = vmatmul.mubr.f32.gmra.mrb[0].mxu0 %v1981
        %v2080 = vpop.f32.mrb[0].mxu0
        %v2081 = vadd.f32 0.0, %v2080
        %v2082 = vpop.f32.mrb[0].mxu0
        %2083 = vmatprep.mubr.f32.mxu0 0.0
        %2084 = vmatmul.mubr.f32.gmra.mrb[0].mxu0 %v1984
        %v2085 = vpop.f32.mrb[0].mxu0
        %v2086 = vadd.f32 0.0, %v2085
        %v2087 = vpop.f32.mrb[0].mxu0
        %2088 = vmatprep.mubr.f32.mxu0 0.0
        %2089 = vmatmul.mubr.f32.gmra.mrb[0].mxu0 %v1987
        %v2090 = vpop.f32.mrb[0].mxu0
        %v2091 = vadd.f32 0.0, %v2090
        %v2092 = vpop.f32.mrb[0].mxu0
        %2093 = vdwg.mxu0
        %v2094 = vand.u32 2147483647, %v1132
        %vm2095 = vcmp.le.f32.partialorder %v2094, 0.7853982
        %vm2096 = vcmp.lt.s32.totalorder %v1132, 0
        %v2097 = vand.u32 %v1132, 2139095040
        %v2098 = vshrl.u32 %v2097, 23
        %v2099 = vsub.s32 %v2098, 127
        %v2100 = vand.u32 2147483647, %v1132
        %v2101 = vand.u32 %v2100, 8388607
        %v2102 = vor.u32 %v2101, 8388608
        %v2103 = vsub.s32 0, %v2102
        %v2104 = vadd.s32 %v2099, 1
        %vm2105 = vcmp.gt.s32.totalorder %v2104, 0
        %v2106 = vsel %vm2105, %v2104, 0
        %v2107 = vshrl.u32 %v2106, 5
        %v2108 = vand.u32 %v2106, 31
        %v2109 = vsub.s32 32, %v2108
        %v2110 = vshrl.u32 683565275, %v2109
        %v2111 = vshll.u32 683565275, %v2108
        %v2112 = vshrl.u32 2475754826, %v2109
        %v2113 = vor.u32 %v2111, %v2112
        %v2114 = vshll.u32 2475754826, %v2108
        %v2115 = vshrl.u32 2131351028, %v2109
        %v2116 = vor.u32 %v2114, %v2115
        %v2117 = vshll.u32 2131351028, %v2108
        %v2118 = vshrl.u32 2102212464, %v2109
        %v2119 = vor.u32 %v2117, %v2118
        %v2120 = vshll.u32 2102212464, %v2108
        %v2121 = vshrl.u32 920167782, %v2109
        %v2122 = vor.u32 %v2120, %v2121
        %v2123 = vshll.u32 920167782, %v2108
        %v2124 = vshrl.u32 1326507024, %v2109
        %v2125 = vor.u32 %v2123, %v2124
        %vm2126 = vcmp.lt.s32.totalorder %v2107, 1
        %vm2127 = vcmp.lt.s32.totalorder %v2107, 2
        %vm2128 = vcmp.lt.s32.totalorder %v2107, 3
        %vm2129 = vcmp.lt.s32.totalorder %v2107, 4
        %v2130 = vsel %vm2126, %v2110, %v2113
        %v2131 = vsel %vm2129, %v2119, 2102212464
        %v2132 = vsel %vm2128, %v2116, %v2131
        %v2133 = vsel %vm2127, %v2130, %v2132
        %v2134 = vsel %vm2126, %v2113, %v2116
        %v2135 = vsel %vm2129, %v2122, 920167782
        %v2136 = vsel %vm2128, %v2119, %v2135
        %v2137 = vsel %vm2127, %v2134, %v2136
        %v2138 = vsel %vm2126, %v2116, %v2119
        %v2139 = vsel %vm2129, %v2125, 1326507024
        %v2140 = vsel %vm2128, %v2122, %v2139
        %v2141 = vsel %vm2127, %v2138, %v2140
        %v2142 = vshll.u32 %v2102, 8
        %v2143 = vmul.u32.u64.compose %v2142, %v2141
        %v2144 = vextract.low.u32 %v2143
        %v2145 = vextract.high.u32 %v2143
        %v2146 = vmul.u32.u64.compose %v2142, %v2137
        %v2147 = vextract.low.u32 %v2146
        %v2148 = vextract.high.u32 %v2146
        %v2149 = vmul.u32 %v2142, %v2133
        %v2150 = vadd.s32 %v2145, %v2147
        %vm2151 = vc.u32 %v2145, %v2147
        %v2152 = vadd.s32 %v2148, 1
        %v2153 = vsel %vm2151, %v2152, %v2148
        %v2154 = vadd.s32 %v2149, %v2153
        %v2155 = vadd.s32 %v2154, 536870912
        %v2156 = vshrl.u32 %v2155, 30
        %v2157 = vshll.u32 %v2156, 30
        %v2158 = vsub.s32 %v2154, %v2157
        %vm2159 = vcmp.lt.s32.totalorder %v2158, 0
        %v2160 = vsub.s32 0, %v2158
        %v2161 = vsel %vm2159, %v2160, %v2158
        %v2162 = vclz %v2161
        %v2163 = vsub.s32 %v2162, 2
        %vm2164 = vcmp.gt.s32.totalorder 0, %v2163
        %v2165 = vsel %vm2164, 0, %v2163
        %v2166 = vsub.s32 32, %v2165
        %v2167 = vshll.u32 %v2158, %v2165
        %v2168 = vshrl.u32 %v2150, %v2166
        %v2169 = vor.u32 %v2167, %v2168
        %v2170 = vsub.s32 4294967266, %v2165
        %v2171 = vadd.s32 %v2170, 127
        %v2172 = vshll.u32 %v2171, 23
        %v2173 = vor.u32 4788187, %v2172
        %v2174 = vand.u32 2147483647, %v2173
        %v2176 = vcvt.s32.f32 %v2169
        %v2177 = vmul.f32 %v2176, %v2174
        %v2178 = vxor.u32 %v2177, 2147483648
        %v2179 = vsel %vm2096, %v2178, %v2177
        %v2180 = vsub.s32 4, %v2156
        %v2181 = vsel %vm2096, %v2180, %v2156
        %v2182 = vsel %vm2095, %v1132, %v2179
        %v2183 = vsel %vm2095, 0, %v2181
        %v2184 = vcosq.f32.pop %v2182
        %v2185 = vsinq.f32.pop %v2182
        %vm2186 = vweird.f32 %v1132
        %v2187 = vadd.s32 %v2183, 3
        %v2188 = vand.u32 %v2187, 3
        %vm2189 = vcmp.lt.s32.totalorder %v2188, 2
        %vm2190 = vcmp.eq.s32.totalorder %v2188, 0
        %v2191 = vxor.u32 %v2185, 2147483648
        %v2192 = vsel %vm2190, %v2184, %v2191
        %vm2193 = vcmp.eq.s32.totalorder %v2188, 2
        %v2194 = vxor.u32 %v2184, 2147483648
        %v2195 = vsel %vm2193, %v2194, %v2185
        %v2196 = vsel %vm2189, %v2192, %v2195
        %v2197 = vsel %vm2186, nan, %v2196
        %v2198 = vand.u32 2147483647, %v1133
        %vm2199 = vcmp.le.f32.partialorder %v2198, 0.7853982
        %vm2200 = vcmp.lt.s32.totalorder %v1133, 0
        %v2201 = vand.u32 %v1133, 2139095040
        %v2202 = vshrl.u32 %v2201, 23
        %v2203 = vsub.s32 %v2202, 127
        %v2204 = vand.u32 2147483647, %v1133
        %v2205 = vand.u32 %v2204, 8388607
        %v2206 = vor.u32 %v2205, 8388608
        %v2207 = vsub.s32 0, %v2206
        %v2208 = vadd.s32 %v2203, 1
        %vm2209 = vcmp.gt.s32.totalorder %v2208, 0
        %v2210 = vsel %vm2209, %v2208, 0
        %v2211 = vshrl.u32 %v2210, 5
        %v2212 = vand.u32 %v2210, 31
        %v2213 = vsub.s32 32, %v2212
        %v2214 = vshrl.u32 683565275, %v2213
        %v2215 = vshll.u32 683565275, %v2212
        %v2216 = vshrl.u32 2475754826, %v2213
        %v2217 = vor.u32 %v2215, %v2216
        %v2218 = vshll.u32 2475754826, %v2212
        %v2219 = vshrl.u32 2131351028, %v2213
        %v2220 = vor.u32 %v2218, %v2219
        %v2221 = vshll.u32 2131351028, %v2212
        %v2222 = vshrl.u32 2102212464, %v2213
        %v2223 = vor.u32 %v2221, %v2222
        %v2224 = vshll.u32 2102212464, %v2212
        %v2225 = vshrl.u32 920167782, %v2213
        %v2226 = vor.u32 %v2224, %v2225
        %v2227 = vshll.u32 920167782, %v2212
        %v2228 = vshrl.u32 1326507024, %v2213
        %v2229 = vor.u32 %v2227, %v2228
        %vm2230 = vcmp.lt.s32.totalorder %v2211, 1
        %vm2231 = vcmp.lt.s32.totalorder %v2211, 2
        %vm2232 = vcmp.lt.s32.totalorder %v2211, 3
        %vm2233 = vcmp.lt.s32.totalorder %v2211, 4
        %v2234 = vsel %vm2230, %v2214, %v2217
        %v2235 = vsel %vm2233, %v2223, 2102212464
        %v2236 = vsel %vm2232, %v2220, %v2235
        %v2237 = vsel %vm2231, %v2234, %v2236
        %v2238 = vsel %vm2230, %v2217, %v2220
        %v2239 = vsel %vm2233, %v2226, 920167782
        %v2240 = vsel %vm2232, %v2223, %v2239
        %v2241 = vsel %vm2231, %v2238, %v2240
        %v2242 = vsel %vm2230, %v2220, %v2223
        %v2243 = vsel %vm2233, %v2229, 1326507024
        %v2244 = vsel %vm2232, %v2226, %v2243
        %v2245 = vsel %vm2231, %v2242, %v2244
        %v2246 = vshll.u32 %v2206, 8
        %v2247 = vmul.u32.u64.compose %v2246, %v2245
        %v2248 = vextract.low.u32 %v2247
        %v2249 = vextract.high.u32 %v2247
        %v2250 = vmul.u32.u64.compose %v2246, %v2241
        %v2251 = vextract.low.u32 %v2250
        %v2252 = vextract.high.u32 %v2250
        %v2253 = vmul.u32 %v2246, %v2237
        %v2254 = vadd.s32 %v2249, %v2251
        %vm2255 = vc.u32 %v2249, %v2251
        %v2256 = vadd.s32 %v2252, 1
        %v2257 = vsel %vm2255, %v2256, %v2252
        %v2258 = vadd.s32 %v2253, %v2257
        %v2259 = vadd.s32 %v2258, 536870912
        %v2260 = vshrl.u32 %v2259, 30
        %v2261 = vshll.u32 %v2260, 30
        %v2262 = vsub.s32 %v2258, %v2261
        %vm2263 = vcmp.lt.s32.totalorder %v2262, 0
        %v2264 = vsub.s32 0, %v2262
        %v2265 = vsel %vm2263, %v2264, %v2262
        %v2266 = vclz %v2265
        %v2267 = vsub.s32 %v2266, 2
        %vm2268 = vcmp.gt.s32.totalorder 0, %v2267
        %v2269 = vsel %vm2268, 0, %v2267
        %v2270 = vsub.s32 32, %v2269
        %v2271 = vshll.u32 %v2262, %v2269
        %v2272 = vshrl.u32 %v2254, %v2270
        %v2273 = vor.u32 %v2271, %v2272
        %v2274 = vsub.s32 4294967266, %v2269
        %v2275 = vadd.s32 %v2274, 127
        %v2276 = vshll.u32 %v2275, 23
        %v2277 = vor.u32 4788187, %v2276
        %v2278 = vand.u32 2147483647, %v2277
        %v2280 = vcvt.s32.f32 %v2273
        %v2281 = vmul.f32 %v2280, %v2278
        %v2282 = vxor.u32 %v2281, 2147483648
        %v2283 = vsel %vm2200, %v2282, %v2281
        %v2284 = vsub.s32 4, %v2260
        %v2285 = vsel %vm2200, %v2284, %v2260
        %v2286 = vsel %vm2199, %v1133, %v2283
        %v2287 = vsel %vm2199, 0, %v2285
        %v2288 = vcosq.f32.pop %v2286
        %v2289 = vsinq.f32.pop %v2286
        %vm2290 = vweird.f32 %v1133
        %v2291 = vadd.s32 %v2287, 3
        %v2292 = vand.u32 %v2291, 3
        %vm2293 = vcmp.lt.s32.totalorder %v2292, 2
        %vm2294 = vcmp.eq.s32.totalorder %v2292, 0
        %v2295 = vxor.u32 %v2289, 2147483648
        %v2296 = vsel %vm2294, %v2288, %v2295
        %vm2297 = vcmp.eq.s32.totalorder %v2292, 2
        %v2298 = vxor.u32 %v2288, 2147483648
        %v2299 = vsel %vm2297, %v2298, %v2289
        %v2300 = vsel %vm2293, %v2296, %v2299
        %v2301 = vsel %vm2290, nan, %v2300
        %v2302 = vand.u32 2147483647, %v1134
        %vm2303 = vcmp.le.f32.partialorder %v2302, 0.7853982
        %vm2304 = vcmp.lt.s32.totalorder %v1134, 0
        %v2305 = vand.u32 %v1134, 2139095040
        %v2306 = vshrl.u32 %v2305, 23
        %v2307 = vsub.s32 %v2306, 127
        %v2308 = vand.u32 2147483647, %v1134
        %v2309 = vand.u32 %v2308, 8388607
        %v2310 = vor.u32 %v2309, 8388608
        %v2311 = vsub.s32 0, %v2310
        %v2312 = vadd.s32 %v2307, 1
        %vm2313 = vcmp.gt.s32.totalorder %v2312, 0
        %v2314 = vsel %vm2313, %v2312, 0
        %v2315 = vshrl.u32 %v2314, 5
        %v2316 = vand.u32 %v2314, 31
        %v2317 = vsub.s32 32, %v2316
        %v2318 = vshrl.u32 683565275, %v2317
        %v2319 = vshll.u32 683565275, %v2316
        %v2320 = vshrl.u32 2475754826, %v2317
        %v2321 = vor.u32 %v2319, %v2320
        %v2322 = vshll.u32 2475754826, %v2316
        %v2323 = vshrl.u32 2131351028, %v2317
        %v2324 = vor.u32 %v2322, %v2323
        %v2325 = vshll.u32 2131351028, %v2316
        %v2326 = vshrl.u32 2102212464, %v2317
        %v2327 = vor.u32 %v2325, %v2326
        %v2328 = vshll.u32 2102212464, %v2316
        %v2329 = vshrl.u32 920167782, %v2317
        %v2330 = vor.u32 %v2328, %v2329
        %v2331 = vshll.u32 920167782, %v2316
        %v2332 = vshrl.u32 1326507024, %v2317
        %v2333 = vor.u32 %v2331, %v2332
        %vm2334 = vcmp.lt.s32.totalorder %v2315, 1
        %vm2335 = vcmp.lt.s32.totalorder %v2315, 2
        %vm2336 = vcmp.lt.s32.totalorder %v2315, 3
        %vm2337 = vcmp.lt.s32.totalorder %v2315, 4
        %v2338 = vsel %vm2334, %v2318, %v2321
        %v2339 = vsel %vm2337, %v2327, 2102212464
        %v2340 = vsel %vm2336, %v2324, %v2339
        %v2341 = vsel %vm2335, %v2338, %v2340
        %v2342 = vsel %vm2334, %v2321, %v2324
        %v2343 = vsel %vm2337, %v2330, 920167782
        %v2344 = vsel %vm2336, %v2327, %v2343
        %v2345 = vsel %vm2335, %v2342, %v2344
        %v2346 = vsel %vm2334, %v2324, %v2327
        %v2347 = vsel %vm2337, %v2333, 1326507024
        %v2348 = vsel %vm2336, %v2330, %v2347
        %v2349 = vsel %vm2335, %v2346, %v2348
        %v2350 = vshll.u32 %v2310, 8
        %v2351 = vmul.u32.u64.compose %v2350, %v2349
        %v2352 = vextract.low.u32 %v2351
        %v2353 = vextract.high.u32 %v2351
        %v2354 = vmul.u32.u64.compose %v2350, %v2345
        %v2355 = vextract.low.u32 %v2354
        %v2356 = vextract.high.u32 %v2354
        %v2357 = vmul.u32 %v2350, %v2341
        %v2358 = vadd.s32 %v2353, %v2355
        %vm2359 = vc.u32 %v2353, %v2355
        %v2360 = vadd.s32 %v2356, 1
        %v2361 = vsel %vm2359, %v2360, %v2356
        %v2362 = vadd.s32 %v2357, %v2361
        %v2363 = vadd.s32 %v2362, 536870912
        %v2364 = vshrl.u32 %v2363, 30
        %v2365 = vshll.u32 %v2364, 30
        %v2366 = vsub.s32 %v2362, %v2365
        %vm2367 = vcmp.lt.s32.totalorder %v2366, 0
        %v2368 = vsub.s32 0, %v2366
        %v2369 = vsel %vm2367, %v2368, %v2366
        %v2370 = vclz %v2369
        %v2371 = vsub.s32 %v2370, 2
        %vm2372 = vcmp.gt.s32.totalorder 0, %v2371
        %v2373 = vsel %vm2372, 0, %v2371
        %v2374 = vsub.s32 32, %v2373
        %v2375 = vshll.u32 %v2366, %v2373
        %v2376 = vshrl.u32 %v2358, %v2374
        %v2377 = vor.u32 %v2375, %v2376
        %v2378 = vsub.s32 4294967266, %v2373
        %v2379 = vadd.s32 %v2378, 127
        %v2380 = vshll.u32 %v2379, 23
        %v2381 = vor.u32 4788187, %v2380
        %v2382 = vand.u32 2147483647, %v2381
        %v2384 = vcvt.s32.f32 %v2377
        %v2385 = vmul.f32 %v2384, %v2382
        %v2386 = vxor.u32 %v2385, 2147483648
        %v2387 = vsel %vm2304, %v2386, %v2385
        %v2388 = vsub.s32 4, %v2364
        %v2389 = vsel %vm2304, %v2388, %v2364
        %v2390 = vsel %vm2303, %v1134, %v2387
        %v2391 = vsel %vm2303, 0, %v2389
        %v2392 = vcosq.f32.pop %v2390
        %v2393 = vsinq.f32.pop %v2390
        %vm2394 = vweird.f32 %v1134
        %v2395 = vadd.s32 %v2391, 3
        %v2396 = vand.u32 %v2395, 3
        %vm2397 = vcmp.lt.s32.totalorder %v2396, 2
        %vm2398 = vcmp.eq.s32.totalorder %v2396, 0
        %v2399 = vxor.u32 %v2393, 2147483648
        %v2400 = vsel %vm2398, %v2392, %v2399
        %vm2401 = vcmp.eq.s32.totalorder %v2396, 2
        %v2402 = vxor.u32 %v2392, 2147483648
        %v2403 = vsel %vm2401, %v2402, %v2393
        %v2404 = vsel %vm2397, %v2400, %v2403
        %v2405 = vsel %vm2394, nan, %v2404
        %v2406 = vand.u32 2147483647, %v1135
        %vm2407 = vcmp.le.f32.partialorder %v2406, 0.7853982
        %vm2408 = vcmp.lt.s32.totalorder %v1135, 0
        %v2409 = vand.u32 %v1135, 2139095040
        %v2410 = vshrl.u32 %v2409, 23
        %v2411 = vsub.s32 %v2410, 127
        %v2412 = vand.u32 2147483647, %v1135
        %v2413 = vand.u32 %v2412, 8388607
        %v2414 = vor.u32 %v2413, 8388608
        %v2415 = vsub.s32 0, %v2414
        %v2416 = vadd.s32 %v2411, 1
        %vm2417 = vcmp.gt.s32.totalorder %v2416, 0
        %v2418 = vsel %vm2417, %v2416, 0
        %v2419 = vshrl.u32 %v2418, 5
        %v2420 = vand.u32 %v2418, 31
        %v2421 = vsub.s32 32, %v2420
        %v2422 = vshrl.u32 683565275, %v2421
        %v2423 = vshll.u32 683565275, %v2420
        %v2424 = vshrl.u32 2475754826, %v2421
        %v2425 = vor.u32 %v2423, %v2424
        %v2426 = vshll.u32 2475754826, %v2420
        %v2427 = vshrl.u32 2131351028, %v2421
        %v2428 = vor.u32 %v2426, %v2427
        %v2429 = vshll.u32 2131351028, %v2420
        %v2430 = vshrl.u32 2102212464, %v2421
        %v2431 = vor.u32 %v2429, %v2430
        %v2432 = vshll.u32 2102212464, %v2420
        %v2433 = vshrl.u32 920167782, %v2421
        %v2434 = vor.u32 %v2432, %v2433
        %v2435 = vshll.u32 920167782, %v2420
        %v2436 = vshrl.u32 1326507024, %v2421
        %v2437 = vor.u32 %v2435, %v2436
        %vm2438 = vcmp.lt.s32.totalorder %v2419, 1
        %vm2439 = vcmp.lt.s32.totalorder %v2419, 2
        %vm2440 = vcmp.lt.s32.totalorder %v2419, 3
        %vm2441 = vcmp.lt.s32.totalorder %v2419, 4
        %v2442 = vsel %vm2438, %v2422, %v2425
        %v2443 = vsel %vm2441, %v2431, 2102212464
        %v2444 = vsel %vm2440, %v2428, %v2443
        %v2445 = vsel %vm2439, %v2442, %v2444
        %v2446 = vsel %vm2438, %v2425, %v2428
        %v2447 = vsel %vm2441, %v2434, 920167782
        %v2448 = vsel %vm2440, %v2431, %v2447
        %v2449 = vsel %vm2439, %v2446, %v2448
        %v2450 = vsel %vm2438, %v2428, %v2431
        %v2451 = vsel %vm2441, %v2437, 1326507024
        %v2452 = vsel %vm2440, %v2434, %v2451
        %v2453 = vsel %vm2439, %v2450, %v2452
        %v2454 = vshll.u32 %v2414, 8
        %v2455 = vmul.u32.u64.compose %v2454, %v2453
        %v2456 = vextract.low.u32 %v2455
        %v2457 = vextract.high.u32 %v2455
        %v2458 = vmul.u32.u64.compose %v2454, %v2449
        %v2459 = vextract.low.u32 %v2458
        %v2460 = vextract.high.u32 %v2458
        %v2461 = vmul.u32 %v2454, %v2445
        %v2462 = vadd.s32 %v2457, %v2459
        %vm2463 = vc.u32 %v2457, %v2459
        %v2464 = vadd.s32 %v2460, 1
        %v2465 = vsel %vm2463, %v2464, %v2460
        %v2466 = vadd.s32 %v2461, %v2465
        %v2467 = vadd.s32 %v2466, 536870912
        %v2468 = vshrl.u32 %v2467, 30
        %v2469 = vshll.u32 %v2468, 30
        %v2470 = vsub.s32 %v2466, %v2469
        %vm2471 = vcmp.lt.s32.totalorder %v2470, 0
        %v2472 = vsub.s32 0, %v2470
        %v2473 = vsel %vm2471, %v2472, %v2470
        %v2474 = vclz %v2473
        %v2475 = vsub.s32 %v2474, 2
        %vm2476 = vcmp.gt.s32.totalorder 0, %v2475
        %v2477 = vsel %vm2476, 0, %v2475
        %v2478 = vsub.s32 32, %v2477
        %v2479 = vshll.u32 %v2470, %v2477
        %v2480 = vshrl.u32 %v2462, %v2478
        %v2481 = vor.u32 %v2479, %v2480
        %v2482 = vsub.s32 4294967266, %v2477
        %v2483 = vadd.s32 %v2482, 127
        %v2484 = vshll.u32 %v2483, 23
        %v2485 = vor.u32 4788187, %v2484
        %v2486 = vand.u32 2147483647, %v2485
        %v2488 = vcvt.s32.f32 %v2481
        %v2489 = vmul.f32 %v2488, %v2486
        %v2490 = vxor.u32 %v2489, 2147483648
        %v2491 = vsel %vm2408, %v2490, %v2489
        %v2492 = vsub.s32 4, %v2468
        %v2493 = vsel %vm2408, %v2492, %v2468
        %v2494 = vsel %vm2407, %v1135, %v2491
        %v2495 = vsel %vm2407, 0, %v2493
        %v2496 = vcosq.f32.pop %v2494
        %v2497 = vsinq.f32.pop %v2494
        %vm2498 = vweird.f32 %v1135
        %v2499 = vadd.s32 %v2495, 3
        %v2500 = vand.u32 %v2499, 3
        %vm2501 = vcmp.lt.s32.totalorder %v2500, 2
        %vm2502 = vcmp.eq.s32.totalorder %v2500, 0
        %v2503 = vxor.u32 %v2497, 2147483648
        %v2504 = vsel %vm2502, %v2496, %v2503
        %vm2505 = vcmp.eq.s32.totalorder %v2500, 2
        %v2506 = vxor.u32 %v2496, 2147483648
        %v2507 = vsel %vm2505, %v2506, %v2497
        %v2508 = vsel %vm2501, %v2504, %v2507
        %v2509 = vsel %vm2498, nan, %v2508
        %v2510 = vand.u32 2147483647, %v1136
        %vm2511 = vcmp.le.f32.partialorder %v2510, 0.7853982
        %vm2512 = vcmp.lt.s32.totalorder %v1136, 0
        %v2513 = vand.u32 %v1136, 2139095040
        %v2514 = vshrl.u32 %v2513, 23
        %v2515 = vsub.s32 %v2514, 127
        %v2516 = vand.u32 2147483647, %v1136
        %v2517 = vand.u32 %v2516, 8388607
        %v2518 = vor.u32 %v2517, 8388608
        %v2519 = vsub.s32 0, %v2518
        %v2520 = vadd.s32 %v2515, 1
        %vm2521 = vcmp.gt.s32.totalorder %v2520, 0
        %v2522 = vsel %vm2521, %v2520, 0
        %v2523 = vshrl.u32 %v2522, 5
        %v2524 = vand.u32 %v2522, 31
        %v2525 = vsub.s32 32, %v2524
        %v2526 = vshrl.u32 683565275, %v2525
        %v2527 = vshll.u32 683565275, %v2524
        %v2528 = vshrl.u32 2475754826, %v2525
        %v2529 = vor.u32 %v2527, %v2528
        %v2530 = vshll.u32 2475754826, %v2524
        %v2531 = vshrl.u32 2131351028, %v2525
        %v2532 = vor.u32 %v2530, %v2531
        %v2533 = vshll.u32 2131351028, %v2524
        %v2534 = vshrl.u32 2102212464, %v2525
        %v2535 = vor.u32 %v2533, %v2534
        %v2536 = vshll.u32 2102212464, %v2524
        %v2537 = vshrl.u32 920167782, %v2525
        %v2538 = vor.u32 %v2536, %v2537
        %v2539 = vshll.u32 920167782, %v2524
        %v2540 = vshrl.u32 1326507024, %v2525
        %v2541 = vor.u32 %v2539, %v2540
        %vm2542 = vcmp.lt.s32.totalorder %v2523, 1
        %vm2543 = vcmp.lt.s32.totalorder %v2523, 2
        %vm2544 = vcmp.lt.s32.totalorder %v2523, 3
        %vm2545 = vcmp.lt.s32.totalorder %v2523, 4
        %v2546 = vsel %vm2542, %v2526, %v2529
        %v2547 = vsel %vm2545, %v2535, 2102212464
        %v2548 = vsel %vm2544, %v2532, %v2547
        %v2549 = vsel %vm2543, %v2546, %v2548
        %v2550 = vsel %vm2542, %v2529, %v2532
        %v2551 = vsel %vm2545, %v2538, 920167782
        %v2552 = vsel %vm2544, %v2535, %v2551
        %v2553 = vsel %vm2543, %v2550, %v2552
        %v2554 = vsel %vm2542, %v2532, %v2535
        %v2555 = vsel %vm2545, %v2541, 1326507024
        %v2556 = vsel %vm2544, %v2538, %v2555
        %v2557 = vsel %vm2543, %v2554, %v2556
        %v2558 = vshll.u32 %v2518, 8
        %v2559 = vmul.u32.u64.compose %v2558, %v2557
        %v2560 = vextract.low.u32 %v2559
        %v2561 = vextract.high.u32 %v2559
        %v2562 = vmul.u32.u64.compose %v2558, %v2553
        %v2563 = vextract.low.u32 %v2562
        %v2564 = vextract.high.u32 %v2562
        %v2565 = vmul.u32 %v2558, %v2549
        %v2566 = vadd.s32 %v2561, %v2563
        %vm2567 = vc.u32 %v2561, %v2563
        %v2568 = vadd.s32 %v2564, 1
        %v2569 = vsel %vm2567, %v2568, %v2564
        %v2570 = vadd.s32 %v2565, %v2569
        %v2571 = vadd.s32 %v2570, 536870912
        %v2572 = vshrl.u32 %v2571, 30
        %v2573 = vshll.u32 %v2572, 30
        %v2574 = vsub.s32 %v2570, %v2573
        %vm2575 = vcmp.lt.s32.totalorder %v2574, 0
        %v2576 = vsub.s32 0, %v2574
        %v2577 = vsel %vm2575, %v2576, %v2574
        %v2578 = vclz %v2577
        %v2579 = vsub.s32 %v2578, 2
        %vm2580 = vcmp.gt.s32.totalorder 0, %v2579
        %v2581 = vsel %vm2580, 0, %v2579
        %v2582 = vsub.s32 32, %v2581
        %v2583 = vshll.u32 %v2574, %v2581
        %v2584 = vshrl.u32 %v2566, %v2582
        %v2585 = vor.u32 %v2583, %v2584
        %v2586 = vsub.s32 4294967266, %v2581
        %v2587 = vadd.s32 %v2586, 127
        %v2588 = vshll.u32 %v2587, 23
        %v2589 = vor.u32 4788187, %v2588
        %v2590 = vand.u32 2147483647, %v2589
        %v2592 = vcvt.s32.f32 %v2585
        %v2593 = vmul.f32 %v2592, %v2590
        %v2594 = vxor.u32 %v2593, 2147483648
        %v2595 = vsel %vm2512, %v2594, %v2593
        %v2596 = vsub.s32 4, %v2572
        %v2597 = vsel %vm2512, %v2596, %v2572
        %v2598 = vsel %vm2511, %v1136, %v2595
        %v2599 = vsel %vm2511, 0, %v2597
        %v2600 = vcosq.f32.pop %v2598
        %v2601 = vsinq.f32.pop %v2598
        %vm2602 = vweird.f32 %v1136
        %v2603 = vadd.s32 %v2599, 3
        %v2604 = vand.u32 %v2603, 3
        %vm2605 = vcmp.lt.s32.totalorder %v2604, 2
        %vm2606 = vcmp.eq.s32.totalorder %v2604, 0
        %v2607 = vxor.u32 %v2601, 2147483648
        %v2608 = vsel %vm2606, %v2600, %v2607
        %vm2609 = vcmp.eq.s32.totalorder %v2604, 2
        %v2610 = vxor.u32 %v2600, 2147483648
        %v2611 = vsel %vm2609, %v2610, %v2601
        %v2612 = vsel %vm2605, %v2608, %v2611
        %v2613 = vsel %vm2602, nan, %v2612
        %v2614 = vand.u32 2147483647, %v1137
        %vm2615 = vcmp.le.f32.partialorder %v2614, 0.7853982
        %vm2616 = vcmp.lt.s32.totalorder %v1137, 0
        %v2617 = vand.u32 %v1137, 2139095040
        %v2618 = vshrl.u32 %v2617, 23
        %v2619 = vsub.s32 %v2618, 127
        %v2620 = vand.u32 2147483647, %v1137
        %v2621 = vand.u32 %v2620, 8388607
        %v2622 = vor.u32 %v2621, 8388608
        %v2623 = vsub.s32 0, %v2622
        %v2624 = vadd.s32 %v2619, 1
        %vm2625 = vcmp.gt.s32.totalorder %v2624, 0
        %v2626 = vsel %vm2625, %v2624, 0
        %v2627 = vshrl.u32 %v2626, 5
        %v2628 = vand.u32 %v2626, 31
        %v2629 = vsub.s32 32, %v2628
        %v2630 = vshrl.u32 683565275, %v2629
        %v2631 = vshll.u32 683565275, %v2628
        %v2632 = vshrl.u32 2475754826, %v2629
        %v2633 = vor.u32 %v2631, %v2632
        %v2634 = vshll.u32 2475754826, %v2628
        %v2635 = vshrl.u32 2131351028, %v2629
        %v2636 = vor.u32 %v2634, %v2635
        %v2637 = vshll.u32 2131351028, %v2628
        %v2638 = vshrl.u32 2102212464, %v2629
        %v2639 = vor.u32 %v2637, %v2638
        %v2640 = vshll.u32 2102212464, %v2628
        %v2641 = vshrl.u32 920167782, %v2629
        %v2642 = vor.u32 %v2640, %v2641
        %v2643 = vshll.u32 920167782, %v2628
        %v2644 = vshrl.u32 1326507024, %v2629
        %v2645 = vor.u32 %v2643, %v2644
        %vm2646 = vcmp.lt.s32.totalorder %v2627, 1
        %vm2647 = vcmp.lt.s32.totalorder %v2627, 2
        %vm2648 = vcmp.lt.s32.totalorder %v2627, 3
        %vm2649 = vcmp.lt.s32.totalorder %v2627, 4
        %v2650 = vsel %vm2646, %v2630, %v2633
        %v2651 = vsel %vm2649, %v2639, 2102212464
        %v2652 = vsel %vm2648, %v2636, %v2651
        %v2653 = vsel %vm2647, %v2650, %v2652
        %v2654 = vsel %vm2646, %v2633, %v2636
        %v2655 = vsel %vm2649, %v2642, 920167782
        %v2656 = vsel %vm2648, %v2639, %v2655
        %v2657 = vsel %vm2647, %v2654, %v2656
        %v2658 = vsel %vm2646, %v2636, %v2639
        %v2659 = vsel %vm2649, %v2645, 1326507024
        %v2660 = vsel %vm2648, %v2642, %v2659
        %v2661 = vsel %vm2647, %v2658, %v2660
        %v2662 = vshll.u32 %v2622, 8
        %v2663 = vmul.u32.u64.compose %v2662, %v2661
        %v2664 = vextract.low.u32 %v2663
        %v2665 = vextract.high.u32 %v2663
        %v2666 = vmul.u32.u64.compose %v2662, %v2657
        %v2667 = vextract.low.u32 %v2666
        %v2668 = vextract.high.u32 %v2666
        %v2669 = vmul.u32 %v2662, %v2653
        %v2670 = vadd.s32 %v2665, %v2667
        %vm2671 = vc.u32 %v2665, %v2667
        %v2672 = vadd.s32 %v2668, 1
        %v2673 = vsel %vm2671, %v2672, %v2668
        %v2674 = vadd.s32 %v2669, %v2673
        %v2675 = vadd.s32 %v2674, 536870912
        %v2676 = vshrl.u32 %v2675, 30
        %v2677 = vshll.u32 %v2676, 30
        %v2678 = vsub.s32 %v2674, %v2677
        %vm2679 = vcmp.lt.s32.totalorder %v2678, 0
        %v2680 = vsub.s32 0, %v2678
        %v2681 = vsel %vm2679, %v2680, %v2678
        %v2682 = vclz %v2681
        %v2683 = vsub.s32 %v2682, 2
        %vm2684 = vcmp.gt.s32.totalorder 0, %v2683
        %v2685 = vsel %vm2684, 0, %v2683
        %v2686 = vsub.s32 32, %v2685
        %v2687 = vshll.u32 %v2678, %v2685
        %v2688 = vshrl.u32 %v2670, %v2686
        %v2689 = vor.u32 %v2687, %v2688
        %v2690 = vsub.s32 4294967266, %v2685
        %v2691 = vadd.s32 %v2690, 127
        %v2692 = vshll.u32 %v2691, 23
        %v2693 = vor.u32 4788187, %v2692
        %v2694 = vand.u32 2147483647, %v2693
        %v2696 = vcvt.s32.f32 %v2689
        %v2697 = vmul.f32 %v2696, %v2694
        %v2698 = vxor.u32 %v2697, 2147483648
        %v2699 = vsel %vm2616, %v2698, %v2697
        %v2700 = vsub.s32 4, %v2676
        %v2701 = vsel %vm2616, %v2700, %v2676
        %v2702 = vsel %vm2615, %v1137, %v2699
        %v2703 = vsel %vm2615, 0, %v2701
        %v2704 = vcosq.f32.pop %v2702
        %v2705 = vsinq.f32.pop %v2702
        %vm2706 = vweird.f32 %v1137
        %v2707 = vadd.s32 %v2703, 3
        %v2708 = vand.u32 %v2707, 3
        %vm2709 = vcmp.lt.s32.totalorder %v2708, 2
        %vm2710 = vcmp.eq.s32.totalorder %v2708, 0
        %v2711 = vxor.u32 %v2705, 2147483648
        %v2712 = vsel %vm2710, %v2704, %v2711
        %vm2713 = vcmp.eq.s32.totalorder %v2708, 2
        %v2714 = vxor.u32 %v2704, 2147483648
        %v2715 = vsel %vm2713, %v2714, %v2705
        %v2716 = vsel %vm2709, %v2712, %v2715
        %v2717 = vsel %vm2706, nan, %v2716
        %v2718 = vand.u32 2147483647, %v1138
        %vm2719 = vcmp.le.f32.partialorder %v2718, 0.7853982
        %vm2720 = vcmp.lt.s32.totalorder %v1138, 0
        %v2721 = vand.u32 %v1138, 2139095040
        %v2722 = vshrl.u32 %v2721, 23
        %v2723 = vsub.s32 %v2722, 127
        %v2724 = vand.u32 2147483647, %v1138
        %v2725 = vand.u32 %v2724, 8388607
        %v2726 = vor.u32 %v2725, 8388608
        %v2727 = vsub.s32 0, %v2726
        %v2728 = vadd.s32 %v2723, 1
        %vm2729 = vcmp.gt.s32.totalorder %v2728, 0
        %v2730 = vsel %vm2729, %v2728, 0
        %v2731 = vshrl.u32 %v2730, 5
        %v2732 = vand.u32 %v2730, 31
        %v2733 = vsub.s32 32, %v2732
        %v2734 = vshrl.u32 683565275, %v2733
        %v2735 = vshll.u32 683565275, %v2732
        %v2736 = vshrl.u32 2475754826, %v2733
        %v2737 = vor.u32 %v2735, %v2736
        %v2738 = vshll.u32 2475754826, %v2732
        %v2739 = vshrl.u32 2131351028, %v2733
        %v2740 = vor.u32 %v2738, %v2739
        %v2741 = vshll.u32 2131351028, %v2732
        %v2742 = vshrl.u32 2102212464, %v2733
        %v2743 = vor.u32 %v2741, %v2742
        %v2744 = vshll.u32 2102212464, %v2732
        %v2745 = vshrl.u32 920167782, %v2733
        %v2746 = vor.u32 %v2744, %v2745
        %v2747 = vshll.u32 920167782, %v2732
        %v2748 = vshrl.u32 1326507024, %v2733
        %v2749 = vor.u32 %v2747, %v2748
        %vm2750 = vcmp.lt.s32.totalorder %v2731, 1
        %vm2751 = vcmp.lt.s32.totalorder %v2731, 2
        %vm2752 = vcmp.lt.s32.totalorder %v2731, 3
        %vm2753 = vcmp.lt.s32.totalorder %v2731, 4
        %v2754 = vsel %vm2750, %v2734, %v2737
        %v2755 = vsel %vm2753, %v2743, 2102212464
        %v2756 = vsel %vm2752, %v2740, %v2755
        %v2757 = vsel %vm2751, %v2754, %v2756
        %v2758 = vsel %vm2750, %v2737, %v2740
        %v2759 = vsel %vm2753, %v2746, 920167782
        %v2760 = vsel %vm2752, %v2743, %v2759
        %v2761 = vsel %vm2751, %v2758, %v2760
        %v2762 = vsel %vm2750, %v2740, %v2743
        %v2763 = vsel %vm2753, %v2749, 1326507024
        %v2764 = vsel %vm2752, %v2746, %v2763
        %v2765 = vsel %vm2751, %v2762, %v2764
        %v2766 = vshll.u32 %v2726, 8
        %v2767 = vmul.u32.u64.compose %v2766, %v2765
        %v2768 = vextract.low.u32 %v2767
        %v2769 = vextract.high.u32 %v2767
        %v2770 = vmul.u32.u64.compose %v2766, %v2761
        %v2771 = vextract.low.u32 %v2770
        %v2772 = vextract.high.u32 %v2770
        %v2773 = vmul.u32 %v2766, %v2757
        %v2774 = vadd.s32 %v2769, %v2771
        %vm2775 = vc.u32 %v2769, %v2771
        %v2776 = vadd.s32 %v2772, 1
        %v2777 = vsel %vm2775, %v2776, %v2772
        %v2778 = vadd.s32 %v2773, %v2777
        %v2779 = vadd.s32 %v2778, 536870912
        %v2780 = vshrl.u32 %v2779, 30
        %v2781 = vshll.u32 %v2780, 30
        %v2782 = vsub.s32 %v2778, %v2781
        %vm2783 = vcmp.lt.s32.totalorder %v2782, 0
        %v2784 = vsub.s32 0, %v2782
        %v2785 = vsel %vm2783, %v2784, %v2782
        %v2786 = vclz %v2785
        %v2787 = vsub.s32 %v2786, 2
        %vm2788 = vcmp.gt.s32.totalorder 0, %v2787
        %v2789 = vsel %vm2788, 0, %v2787
        %v2790 = vsub.s32 32, %v2789
        %v2791 = vshll.u32 %v2782, %v2789
        %v2792 = vshrl.u32 %v2774, %v2790
        %v2793 = vor.u32 %v2791, %v2792
        %v2794 = vsub.s32 4294967266, %v2789
        %v2795 = vadd.s32 %v2794, 127
        %v2796 = vshll.u32 %v2795, 23
        %v2797 = vor.u32 4788187, %v2796
        %v2798 = vand.u32 2147483647, %v2797
        %v2800 = vcvt.s32.f32 %v2793
        %v2801 = vmul.f32 %v2800, %v2798
        %v2802 = vxor.u32 %v2801, 2147483648
        %v2803 = vsel %vm2720, %v2802, %v2801
        %v2804 = vsub.s32 4, %v2780
        %v2805 = vsel %vm2720, %v2804, %v2780
        %v2806 = vsel %vm2719, %v1138, %v2803
        %v2807 = vsel %vm2719, 0, %v2805
        %v2808 = vcosq.f32.pop %v2806
        %v2809 = vsinq.f32.pop %v2806
        %vm2810 = vweird.f32 %v1138
        %v2811 = vadd.s32 %v2807, 3
        %v2812 = vand.u32 %v2811, 3
        %vm2813 = vcmp.lt.s32.totalorder %v2812, 2
        %vm2814 = vcmp.eq.s32.totalorder %v2812, 0
        %v2815 = vxor.u32 %v2809, 2147483648
        %v2816 = vsel %vm2814, %v2808, %v2815
        %vm2817 = vcmp.eq.s32.totalorder %v2812, 2
        %v2818 = vxor.u32 %v2808, 2147483648
        %v2819 = vsel %vm2817, %v2818, %v2809
        %v2820 = vsel %vm2813, %v2816, %v2819
        %v2821 = vsel %vm2810, nan, %v2820
        %v2822 = vand.u32 2147483647, %v1139
        %vm2823 = vcmp.le.f32.partialorder %v2822, 0.7853982
        %vm2824 = vcmp.lt.s32.totalorder %v1139, 0
        %v2825 = vand.u32 %v1139, 2139095040
        %v2826 = vshrl.u32 %v2825, 23
        %v2827 = vsub.s32 %v2826, 127
        %v2828 = vand.u32 2147483647, %v1139
        %v2829 = vand.u32 %v2828, 8388607
        %v2830 = vor.u32 %v2829, 8388608
        %v2831 = vsub.s32 0, %v2830
        %v2832 = vadd.s32 %v2827, 1
        %vm2833 = vcmp.gt.s32.totalorder %v2832, 0
        %v2834 = vsel %vm2833, %v2832, 0
        %v2835 = vshrl.u32 %v2834, 5
        %v2836 = vand.u32 %v2834, 31
        %v2837 = vsub.s32 32, %v2836
        %v2838 = vshrl.u32 683565275, %v2837
        %v2839 = vshll.u32 683565275, %v2836
        %v2840 = vshrl.u32 2475754826, %v2837
        %v2841 = vor.u32 %v2839, %v2840
        %v2842 = vshll.u32 2475754826, %v2836
        %v2843 = vshrl.u32 2131351028, %v2837
        %v2844 = vor.u32 %v2842, %v2843
        %v2845 = vshll.u32 2131351028, %v2836
        %v2846 = vshrl.u32 2102212464, %v2837
        %v2847 = vor.u32 %v2845, %v2846
        %v2848 = vshll.u32 2102212464, %v2836
        %v2849 = vshrl.u32 920167782, %v2837
        %v2850 = vor.u32 %v2848, %v2849
        %v2851 = vshll.u32 920167782, %v2836
        %v2852 = vshrl.u32 1326507024, %v2837
        %v2853 = vor.u32 %v2851, %v2852
        %vm2854 = vcmp.lt.s32.totalorder %v2835, 1
        %vm2855 = vcmp.lt.s32.totalorder %v2835, 2
        %vm2856 = vcmp.lt.s32.totalorder %v2835, 3
        %vm2857 = vcmp.lt.s32.totalorder %v2835, 4
        %v2858 = vsel %vm2854, %v2838, %v2841
        %v2859 = vsel %vm2857, %v2847, 2102212464
        %v2860 = vsel %vm2856, %v2844, %v2859
        %v2861 = vsel %vm2855, %v2858, %v2860
        %v2862 = vsel %vm2854, %v2841, %v2844
        %v2863 = vsel %vm2857, %v2850, 920167782
        %v2864 = vsel %vm2856, %v2847, %v2863
        %v2865 = vsel %vm2855, %v2862, %v2864
        %v2866 = vsel %vm2854, %v2844, %v2847
        %v2867 = vsel %vm2857, %v2853, 1326507024
        %v2868 = vsel %vm2856, %v2850, %v2867
        %v2869 = vsel %vm2855, %v2866, %v2868
        %v2870 = vshll.u32 %v2830, 8
        %v2871 = vmul.u32.u64.compose %v2870, %v2869
        %v2872 = vextract.low.u32 %v2871
        %v2873 = vextract.high.u32 %v2871
        %v2874 = vmul.u32.u64.compose %v2870, %v2865
        %v2875 = vextract.low.u32 %v2874
        %v2876 = vextract.high.u32 %v2874
        %v2877 = vmul.u32 %v2870, %v2861
        %v2878 = vadd.s32 %v2873, %v2875
        %vm2879 = vc.u32 %v2873, %v2875
        %v2880 = vadd.s32 %v2876, 1
        %v2881 = vsel %vm2879, %v2880, %v2876
        %v2882 = vadd.s32 %v2877, %v2881
        %v2883 = vadd.s32 %v2882, 536870912
        %v2884 = vshrl.u32 %v2883, 30
        %v2885 = vshll.u32 %v2884, 30
        %v2886 = vsub.s32 %v2882, %v2885
        %vm2887 = vcmp.lt.s32.totalorder %v2886, 0
        %v2888 = vsub.s32 0, %v2886
        %v2889 = vsel %vm2887, %v2888, %v2886
        %v2890 = vclz %v2889
        %v2891 = vsub.s32 %v2890, 2
        %vm2892 = vcmp.gt.s32.totalorder 0, %v2891
        %v2893 = vsel %vm2892, 0, %v2891
        %v2894 = vsub.s32 32, %v2893
        %v2895 = vshll.u32 %v2886, %v2893
        %v2896 = vshrl.u32 %v2878, %v2894
        %v2897 = vor.u32 %v2895, %v2896
        %v2898 = vsub.s32 4294967266, %v2893
        %v2899 = vadd.s32 %v2898, 127
        %v2900 = vshll.u32 %v2899, 23
        %v2901 = vor.u32 4788187, %v2900
        %v2902 = vand.u32 2147483647, %v2901
        %v2904 = vcvt.s32.f32 %v2897
        %v2905 = vmul.f32 %v2904, %v2902
        %v2906 = vxor.u32 %v2905, 2147483648
        %v2907 = vsel %vm2824, %v2906, %v2905
        %v2908 = vsub.s32 4, %v2884
        %v2909 = vsel %vm2824, %v2908, %v2884
        %v2910 = vsel %vm2823, %v1139, %v2907
        %v2911 = vsel %vm2823, 0, %v2909
        %v2912 = vcosq.f32.pop %v2910
        %v2913 = vsinq.f32.pop %v2910
        %vm2914 = vweird.f32 %v1139
        %v2915 = vadd.s32 %v2911, 3
        %v2916 = vand.u32 %v2915, 3
        %vm2917 = vcmp.lt.s32.totalorder %v2916, 2
        %vm2918 = vcmp.eq.s32.totalorder %v2916, 0
        %v2919 = vxor.u32 %v2913, 2147483648
        %v2920 = vsel %vm2918, %v2912, %v2919
        %vm2921 = vcmp.eq.s32.totalorder %v2916, 2
        %v2922 = vxor.u32 %v2912, 2147483648
        %v2923 = vsel %vm2921, %v2922, %v2913
        %v2924 = vsel %vm2917, %v2920, %v2923
        %v2925 = vsel %vm2914, nan, %v2924
        %v2927 = vsel %vm1964, %v2197, 0
        %v2930 = vsel %vm1964, %v2301, 0
        %v2933 = vsel %vm1964, %v2405, 0
        %v2936 = vsel %vm1964, %v2509, 0
        %v2939 = vsel %vm1964, %v2613, 0
        %v2942 = vsel %vm1964, %v2717, 0
        %v2945 = vsel %vm1964, %v2821, 0
        %v2948 = vsel %vm1964, %v2925, 0
        %2950 = vmatprep.subr.mxu0 0.0
        %2951 = vmatpush1.msra.mxu0 %v687
        %2952 = vmatprep.subr.mxu0 0.0
        %2953 = vmatpush1.msra.mxu0 %v688
        %2954 = vmatprep.subr.mxu0 0.0
        %2955 = vmatpush1.msra.mxu0 0.0
        %2956 = vmatprep.subr.mxu0 0.0
        %2957 = vmatpush1.msra.mxu0 0.0
        %2958 = vmatprep.subr.mxu0 0.0
        %2959 = vmatpush1.msra.mxu0 0.0
        %2960 = vmatprep.subr.mxu0 0.0
        %2961 = vmatpush1.msra.mxu0 0.0
        %2962 = vmatprep.subr.mxu0 0.0
        %2963 = vmatpush1.msra.mxu0 0.0
        %2964 = vmatprep.subr.mxu0 0.0
        %2965 = vmatpush1.msra.mxu0 0.0
        %2966 = vmatprep.subr.mxu0 0.0
        %2967 = vmatpush1.msra.mxu0 0.0
        %2968 = vmatprep.subr.mxu0 0.0
        %2969 = vmatpush1.msra.mxu0 0.0
        %2970 = vmatprep.subr.mxu0 0.0
        %2971 = vmatpush1.msra.mxu0 0.0
        %2972 = vmatprep.subr.mxu0 0.0
        %2973 = vmatpush1.msra.mxu0 0.0
        %2974 = vmatprep.subr.mxu0 0.0
        %2975 = vmatpush1.msra.mxu0 0.0
        %2976 = vmatprep.subr.mxu0 0.0
        %2977 = vmatpush1.msra.mxu0 0.0
        %2978 = vmatprep.subr.mxu0 0.0
        %2979 = vmatpush1.msra.mxu0 0.0
        %2980 = vmatprep.subr.mxu0 0.0
        %2981 = vmatpush1.msra.mxu0 0.0
        %2982 = vmatprep.subr.mxu0 0.0
        %2983 = vmatpush1.msra.mxu0 0.0
        %2984 = vmatprep.subr.mxu0 0.0
        %2985 = vmatpush1.msra.mxu0 0.0
        %2986 = vmatprep.subr.mxu0 0.0
        %2987 = vmatpush1.msra.mxu0 0.0
        %2988 = vmatprep.subr.mxu0 0.0
        %2989 = vmatpush1.msra.mxu0 0.0
        %2990 = vmatprep.subr.mxu0 0.0
        %2991 = vmatpush1.msra.mxu0 0.0
        %2992 = vmatprep.subr.mxu0 0.0
        %2993 = vmatpush1.msra.mxu0 0.0
        %2994 = vmatprep.subr.mxu0 0.0
        %2995 = vmatpush1.msra.mxu0 0.0
        %2996 = vmatprep.subr.mxu0 0.0
        %2997 = vmatpush1.msra.mxu0 0.0
        %2998 = vmatprep.subr.mxu0 0.0
        %2999 = vmatpush1.msra.mxu0 0.0
        %3000 = vmatprep.subr.mxu0 0.0
        %3001 = vmatpush1.msra.mxu0 0.0
        %3002 = vmatprep.subr.mxu0 0.0
        %3003 = vmatpush1.msra.mxu0 0.0
        %3004 = vmatprep.subr.mxu0 0.0
        %3005 = vmatpush1.msra.mxu0 0.0
        %3006 = vmatprep.subr.mxu0 0.0
        %3007 = vmatpush1.msra.mxu0 0.0
        %3008 = vmatprep.subr.mxu0 0.0
        %3009 = vmatpush1.msra.mxu0 0.0
        %3010 = vmatprep.subr.mxu0 0.0
        %3011 = vmatpush1.msra.mxu0 0.0
        %3012 = vmatprep.subr.mxu0 0.0
        %3013 = vmatpush1.msra.mxu0 0.0
        %3014 = vmatprep.mubr.f32.mxu0 0.0
        %3015 = vmatmul.mubr.f32.gmra.mrb[0].mxu0 %v2927
        %v3016 = vpop.f32.mrb[0].mxu0
        %v3017 = vadd.f32 0.0, %v3016
        %v3018 = vpop.f32.mrb[0].mxu0
        %3019 = vmatprep.mubr.f32.mxu0 0.0
        %3020 = vmatmul.mubr.f32.gmra.mrb[0].mxu0 %v2930
        %v3021 = vpop.f32.mrb[0].mxu0
        %v3022 = vadd.f32 0.0, %v3021
        %v3023 = vpop.f32.mrb[0].mxu0
        %3024 = vmatprep.mubr.f32.mxu0 0.0
        %3025 = vmatmul.mubr.f32.gmra.mrb[0].mxu0 %v2933
        %v3026 = vpop.f32.mrb[0].mxu0
        %v3027 = vadd.f32 0.0, %v3026
        %v3028 = vpop.f32.mrb[0].mxu0
        %3029 = vmatprep.mubr.f32.mxu0 0.0
        %3030 = vmatmul.mubr.f32.gmra.mrb[0].mxu0 %v2936
        %v3031 = vpop.f32.mrb[0].mxu0
        %v3032 = vadd.f32 0.0, %v3031
        %v3033 = vpop.f32.mrb[0].mxu0
        %3034 = vmatprep.mubr.f32.mxu0 0.0
        %3035 = vmatmul.mubr.f32.gmra.mrb[0].mxu0 %v2939
        %v3036 = vpop.f32.mrb[0].mxu0
        %v3037 = vadd.f32 0.0, %v3036
        %v3038 = vpop.f32.mrb[0].mxu0
        %3039 = vmatprep.mubr.f32.mxu0 0.0
        %3040 = vmatmul.mubr.f32.gmra.mrb[0].mxu0 %v2942
        %v3041 = vpop.f32.mrb[0].mxu0
        %v3042 = vadd.f32 0.0, %v3041
        %v3043 = vpop.f32.mrb[0].mxu0
        %3044 = vmatprep.mubr.f32.mxu0 0.0
        %3045 = vmatmul.mubr.f32.gmra.mrb[0].mxu0 %v2945
        %v3046 = vpop.f32.mrb[0].mxu0
        %v3047 = vadd.f32 0.0, %v3046
        %v3048 = vpop.f32.mrb[0].mxu0
        %3049 = vmatprep.mubr.f32.mxu0 0.0
        %3050 = vmatmul.mubr.f32.gmra.mrb[0].mxu0 %v2948
        %v3051 = vpop.f32.mrb[0].mxu0
        %v3052 = vadd.f32 0.0, %v3051
        %v3053 = vpop.f32.mrb[0].mxu0
        %3054 = vdwg.mxu0
        %v3056 = vcombine.high %v820, %v820
        %v3058 = vunpack.c.l.s4 1966171168
        %v3059 = vunpack.c.0.s8 %v3058
        %v3060 = vlaneseq
        %v3061 = vshrl.u32 %v3060, 7
        %v3062 = vsub.s32 %v3059, %v3061
        %v3063 = vrot.slane %v820, %v3062
        %v3065 = vunpack.c.l.s4 1966171168
        %v3066 = vunpack.c.0.s8 %v3065
        %v3067 = vlaneseq
        %v3068 = vshrl.u32 %v3067, 7
        %v3069 = vsub.s32 %v3066, %v3068
        %v3070 = vrot.slane %v3056, %v3069
        %v3071 = vcombine.high %v3063, %v3063
        %v3072 = vcombine.high %v3070, %v3070
        %v3074 = vunpack.c.l.s4 1966171168
        %v3075 = vunpack.c.0.s8 %v3074
        %v3076 = vlaneseq
        %v3077 = vshrl.u32 %v3076, 7
        %v3078 = vsub.s32 %v3075, %v3077
        %v3079 = vrot.slane %v3063, %v3078
        %v3081 = vunpack.c.l.s4 1966171168
        %v3082 = vunpack.c.0.s8 %v3081
        %v3083 = vlaneseq
        %v3084 = vshrl.u32 %v3083, 7
        %v3085 = vsub.s32 %v3082, %v3084
        %v3086 = vrot.slane %v3070, %v3085
        %v3088 = vunpack.c.l.s4 1966171168
        %v3089 = vunpack.c.0.s8 %v3088
        %v3090 = vlaneseq
        %v3091 = vshrl.u32 %v3090, 7
        %v3092 = vsub.s32 %v3089, %v3091
        %v3093 = vrot.slane %v3071, %v3092
        %v3095 = vunpack.c.l.s4 1966171168
        %v3096 = vunpack.c.0.s8 %v3095
        %v3097 = vlaneseq
        %v3098 = vshrl.u32 %v3097, 7
        %v3099 = vsub.s32 %v3096, %v3098
        %v3100 = vrot.slane %v3072, %v3099
        %v3101 = vcombine.high %v3079, %v3079
        %v3102 = vcombine.high %v3086, %v3086
        %v3103 = vcombine.high %v3093, %v3093
        %v3104 = vcombine.high %v3100, %v3100
        %v3105 = vlaneseq
        %v3106 = vshrl.u32 %v3105, 7
        %v3107 = vsub.s32 0, %v3106
        %v3108 = vrot.slane %v3079, %v3107
        %v3109 = vlaneseq
        %v3110 = vshrl.u32 %v3109, 7
        %v3111 = vsub.s32 0, %v3110
        %v3112 = vrot.slane %v3093, %v3111
        %v3113 = vlaneseq
        %v3114 = vshrl.u32 %v3113, 7
        %v3115 = vsub.s32 0, %v3114
        %v3116 = vrot.slane %v3101, %v3115
        %v3117 = vlaneseq
        %v3118 = vshrl.u32 %v3117, 7
        %v3119 = vsub.s32 0, %v3118
        %v3120 = vrot.slane %v3103, %v3119
        %v3121 = vlaneseq
        %v3122 = vshrl.u32 %v3121, 7
        %v3123 = vsub.s32 0, %v3122
        %v3124 = vrot.slane %v3086, %v3123
        %v3125 = vlaneseq
        %v3126 = vshrl.u32 %v3125, 7
        %v3127 = vsub.s32 0, %v3126
        %v3128 = vrot.slane %v3100, %v3127
        %v3129 = vlaneseq
        %v3130 = vshrl.u32 %v3129, 7
        %v3131 = vsub.s32 0, %v3130
        %v3132 = vrot.slane %v3102, %v3131
        %v3133 = vlaneseq
        %v3134 = vshrl.u32 %v3133, 7
        %v3135 = vsub.s32 0, %v3134
        %v3136 = vrot.slane %v3104, %v3135
        %v3145 = vmul.f32 %v3108, %v2056
        %v3146 = vmul.f32 %v3112, %v2061
        %v3147 = vmul.f32 %v3116, %v2066
        %v3148 = vmul.f32 %v3120, %v2071
        %v3149 = vmul.f32 %v3124, %v2076
        %v3150 = vmul.f32 %v3128, %v2081
        %v3151 = vmul.f32 %v3132, %v2086
        %v3152 = vmul.f32 %v3136, %v2091
        %v3154 = vcombine.high %v961, %v961
        %v3156 = vunpack.c.l.s4 1966171168
        %v3157 = vunpack.c.0.s8 %v3156
        %v3158 = vlaneseq
        %v3159 = vshrl.u32 %v3158, 7
        %v3160 = vsub.s32 %v3157, %v3159
        %v3161 = vrot.slane %v961, %v3160
        %v3163 = vunpack.c.l.s4 1966171168
        %v3164 = vunpack.c.0.s8 %v3163
        %v3165 = vlaneseq
        %v3166 = vshrl.u32 %v3165, 7
        %v3167 = vsub.s32 %v3164, %v3166
        %v3168 = vrot.slane %v3154, %v3167
        %v3169 = vcombine.high %v3161, %v3161
        %v3170 = vcombine.high %v3168, %v3168
        %v3172 = vunpack.c.l.s4 1966171168
        %v3173 = vunpack.c.0.s8 %v3172
        %v3174 = vlaneseq
        %v3175 = vshrl.u32 %v3174, 7
        %v3176 = vsub.s32 %v3173, %v3175
        %v3177 = vrot.slane %v3161, %v3176
        %v3179 = vunpack.c.l.s4 1966171168
        %v3180 = vunpack.c.0.s8 %v3179
        %v3181 = vlaneseq
        %v3182 = vshrl.u32 %v3181, 7
        %v3183 = vsub.s32 %v3180, %v3182
        %v3184 = vrot.slane %v3168, %v3183
        %v3186 = vunpack.c.l.s4 1966171168
        %v3187 = vunpack.c.0.s8 %v3186
        %v3188 = vlaneseq
        %v3189 = vshrl.u32 %v3188, 7
        %v3190 = vsub.s32 %v3187, %v3189
        %v3191 = vrot.slane %v3169, %v3190
        %v3193 = vunpack.c.l.s4 1966171168
        %v3194 = vunpack.c.0.s8 %v3193
        %v3195 = vlaneseq
        %v3196 = vshrl.u32 %v3195, 7
        %v3197 = vsub.s32 %v3194, %v3196
        %v3198 = vrot.slane %v3170, %v3197
        %v3199 = vcombine.high %v3177, %v3177
        %v3200 = vcombine.high %v3184, %v3184
        %v3201 = vcombine.high %v3191, %v3191
        %v3202 = vcombine.high %v3198, %v3198
        %v3203 = vlaneseq
        %v3204 = vshrl.u32 %v3203, 7
        %v3205 = vsub.s32 0, %v3204
        %v3206 = vrot.slane %v3177, %v3205
        %v3207 = vlaneseq
        %v3208 = vshrl.u32 %v3207, 7
        %v3209 = vsub.s32 0, %v3208
        %v3210 = vrot.slane %v3191, %v3209
        %v3211 = vlaneseq
        %v3212 = vshrl.u32 %v3211, 7
        %v3213 = vsub.s32 0, %v3212
        %v3214 = vrot.slane %v3199, %v3213
        %v3215 = vlaneseq
        %v3216 = vshrl.u32 %v3215, 7
        %v3217 = vsub.s32 0, %v3216
        %v3218 = vrot.slane %v3201, %v3217
        %v3219 = vlaneseq
        %v3220 = vshrl.u32 %v3219, 7
        %v3221 = vsub.s32 0, %v3220
        %v3222 = vrot.slane %v3184, %v3221
        %v3223 = vlaneseq
        %v3224 = vshrl.u32 %v3223, 7
        %v3225 = vsub.s32 0, %v3224
        %v3226 = vrot.slane %v3198, %v3225
        %v3227 = vlaneseq
        %v3228 = vshrl.u32 %v3227, 7
        %v3229 = vsub.s32 0, %v3228
        %v3230 = vrot.slane %v3200, %v3229
        %v3231 = vlaneseq
        %v3232 = vshrl.u32 %v3231, 7
        %v3233 = vsub.s32 0, %v3232
        %v3234 = vrot.slane %v3202, %v3233
        %v3243 = vmul.f32 %v3206, %v3017
        %v3244 = vmul.f32 %v3210, %v3022
        %v3245 = vmul.f32 %v3214, %v3027
        %v3246 = vmul.f32 %v3218, %v3032
        %v3247 = vmul.f32 %v3222, %v3037
        %v3248 = vmul.f32 %v3226, %v3042
        %v3249 = vmul.f32 %v3230, %v3047
        %v3250 = vmul.f32 %v3234, %v3052
        %v3251 = vadd.f32 %v3145, %v3243
        %v3252 = vadd.f32 %v3146, %v3244
        %v3253 = vadd.f32 %v3147, %v3245
        %v3254 = vadd.f32 %v3148, %v3246
        %v3255 = vadd.f32 %v3149, %v3247
        %v3256 = vadd.f32 %v3150, %v3248
        %v3257 = vadd.f32 %v3151, %v3249
        %v3258 = vadd.f32 %v3152, %v3250
        %v3259 = vmul.f32 %v3251, %v822
        %v3260 = vmul.f32 %v3252, %v822
        %v3261 = vmul.f32 %v3253, %v822
        %v3262 = vmul.f32 %v3254, %v822
        %v3263 = vmul.f32 %v3255, %v822
        %v3264 = vmul.f32 %v3256, %v822
        %v3265 = vmul.f32 %v3257, %v822
        %v3266 = vmul.f32 %v3258, %v822
        %3267 = vmatprep.subr.mxu0 0.0
        %3268 = vmatpush1.msra.mxu0 %v655
        %3269 = vmatprep.subr.mxu0 0.0
        %3270 = vmatpush1.msra.mxu0 %v656
        %3271 = vmatprep.subr.mxu0 0.0
        %3272 = vmatpush1.msra.mxu0 %v657
        %3273 = vmatprep.subr.mxu0 0.0
        %3274 = vmatpush1.msra.mxu0 %v658
        %3275 = vmatprep.subr.mxu0 0.0
        %3276 = vmatpush1.msra.mxu0 %v659
        %3277 = vmatprep.subr.mxu0 0.0
        %3278 = vmatpush1.msra.mxu0 %v660
        %3279 = vmatprep.subr.mxu0 0.0
        %3280 = vmatpush1.msra.mxu0 %v661
        %3281 = vmatprep.subr.mxu0 0.0
        %3282 = vmatpush1.msra.mxu0 %v662
        %3283 = vmatprep.subr.mxu0 0.0
        %3284 = vmatpush1.msra.mxu0 %v663
        %3285 = vmatprep.subr.mxu0 0.0
        %3286 = vmatpush1.msra.mxu0 %v664
        %3287 = vmatprep.subr.mxu0 0.0
        %3288 = vmatpush1.msra.mxu0 %v665
        %3289 = vmatprep.subr.mxu0 0.0
        %3290 = vmatpush1.msra.mxu0 %v666
        %3291 = vmatprep.subr.mxu0 0.0
        %3292 = vmatpush1.msra.mxu0 %v667
        %3293 = vmatprep.subr.mxu0 0.0
        %3294 = vmatpush1.msra.mxu0 %v668
        %3295 = vmatprep.subr.mxu0 0.0
        %3296 = vmatpush1.msra.mxu0 %v669
        %3297 = vmatprep.subr.mxu0 0.0
        %3298 = vmatpush1.msra.mxu0 %v670
        %3299 = vmatprep.subr.mxu0 0.0
        %3300 = vmatpush1.msra.mxu0 0.0
        %3301 = vmatprep.subr.mxu0 0.0
        %3302 = vmatpush1.msra.mxu0 0.0
        %3303 = vmatprep.subr.mxu0 0.0
        %3304 = vmatpush1.msra.mxu0 0.0
        %3305 = vmatprep.subr.mxu0 0.0
        %3306 = vmatpush1.msra.mxu0 0.0
        %3307 = vmatprep.subr.mxu0 0.0
        %3308 = vmatpush1.msra.mxu0 0.0
        %3309 = vmatprep.subr.mxu0 0.0
        %3310 = vmatpush1.msra.mxu0 0.0
        %3311 = vmatprep.subr.mxu0 0.0
        %3312 = vmatpush1.msra.mxu0 0.0
        %3313 = vmatprep.subr.mxu0 0.0
        %3314 = vmatpush1.msra.mxu0 0.0
        %3315 = vmatprep.subr.mxu0 0.0
        %3316 = vmatpush1.msra.mxu0 0.0
        %3317 = vmatprep.subr.mxu0 0.0
        %3318 = vmatpush1.msra.mxu0 0.0
        %3319 = vmatprep.subr.mxu0 0.0
        %3320 = vmatpush1.msra.mxu0 0.0
        %3321 = vmatprep.subr.mxu0 0.0
        %3322 = vmatpush1.msra.mxu0 0.0
        %3323 = vmatprep.subr.mxu0 0.0
        %3324 = vmatpush1.msra.mxu0 0.0
        %3325 = vmatprep.subr.mxu0 0.0
        %3326 = vmatpush1.msra.mxu0 0.0
        %3327 = vmatprep.subr.mxu0 0.0
        %3328 = vmatpush1.msra.mxu0 0.0
        %3329 = vmatprep.subr.mxu0 0.0
        %3330 = vmatpush1.msra.mxu0 0.0
        %3331 = vmatprep.mubr.f32.mxu0 0.0
        %3332 = vmatmul.mubr.f32.gmra.mrb[0].mxu0 %v3259
        %v3333 = vpop.f32.mrb[0].mxu0
        %v3334 = vadd.f32 0.0, %v3333
        %v3335 = vpop.f32.mrb[0].mxu0
        %3336 = vmatprep.mubr.f32.mxu0 0.0
        %3337 = vmatmul.mubr.f32.gmra.mrb[0].mxu0 %v3260
        %v3338 = vpop.f32.mrb[0].mxu0
        %v3339 = vadd.f32 0.0, %v3338
        %v3340 = vpop.f32.mrb[0].mxu0
        %3341 = vmatprep.mubr.f32.mxu0 0.0
        %3342 = vmatmul.mubr.f32.gmra.mrb[0].mxu0 %v3261
        %v3343 = vpop.f32.mrb[0].mxu0
        %v3344 = vadd.f32 0.0, %v3343
        %v3345 = vpop.f32.mrb[0].mxu0
        %3346 = vmatprep.mubr.f32.mxu0 0.0
        %3347 = vmatmul.mubr.f32.gmra.mrb[0].mxu0 %v3262
        %v3348 = vpop.f32.mrb[0].mxu0
        %v3349 = vadd.f32 0.0, %v3348
        %v3350 = vpop.f32.mrb[0].mxu0
        %3351 = vmatprep.mubr.f32.mxu0 0.0
        %3352 = vmatmul.mubr.f32.gmra.mrb[0].mxu0 %v3263
        %v3353 = vpop.f32.mrb[0].mxu0
        %v3354 = vadd.f32 0.0, %v3353
        %v3355 = vpop.f32.mrb[0].mxu0
        %3356 = vmatprep.mubr.f32.mxu0 0.0
        %3357 = vmatmul.mubr.f32.gmra.mrb[0].mxu0 %v3264
        %v3358 = vpop.f32.mrb[0].mxu0
        %v3359 = vadd.f32 0.0, %v3358
        %v3360 = vpop.f32.mrb[0].mxu0
        %3361 = vmatprep.mubr.f32.mxu0 0.0
        %3362 = vmatmul.mubr.f32.gmra.mrb[0].mxu0 %v3265
        %v3363 = vpop.f32.mrb[0].mxu0
        %v3364 = vadd.f32 0.0, %v3363
        %v3365 = vpop.f32.mrb[0].mxu0
        %3366 = vmatprep.mubr.f32.mxu0 0.0
        %3367 = vmatmul.mubr.f32.gmra.mrb[0].mxu0 %v3266
        %v3368 = vpop.f32.mrb[0].mxu0
        %v3369 = vadd.f32 0.0, %v3368
        %v3370 = vpop.f32.mrb[0].mxu0
        %3371 = vdwg.mxu0
        %v3372 = vrot.slane %v3334, 4
        %v3373 = vmax.f32 %v3334, %v3372
        %v3374 = vrot.slane %v3373, 2
        %v3375 = vmax.f32 %v3373, %v3374
        %v3376 = vrot.slane %v3375, 1
        %v3377 = vmax.f32 %v3375, %v3376
        %v3378 = vrot.slane %v3339, 4
        %v3379 = vmax.f32 %v3339, %v3378
        %v3380 = vrot.slane %v3379, 2
        %v3381 = vmax.f32 %v3379, %v3380
        %v3382 = vrot.slane %v3381, 1
        %v3383 = vmax.f32 %v3381, %v3382
        %v3384 = vrot.slane %v3344, 4
        %v3385 = vmax.f32 %v3344, %v3384
        %v3386 = vrot.slane %v3385, 2
        %v3387 = vmax.f32 %v3385, %v3386
        %v3388 = vrot.slane %v3387, 1
        %v3389 = vmax.f32 %v3387, %v3388
        %v3390 = vrot.slane %v3349, 4
        %v3391 = vmax.f32 %v3349, %v3390
        %v3392 = vrot.slane %v3391, 2
        %v3393 = vmax.f32 %v3391, %v3392
        %v3394 = vrot.slane %v3393, 1
        %v3395 = vmax.f32 %v3393, %v3394
        %v3396 = vrot.slane %v3354, 4
        %v3397 = vmax.f32 %v3354, %v3396
        %v3398 = vrot.slane %v3397, 2
        %v3399 = vmax.f32 %v3397, %v3398
        %v3400 = vrot.slane %v3399, 1
        %v3401 = vmax.f32 %v3399, %v3400
        %v3402 = vrot.slane %v3359, 4
        %v3403 = vmax.f32 %v3359, %v3402
        %v3404 = vrot.slane %v3403, 2
        %v3405 = vmax.f32 %v3403, %v3404
        %v3406 = vrot.slane %v3405, 1
        %v3407 = vmax.f32 %v3405, %v3406
        %v3408 = vrot.slane %v3364, 4
        %v3409 = vmax.f32 %v3364, %v3408
        %v3410 = vrot.slane %v3409, 2
        %v3411 = vmax.f32 %v3409, %v3410
        %v3412 = vrot.slane %v3411, 1
        %v3413 = vmax.f32 %v3411, %v3412
        %v3414 = vrot.slane %v3369, 4
        %v3415 = vmax.f32 %v3369, %v3414
        %v3416 = vrot.slane %v3415, 2
        %v3417 = vmax.f32 %v3415, %v3416
        %v3418 = vrot.slane %v3417, 1
        %v3419 = vmax.f32 %v3417, %v3418
        %v3420 = vsub.f32 %v3334, %v3377
        %v3421 = vsub.f32 %v3339, %v3383
        %v3422 = vsub.f32 %v3344, %v3389
        %v3423 = vsub.f32 %v3349, %v3395
        %v3424 = vsub.f32 %v3354, %v3401
        %v3425 = vsub.f32 %v3359, %v3407
        %v3426 = vsub.f32 %v3364, %v3413
        %v3427 = vsub.f32 %v3369, %v3419
        %v3428 = vmul.f32 %v3420, 1.442695
        %v3429 = vpow.pop %v3428
        %v3430 = vmul.f32 %v3421, 1.442695
        %v3431 = vpow.pop %v3430
        %v3432 = vmul.f32 %v3422, 1.442695
        %v3433 = vpow.pop %v3432
        %v3434 = vmul.f32 %v3423, 1.442695
        %v3435 = vpow.pop %v3434
        %v3436 = vmul.f32 %v3424, 1.442695
        %v3437 = vpow.pop %v3436
        %v3438 = vmul.f32 %v3425, 1.442695
        %v3439 = vpow.pop %v3438
        %v3440 = vmul.f32 %v3426, 1.442695
        %v3441 = vpow.pop %v3440
        %v3442 = vmul.f32 %v3427, 1.442695
        %v3443 = vpow.pop %v3442
        %v3444 = vrot.slane %v3429, 4
        %v3445 = vadd.f32 %v3429, %v3444
        %v3446 = vrot.slane %v3445, 2
        %v3447 = vadd.f32 %v3445, %v3446
        %v3448 = vrot.slane %v3447, 1
        %v3449 = vadd.f32 %v3447, %v3448
        %v3450 = vrot.slane %v3431, 4
        %v3451 = vadd.f32 %v3431, %v3450
        %v3452 = vrot.slane %v3451, 2
        %v3453 = vadd.f32 %v3451, %v3452
        %v3454 = vrot.slane %v3453, 1
        %v3455 = vadd.f32 %v3453, %v3454
        %v3456 = vrot.slane %v3433, 4
        %v3457 = vadd.f32 %v3433, %v3456
        %v3458 = vrot.slane %v3457, 2
        %v3459 = vadd.f32 %v3457, %v3458
        %v3460 = vrot.slane %v3459, 1
        %v3461 = vadd.f32 %v3459, %v3460
        %v3462 = vrot.slane %v3435, 4
        %v3463 = vadd.f32 %v3435, %v3462
        %v3464 = vrot.slane %v3463, 2
        %v3465 = vadd.f32 %v3463, %v3464
        %v3466 = vrot.slane %v3465, 1
        %v3467 = vadd.f32 %v3465, %v3466
        %v3468 = vrot.slane %v3437, 4
        %v3469 = vadd.f32 %v3437, %v3468
        %v3470 = vrot.slane %v3469, 2
        %v3471 = vadd.f32 %v3469, %v3470
        %v3472 = vrot.slane %v3471, 1
        %v3473 = vadd.f32 %v3471, %v3472
        %v3474 = vrot.slane %v3439, 4
        %v3475 = vadd.f32 %v3439, %v3474
        %v3476 = vrot.slane %v3475, 2
        %v3477 = vadd.f32 %v3475, %v3476
        %v3478 = vrot.slane %v3477, 1
        %v3479 = vadd.f32 %v3477, %v3478
        %v3480 = vrot.slane %v3441, 4
        %v3481 = vadd.f32 %v3441, %v3480
        %v3482 = vrot.slane %v3481, 2
        %v3483 = vadd.f32 %v3481, %v3482
        %v3484 = vrot.slane %v3483, 1
        %v3485 = vadd.f32 %v3483, %v3484
        %v3486 = vrot.slane %v3443, 4
        %v3487 = vadd.f32 %v3443, %v3486
        %v3488 = vrot.slane %v3487, 2
        %v3489 = vadd.f32 %v3487, %v3488
        %v3490 = vrot.slane %v3489, 1
        %v3491 = vadd.f32 %v3489, %v3490
        %v3492 = vrcp.pop %v3449
        %v3493 = vrcp.pop %v3455
        %v3494 = vrcp.pop %v3461
        %v3495 = vrcp.pop %v3467
        %v3496 = vrcp.pop %v3473
        %v3497 = vrcp.pop %v3479
        %v3498 = vrcp.pop %v3485
        %v3499 = vrcp.pop %v3491
        %v3500 = vmul.f32 %v3429, %v3492
        %v3501 = vmul.f32 %v3431, %v3493
        %v3502 = vmul.f32 %v3433, %v3494
        %v3503 = vmul.f32 %v3435, %v3495
        %v3504 = vmul.f32 %v3437, %v3496
        %v3505 = vmul.f32 %v3439, %v3497
        %v3506 = vmul.f32 %v3441, %v3498
        %v3507 = vmul.f32 %v3443, %v3499
        %v3508 = vmul.f32 %v3500, %v891
        %v3509 = vmul.f32 %v3501, %v891
        %v3510 = vmul.f32 %v3502, %v891
        %v3511 = vmul.f32 %v3503, %v891
        %v3512 = vmul.f32 %v3504, %v891
        %v3513 = vmul.f32 %v3505, %v891
        %v3514 = vmul.f32 %v3506, %v891
        %v3515 = vmul.f32 %v3507, %v891
        %v3516 = vrot.slane %v3508, 4
        %v3517 = vadd.f32 %v3508, %v3516
        %v3518 = vrot.slane %v3517, 2
        %v3519 = vadd.f32 %v3517, %v3518
        %v3520 = vrot.slane %v3519, 1
        %v3521 = vadd.f32 %v3519, %v3520
        %v3522 = vrot.slane %v3509, 4
        %v3523 = vadd.f32 %v3509, %v3522
        %v3524 = vrot.slane %v3523, 2
        %v3525 = vadd.f32 %v3523, %v3524
        %v3526 = vrot.slane %v3525, 1
        %v3527 = vadd.f32 %v3525, %v3526
        %v3528 = vrot.slane %v3510, 4
        %v3529 = vadd.f32 %v3510, %v3528
        %v3530 = vrot.slane %v3529, 2
        %v3531 = vadd.f32 %v3529, %v3530
        %v3532 = vrot.slane %v3531, 1
        %v3533 = vadd.f32 %v3531, %v3532
        %v3534 = vrot.slane %v3511, 4
        %v3535 = vadd.f32 %v3511, %v3534
        %v3536 = vrot.slane %v3535, 2
        %v3537 = vadd.f32 %v3535, %v3536
        %v3538 = vrot.slane %v3537, 1
        %v3539 = vadd.f32 %v3537, %v3538
        %v3540 = vrot.slane %v3512, 4
        %v3541 = vadd.f32 %v3512, %v3540
        %v3542 = vrot.slane %v3541, 2
        %v3543 = vadd.f32 %v3541, %v3542
        %v3544 = vrot.slane %v3543, 1
        %v3545 = vadd.f32 %v3543, %v3544
        %v3546 = vrot.slane %v3513, 4
        %v3547 = vadd.f32 %v3513, %v3546
        %v3548 = vrot.slane %v3547, 2
        %v3549 = vadd.f32 %v3547, %v3548
        %v3550 = vrot.slane %v3549, 1
        %v3551 = vadd.f32 %v3549, %v3550
        %v3552 = vrot.slane %v3514, 4
        %v3553 = vadd.f32 %v3514, %v3552
        %v3554 = vrot.slane %v3553, 2
        %v3555 = vadd.f32 %v3553, %v3554
        %v3556 = vrot.slane %v3555, 1
        %v3557 = vadd.f32 %v3555, %v3556
        %v3558 = vrot.slane %v3515, 4
        %v3559 = vadd.f32 %v3515, %v3558
        %v3560 = vrot.slane %v3559, 2
        %v3561 = vadd.f32 %v3559, %v3560
        %v3562 = vrot.slane %v3561, 1
        %v3563 = vadd.f32 %v3561, %v3562
        %v3564 = vld [vmem:[%s9] sm:$0xff]
        %v3565 = vld [vmem:[%s9 + $0x8] sm:$0xff]
        %v3566 = vld [vmem:[%s9 + $0x10] sm:$0xff]
        %v3567 = vld [vmem:[%s9 + $0x18] sm:$0xff]
        %v3568 = vld [vmem:[%s9 + $0x20] sm:$0xff]
        %v3569 = vld [vmem:[%s9 + $0x28] sm:$0xff]
        %v3570 = vld [vmem:[%s9 + $0x30] sm:$0xff]
        %v3571 = vld [vmem:[%s9 + $0x38] sm:$0xff]
        %v3572 = vld [vmem:[%s9 + $0x40] sm:$0xff]
        %v3573 = vld [vmem:[%s9 + $0x48] sm:$0xff]
        %v3574 = vld [vmem:[%s9 + $0x50] sm:$0xff]
        %v3575 = vld [vmem:[%s9 + $0x58] sm:$0xff]
        %v3576 = vld [vmem:[%s9 + $0x60] sm:$0xff]
        %v3577 = vld [vmem:[%s9 + $0x68] sm:$0xff]
        %v3578 = vld [vmem:[%s9 + $0x70] sm:$0xff]
        %v3579 = vld [vmem:[%s9 + $0x78] sm:$0xff]
        %v3588 = vsel %vm1047, %v3527, %v3521
        %v3589 = vsel %vm1048, %v3533, %v3588
        %v3590 = vsel %vm1050, %v3539, %v3589
        %v3591 = vsel %vm1052, %v3545, %v3590
        %v3592 = vsel %vm1054, %v3551, %v3591
        %v3593 = vsel %vm1056, %v3557, %v3592
        %v3594 = vsel %vm1058, %v3563, %v3593
        %3596 = vmatprep.subr.mxu0 0.0
        %3597 = vmatpush1.msra.mxu0 %v3564
        %3598 = vmatprep.subr.mxu0 0.0
        %3599 = vmatpush1.msra.mxu0 %v3565
        %3600 = vmatprep.subr.mxu0 0.0
        %3601 = vmatpush1.msra.mxu0 %v3566
        %3602 = vmatprep.subr.mxu0 0.0
        %3603 = vmatpush1.msra.mxu0 %v3567
        %3604 = vmatprep.subr.mxu0 0.0
        %3605 = vmatpush1.msra.mxu0 %v3568
        %3606 = vmatprep.subr.mxu0 0.0
        %3607 = vmatpush1.msra.mxu0 %v3569
        %3608 = vmatprep.subr.mxu0 0.0
        %3609 = vmatpush1.msra.mxu0 %v3570
        %3610 = vmatprep.subr.mxu0 0.0
        %3611 = vmatpush1.msra.mxu0 %v3571
        %3612 = vmatprep.subr.mxu0 0.0
        %3613 = vmatpush1.msra.mxu0 %v3572
        %3614 = vmatprep.subr.mxu0 0.0
        %3615 = vmatpush1.msra.mxu0 %v3573
        %3616 = vmatprep.subr.mxu0 0.0
        %3617 = vmatpush1.msra.mxu0 %v3574
        %3618 = vmatprep.subr.mxu0 0.0
        %3619 = vmatpush1.msra.mxu0 %v3575
        %3620 = vmatprep.subr.mxu0 0.0
        %3621 = vmatpush1.msra.mxu0 %v3576
        %3622 = vmatprep.subr.mxu0 0.0
        %3623 = vmatpush1.msra.mxu0 %v3577
        %3624 = vmatprep.subr.mxu0 0.0
        %3625 = vmatpush1.msra.mxu0 %v3578
        %3626 = vmatprep.subr.mxu0 0.0
        %3627 = vmatpush1.msra.mxu0 %v3579
        %3628 = vmatprep.subr.mxu0 0.0
        %3629 = vmatpush1.msra.mxu0 0.0
        %3630 = vmatprep.subr.mxu0 0.0
        %3631 = vmatpush1.msra.mxu0 0.0
        %3632 = vmatprep.subr.mxu0 0.0
        %3633 = vmatpush1.msra.mxu0 0.0
        %3634 = vmatprep.subr.mxu0 0.0
        %3635 = vmatpush1.msra.mxu0 0.0
        %3636 = vmatprep.subr.mxu0 0.0
        %3637 = vmatpush1.msra.mxu0 0.0
        %3638 = vmatprep.subr.mxu0 0.0
        %3639 = vmatpush1.msra.mxu0 0.0
        %3640 = vmatprep.subr.mxu0 0.0
        %3641 = vmatpush1.msra.mxu0 0.0
        %3642 = vmatprep.subr.mxu0 0.0
        %3643 = vmatpush1.msra.mxu0 0.0
        %3644 = vmatprep.subr.mxu0 0.0
        %3645 = vmatpush1.msra.mxu0 0.0
        %3646 = vmatprep.subr.mxu0 0.0
        %3647 = vmatpush1.msra.mxu0 0.0
        %3648 = vmatprep.subr.mxu0 0.0
        %3649 = vmatpush1.msra.mxu0 0.0
        %3650 = vmatprep.subr.mxu0 0.0
        %3651 = vmatpush1.msra.mxu0 0.0
        %3652 = vmatprep.subr.mxu0 0.0
        %3653 = vmatpush1.msra.mxu0 0.0
        %3654 = vmatprep.subr.mxu0 0.0
        %3655 = vmatpush1.msra.mxu0 0.0
        %3656 = vmatprep.subr.mxu0 0.0
        %3657 = vmatpush1.msra.mxu0 0.0
        %3658 = vmatprep.subr.mxu0 0.0
        %3659 = vmatpush1.msra.mxu0 0.0
        %3660 = vmatprep.mubr.f32.mxu0 0.0
        %3661 = vmatmul.mubr.f32.gmra.mrb[0].mxu0 %v3594
        %v3662 = vpop.f32.mrb[0].mxu0
        %v3663 = vadd.f32 0.0, %v3662
        %v3664 = vpop.f32.mrb[0].mxu0
        %3665 = vdwg.mxu0
        %v3666 = vadd.f32 %v653, %v3663
        %v3667 = vld [vmem:[%s10] sm:$0x1]
        %v3669 = vlaneseq
        %v3670 = vshrl.u32 %v3669, 7
        %v3671 = vsub.s32 0, %v3670
        %v3672 = vrot.slane %v3667, %v3671
        %v3674 = vadd.f32 %v3666, %v3672
        %v3675 = vld [vmem:[%s11] sm:$0xff]
        %v3676 = vld [vmem:[%s11 + $0x8] sm:$0xff]
        %v3677 = vld [vmem:[%s11 + $0x10] sm:$0xff]
        %v3678 = vld [vmem:[%s11 + $0x18] sm:$0xff]
        %v3679 = vld [vmem:[%s11 + $0x20] sm:$0xff]
        %v3680 = vld [vmem:[%s11 + $0x28] sm:$0xff]
        %v3681 = vld [vmem:[%s11 + $0x30] sm:$0xff]
        %v3682 = vld [vmem:[%s11 + $0x38] sm:$0xff]
        %v3683 = vld [vmem:[%s11 + $0x40] sm:$0xff]
        %v3684 = vld [vmem:[%s11 + $0x48] sm:$0xff]
        %v3685 = vld [vmem:[%s11 + $0x50] sm:$0xff]
        %v3686 = vld [vmem:[%s11 + $0x58] sm:$0xff]
        %v3687 = vld [vmem:[%s11 + $0x60] sm:$0xff]
        %v3688 = vld [vmem:[%s11 + $0x68] sm:$0xff]
        %v3689 = vld [vmem:[%s11 + $0x70] sm:$0xff]
        %v3690 = vld [vmem:[%s11 + $0x78] sm:$0xff]
        %3691 = vmatprep.subr.mxu0 0.0
        %3692 = vmatpush1.msra.mxu0 %v3675
        %3693 = vmatprep.subr.mxu0 0.0
        %3694 = vmatpush1.msra.mxu0 %v3676
        %3695 = vmatprep.subr.mxu0 0.0
        %3696 = vmatpush1.msra.mxu0 %v3677
        %3697 = vmatprep.subr.mxu0 0.0
        %3698 = vmatpush1.msra.mxu0 %v3678
        %3699 = vmatprep.subr.mxu0 0.0
        %3700 = vmatpush1.msra.mxu0 %v3679
        %3701 = vmatprep.subr.mxu0 0.0
        %3702 = vmatpush1.msra.mxu0 %v3680
        %3703 = vmatprep.subr.mxu0 0.0
        %3704 = vmatpush1.msra.mxu0 %v3681
        %3705 = vmatprep.subr.mxu0 0.0
        %3706 = vmatpush1.msra.mxu0 %v3682
        %3707 = vmatprep.subr.mxu0 0.0
        %3708 = vmatpush1.msra.mxu0 %v3683
        %3709 = vmatprep.subr.mxu0 0.0
        %3710 = vmatpush1.msra.mxu0 %v3684
        %3711 = vmatprep.subr.mxu0 0.0
        %3712 = vmatpush1.msra.mxu0 %v3685
        %3713 = vmatprep.subr.mxu0 0.0
        %3714 = vmatpush1.msra.mxu0 %v3686
        %3715 = vmatprep.subr.mxu0 0.0
        %3716 = vmatpush1.msra.mxu0 %v3687
        %3717 = vmatprep.subr.mxu0 0.0
        %3718 = vmatpush1.msra.mxu0 %v3688
        %3719 = vmatprep.subr.mxu0 0.0
        %3720 = vmatpush1.msra.mxu0 %v3689
        %3721 = vmatprep.subr.mxu0 0.0
        %3722 = vmatpush1.msra.mxu0 %v3690
        %3723 = vmatprep.subr.mxu0 0.0
        %3724 = vmatpush1.msra.mxu0 0.0
        %3725 = vmatprep.subr.mxu0 0.0
        %3726 = vmatpush1.msra.mxu0 0.0
        %3727 = vmatprep.subr.mxu0 0.0
        %3728 = vmatpush1.msra.mxu0 0.0
        %3729 = vmatprep.subr.mxu0 0.0
        %3730 = vmatpush1.msra.mxu0 0.0
        %3731 = vmatprep.subr.mxu0 0.0
        %3732 = vmatpush1.msra.mxu0 0.0
        %3733 = vmatprep.subr.mxu0 0.0
        %3734 = vmatpush1.msra.mxu0 0.0
        %3735 = vmatprep.subr.mxu0 0.0
        %3736 = vmatpush1.msra.mxu0 0.0
        %3737 = vmatprep.subr.mxu0 0.0
        %3738 = vmatpush1.msra.mxu0 0.0
        %3739 = vmatprep.subr.mxu0 0.0
        %3740 = vmatpush1.msra.mxu0 0.0
        %3741 = vmatprep.subr.mxu0 0.0
        %3742 = vmatpush1.msra.mxu0 0.0
        %3743 = vmatprep.subr.mxu0 0.0
        %3744 = vmatpush1.msra.mxu0 0.0
        %3745 = vmatprep.subr.mxu0 0.0
        %3746 = vmatpush1.msra.mxu0 0.0
        %3747 = vmatprep.subr.mxu0 0.0
        %3748 = vmatpush1.msra.mxu0 0.0
        %3749 = vmatprep.subr.mxu0 0.0
        %3750 = vmatpush1.msra.mxu0 0.0
        %3751 = vmatprep.subr.mxu0 0.0
        %3752 = vmatpush1.msra.mxu0 0.0
        %3753 = vmatprep.subr.mxu0 0.0
        %3754 = vmatpush1.msra.mxu0 0.0
        %3755 = vmatprep.mubr.f32.mxu0 0.0
        %3756 = vmatmul.mubr.f32.gmra.mrb[0].mxu0 %v3334
        %v3757 = vpop.f32.mrb[0].mxu0
        %v3758 = vadd.f32 0.0, %v3757
        %v3759 = vpop.f32.mrb[0].mxu0
        %3760 = vmatprep.mubr.f32.mxu0 0.0
        %3761 = vmatmul.mubr.f32.gmra.mrb[0].mxu0 %v3339
        %v3762 = vpop.f32.mrb[0].mxu0
        %v3763 = vadd.f32 0.0, %v3762
        %v3764 = vpop.f32.mrb[0].mxu0
        %3765 = vmatprep.mubr.f32.mxu0 0.0
        %3766 = vmatmul.mubr.f32.gmra.mrb[0].mxu0 %v3344
        %v3767 = vpop.f32.mrb[0].mxu0
        %v3768 = vadd.f32 0.0, %v3767
        %v3769 = vpop.f32.mrb[0].mxu0
        %3770 = vmatprep.mubr.f32.mxu0 0.0
        %3771 = vmatmul.mubr.f32.gmra.mrb[0].mxu0 %v3349
        %v3772 = vpop.f32.mrb[0].mxu0
        %v3773 = vadd.f32 0.0, %v3772
        %v3774 = vpop.f32.mrb[0].mxu0
        %3775 = vmatprep.mubr.f32.mxu0 0.0
        %3776 = vmatmul.mubr.f32.gmra.mrb[0].mxu0 %v3354
        %v3777 = vpop.f32.mrb[0].mxu0
        %v3778 = vadd.f32 0.0, %v3777
        %v3779 = vpop.f32.mrb[0].mxu0
        %3780 = vmatprep.mubr.f32.mxu0 0.0
        %3781 = vmatmul.mubr.f32.gmra.mrb[0].mxu0 %v3359
        %v3782 = vpop.f32.mrb[0].mxu0
        %v3783 = vadd.f32 0.0, %v3782
        %v3784 = vpop.f32.mrb[0].mxu0
        %3785 = vmatprep.mubr.f32.mxu0 0.0
        %3786 = vmatmul.mubr.f32.gmra.mrb[0].mxu0 %v3364
        %v3787 = vpop.f32.mrb[0].mxu0
        %v3788 = vadd.f32 0.0, %v3787
        %v3789 = vpop.f32.mrb[0].mxu0
        %3790 = vmatprep.mubr.f32.mxu0 0.0
        %3791 = vmatmul.mubr.f32.gmra.mrb[0].mxu0 %v3369
        %v3792 = vpop.f32.mrb[0].mxu0
        %v3793 = vadd.f32 0.0, %v3792
        %v3794 = vpop.f32.mrb[0].mxu0
        %3795 = vdwg.mxu0
        %v3796 = vmul.f32 %v3758, 0.5
        %v3797 = vmul.f32 %v3763, 0.5
        %v3798 = vmul.f32 %v3768, 0.5
        %v3799 = vmul.f32 %v3773, 0.5
        %v3800 = vmul.f32 %v3778, 0.5
        %v3801 = vmul.f32 %v3783, 0.5
        %v3802 = vmul.f32 %v3788, 0.5
        %v3803 = vmul.f32 %v3793, 0.5
        %v3804 = vmul.f32 %v3758, 0.044715
        %v3805 = vmul.f32 %v3763, 0.044715
        %v3806 = vmul.f32 %v3768, 0.044715
        %v3807 = vmul.f32 %v3773, 0.044715
        %v3808 = vmul.f32 %v3778, 0.044715
        %v3809 = vmul.f32 %v3783, 0.044715
        %v3810 = vmul.f32 %v3788, 0.044715
        %v3811 = vmul.f32 %v3793, 0.044715
        %v3812 = vmul.f32 %v3804, %v3758
        %v3813 = vmul.f32 %v3805, %v3763
        %v3814 = vmul.f32 %v3806, %v3768
        %v3815 = vmul.f32 %v3807, %v3773
        %v3816 = vmul.f32 %v3808, %v3778
        %v3817 = vmul.f32 %v3809, %v3783
        %v3818 = vmul.f32 %v3810, %v3788
        %v3819 = vmul.f32 %v3811, %v3793
        %v3820 = vmul.f32 %v3812, %v3758
        %v3821 = vmul.f32 %v3813, %v3763
        %v3822 = vmul.f32 %v3814, %v3768
        %v3823 = vmul.f32 %v3815, %v3773
        %v3824 = vmul.f32 %v3816, %v3778
        %v3825 = vmul.f32 %v3817, %v3783
        %v3826 = vmul.f32 %v3818, %v3788
        %v3827 = vmul.f32 %v3819, %v3793
        %v3828 = vadd.f32 %v3758, %v3820
        %v3829 = vadd.f32 %v3763, %v3821
        %v3830 = vadd.f32 %v3768, %v3822
        %v3831 = vadd.f32 %v3773, %v3823
        %v3832 = vadd.f32 %v3778, %v3824
        %v3833 = vadd.f32 %v3783, %v3825
        %v3834 = vadd.f32 %v3788, %v3826
        %v3835 = vadd.f32 %v3793, %v3827
        %v3836 = vmul.f32 %v3828, 0.7978846
        %v3837 = vmul.f32 %v3829, 0.7978846
        %v3838 = vmul.f32 %v3830, 0.7978846
        %v3839 = vmul.f32 %v3831, 0.7978846
        %v3840 = vmul.f32 %v3832, 0.7978846
        %v3841 = vmul.f32 %v3833, 0.7978846
        %v3842 = vmul.f32 %v3834, 0.7978846
        %v3843 = vmul.f32 %v3835, 0.7978846
        %v3844 = vtanh.pop %v3836
        %v3845 = vtanh.pop %v3837
        %v3846 = vtanh.pop %v3838
        %v3847 = vtanh.pop %v3839
        %v3848 = vtanh.pop %v3840
        %v3849 = vtanh.pop %v3841
        %v3850 = vtanh.pop %v3842
        %v3851 = vtanh.pop %v3843
        %v3852 = vadd.f32 %v3844, 1.0
        %v3853 = vadd.f32 %v3845, 1.0
        %v3854 = vadd.f32 %v3846, 1.0
        %v3855 = vadd.f32 %v3847, 1.0
        %v3856 = vadd.f32 %v3848, 1.0
        %v3857 = vadd.f32 %v3849, 1.0
        %v3858 = vadd.f32 %v3850, 1.0
        %v3859 = vadd.f32 %v3851, 1.0
        %v3860 = vmul.f32 %v3796, %v3852
        %v3861 = vmul.f32 %v3797, %v3853
        %v3862 = vmul.f32 %v3798, %v3854
        %v3863 = vmul.f32 %v3799, %v3855
        %v3864 = vmul.f32 %v3800, %v3856
        %v3865 = vmul.f32 %v3801, %v3857
        %v3866 = vmul.f32 %v3802, %v3858
        %v3867 = vmul.f32 %v3803, %v3859
        %v3868 = vld [vmem:[%s12] sm:$0x1]
        %v3870 = vlaneseq
        %v3871 = vshrl.u32 %v3870, 7
        %v3872 = vsub.s32 0, %v3871
        %v3873 = vrot.slane %v3868, %v3872
        %v3875 = vmul.f32 %v3860, %v3873
        %v3876 = vmul.f32 %v3861, %v3873
        %v3877 = vmul.f32 %v3862, %v3873
        %v3878 = vmul.f32 %v3863, %v3873
        %v3879 = vmul.f32 %v3864, %v3873
        %v3880 = vmul.f32 %v3865, %v3873
        %v3881 = vmul.f32 %v3866, %v3873
        %v3882 = vmul.f32 %v3867, %v3873
        %v3883 = vsel %vm1964, %v3875, 0.0
        %3884 = vadd.xlane.f32.xlu0 %v3883
        %v3885 = vpop.xlane.xlu0 %3884
        %v3886 = vsel %vm1964, %v3876, 0.0
        %3887 = vadd.xlane.f32.xlu0 %v3886
        %v3888 = vpop.xlane.xlu0 %3887
        %v3889 = vsel %vm1964, %v3877, 0.0
        %3890 = vadd.xlane.f32.xlu0 %v3889
        %v3891 = vpop.xlane.xlu0 %3890
        %v3892 = vsel %vm1964, %v3878, 0.0
        %3893 = vadd.xlane.f32.xlu0 %v3892
        %v3894 = vpop.xlane.xlu0 %3893
        %v3895 = vsel %vm1964, %v3879, 0.0
        %3896 = vadd.xlane.f32.xlu0 %v3895
        %v3897 = vpop.xlane.xlu0 %3896
        %v3898 = vsel %vm1964, %v3880, 0.0
        %3899 = vadd.xlane.f32.xlu0 %v3898
        %v3900 = vpop.xlane.xlu0 %3899
        %v3901 = vsel %vm1964, %v3881, 0.0
        %3902 = vadd.xlane.f32.xlu0 %v3901
        %v3903 = vpop.xlane.xlu0 %3902
        %v3904 = vsel %vm1964, %v3882, 0.0
        %3905 = vadd.xlane.f32.xlu0 %v3904
        %v3906 = vpop.xlane.xlu0 %3905
        %v3908 = vlaneseq
        %v3909 = vshrl.u32 %v3908, 7
        %v3910 = vsub.s32 0, %v3909
        %v3911 = vrot.slane %v1065, %v3910
        %3913 = vbcast.lane.b32.xlu0 %v3911, 256
        %v3914 = vpop.permute.xlu0 %3913
        %v3915 = vlaneseq
        %v3916 = vshrl.u32 %v3915, 7
        %v3917 = vsub.s32 1, %v3916
        %v3918 = vrot.slane %v1065, %v3917
        %3920 = vbcast.lane.b32.xlu0 %v3918, 256
        %v3921 = vpop.permute.xlu0 %3920
        %v3922 = vlaneseq
        %v3923 = vshrl.u32 %v3922, 7
        %v3924 = vsub.s32 2, %v3923
        %v3925 = vrot.slane %v1065, %v3924
        %3927 = vbcast.lane.b32.xlu0 %v3925, 256
        %v3928 = vpop.permute.xlu0 %3927
        %v3929 = vlaneseq
        %v3930 = vshrl.u32 %v3929, 7
        %v3931 = vsub.s32 3, %v3930
        %v3932 = vrot.slane %v1065, %v3931
        %3934 = vbcast.lane.b32.xlu0 %v3932, 256
        %v3935 = vpop.permute.xlu0 %3934
        %v3936 = vlaneseq
        %v3937 = vshrl.u32 %v3936, 7
        %v3938 = vsub.s32 4, %v3937
        %v3939 = vrot.slane %v1065, %v3938
        %3941 = vbcast.lane.b32.xlu0 %v3939, 256
        %v3942 = vpop.permute.xlu0 %3941
        %v3943 = vlaneseq
        %v3944 = vshrl.u32 %v3943, 7
        %v3945 = vsub.s32 5, %v3944
        %v3946 = vrot.slane %v1065, %v3945
        %3948 = vbcast.lane.b32.xlu0 %v3946, 256
        %v3949 = vpop.permute.xlu0 %3948
        %v3950 = vlaneseq
        %v3951 = vshrl.u32 %v3950, 7
        %v3952 = vsub.s32 6, %v3951
        %v3953 = vrot.slane %v1065, %v3952
        %3955 = vbcast.lane.b32.xlu0 %v3953, 256
        %v3956 = vpop.permute.xlu0 %3955
        %v3957 = vlaneseq
        %v3958 = vshrl.u32 %v3957, 7
        %v3959 = vsub.s32 7, %v3958
        %v3960 = vrot.slane %v1065, %v3959
        %3962 = vbcast.lane.b32.xlu0 %v3960, 256
        %v3963 = vpop.permute.xlu0 %3962
        %v3972 = vmul.f32 %v3885, %v3914
        %v3973 = vmul.f32 %v3888, %v3921
        %v3974 = vmul.f32 %v3891, %v3928
        %v3975 = vmul.f32 %v3894, %v3935
        %v3976 = vmul.f32 %v3897, %v3942
        %v3977 = vmul.f32 %v3900, %v3949
        %v3978 = vmul.f32 %v3903, %v3956
        %v3979 = vmul.f32 %v3906, %v3963
        %3988 = vset.pattern.permute.xlu0 0
        %3989 = vperm.xlu0 %3988, %v3972
        %v3990 = vpop.permute.xlu0 %3989
        %3991 = vset.pattern.permute.xlu0 0
        %3992 = vperm.xlu0 %3991, %v3973
        %v3993 = vpop.permute.xlu0 %3992
        %3994 = vset.pattern.permute.xlu0 0
        %3995 = vperm.xlu0 %3994, %v3974
        %v3996 = vpop.permute.xlu0 %3995
        %3997 = vset.pattern.permute.xlu0 0
        %3998 = vperm.xlu0 %3997, %v3975
        %v3999 = vpop.permute.xlu0 %3998
        %4000 = vset.pattern.permute.xlu0 0
        %4001 = vperm.xlu0 %4000, %v3976
        %v4002 = vpop.permute.xlu0 %4001
        %4003 = vset.pattern.permute.xlu0 0
        %4004 = vperm.xlu0 %4003, %v3977
        %v4005 = vpop.permute.xlu0 %4004
        %4006 = vset.pattern.permute.xlu0 0
        %4007 = vperm.xlu0 %4006, %v3978
        %v4008 = vpop.permute.xlu0 %4007
        %4009 = vset.pattern.permute.xlu0 0
        %4010 = vperm.xlu0 %4009, %v3979
        %v4011 = vpop.permute.xlu0 %4010
        %v4012 = vlaneseq
        %v4013 = vshrl.u32 %v4012, 7
        %v4014 = vsub.s32 %v693, %v4013
        %v4015 = vrot.slane %v3990, %v4014
        %v4016 = vlaneseq
        %v4017 = vshrl.u32 %v4016, 7
        %v4018 = vsub.s32 %v693, %v4017
        %v4019 = vrot.slane %v3993, %v4018
        %v4020 = vlaneseq
        %v4021 = vshrl.u32 %v4020, 7
        %v4022 = vsub.s32 %v693, %v4021
        %v4023 = vrot.slane %v3996, %v4022
        %v4024 = vlaneseq
        %v4025 = vshrl.u32 %v4024, 7
        %v4026 = vsub.s32 %v693, %v4025
        %v4027 = vrot.slane %v3999, %v4026
        %v4028 = vlaneseq
        %v4029 = vshrl.u32 %v4028, 7
        %v4030 = vsub.s32 %v693, %v4029
        %v4031 = vrot.slane %v4002, %v4030
        %v4032 = vlaneseq
        %v4033 = vshrl.u32 %v4032, 7
        %v4034 = vsub.s32 %v693, %v4033
        %v4035 = vrot.slane %v4005, %v4034
        %v4036 = vlaneseq
        %v4037 = vshrl.u32 %v4036, 7
        %v4038 = vsub.s32 %v693, %v4037
        %v4039 = vrot.slane %v4008, %v4038
        %v4040 = vlaneseq
        %v4041 = vshrl.u32 %v4040, 7
        %v4042 = vsub.s32 %v693, %v4041
        %v4043 = vrot.slane %v4011, %v4042
        %v4044 = vsel %vm1047, %v4019, %v4015
        %v4045 = vsel %vm1048, %v4023, %v4044
        %v4046 = vsel %vm1050, %v4027, %v4045
        %v4047 = vsel %vm1052, %v4031, %v4046
        %v4048 = vsel %vm1054, %v4035, %v4047
        %v4049 = vsel %vm1056, %v4039, %v4048
        %v4050 = vsel %vm1058, %v4043, %v4049
        %v4052 = vsel %vm694, 0.0, %v4050
        %vm4053 = vcmask 64512
        %v4054 = vsel %vm4053, %v4052, 0.0
        %4055 = vadd.xlane.f32.xlu0 %v4054
        %v4056 = vpop.xlane.xlu0 %4055
        %v4057 = vmul.f32 %v654, %v4056
        %v4058 = vadd.f32 %v654, %v4057
        %v4060 = vsel %vm4053, %v4052, 0
        %4062 = vmatprep.subr.mxu0 0.0
        %4063 = vmatpush1.msra.mxu0 %v654
        %4064 = vmatprep.subr.mxu0 0.0
        %4065 = vmatpush1.msra.mxu0 0.0
        %4066 = vmatprep.subr.mxu0 0.0
        %4067 = vmatpush1.msra.mxu0 0.0
        %4068 = vmatprep.subr.mxu0 0.0
        %4069 = vmatpush1.msra.mxu0 0.0
        %4070 = vmatprep.subr.mxu0 0.0
        %4071 = vmatpush1.msra.mxu0 0.0
        %4072 = vmatprep.subr.mxu0 0.0
        %4073 = vmatpush1.msra.mxu0 0.0
        %4074 = vmatprep.subr.mxu0 0.0
        %4075 = vmatpush1.msra.mxu0 0.0
        %4076 = vmatprep.subr.mxu0 0.0
        %4077 = vmatpush1.msra.mxu0 0.0
        %4078 = vmatprep.subr.mxu0 0.0
        %4079 = vmatpush1.msra.mxu0 0.0
        %4080 = vmatprep.subr.mxu0 0.0
        %4081 = vmatpush1.msra.mxu0 0.0
        %4082 = vmatprep.subr.mxu0 0.0
        %4083 = vmatpush1.msra.mxu0 0.0
        %4084 = vmatprep.subr.mxu0 0.0
        %4085 = vmatpush1.msra.mxu0 0.0
        %4086 = vmatprep.subr.mxu0 0.0
        %4087 = vmatpush1.msra.mxu0 0.0
        %4088 = vmatprep.subr.mxu0 0.0
        %4089 = vmatpush1.msra.mxu0 0.0
        %4090 = vmatprep.subr.mxu0 0.0
        %4091 = vmatpush1.msra.mxu0 0.0
        %4092 = vmatprep.subr.mxu0 0.0
        %4093 = vmatpush1.msra.mxu0 0.0
        %4094 = vmatprep.subr.mxu0 0.0
        %4095 = vmatpush1.msra.mxu0 0.0
        %4096 = vmatprep.subr.mxu0 0.0
        %4097 = vmatpush1.msra.mxu0 0.0
        %4098 = vmatprep.subr.mxu0 0.0
        %4099 = vmatpush1.msra.mxu0 0.0
        %4100 = vmatprep.subr.mxu0 0.0
        %4101 = vmatpush1.msra.mxu0 0.0
        %4102 = vmatprep.subr.mxu0 0.0
        %4103 = vmatpush1.msra.mxu0 0.0
        %4104 = vmatprep.subr.mxu0 0.0
        %4105 = vmatpush1.msra.mxu0 0.0
        %4106 = vmatprep.subr.mxu0 0.0
        %4107 = vmatpush1.msra.mxu0 0.0
        %4108 = vmatprep.subr.mxu0 0.0
        %4109 = vmatpush1.msra.mxu0 0.0
        %4110 = vmatprep.subr.mxu0 0.0
        %4111 = vmatpush1.msra.mxu0 0.0
        %4112 = vmatprep.subr.mxu0 0.0
        %4113 = vmatpush1.msra.mxu0 0.0
        %4114 = vmatprep.subr.mxu0 0.0
        %4115 = vmatpush1.msra.mxu0 0.0
        %4116 = vmatprep.subr.mxu0 0.0
        %4117 = vmatpush1.msra.mxu0 0.0
        %4118 = vmatprep.subr.mxu0 0.0
        %4119 = vmatpush1.msra.mxu0 0.0
        %4120 = vmatprep.subr.mxu0 0.0
        %4121 = vmatpush1.msra.mxu0 0.0
        %4122 = vmatprep.subr.mxu0 0.0
        %4123 = vmatpush1.msra.mxu0 0.0
        %4124 = vmatprep.subr.mxu0 0.0
        %4125 = vmatpush1.msra.mxu0 0.0
        %4126 = vmatprep.mubr.f32.mxu0 0.0
        %4127 = vmatmul.mubr.f32.gmra.mrb[0].mxu0 %v4060
        %v4128 = vpop.f32.mrb[0].mxu0
        %v4129 = vadd.f32 0.0, %v4128
        %v4130 = vpop.f32.mrb[0].mxu0
        %4131 = vdwg.mxu0
        %v4132 = vsub.f32 %v4058, %v4129
        %v4133 = vld [vmem:[%s13] sm:$0x1]
        %v4134 = vld [vmem:[%s14] sm:$0x1]
        %v4135 = vsel %vm697, %v3674, 0.0
        %4136 = vadd.xlane.f32.xlu0 %v4135
        %v4137 = vpop.xlane.xlu0 %4136
        %v4138 = vmul.f32 %v4137, %v701
        %v4139 = vsub.f32 %v3674, %v4138
        %v4140 = vmul.f32 %v4139, %v4139
        %v4141 = vsel %vm697, %v4140, 0.0
        %4142 = vadd.xlane.f32.xlu0 %v4141
        %v4143 = vpop.xlane.xlu0 %4142
        %v4144 = vmul.f32 %v4143, %v701
        %v4145 = vadd.f32 %v4144, 1e-05
        %v4146 = vrsqrt.pop %v4145
        %v4147 = vmul.f32 %v4139, %v4146
        %v4149 = vlaneseq
        %v4150 = vshrl.u32 %v4149, 7
        %v4151 = vsub.s32 0, %v4150
        %v4152 = vrot.slane %v4133, %v4151
        %v4154 = vmul.f32 %v4147, %v4152
        %v4156 = vlaneseq
        %v4157 = vshrl.u32 %v4156, 7
        %v4158 = vsub.s32 0, %v4157
        %v4159 = vrot.slane %v4134, %v4158
        %v4161 = vadd.f32 %v4154, %v4159
        %v4162 = vld [vmem:[%s15] sm:$0xff]
        %v4163 = vld [vmem:[%s15 + $0x8] sm:$0xff]
        %v4164 = vld [vmem:[%s15 + $0x10] sm:$0xff]
        %v4165 = vld [vmem:[%s15 + $0x18] sm:$0xff]
        %v4166 = vld [vmem:[%s15 + $0x20] sm:$0xff]
        %v4167 = vld [vmem:[%s15 + $0x28] sm:$0xff]
        %v4168 = vld [vmem:[%s15 + $0x30] sm:$0xff]
        %v4169 = vld [vmem:[%s15 + $0x38] sm:$0xff]
        %v4170 = vld [vmem:[%s15 + $0x40] sm:$0xff]
        %v4171 = vld [vmem:[%s15 + $0x48] sm:$0xff]
        %v4172 = vld [vmem:[%s15 + $0x50] sm:$0xff]
        %v4173 = vld [vmem:[%s15 + $0x58] sm:$0xff]
        %v4174 = vld [vmem:[%s15 + $0x60] sm:$0xff]
        %v4175 = vld [vmem:[%s15 + $0x68] sm:$0xff]
        %v4176 = vld [vmem:[%s15 + $0x70] sm:$0xff]
        %v4177 = vld [vmem:[%s15 + $0x78] sm:$0xff]
        %v4178 = vld [vmem:[%s16] sm:$0x3]
        %v4180 = vlaneseq
        %v4181 = vshrl.u32 %v4180, 7
        %v4182 = vsub.s32 0, %v4181
        %v4183 = vrot.slane %v4178, %v4182
        %v4184 = vlaneseq
        %v4185 = vshrl.u32 %v4184, 7
        %v4186 = vsub.s32 1, %v4185
        %v4187 = vrot.slane %v4178, %v4186
        %v4191 = vsel %vm697, %v4161, 0
        %4193 = vmatprep.subr.mxu0 %v4163
        %4194 = vmatpush1.msra.mxu0 %v4162
        %4195 = vmatprep.subr.mxu0 %v4165
        %4196 = vmatpush1.msra.mxu0 %v4164
        %4197 = vmatprep.subr.mxu0 %v4167
        %4198 = vmatpush1.msra.mxu0 %v4166
        %4199 = vmatprep.subr.mxu0 %v4169
        %4200 = vmatpush1.msra.mxu0 %v4168
        %4201 = vmatprep.subr.mxu0 %v4171
        %4202 = vmatpush1.msra.mxu0 %v4170
        %4203 = vmatprep.subr.mxu0 %v4173
        %4204 = vmatpush1.msra.mxu0 %v4172
        %4205 = vmatprep.subr.mxu0 %v4175
        %4206 = vmatpush1.msra.mxu0 %v4174
        %4207 = vmatprep.subr.mxu0 %v4177
        %4208 = vmatpush1.msra.mxu0 %v4176
        %4209 = vmatprep.subr.mxu0 0.0
        %4210 = vmatpush1.msra.mxu0 0.0
        %4211 = vmatprep.subr.mxu0 0.0
        %4212 = vmatpush1.msra.mxu0 0.0
        %4213 = vmatprep.subr.mxu0 0.0
        %4214 = vmatpush1.msra.mxu0 0.0
        %4215 = vmatprep.subr.mxu0 0.0
        %4216 = vmatpush1.msra.mxu0 0.0
        %4217 = vmatprep.subr.mxu0 0.0
        %4218 = vmatpush1.msra.mxu0 0.0
        %4219 = vmatprep.subr.mxu0 0.0
        %4220 = vmatpush1.msra.mxu0 0.0
        %4221 = vmatprep.subr.mxu0 0.0
        %4222 = vmatpush1.msra.mxu0 0.0
        %4223 = vmatprep.subr.mxu0 0.0
        %4224 = vmatpush1.msra.mxu0 0.0
        %4225 = vmatprep.subr.mxu0 0.0
        %4226 = vmatpush1.msra.mxu0 0.0
        %4227 = vmatprep.subr.mxu0 0.0
        %4228 = vmatpush1.msra.mxu0 0.0
        %4229 = vmatprep.subr.mxu0 0.0
        %4230 = vmatpush1.msra.mxu0 0.0
        %4231 = vmatprep.subr.mxu0 0.0
        %4232 = vmatpush1.msra.mxu0 0.0
        %4233 = vmatprep.subr.mxu0 0.0
        %4234 = vmatpush1.msra.mxu0 0.0
        %4235 = vmatprep.subr.mxu0 0.0
        %4236 = vmatpush1.msra.mxu0 0.0
        %4237 = vmatprep.subr.mxu0 0.0
        %4238 = vmatpush1.msra.mxu0 0.0
        %4239 = vmatprep.subr.mxu0 0.0
        %4240 = vmatpush1.msra.mxu0 0.0
        %4241 = vmatprep.subr.mxu0 0.0
        %4242 = vmatpush1.msra.mxu0 0.0
        %4243 = vmatprep.subr.mxu0 0.0
        %4244 = vmatpush1.msra.mxu0 0.0
        %4245 = vmatprep.subr.mxu0 0.0
        %4246 = vmatpush1.msra.mxu0 0.0
        %4247 = vmatprep.subr.mxu0 0.0
        %4248 = vmatpush1.msra.mxu0 0.0
        %4249 = vmatprep.subr.mxu0 0.0
        %4250 = vmatpush1.msra.mxu0 0.0
        %4251 = vmatprep.subr.mxu0 0.0
        %4252 = vmatpush1.msra.mxu0 0.0
        %4253 = vmatprep.subr.mxu0 0.0
        %4254 = vmatpush1.msra.mxu0 0.0
        %4255 = vmatprep.subr.mxu0 0.0
        %4256 = vmatpush1.msra.mxu0 0.0
        %4257 = vmatprep.mubr.f32.mxu0 0.0
        %4258 = vmatmul.mubr.f32.gmra.mrb[0].mxu0 %v4191
        %v4259 = vpop.f32.mrb[0].mxu0
        %v4260 = vadd.f32 %v4183, %v4259
        %v4261 = vpop.f32.mrb[0].mxu0
        %v4262 = vadd.f32 %v4187, %v4261
        %4263 = vdwg.mxu0
        %v4264 = vmul.f32 %v4260, 0.5
        %v4265 = vmul.f32 %v4262, 0.5
        %v4266 = vmul.f32 %v4260, 0.044715
        %v4267 = vmul.f32 %v4262, 0.044715
        %v4268 = vmul.f32 %v4266, %v4260
        %v4269 = vmul.f32 %v4267, %v4262
        %v4270 = vmul.f32 %v4268, %v4260
        %v4271 = vmul.f32 %v4269, %v4262
        %v4272 = vadd.f32 %v4260, %v4270
        %v4273 = vadd.f32 %v4262, %v4271
        %v4274 = vmul.f32 %v4272, 0.7978846
        %v4275 = vmul.f32 %v4273, 0.7978846
        %v4276 = vtanh.pop %v4274
        %v4277 = vtanh.pop %v4275
        %v4278 = vadd.f32 %v4276, 1.0
        %v4279 = vadd.f32 %v4277, 1.0
        %v4280 = vmul.f32 %v4264, %v4278
        %v4281 = vmul.f32 %v4265, %v4279
        %v4282 = vld [vmem:[%s17] sm:$0xff]
        %v4283 = vld [vmem:[%s17 + $0x8] sm:$0xff]
        %v4284 = vld [vmem:[%s17 + $0x10] sm:$0xff]
        %v4285 = vld [vmem:[%s17 + $0x18] sm:$0xff]
        %v4286 = vld [vmem:[%s17 + $0x20] sm:$0xff]
        %v4287 = vld [vmem:[%s17 + $0x28] sm:$0xff]
        %v4288 = vld [vmem:[%s17 + $0x30] sm:$0xff]
        %v4289 = vld [vmem:[%s17 + $0x38] sm:$0xff]
        %v4290 = vld [vmem:[%s17 + $0x40] sm:$0xff]
        %v4291 = vld [vmem:[%s17 + $0x48] sm:$0xff]
        %v4292 = vld [vmem:[%s17 + $0x50] sm:$0xff]
        %v4293 = vld [vmem:[%s17 + $0x58] sm:$0xff]
        %v4294 = vld [vmem:[%s17 + $0x60] sm:$0xff]
        %v4295 = vld [vmem:[%s17 + $0x68] sm:$0xff]
        %v4296 = vld [vmem:[%s17 + $0x70] sm:$0xff]
        %v4297 = vld [vmem:[%s17 + $0x78] sm:$0xff]
        %v4298 = vld [vmem:[%s17 + $0x80] sm:$0xff]
        %v4299 = vld [vmem:[%s17 + $0x88] sm:$0xff]
        %v4300 = vld [vmem:[%s17 + $0x90] sm:$0xff]
        %v4301 = vld [vmem:[%s17 + $0x98] sm:$0xff]
        %v4302 = vld [vmem:[%s17 + $0xa0] sm:$0xff]
        %v4303 = vld [vmem:[%s17 + $0xa8] sm:$0xff]
        %v4304 = vld [vmem:[%s17 + $0xb0] sm:$0xff]
        %v4305 = vld [vmem:[%s17 + $0xb8] sm:$0xff]
        %v4306 = vld [vmem:[%s17 + $0xc0] sm:$0xff]
        %v4307 = vld [vmem:[%s17 + $0xc8] sm:$0xff]
        %v4308 = vld [vmem:[%s17 + $0xd0] sm:$0xff]
        %v4309 = vld [vmem:[%s17 + $0xd8] sm:$0xff]
        %v4310 = vld [vmem:[%s17 + $0xe0] sm:$0xff]
        %v4311 = vld [vmem:[%s17 + $0xe8] sm:$0xff]
        %v4312 = vld [vmem:[%s17 + $0xf0] sm:$0xff]
        %v4313 = vld [vmem:[%s17 + $0xf8] sm:$0xff]
        %4314 = vmatprep.subr.mxu0 0.0
        %4315 = vmatpush1.msra.mxu0 %v4282
        %4316 = vmatprep.subr.mxu0 0.0
        %4317 = vmatpush1.msra.mxu0 %v4283
        %4318 = vmatprep.subr.mxu0 0.0
        %4319 = vmatpush1.msra.mxu0 %v4284
        %4320 = vmatprep.subr.mxu0 0.0
        %4321 = vmatpush1.msra.mxu0 %v4285
        %4322 = vmatprep.subr.mxu0 0.0
        %4323 = vmatpush1.msra.mxu0 %v4286
        %4324 = vmatprep.subr.mxu0 0.0
        %4325 = vmatpush1.msra.mxu0 %v4287
        %4326 = vmatprep.subr.mxu0 0.0
        %4327 = vmatpush1.msra.mxu0 %v4288
        %4328 = vmatprep.subr.mxu0 0.0
        %4329 = vmatpush1.msra.mxu0 %v4289
        %4330 = vmatprep.subr.mxu0 0.0
        %4331 = vmatpush1.msra.mxu0 %v4290
        %4332 = vmatprep.subr.mxu0 0.0
        %4333 = vmatpush1.msra.mxu0 %v4291
        %4334 = vmatprep.subr.mxu0 0.0
        %4335 = vmatpush1.msra.mxu0 %v4292
        %4336 = vmatprep.subr.mxu0 0.0
        %4337 = vmatpush1.msra.mxu0 %v4293
        %4338 = vmatprep.subr.mxu0 0.0
        %4339 = vmatpush1.msra.mxu0 %v4294
        %4340 = vmatprep.subr.mxu0 0.0
        %4341 = vmatpush1.msra.mxu0 %v4295
        %4342 = vmatprep.subr.mxu0 0.0
        %4343 = vmatpush1.msra.mxu0 %v4296
        %4344 = vmatprep.subr.mxu0 0.0
        %4345 = vmatpush1.msra.mxu0 %v4297
        %4346 = vmatprep.subr.mxu0 0.0
        %4347 = vmatpush1.msra.mxu0 %v4298
        %4348 = vmatprep.subr.mxu0 0.0
        %4349 = vmatpush1.msra.mxu0 %v4299
        %4350 = vmatprep.subr.mxu0 0.0
        %4351 = vmatpush1.msra.mxu0 %v4300
        %4352 = vmatprep.subr.mxu0 0.0
        %4353 = vmatpush1.msra.mxu0 %v4301
        %4354 = vmatprep.subr.mxu0 0.0
        %4355 = vmatpush1.msra.mxu0 %v4302
        %4356 = vmatprep.subr.mxu0 0.0
        %4357 = vmatpush1.msra.mxu0 %v4303
        %4358 = vmatprep.subr.mxu0 0.0
        %4359 = vmatpush1.msra.mxu0 %v4304
        %4360 = vmatprep.subr.mxu0 0.0
        %4361 = vmatpush1.msra.mxu0 %v4305
        %4362 = vmatprep.subr.mxu0 0.0
        %4363 = vmatpush1.msra.mxu0 %v4306
        %4364 = vmatprep.subr.mxu0 0.0
        %4365 = vmatpush1.msra.mxu0 %v4307
        %4366 = vmatprep.subr.mxu0 0.0
        %4367 = vmatpush1.msra.mxu0 %v4308
        %4368 = vmatprep.subr.mxu0 0.0
        %4369 = vmatpush1.msra.mxu0 %v4309
        %4370 = vmatprep.subr.mxu0 0.0
        %4371 = vmatpush1.msra.mxu0 %v4310
        %4372 = vmatprep.subr.mxu0 0.0
        %4373 = vmatpush1.msra.mxu0 %v4311
        %4374 = vmatprep.subr.mxu0 0.0
        %4375 = vmatpush1.msra.mxu0 %v4312
        %4376 = vmatprep.subr.mxu0 0.0
        %4377 = vmatpush1.msra.mxu0 %v4313
        %4378 = vmatprep.mubr.f32.mxu0 %v4281
        %4379 = vmatmul.mubr.f32.gmra.mrb[0].mxu0 %v4280
        %v4380 = vpop.f32.mrb[0].mxu0
        %v4381 = vadd.f32 0.0, %v4380
        %v4382 = vpop.f32.mrb[0].mxu0
        %4383 = vdwg.mxu0
        %v4384 = vadd.f32 %v3674, %v4381
        %v4385 = vld [vmem:[%s18] sm:$0x1]
        %v4387 = vlaneseq
        %v4388 = vshrl.u32 %v4387, 7
        %v4389 = vsub.s32 0, %v4388
        %v4390 = vrot.slane %v4385, %v4389
        %v4392 = vadd.f32 %v4384, %v4390
        %s4393 = scalar_lea.vmem %s6, 1
        %v4394 = vld [vmem:[%s4393] sm:$0x1]
        %s4395 = scalar_lea.vmem %s7, 1
        %v4396 = vld [vmem:[%s4395] sm:$0x1]
        %v4397 = vsel %vm697, %v4392, 0.0
        %4398 = vadd.xlane.f32.xlu0 %v4397
        %v4399 = vpop.xlane.xlu0 %4398
        %v4400 = vmul.f32 %v4399, %v701
        %v4401 = vsub.f32 %v4392, %v4400
        %v4402 = vmul.f32 %v4401, %v4401
        %v4403 = vsel %vm697, %v4402, 0.0
        %4404 = vadd.xlane.f32.xlu0 %v4403
        %v4405 = vpop.xlane.xlu0 %4404
        %v4406 = vmul.f32 %v4405, %v701
        %v4407 = vadd.f32 %v4406, 1e-05
        %v4408 = vrsqrt.pop %v4407
        %v4409 = vmul.f32 %v4401, %v4408
        %v4411 = vlaneseq
        %v4412 = vshrl.u32 %v4411, 7
        %v4413 = vsub.s32 0, %v4412
        %v4414 = vrot.slane %v4394, %v4413
        %v4416 = vmul.f32 %v4409, %v4414
        %v4418 = vlaneseq
        %v4419 = vshrl.u32 %v4418, 7
        %v4420 = vsub.s32 0, %v4419
        %v4421 = vrot.slane %v4396, %v4420
        %v4423 = vadd.f32 %v4416, %v4421
        %s4424 = scalar_lea.vmem %s8, 192
        %v4425 = vld [vmem:[%s4424] sm:$0xff]
        %v4426 = vld [vmem:[%s4424 + $0x8] sm:$0xff]
        %v4427 = vld [vmem:[%s4424 + $0x10] sm:$0xff]
        %v4428 = vld [vmem:[%s4424 + $0x18] sm:$0xff]
        %v4429 = vld [vmem:[%s4424 + $0x20] sm:$0xff]
        %v4430 = vld [vmem:[%s4424 + $0x28] sm:$0xff]
        %v4431 = vld [vmem:[%s4424 + $0x30] sm:$0xff]
        %v4432 = vld [vmem:[%s4424 + $0x38] sm:$0xff]
        %v4433 = vld [vmem:[%s4424 + $0x40] sm:$0xff]
        %v4434 = vld [vmem:[%s4424 + $0x48] sm:$0xff]
        %v4435 = vld [vmem:[%s4424 + $0x50] sm:$0xff]
        %v4436 = vld [vmem:[%s4424 + $0x58] sm:$0xff]
        %v4437 = vld [vmem:[%s4424 + $0x60] sm:$0xff]
        %v4438 = vld [vmem:[%s4424 + $0x68] sm:$0xff]
        %v4439 = vld [vmem:[%s4424 + $0x70] sm:$0xff]
        %v4440 = vld [vmem:[%s4424 + $0x78] sm:$0xff]
        %v4441 = vld [vmem:[%s4424 + $0x80] sm:$0xff]
        %v4442 = vld [vmem:[%s4424 + $0x88] sm:$0xff]
        %v4443 = vld [vmem:[%s4424 + $0x90] sm:$0xff]
        %v4444 = vld [vmem:[%s4424 + $0x98] sm:$0xff]
        %v4445 = vld [vmem:[%s4424 + $0xa0] sm:$0xff]
        %v4446 = vld [vmem:[%s4424 + $0xa8] sm:$0xff]
        %v4447 = vld [vmem:[%s4424 + $0xb0] sm:$0xff]
        %v4448 = vld [vmem:[%s4424 + $0xb8] sm:$0xff]
        %v4450 = vsel %vm697, %v4423, 0
        %4452 = vmatprep.subr.mxu0 %v4426
        %4453 = vmatpush1.msra.mxu0 %v4425
        %4454 = vmatprep.subr.mxu0 %v4429
        %4455 = vmatpush1.msra.mxu0 %v4428
        %4456 = vmatprep.subr.mxu0 %v4432
        %4457 = vmatpush1.msra.mxu0 %v4431
        %4458 = vmatprep.subr.mxu0 %v4435
        %4459 = vmatpush1.msra.mxu0 %v4434
        %4460 = vmatprep.subr.mxu0 %v4438
        %4461 = vmatpush1.msra.mxu0 %v4437
        %4462 = vmatprep.subr.mxu0 %v4441
        %4463 = vmatpush1.msra.mxu0 %v4440
        %4464 = vmatprep.subr.mxu0 %v4444
        %4465 = vmatpush1.msra.mxu0 %v4443
        %4466 = vmatprep.subr.mxu0 %v4447
        %4467 = vmatpush1.msra.mxu0 %v4446
        %4468 = vmatprep.subr.mxu0 0.0
        %4469 = vmatpush1.msra.mxu0 0.0
        %4470 = vmatprep.subr.mxu0 0.0
        %4471 = vmatpush1.msra.mxu0 0.0
        %4472 = vmatprep.subr.mxu0 0.0
        %4473 = vmatpush1.msra.mxu0 0.0
        %4474 = vmatprep.subr.mxu0 0.0
        %4475 = vmatpush1.msra.mxu0 0.0
        %4476 = vmatprep.subr.mxu0 0.0
        %4477 = vmatpush1.msra.mxu0 0.0
        %4478 = vmatprep.subr.mxu0 0.0
        %4479 = vmatpush1.msra.mxu0 0.0
        %4480 = vmatprep.subr.mxu0 0.0
        %4481 = vmatpush1.msra.mxu0 0.0
        %4482 = vmatprep.subr.mxu0 0.0
        %4483 = vmatpush1.msra.mxu0 0.0
        %4484 = vmatprep.subr.mxu0 0.0
        %4485 = vmatpush1.msra.mxu0 0.0
        %4486 = vmatprep.subr.mxu0 0.0
        %4487 = vmatpush1.msra.mxu0 0.0
        %4488 = vmatprep.subr.mxu0 0.0
        %4489 = vmatpush1.msra.mxu0 0.0
        %4490 = vmatprep.subr.mxu0 0.0
        %4491 = vmatpush1.msra.mxu0 0.0
        %4492 = vmatprep.subr.mxu0 0.0
        %4493 = vmatpush1.msra.mxu0 0.0
        %4494 = vmatprep.subr.mxu0 0.0
        %4495 = vmatpush1.msra.mxu0 0.0
        %4496 = vmatprep.subr.mxu0 0.0
        %4497 = vmatpush1.msra.mxu0 0.0
        %4498 = vmatprep.subr.mxu0 0.0
        %4499 = vmatpush1.msra.mxu0 0.0
        %4500 = vmatprep.subr.mxu0 0.0
        %4501 = vmatpush1.msra.mxu0 0.0
        %4502 = vmatprep.subr.mxu0 0.0
        %4503 = vmatpush1.msra.mxu0 0.0
        %4504 = vmatprep.subr.mxu0 0.0
        %4505 = vmatpush1.msra.mxu0 0.0
        %4506 = vmatprep.subr.mxu0 0.0
        %4507 = vmatpush1.msra.mxu0 0.0
        %4508 = vmatprep.subr.mxu0 0.0
        %4509 = vmatpush1.msra.mxu0 0.0
        %4510 = vmatprep.subr.mxu0 0.0
        %4511 = vmatpush1.msra.mxu0 0.0
        %4512 = vmatprep.subr.mxu0 0.0
        %4513 = vmatpush1.msra.mxu0 0.0
        %4514 = vmatprep.subr.mxu0 0.0
        %4515 = vmatpush1.msra.mxu0 0.0
        %4516 = vmatprep.mubr.f32.mxu0 0.0
        %4517 = vmatmul.mubr.f32.gmra.mrb[0].mxu0 %v4450
        %v4518 = vpop.f32.mrb[0].mxu0
        %v4519 = vadd.f32 0.0, %v4518
        %v4520 = vpop.f32.mrb[0].mxu0
        %v4521 = vadd.f32 0.0, %v4520
        %4522 = vdwg.mxu0
        %4523 = vmatprep.subr.mxu0 0.0
        %4524 = vmatpush1.msra.mxu0 %v4427
        %4525 = vmatprep.subr.mxu0 0.0
        %4526 = vmatpush1.msra.mxu0 %v4430
        %4527 = vmatprep.subr.mxu0 0.0
        %4528 = vmatpush1.msra.mxu0 %v4433
        %4529 = vmatprep.subr.mxu0 0.0
        %4530 = vmatpush1.msra.mxu0 %v4436
        %4531 = vmatprep.subr.mxu0 0.0
        %4532 = vmatpush1.msra.mxu0 %v4439
        %4533 = vmatprep.subr.mxu0 0.0
        %4534 = vmatpush1.msra.mxu0 %v4442
        %4535 = vmatprep.subr.mxu0 0.0
        %4536 = vmatpush1.msra.mxu0 %v4445
        %4537 = vmatprep.subr.mxu0 0.0
        %4538 = vmatpush1.msra.mxu0 %v4448
        %4539 = vmatprep.subr.mxu0 0.0
        %4540 = vmatpush1.msra.mxu0 0.0
        %4541 = vmatprep.subr.mxu0 0.0
        %4542 = vmatpush1.msra.mxu0 0.0
        %4543 = vmatprep.subr.mxu0 0.0
        %4544 = vmatpush1.msra.mxu0 0.0
        %4545 = vmatprep.subr.mxu0 0.0
        %4546 = vmatpush1.msra.mxu0 0.0
        %4547 = vmatprep.subr.mxu0 0.0
        %4548 = vmatpush1.msra.mxu0 0.0
        %4549 = vmatprep.subr.mxu0 0.0
        %4550 = vmatpush1.msra.mxu0 0.0
        %4551 = vmatprep.subr.mxu0 0.0
        %4552 = vmatpush1.msra.mxu0 0.0
        %4553 = vmatprep.subr.mxu0 0.0
        %4554 = vmatpush1.msra.mxu0 0.0
        %4555 = vmatprep.subr.mxu0 0.0
        %4556 = vmatpush1.msra.mxu0 0.0
        %4557 = vmatprep.subr.mxu0 0.0
        %4558 = vmatpush1.msra.mxu0 0.0
        %4559 = vmatprep.subr.mxu0 0.0
        %4560 = vmatpush1.msra.mxu0 0.0
        %4561 = vmatprep.subr.mxu0 0.0
        %4562 = vmatpush1.msra.mxu0 0.0
        %4563 = vmatprep.subr.mxu0 0.0
        %4564 = vmatpush1.msra.mxu0 0.0
        %4565 = vmatprep.subr.mxu0 0.0
        %4566 = vmatpush1.msra.mxu0 0.0
        %4567 = vmatprep.subr.mxu0 0.0
        %4568 = vmatpush1.msra.mxu0 0.0
        %4569 = vmatprep.subr.mxu0 0.0
        %4570 = vmatpush1.msra.mxu0 0.0
        %4571 = vmatprep.subr.mxu0 0.0
        %4572 = vmatpush1.msra.mxu0 0.0
        %4573 = vmatprep.subr.mxu0 0.0
        %4574 = vmatpush1.msra.mxu0 0.0
        %4575 = vmatprep.subr.mxu0 0.0
        %4576 = vmatpush1.msra.mxu0 0.0
        %4577 = vmatprep.subr.mxu0 0.0
        %4578 = vmatpush1.msra.mxu0 0.0
        %4579 = vmatprep.subr.mxu0 0.0
        %4580 = vmatpush1.msra.mxu0 0.0
        %4581 = vmatprep.subr.mxu0 0.0
        %4582 = vmatpush1.msra.mxu0 0.0
        %4583 = vmatprep.subr.mxu0 0.0
        %4584 = vmatpush1.msra.mxu0 0.0
        %4585 = vmatprep.subr.mxu0 0.0
        %4586 = vmatpush1.msra.mxu0 0.0
        %4587 = vmatprep.mubr.f32.mxu0 0.0
        %4588 = vmatmul.mubr.f32.gmra.mrb[0].mxu0 %v4450
        %v4589 = vpop.f32.mrb[0].mxu0
        %v4590 = vadd.f32 0.0, %v4589
        %v4591 = vpop.f32.mrb[0].mxu0
        %4592 = vdwg.mxu0
        %4593 = vmatprep.subr.mxu0 0.0
        %4594 = vmatpush1.msra.mxu0 %v671
        %4595 = vmatprep.subr.mxu0 0.0
        %4596 = vmatpush1.msra.mxu0 %v672
        %4597 = vmatprep.subr.mxu0 0.0
        %4598 = vmatpush1.msra.mxu0 %v673
        %4599 = vmatprep.subr.mxu0 0.0
        %4600 = vmatpush1.msra.mxu0 %v674
        %4601 = vmatprep.subr.mxu0 0.0
        %4602 = vmatpush1.msra.mxu0 %v675
        %4603 = vmatprep.subr.mxu0 0.0
        %4604 = vmatpush1.msra.mxu0 %v676
        %4605 = vmatprep.subr.mxu0 0.0
        %4606 = vmatpush1.msra.mxu0 %v677
        %4607 = vmatprep.subr.mxu0 0.0
        %4608 = vmatpush1.msra.mxu0 %v678
        %4609 = vmatprep.subr.mxu0 0.0
        %4610 = vmatpush1.msra.mxu0 %v679
        %4611 = vmatprep.subr.mxu0 0.0
        %4612 = vmatpush1.msra.mxu0 %v680
        %4613 = vmatprep.subr.mxu0 0.0
        %4614 = vmatpush1.msra.mxu0 %v681
        %4615 = vmatprep.subr.mxu0 0.0
        %4616 = vmatpush1.msra.mxu0 %v682
        %4617 = vmatprep.subr.mxu0 0.0
        %4618 = vmatpush1.msra.mxu0 %v683
        %4619 = vmatprep.subr.mxu0 0.0
        %4620 = vmatpush1.msra.mxu0 %v684
        %4621 = vmatprep.subr.mxu0 0.0
        %4622 = vmatpush1.msra.mxu0 %v685
        %4623 = vmatprep.subr.mxu0 0.0
        %4624 = vmatpush1.msra.mxu0 %v686
        %4625 = vmatprep.subr.mxu0 0.0
        %4626 = vmatpush1.msra.mxu0 0.0
        %4627 = vmatprep.subr.mxu0 0.0
        %4628 = vmatpush1.msra.mxu0 0.0
        %4629 = vmatprep.subr.mxu0 0.0
        %4630 = vmatpush1.msra.mxu0 0.0
        %4631 = vmatprep.subr.mxu0 0.0
        %4632 = vmatpush1.msra.mxu0 0.0
        %4633 = vmatprep.subr.mxu0 0.0
        %4634 = vmatpush1.msra.mxu0 0.0
        %4635 = vmatprep.subr.mxu0 0.0
        %4636 = vmatpush1.msra.mxu0 0.0
        %4637 = vmatprep.subr.mxu0 0.0
        %4638 = vmatpush1.msra.mxu0 0.0
        %4639 = vmatprep.subr.mxu0 0.0
        %4640 = vmatpush1.msra.mxu0 0.0
        %4641 = vmatprep.subr.mxu0 0.0
        %4642 = vmatpush1.msra.mxu0 0.0
        %4643 = vmatprep.subr.mxu0 0.0
        %4644 = vmatpush1.msra.mxu0 0.0
        %4645 = vmatprep.subr.mxu0 0.0
        %4646 = vmatpush1.msra.mxu0 0.0
        %4647 = vmatprep.subr.mxu0 0.0
        %4648 = vmatpush1.msra.mxu0 0.0
        %4649 = vmatprep.subr.mxu0 0.0
        %4650 = vmatpush1.msra.mxu0 0.0
        %4651 = vmatprep.subr.mxu0 0.0
        %4652 = vmatpush1.msra.mxu0 0.0
        %4653 = vmatprep.subr.mxu0 0.0
        %4654 = vmatpush1.msra.mxu0 0.0
        %4655 = vmatprep.subr.mxu0 0.0
        %4656 = vmatpush1.msra.mxu0 0.0
        %4657 = vmatprep.mubr.f32.mxu0 0.0
        %4658 = vmatmul.mubr.f32.gmra.mrb[0].mxu0 %v4519
        %v4659 = vpop.f32.mrb[0].mxu0
        %v4660 = vadd.f32 0.0, %v4659
        %v4661 = vpop.f32.mrb[0].mxu0
        %4662 = vdwg.mxu0
        %v4664 = vsel %vm964, %v4132, 0
        %4666 = vmatprep.subr.mxu0 0.0
        %4667 = vmatpush1.xpose.msra.mxu0 %v4664
        %4668 = vmatprep.subr.mxu0 0.0
        %4669 = vmatpush1.xpose.msra.mxu0 0.0
        %4670 = vmatprep.subr.mxu0 0.0
        %4671 = vmatpush1.xpose.msra.mxu0 0.0
        %4672 = vmatprep.subr.mxu0 0.0
        %4673 = vmatpush1.xpose.msra.mxu0 0.0
        %4674 = vmatprep.subr.mxu0 0.0
        %4675 = vmatpush1.xpose.msra.mxu0 0.0
        %4676 = vmatprep.subr.mxu0 0.0
        %4677 = vmatpush1.xpose.msra.mxu0 0.0
        %4678 = vmatprep.subr.mxu0 0.0
        %4679 = vmatpush1.xpose.msra.mxu0 0.0
        %4680 = vmatprep.subr.mxu0 0.0
        %4681 = vmatpush1.xpose.msra.mxu0 0.0
        %4682 = vmatprep.subr.mxu0 0.0
        %4683 = vmatpush1.xpose.msra.mxu0 0.0
        %4684 = vmatprep.subr.mxu0 0.0
        %4685 = vmatpush1.xpose.msra.mxu0 0.0
        %4686 = vmatprep.subr.mxu0 0.0
        %4687 = vmatpush1.xpose.msra.mxu0 0.0
        %4688 = vmatprep.subr.mxu0 0.0
        %4689 = vmatpush1.xpose.msra.mxu0 0.0
        %4690 = vmatprep.subr.mxu0 0.0
        %4691 = vmatpush1.xpose.msra.mxu0 0.0
        %4692 = vmatprep.subr.mxu0 0.0
        %4693 = vmatpush1.xpose.msra.mxu0 0.0
        %4694 = vmatprep.subr.mxu0 0.0
        %4695 = vmatpush1.xpose.msra.mxu0 0.0
        %4696 = vmatprep.subr.mxu0 0.0
        %4697 = vmatpush1.xpose.msra.mxu0 0.0
        %4698 = vmatprep.subr.mxu0 0.0
        %4699 = vmatpush1.xpose.msra.mxu0 0.0
        %4700 = vmatprep.subr.mxu0 0.0
        %4701 = vmatpush1.xpose.msra.mxu0 0.0
        %4702 = vmatprep.subr.mxu0 0.0
        %4703 = vmatpush1.xpose.msra.mxu0 0.0
        %4704 = vmatprep.subr.mxu0 0.0
        %4705 = vmatpush1.xpose.msra.mxu0 0.0
        %4706 = vmatprep.subr.mxu0 0.0
        %4707 = vmatpush1.xpose.msra.mxu0 0.0
        %4708 = vmatprep.subr.mxu0 0.0
        %4709 = vmatpush1.xpose.msra.mxu0 0.0
        %4710 = vmatprep.subr.mxu0 0.0
        %4711 = vmatpush1.xpose.msra.mxu0 0.0
        %4712 = vmatprep.subr.mxu0 0.0
        %4713 = vmatpush1.xpose.msra.mxu0 0.0
        %4714 = vmatprep.subr.mxu0 0.0
        %4715 = vmatpush1.xpose.msra.mxu0 0.0
        %4716 = vmatprep.subr.mxu0 0.0
        %4717 = vmatpush1.xpose.msra.mxu0 0.0
        %4718 = vmatprep.subr.mxu0 0.0
        %4719 = vmatpush1.xpose.msra.mxu0 0.0
        %4720 = vmatprep.subr.mxu0 0.0
        %4721 = vmatpush1.xpose.msra.mxu0 0.0
        %4722 = vmatprep.subr.mxu0 0.0
        %4723 = vmatpush1.xpose.msra.mxu0 0.0
        %4724 = vmatprep.subr.mxu0 0.0
        %4725 = vmatpush1.xpose.msra.mxu0 0.0
        %4726 = vmatprep.subr.mxu0 0.0
        %4727 = vmatpush1.xpose.msra.mxu0 0.0
        %4728 = vmatprep.subr.mxu0 0.0
        %4729 = vmatpush1.xpose.msra.mxu0 0.0
        %4730 = vmatprep.mubr.f32.mxu0 0.0
        %4731 = vmatmul.mubr.f32.gmra.mrb[0].mxu0 %v4664
        %v4732 = vpop.f32.mrb[0].mxu0
        %v4733 = vadd.f32 0.0, %v4732
        %v4734 = vpop.f32.mrb[0].mxu0
        %4735 = vdwg.mxu0
        %v4736 = vmul.f32 %v4132, %v4132
        %v4737 = vsel %vm964, %v4736, 0.0
        %4738 = vadd.xlane.f32.xlu0 %v4737
        %v4739 = vpop.xlane.xlu0 %4738
        %v4741 = vlaneseq
        %v4742 = vshrl.u32 %v4741, 7
        %v4743 = vsub.s32 %v693, %v4742
        %v4744 = vrot.slane %v4739, %v4743
        %v4745 = vsel %vm1048, %v4744, %v4744
        %v4746 = vsel %vm1050, %v4744, %v4745
        %v4747 = vsel %vm1052, %v4744, %v4746
        %v4748 = vsel %vm1054, %v4744, %v4747
        %v4749 = vsel %vm1056, %v4744, %v4748
        %v4750 = vsel %vm1058, %v4744, %v4749
        %v4752 = vadd.f32 %v4739, %v4750
        %v4753 = vmul.f32 %v4733, 2.0
        %v4754 = vsub.f32 %v4752, %v4753
        %v4755 = vmax.f32 %v4754, 1e-16
        %v4756 = vrsqrt.pop %v4755
        %v4757 = vmul.f32 %v4755, %v4756
        %v4758 = vmul.f32 %v4757, 100.0
        %v4759 = vmax.f32 %v4758, 0.0
        %v4760 = vmin.f32 %v4759, 5000.0
        %v4761 = vlaneseq
        %v4762 = vshrl.u32 %v4761, 7
        %v4763 = vsub.s32 0, %v4762
        %v4764 = vrot.slane %v4760, %v4763
        %4766 = vbcast.lane.b32.xlu0 %v4764, 256
        %v4767 = vpop.permute.xlu0 %4766
        %v4768 = vlaneseq
        %v4769 = vshrl.u32 %v4768, 7
        %v4770 = vsub.s32 1, %v4769
        %v4771 = vrot.slane %v4760, %v4770
        %4773 = vbcast.lane.b32.xlu0 %v4771, 256
        %v4774 = vpop.permute.xlu0 %4773
        %v4775 = vlaneseq
        %v4776 = vshrl.u32 %v4775, 7
        %v4777 = vsub.s32 2, %v4776
        %v4778 = vrot.slane %v4760, %v4777
        %4780 = vbcast.lane.b32.xlu0 %v4778, 256
        %v4781 = vpop.permute.xlu0 %4780
        %v4782 = vlaneseq
        %v4783 = vshrl.u32 %v4782, 7
        %v4784 = vsub.s32 3, %v4783
        %v4785 = vrot.slane %v4760, %v4784
        %4787 = vbcast.lane.b32.xlu0 %v4785, 256
        %v4788 = vpop.permute.xlu0 %4787
        %v4789 = vlaneseq
        %v4790 = vshrl.u32 %v4789, 7
        %v4791 = vsub.s32 4, %v4790
        %v4792 = vrot.slane %v4760, %v4791
        %4794 = vbcast.lane.b32.xlu0 %v4792, 256
        %v4795 = vpop.permute.xlu0 %4794
        %v4796 = vlaneseq
        %v4797 = vshrl.u32 %v4796, 7
        %v4798 = vsub.s32 5, %v4797
        %v4799 = vrot.slane %v4760, %v4798
        %4801 = vbcast.lane.b32.xlu0 %v4799, 256
        %v4802 = vpop.permute.xlu0 %4801
        %v4803 = vlaneseq
        %v4804 = vshrl.u32 %v4803, 7
        %v4805 = vsub.s32 6, %v4804
        %v4806 = vrot.slane %v4760, %v4805
        %4808 = vbcast.lane.b32.xlu0 %v4806, 256
        %v4809 = vpop.permute.xlu0 %4808
        %v4810 = vlaneseq
        %v4811 = vshrl.u32 %v4810, 7
        %v4812 = vsub.s32 7, %v4811
        %v4813 = vrot.slane %v4760, %v4812
        %4815 = vbcast.lane.b32.xlu0 %v4813, 256
        %v4816 = vpop.permute.xlu0 %4815
        %v4817 = vmul.f32 %v4767, %v1130
        %v4818 = vmul.f32 %v4774, %v1130
        %v4819 = vmul.f32 %v4781, %v1130
        %v4820 = vmul.f32 %v4788, %v1130
        %v4821 = vmul.f32 %v4795, %v1130
        %v4822 = vmul.f32 %v4802, %v1130
        %v4823 = vmul.f32 %v4809, %v1130
        %v4824 = vmul.f32 %v4816, %v1130
        %v4825 = vand.u32 2147483647, %v4817
        %vm4826 = vcmp.le.f32.partialorder %v4825, 0.7853982
        %vm4827 = vcmp.lt.s32.totalorder %v4817, 0
        %v4828 = vand.u32 %v4817, 2139095040
        %v4829 = vshrl.u32 %v4828, 23
        %v4830 = vsub.s32 %v4829, 127
        %v4831 = vand.u32 2147483647, %v4817
        %v4832 = vand.u32 %v4831, 8388607
        %v4833 = vor.u32 %v4832, 8388608
        %v4834 = vsub.s32 0, %v4833
        %v4835 = vadd.s32 %v4830, 1
        %vm4836 = vcmp.gt.s32.totalorder %v4835, 0
        %v4837 = vsel %vm4836, %v4835, 0
        %v4838 = vshrl.u32 %v4837, 5
        %v4839 = vand.u32 %v4837, 31
        %v4840 = vsub.s32 32, %v4839
        %v4841 = vshrl.u32 683565275, %v4840
        %v4842 = vshll.u32 683565275, %v4839
        %v4843 = vshrl.u32 2475754826, %v4840
        %v4844 = vor.u32 %v4842, %v4843
        %v4845 = vshll.u32 2475754826, %v4839
        %v4846 = vshrl.u32 2131351028, %v4840
        %v4847 = vor.u32 %v4845, %v4846
        %v4848 = vshll.u32 2131351028, %v4839
        %v4849 = vshrl.u32 2102212464, %v4840
        %v4850 = vor.u32 %v4848, %v4849
        %v4851 = vshll.u32 2102212464, %v4839
        %v4852 = vshrl.u32 920167782, %v4840
        %v4853 = vor.u32 %v4851, %v4852
        %v4854 = vshll.u32 920167782, %v4839
        %v4855 = vshrl.u32 1326507024, %v4840
        %v4856 = vor.u32 %v4854, %v4855
        %vm4857 = vcmp.lt.s32.totalorder %v4838, 1
        %vm4858 = vcmp.lt.s32.totalorder %v4838, 2
        %vm4859 = vcmp.lt.s32.totalorder %v4838, 3
        %vm4860 = vcmp.lt.s32.totalorder %v4838, 4
        %v4861 = vsel %vm4857, %v4841, %v4844
        %v4862 = vsel %vm4860, %v4850, 2102212464
        %v4863 = vsel %vm4859, %v4847, %v4862
        %v4864 = vsel %vm4858, %v4861, %v4863
        %v4865 = vsel %vm4857, %v4844, %v4847
        %v4866 = vsel %vm4860, %v4853, 920167782
        %v4867 = vsel %vm4859, %v4850, %v4866
        %v4868 = vsel %vm4858, %v4865, %v4867
        %v4869 = vsel %vm4857, %v4847, %v4850
        %v4870 = vsel %vm4860, %v4856, 1326507024
        %v4871 = vsel %vm4859, %v4853, %v4870
        %v4872 = vsel %vm4858, %v4869, %v4871
        %v4873 = vshll.u32 %v4833, 8
        %v4874 = vmul.u32.u64.compose %v4873, %v4872
        %v4875 = vextract.low.u32 %v4874
        %v4876 = vextract.high.u32 %v4874
        %v4877 = vmul.u32.u64.compose %v4873, %v4868
        %v4878 = vextract.low.u32 %v4877
        %v4879 = vextract.high.u32 %v4877
        %v4880 = vmul.u32 %v4873, %v4864
        %v4881 = vadd.s32 %v4876, %v4878
        %vm4882 = vc.u32 %v4876, %v4878
        %v4883 = vadd.s32 %v4879, 1
        %v4884 = vsel %vm4882, %v4883, %v4879
        %v4885 = vadd.s32 %v4880, %v4884
        %v4886 = vadd.s32 %v4885, 536870912
        %v4887 = vshrl.u32 %v4886, 30
        %v4888 = vshll.u32 %v4887, 30
        %v4889 = vsub.s32 %v4885, %v4888
        %vm4890 = vcmp.lt.s32.totalorder %v4889, 0
        %v4891 = vsub.s32 0, %v4889
        %v4892 = vsel %vm4890, %v4891, %v4889
        %v4893 = vclz %v4892
        %v4894 = vsub.s32 %v4893, 2
        %vm4895 = vcmp.gt.s32.totalorder 0, %v4894
        %v4896 = vsel %vm4895, 0, %v4894
        %v4897 = vsub.s32 32, %v4896
        %v4898 = vshll.u32 %v4889, %v4896
        %v4899 = vshrl.u32 %v4881, %v4897
        %v4900 = vor.u32 %v4898, %v4899
        %v4901 = vsub.s32 4294967266, %v4896
        %v4902 = vadd.s32 %v4901, 127
        %v4903 = vshll.u32 %v4902, 23
        %v4904 = vor.u32 4788187, %v4903
        %v4905 = vand.u32 2147483647, %v4904
        %v4907 = vcvt.s32.f32 %v4900
        %v4908 = vmul.f32 %v4907, %v4905
        %v4909 = vxor.u32 %v4908, 2147483648
        %v4910 = vsel %vm4827, %v4909, %v4908
        %v4911 = vsub.s32 4, %v4887
        %v4912 = vsel %vm4827, %v4911, %v4887
        %v4913 = vsel %vm4826, %v4817, %v4910
        %v4914 = vsel %vm4826, 0, %v4912
        %v4915 = vcosq.f32.pop %v4913
        %v4916 = vsinq.f32.pop %v4913
        %vm4917 = vweird.f32 %v4817
        %v4918 = vand.u32 %v4914, 3
        %vm4919 = vcmp.lt.s32.totalorder %v4918, 2
        %vm4920 = vcmp.eq.s32.totalorder %v4918, 0
        %v4921 = vxor.u32 %v4916, 2147483648
        %v4922 = vsel %vm4920, %v4915, %v4921
        %vm4923 = vcmp.eq.s32.totalorder %v4918, 2
        %v4924 = vxor.u32 %v4915, 2147483648
        %v4925 = vsel %vm4923, %v4924, %v4916
        %v4926 = vsel %vm4919, %v4922, %v4925
        %v4927 = vsel %vm4917, nan, %v4926
        %v4928 = vand.u32 2147483647, %v4818
        %vm4929 = vcmp.le.f32.partialorder %v4928, 0.7853982
        %vm4930 = vcmp.lt.s32.totalorder %v4818, 0
        %v4931 = vand.u32 %v4818, 2139095040
        %v4932 = vshrl.u32 %v4931, 23
        %v4933 = vsub.s32 %v4932, 127
        %v4934 = vand.u32 2147483647, %v4818
        %v4935 = vand.u32 %v4934, 8388607
        %v4936 = vor.u32 %v4935, 8388608
        %v4937 = vsub.s32 0, %v4936
        %v4938 = vadd.s32 %v4933, 1
        %vm4939 = vcmp.gt.s32.totalorder %v4938, 0
        %v4940 = vsel %vm4939, %v4938, 0
        %v4941 = vshrl.u32 %v4940, 5
        %v4942 = vand.u32 %v4940, 31
        %v4943 = vsub.s32 32, %v4942
        %v4944 = vshrl.u32 683565275, %v4943
        %v4945 = vshll.u32 683565275, %v4942
        %v4946 = vshrl.u32 2475754826, %v4943
        %v4947 = vor.u32 %v4945, %v4946
        %v4948 = vshll.u32 2475754826, %v4942
        %v4949 = vshrl.u32 2131351028, %v4943
        %v4950 = vor.u32 %v4948, %v4949
        %v4951 = vshll.u32 2131351028, %v4942
        %v4952 = vshrl.u32 2102212464, %v4943
        %v4953 = vor.u32 %v4951, %v4952
        %v4954 = vshll.u32 2102212464, %v4942
        %v4955 = vshrl.u32 920167782, %v4943
        %v4956 = vor.u32 %v4954, %v4955
        %v4957 = vshll.u32 920167782, %v4942
        %v4958 = vshrl.u32 1326507024, %v4943
        %v4959 = vor.u32 %v4957, %v4958
        %vm4960 = vcmp.lt.s32.totalorder %v4941, 1
        %vm4961 = vcmp.lt.s32.totalorder %v4941, 2
        %vm4962 = vcmp.lt.s32.totalorder %v4941, 3
        %vm4963 = vcmp.lt.s32.totalorder %v4941, 4
        %v4964 = vsel %vm4960, %v4944, %v4947
        %v4965 = vsel %vm4963, %v4953, 2102212464
        %v4966 = vsel %vm4962, %v4950, %v4965
        %v4967 = vsel %vm4961, %v4964, %v4966
        %v4968 = vsel %vm4960, %v4947, %v4950
        %v4969 = vsel %vm4963, %v4956, 920167782
        %v4970 = vsel %vm4962, %v4953, %v4969
        %v4971 = vsel %vm4961, %v4968, %v4970
        %v4972 = vsel %vm4960, %v4950, %v4953
        %v4973 = vsel %vm4963, %v4959, 1326507024
        %v4974 = vsel %vm4962, %v4956, %v4973
        %v4975 = vsel %vm4961, %v4972, %v4974
        %v4976 = vshll.u32 %v4936, 8
        %v4977 = vmul.u32.u64.compose %v4976, %v4975
        %v4978 = vextract.low.u32 %v4977
        %v4979 = vextract.high.u32 %v4977
        %v4980 = vmul.u32.u64.compose %v4976, %v4971
        %v4981 = vextract.low.u32 %v4980
        %v4982 = vextract.high.u32 %v4980
        %v4983 = vmul.u32 %v4976, %v4967
        %v4984 = vadd.s32 %v4979, %v4981
        %vm4985 = vc.u32 %v4979, %v4981
        %v4986 = vadd.s32 %v4982, 1
        %v4987 = vsel %vm4985, %v4986, %v4982
        %v4988 = vadd.s32 %v4983, %v4987
        %v4989 = vadd.s32 %v4988, 536870912
        %v4990 = vshrl.u32 %v4989, 30
        %v4991 = vshll.u32 %v4990, 30
        %v4992 = vsub.s32 %v4988, %v4991
        %vm4993 = vcmp.lt.s32.totalorder %v4992, 0
        %v4994 = vsub.s32 0, %v4992
        %v4995 = vsel %vm4993, %v4994, %v4992
        %v4996 = vclz %v4995
        %v4997 = vsub.s32 %v4996, 2
        %vm4998 = vcmp.gt.s32.totalorder 0, %v4997
        %v4999 = vsel %vm4998, 0, %v4997
        %v5000 = vsub.s32 32, %v4999
        %v5001 = vshll.u32 %v4992, %v4999
        %v5002 = vshrl.u32 %v4984, %v5000
        %v5003 = vor.u32 %v5001, %v5002
        %v5004 = vsub.s32 4294967266, %v4999
        %v5005 = vadd.s32 %v5004, 127
        %v5006 = vshll.u32 %v5005, 23
        %v5007 = vor.u32 4788187, %v5006
        %v5008 = vand.u32 2147483647, %v5007
        %v5010 = vcvt.s32.f32 %v5003
        %v5011 = vmul.f32 %v5010, %v5008
        %v5012 = vxor.u32 %v5011, 2147483648
        %v5013 = vsel %vm4930, %v5012, %v5011
        %v5014 = vsub.s32 4, %v4990
        %v5015 = vsel %vm4930, %v5014, %v4990
        %v5016 = vsel %vm4929, %v4818, %v5013
        %v5017 = vsel %vm4929, 0, %v5015
        %v5018 = vcosq.f32.pop %v5016
        %v5019 = vsinq.f32.pop %v5016
        %vm5020 = vweird.f32 %v4818
        %v5021 = vand.u32 %v5017, 3
        %vm5022 = vcmp.lt.s32.totalorder %v5021, 2
        %vm5023 = vcmp.eq.s32.totalorder %v5021, 0
        %v5024 = vxor.u32 %v5019, 2147483648
        %v5025 = vsel %vm5023, %v5018, %v5024
        %vm5026 = vcmp.eq.s32.totalorder %v5021, 2
        %v5027 = vxor.u32 %v5018, 2147483648
        %v5028 = vsel %vm5026, %v5027, %v5019
        %v5029 = vsel %vm5022, %v5025, %v5028
        %v5030 = vsel %vm5020, nan, %v5029
        %v5031 = vand.u32 2147483647, %v4819
        %vm5032 = vcmp.le.f32.partialorder %v5031, 0.7853982
        %vm5033 = vcmp.lt.s32.totalorder %v4819, 0
        %v5034 = vand.u32 %v4819, 2139095040
        %v5035 = vshrl.u32 %v5034, 23
        %v5036 = vsub.s32 %v5035, 127
        %v5037 = vand.u32 2147483647, %v4819
        %v5038 = vand.u32 %v5037, 8388607
        %v5039 = vor.u32 %v5038, 8388608
        %v5040 = vsub.s32 0, %v5039
        %v5041 = vadd.s32 %v5036, 1
        %vm5042 = vcmp.gt.s32.totalorder %v5041, 0
        %v5043 = vsel %vm5042, %v5041, 0
        %v5044 = vshrl.u32 %v5043, 5
        %v5045 = vand.u32 %v5043, 31
        %v5046 = vsub.s32 32, %v5045
        %v5047 = vshrl.u32 683565275, %v5046
        %v5048 = vshll.u32 683565275, %v5045
        %v5049 = vshrl.u32 2475754826, %v5046
        %v5050 = vor.u32 %v5048, %v5049
        %v5051 = vshll.u32 2475754826, %v5045
        %v5052 = vshrl.u32 2131351028, %v5046
        %v5053 = vor.u32 %v5051, %v5052
        %v5054 = vshll.u32 2131351028, %v5045
        %v5055 = vshrl.u32 2102212464, %v5046
        %v5056 = vor.u32 %v5054, %v5055
        %v5057 = vshll.u32 2102212464, %v5045
        %v5058 = vshrl.u32 920167782, %v5046
        %v5059 = vor.u32 %v5057, %v5058
        %v5060 = vshll.u32 920167782, %v5045
        %v5061 = vshrl.u32 1326507024, %v5046
        %v5062 = vor.u32 %v5060, %v5061
        %vm5063 = vcmp.lt.s32.totalorder %v5044, 1
        %vm5064 = vcmp.lt.s32.totalorder %v5044, 2
        %vm5065 = vcmp.lt.s32.totalorder %v5044, 3
        %vm5066 = vcmp.lt.s32.totalorder %v5044, 4
        %v5067 = vsel %vm5063, %v5047, %v5050
        %v5068 = vsel %vm5066, %v5056, 2102212464
        %v5069 = vsel %vm5065, %v5053, %v5068
        %v5070 = vsel %vm5064, %v5067, %v5069
        %v5071 = vsel %vm5063, %v5050, %v5053
        %v5072 = vsel %vm5066, %v5059, 920167782
        %v5073 = vsel %vm5065, %v5056, %v5072
        %v5074 = vsel %vm5064, %v5071, %v5073
        %v5075 = vsel %vm5063, %v5053, %v5056
        %v5076 = vsel %vm5066, %v5062, 1326507024
        %v5077 = vsel %vm5065, %v5059, %v5076
        %v5078 = vsel %vm5064, %v5075, %v5077
        %v5079 = vshll.u32 %v5039, 8
        %v5080 = vmul.u32.u64.compose %v5079, %v5078
        %v5081 = vextract.low.u32 %v5080
        %v5082 = vextract.high.u32 %v5080
        %v5083 = vmul.u32.u64.compose %v5079, %v5074
        %v5084 = vextract.low.u32 %v5083
        %v5085 = vextract.high.u32 %v5083
        %v5086 = vmul.u32 %v5079, %v5070
        %v5087 = vadd.s32 %v5082, %v5084
        %vm5088 = vc.u32 %v5082, %v5084
        %v5089 = vadd.s32 %v5085, 1
        %v5090 = vsel %vm5088, %v5089, %v5085
        %v5091 = vadd.s32 %v5086, %v5090
        %v5092 = vadd.s32 %v5091, 536870912
        %v5093 = vshrl.u32 %v5092, 30
        %v5094 = vshll.u32 %v5093, 30
        %v5095 = vsub.s32 %v5091, %v5094
        %vm5096 = vcmp.lt.s32.totalorder %v5095, 0
        %v5097 = vsub.s32 0, %v5095
        %v5098 = vsel %vm5096, %v5097, %v5095
        %v5099 = vclz %v5098
        %v5100 = vsub.s32 %v5099, 2
        %vm5101 = vcmp.gt.s32.totalorder 0, %v5100
        %v5102 = vsel %vm5101, 0, %v5100
        %v5103 = vsub.s32 32, %v5102
        %v5104 = vshll.u32 %v5095, %v5102
        %v5105 = vshrl.u32 %v5087, %v5103
        %v5106 = vor.u32 %v5104, %v5105
        %v5107 = vsub.s32 4294967266, %v5102
        %v5108 = vadd.s32 %v5107, 127
        %v5109 = vshll.u32 %v5108, 23
        %v5110 = vor.u32 4788187, %v5109
        %v5111 = vand.u32 2147483647, %v5110
        %v5113 = vcvt.s32.f32 %v5106
        %v5114 = vmul.f32 %v5113, %v5111
        %v5115 = vxor.u32 %v5114, 2147483648
        %v5116 = vsel %vm5033, %v5115, %v5114
        %v5117 = vsub.s32 4, %v5093
        %v5118 = vsel %vm5033, %v5117, %v5093
        %v5119 = vsel %vm5032, %v4819, %v5116
        %v5120 = vsel %vm5032, 0, %v5118
        %v5121 = vcosq.f32.pop %v5119
        %v5122 = vsinq.f32.pop %v5119
        %vm5123 = vweird.f32 %v4819
        %v5124 = vand.u32 %v5120, 3
        %vm5125 = vcmp.lt.s32.totalorder %v5124, 2
        %vm5126 = vcmp.eq.s32.totalorder %v5124, 0
        %v5127 = vxor.u32 %v5122, 2147483648
        %v5128 = vsel %vm5126, %v5121, %v5127
        %vm5129 = vcmp.eq.s32.totalorder %v5124, 2
        %v5130 = vxor.u32 %v5121, 2147483648
        %v5131 = vsel %vm5129, %v5130, %v5122
        %v5132 = vsel %vm5125, %v5128, %v5131
        %v5133 = vsel %vm5123, nan, %v5132
        %v5134 = vand.u32 2147483647, %v4820
        %vm5135 = vcmp.le.f32.partialorder %v5134, 0.7853982
        %vm5136 = vcmp.lt.s32.totalorder %v4820, 0
        %v5137 = vand.u32 %v4820, 2139095040
        %v5138 = vshrl.u32 %v5137, 23
        %v5139 = vsub.s32 %v5138, 127
        %v5140 = vand.u32 2147483647, %v4820
        %v5141 = vand.u32 %v5140, 8388607
        %v5142 = vor.u32 %v5141, 8388608
        %v5143 = vsub.s32 0, %v5142
        %v5144 = vadd.s32 %v5139, 1
        %vm5145 = vcmp.gt.s32.totalorder %v5144, 0
        %v5146 = vsel %vm5145, %v5144, 0
        %v5147 = vshrl.u32 %v5146, 5
        %v5148 = vand.u32 %v5146, 31
        %v5149 = vsub.s32 32, %v5148
        %v5150 = vshrl.u32 683565275, %v5149
        %v5151 = vshll.u32 683565275, %v5148
        %v5152 = vshrl.u32 2475754826, %v5149
        %v5153 = vor.u32 %v5151, %v5152
        %v5154 = vshll.u32 2475754826, %v5148
        %v5155 = vshrl.u32 2131351028, %v5149
        %v5156 = vor.u32 %v5154, %v5155
        %v5157 = vshll.u32 2131351028, %v5148
        %v5158 = vshrl.u32 2102212464, %v5149
        %v5159 = vor.u32 %v5157, %v5158
        %v5160 = vshll.u32 2102212464, %v5148
        %v5161 = vshrl.u32 920167782, %v5149
        %v5162 = vor.u32 %v5160, %v5161
        %v5163 = vshll.u32 920167782, %v5148
        %v5164 = vshrl.u32 1326507024, %v5149
        %v5165 = vor.u32 %v5163, %v5164
        %vm5166 = vcmp.lt.s32.totalorder %v5147, 1
        %vm5167 = vcmp.lt.s32.totalorder %v5147, 2
        %vm5168 = vcmp.lt.s32.totalorder %v5147, 3
        %vm5169 = vcmp.lt.s32.totalorder %v5147, 4
        %v5170 = vsel %vm5166, %v5150, %v5153
        %v5171 = vsel %vm5169, %v5159, 2102212464
        %v5172 = vsel %vm5168, %v5156, %v5171
        %v5173 = vsel %vm5167, %v5170, %v5172
        %v5174 = vsel %vm5166, %v5153, %v5156
        %v5175 = vsel %vm5169, %v5162, 920167782
        %v5176 = vsel %vm5168, %v5159, %v5175
        %v5177 = vsel %vm5167, %v5174, %v5176
        %v5178 = vsel %vm5166, %v5156, %v5159
        %v5179 = vsel %vm5169, %v5165, 1326507024
        %v5180 = vsel %vm5168, %v5162, %v5179
        %v5181 = vsel %vm5167, %v5178, %v5180
        %v5182 = vshll.u32 %v5142, 8
        %v5183 = vmul.u32.u64.compose %v5182, %v5181
        %v5184 = vextract.low.u32 %v5183
        %v5185 = vextract.high.u32 %v5183
        %v5186 = vmul.u32.u64.compose %v5182, %v5177
        %v5187 = vextract.low.u32 %v5186
        %v5188 = vextract.high.u32 %v5186
        %v5189 = vmul.u32 %v5182, %v5173
        %v5190 = vadd.s32 %v5185, %v5187
        %vm5191 = vc.u32 %v5185, %v5187
        %v5192 = vadd.s32 %v5188, 1
        %v5193 = vsel %vm5191, %v5192, %v5188
        %v5194 = vadd.s32 %v5189, %v5193
        %v5195 = vadd.s32 %v5194, 536870912
        %v5196 = vshrl.u32 %v5195, 30
        %v5197 = vshll.u32 %v5196, 30
        %v5198 = vsub.s32 %v5194, %v5197
        %vm5199 = vcmp.lt.s32.totalorder %v5198, 0
        %v5200 = vsub.s32 0, %v5198
        %v5201 = vsel %vm5199, %v5200, %v5198
        %v5202 = vclz %v5201
        %v5203 = vsub.s32 %v5202, 2
        %vm5204 = vcmp.gt.s32.totalorder 0, %v5203
        %v5205 = vsel %vm5204, 0, %v5203
        %v5206 = vsub.s32 32, %v5205
        %v5207 = vshll.u32 %v5198, %v5205
        %v5208 = vshrl.u32 %v5190, %v5206
        %v5209 = vor.u32 %v5207, %v5208
        %v5210 = vsub.s32 4294967266, %v5205
        %v5211 = vadd.s32 %v5210, 127
        %v5212 = vshll.u32 %v5211, 23
        %v5213 = vor.u32 4788187, %v5212
        %v5214 = vand.u32 2147483647, %v5213
        %v5216 = vcvt.s32.f32 %v5209
        %v5217 = vmul.f32 %v5216, %v5214
        %v5218 = vxor.u32 %v5217, 2147483648
        %v5219 = vsel %vm5136, %v5218, %v5217
        %v5220 = vsub.s32 4, %v5196
        %v5221 = vsel %vm5136, %v5220, %v5196
        %v5222 = vsel %vm5135, %v4820, %v5219
        %v5223 = vsel %vm5135, 0, %v5221
        %v5224 = vcosq.f32.pop %v5222
        %v5225 = vsinq.f32.pop %v5222
        %vm5226 = vweird.f32 %v4820
        %v5227 = vand.u32 %v5223, 3
        %vm5228 = vcmp.lt.s32.totalorder %v5227, 2
        %vm5229 = vcmp.eq.s32.totalorder %v5227, 0
        %v5230 = vxor.u32 %v5225, 2147483648
        %v5231 = vsel %vm5229, %v5224, %v5230
        %vm5232 = vcmp.eq.s32.totalorder %v5227, 2
        %v5233 = vxor.u32 %v5224, 2147483648
        %v5234 = vsel %vm5232, %v5233, %v5225
        %v5235 = vsel %vm5228, %v5231, %v5234
        %v5236 = vsel %vm5226, nan, %v5235
        %v5237 = vand.u32 2147483647, %v4821
        %vm5238 = vcmp.le.f32.partialorder %v5237, 0.7853982
        %vm5239 = vcmp.lt.s32.totalorder %v4821, 0
        %v5240 = vand.u32 %v4821, 2139095040
        %v5241 = vshrl.u32 %v5240, 23
        %v5242 = vsub.s32 %v5241, 127
        %v5243 = vand.u32 2147483647, %v4821
        %v5244 = vand.u32 %v5243, 8388607
        %v5245 = vor.u32 %v5244, 8388608
        %v5246 = vsub.s32 0, %v5245
        %v5247 = vadd.s32 %v5242, 1
        %vm5248 = vcmp.gt.s32.totalorder %v5247, 0
        %v5249 = vsel %vm5248, %v5247, 0
        %v5250 = vshrl.u32 %v5249, 5
        %v5251 = vand.u32 %v5249, 31
        %v5252 = vsub.s32 32, %v5251
        %v5253 = vshrl.u32 683565275, %v5252
        %v5254 = vshll.u32 683565275, %v5251
        %v5255 = vshrl.u32 2475754826, %v5252
        %v5256 = vor.u32 %v5254, %v5255
        %v5257 = vshll.u32 2475754826, %v5251
        %v5258 = vshrl.u32 2131351028, %v5252
        %v5259 = vor.u32 %v5257, %v5258
        %v5260 = vshll.u32 2131351028, %v5251
        %v5261 = vshrl.u32 2102212464, %v5252
        %v5262 = vor.u32 %v5260, %v5261
        %v5263 = vshll.u32 2102212464, %v5251
        %v5264 = vshrl.u32 920167782, %v5252
        %v5265 = vor.u32 %v5263, %v5264
        %v5266 = vshll.u32 920167782, %v5251
        %v5267 = vshrl.u32 1326507024, %v5252
        %v5268 = vor.u32 %v5266, %v5267
        %vm5269 = vcmp.lt.s32.totalorder %v5250, 1
        %vm5270 = vcmp.lt.s32.totalorder %v5250, 2
        %vm5271 = vcmp.lt.s32.totalorder %v5250, 3
        %vm5272 = vcmp.lt.s32.totalorder %v5250, 4
        %v5273 = vsel %vm5269, %v5253, %v5256
        %v5274 = vsel %vm5272, %v5262, 2102212464
        %v5275 = vsel %vm5271, %v5259, %v5274
        %v5276 = vsel %vm5270, %v5273, %v5275
        %v5277 = vsel %vm5269, %v5256, %v5259
        %v5278 = vsel %vm5272, %v5265, 920167782
        %v5279 = vsel %vm5271, %v5262, %v5278
        %v5280 = vsel %vm5270, %v5277, %v5279
        %v5281 = vsel %vm5269, %v5259, %v5262
        %v5282 = vsel %vm5272, %v5268, 1326507024
        %v5283 = vsel %vm5271, %v5265, %v5282
        %v5284 = vsel %vm5270, %v5281, %v5283
        %v5285 = vshll.u32 %v5245, 8
        %v5286 = vmul.u32.u64.compose %v5285, %v5284
        %v5287 = vextract.low.u32 %v5286
        %v5288 = vextract.high.u32 %v5286
        %v5289 = vmul.u32.u64.compose %v5285, %v5280
        %v5290 = vextract.low.u32 %v5289
        %v5291 = vextract.high.u32 %v5289
        %v5292 = vmul.u32 %v5285, %v5276
        %v5293 = vadd.s32 %v5288, %v5290
        %vm5294 = vc.u32 %v5288, %v5290
        %v5295 = vadd.s32 %v5291, 1
        %v5296 = vsel %vm5294, %v5295, %v5291
        %v5297 = vadd.s32 %v5292, %v5296
        %v5298 = vadd.s32 %v5297, 536870912
        %v5299 = vshrl.u32 %v5298, 30
        %v5300 = vshll.u32 %v5299, 30
        %v5301 = vsub.s32 %v5297, %v5300
        %vm5302 = vcmp.lt.s32.totalorder %v5301, 0
        %v5303 = vsub.s32 0, %v5301
        %v5304 = vsel %vm5302, %v5303, %v5301
        %v5305 = vclz %v5304
        %v5306 = vsub.s32 %v5305, 2
        %vm5307 = vcmp.gt.s32.totalorder 0, %v5306
        %v5308 = vsel %vm5307, 0, %v5306
        %v5309 = vsub.s32 32, %v5308
        %v5310 = vshll.u32 %v5301, %v5308
        %v5311 = vshrl.u32 %v5293, %v5309
        %v5312 = vor.u32 %v5310, %v5311
        %v5313 = vsub.s32 4294967266, %v5308
        %v5314 = vadd.s32 %v5313, 127
        %v5315 = vshll.u32 %v5314, 23
        %v5316 = vor.u32 4788187, %v5315
        %v5317 = vand.u32 2147483647, %v5316
        %v5319 = vcvt.s32.f32 %v5312
        %v5320 = vmul.f32 %v5319, %v5317
        %v5321 = vxor.u32 %v5320, 2147483648
        %v5322 = vsel %vm5239, %v5321, %v5320
        %v5323 = vsub.s32 4, %v5299
        %v5324 = vsel %vm5239, %v5323, %v5299
        %v5325 = vsel %vm5238, %v4821, %v5322
        %v5326 = vsel %vm5238, 0, %v5324
        %v5327 = vcosq.f32.pop %v5325
        %v5328 = vsinq.f32.pop %v5325
        %vm5329 = vweird.f32 %v4821
        %v5330 = vand.u32 %v5326, 3
        %vm5331 = vcmp.lt.s32.totalorder %v5330, 2
        %vm5332 = vcmp.eq.s32.totalorder %v5330, 0
        %v5333 = vxor.u32 %v5328, 2147483648
        %v5334 = vsel %vm5332, %v5327, %v5333
        %vm5335 = vcmp.eq.s32.totalorder %v5330, 2
        %v5336 = vxor.u32 %v5327, 2147483648
        %v5337 = vsel %vm5335, %v5336, %v5328
        %v5338 = vsel %vm5331, %v5334, %v5337
        %v5339 = vsel %vm5329, nan, %v5338
        %v5340 = vand.u32 2147483647, %v4822
        %vm5341 = vcmp.le.f32.partialorder %v5340, 0.7853982
        %vm5342 = vcmp.lt.s32.totalorder %v4822, 0
        %v5343 = vand.u32 %v4822, 2139095040
        %v5344 = vshrl.u32 %v5343, 23
        %v5345 = vsub.s32 %v5344, 127
        %v5346 = vand.u32 2147483647, %v4822
        %v5347 = vand.u32 %v5346, 8388607
        %v5348 = vor.u32 %v5347, 8388608
        %v5349 = vsub.s32 0, %v5348
        %v5350 = vadd.s32 %v5345, 1
        %vm5351 = vcmp.gt.s32.totalorder %v5350, 0
        %v5352 = vsel %vm5351, %v5350, 0
        %v5353 = vshrl.u32 %v5352, 5
        %v5354 = vand.u32 %v5352, 31
        %v5355 = vsub.s32 32, %v5354
        %v5356 = vshrl.u32 683565275, %v5355
        %v5357 = vshll.u32 683565275, %v5354
        %v5358 = vshrl.u32 2475754826, %v5355
        %v5359 = vor.u32 %v5357, %v5358
        %v5360 = vshll.u32 2475754826, %v5354
        %v5361 = vshrl.u32 2131351028, %v5355
        %v5362 = vor.u32 %v5360, %v5361
        %v5363 = vshll.u32 2131351028, %v5354
        %v5364 = vshrl.u32 2102212464, %v5355
        %v5365 = vor.u32 %v5363, %v5364
        %v5366 = vshll.u32 2102212464, %v5354
        %v5367 = vshrl.u32 920167782, %v5355
        %v5368 = vor.u32 %v5366, %v5367
        %v5369 = vshll.u32 920167782, %v5354
        %v5370 = vshrl.u32 1326507024, %v5355
        %v5371 = vor.u32 %v5369, %v5370
        %vm5372 = vcmp.lt.s32.totalorder %v5353, 1
        %vm5373 = vcmp.lt.s32.totalorder %v5353, 2
        %vm5374 = vcmp.lt.s32.totalorder %v5353, 3
        %vm5375 = vcmp.lt.s32.totalorder %v5353, 4
        %v5376 = vsel %vm5372, %v5356, %v5359
        %v5377 = vsel %vm5375, %v5365, 2102212464
        %v5378 = vsel %vm5374, %v5362, %v5377
        %v5379 = vsel %vm5373, %v5376, %v5378
        %v5380 = vsel %vm5372, %v5359, %v5362
        %v5381 = vsel %vm5375, %v5368, 920167782
        %v5382 = vsel %vm5374, %v5365, %v5381
        %v5383 = vsel %vm5373, %v5380, %v5382
        %v5384 = vsel %vm5372, %v5362, %v5365
        %v5385 = vsel %vm5375, %v5371, 1326507024
        %v5386 = vsel %vm5374, %v5368, %v5385
        %v5387 = vsel %vm5373, %v5384, %v5386
        %v5388 = vshll.u32 %v5348, 8
        %v5389 = vmul.u32.u64.compose %v5388, %v5387
        %v5390 = vextract.low.u32 %v5389
        %v5391 = vextract.high.u32 %v5389
        %v5392 = vmul.u32.u64.compose %v5388, %v5383
        %v5393 = vextract.low.u32 %v5392
        %v5394 = vextract.high.u32 %v5392
        %v5395 = vmul.u32 %v5388, %v5379
        %v5396 = vadd.s32 %v5391, %v5393
        %vm5397 = vc.u32 %v5391, %v5393
        %v5398 = vadd.s32 %v5394, 1
        %v5399 = vsel %vm5397, %v5398, %v5394
        %v5400 = vadd.s32 %v5395, %v5399
        %v5401 = vadd.s32 %v5400, 536870912
        %v5402 = vshrl.u32 %v5401, 30
        %v5403 = vshll.u32 %v5402, 30
        %v5404 = vsub.s32 %v5400, %v5403
        %vm5405 = vcmp.lt.s32.totalorder %v5404, 0
        %v5406 = vsub.s32 0, %v5404
        %v5407 = vsel %vm5405, %v5406, %v5404
        %v5408 = vclz %v5407
        %v5409 = vsub.s32 %v5408, 2
        %vm5410 = vcmp.gt.s32.totalorder 0, %v5409
        %v5411 = vsel %vm5410, 0, %v5409
        %v5412 = vsub.s32 32, %v5411
        %v5413 = vshll.u32 %v5404, %v5411
        %v5414 = vshrl.u32 %v5396, %v5412
        %v5415 = vor.u32 %v5413, %v5414
        %v5416 = vsub.s32 4294967266, %v5411
        %v5417 = vadd.s32 %v5416, 127
        %v5418 = vshll.u32 %v5417, 23
        %v5419 = vor.u32 4788187, %v5418
        %v5420 = vand.u32 2147483647, %v5419
        %v5422 = vcvt.s32.f32 %v5415
        %v5423 = vmul.f32 %v5422, %v5420
        %v5424 = vxor.u32 %v5423, 2147483648
        %v5425 = vsel %vm5342, %v5424, %v5423
        %v5426 = vsub.s32 4, %v5402
        %v5427 = vsel %vm5342, %v5426, %v5402
        %v5428 = vsel %vm5341, %v4822, %v5425
        %v5429 = vsel %vm5341, 0, %v5427
        %v5430 = vcosq.f32.pop %v5428
        %v5431 = vsinq.f32.pop %v5428
        %vm5432 = vweird.f32 %v4822
        %v5433 = vand.u32 %v5429, 3
        %vm5434 = vcmp.lt.s32.totalorder %v5433, 2
        %vm5435 = vcmp.eq.s32.totalorder %v5433, 0
        %v5436 = vxor.u32 %v5431, 2147483648
        %v5437 = vsel %vm5435, %v5430, %v5436
        %vm5438 = vcmp.eq.s32.totalorder %v5433, 2
        %v5439 = vxor.u32 %v5430, 2147483648
        %v5440 = vsel %vm5438, %v5439, %v5431
        %v5441 = vsel %vm5434, %v5437, %v5440
        %v5442 = vsel %vm5432, nan, %v5441
        %v5443 = vand.u32 2147483647, %v4823
        %vm5444 = vcmp.le.f32.partialorder %v5443, 0.7853982
        %vm5445 = vcmp.lt.s32.totalorder %v4823, 0
        %v5446 = vand.u32 %v4823, 2139095040
        %v5447 = vshrl.u32 %v5446, 23
        %v5448 = vsub.s32 %v5447, 127
        %v5449 = vand.u32 2147483647, %v4823
        %v5450 = vand.u32 %v5449, 8388607
        %v5451 = vor.u32 %v5450, 8388608
        %v5452 = vsub.s32 0, %v5451
        %v5453 = vadd.s32 %v5448, 1
        %vm5454 = vcmp.gt.s32.totalorder %v5453, 0
        %v5455 = vsel %vm5454, %v5453, 0
        %v5456 = vshrl.u32 %v5455, 5
        %v5457 = vand.u32 %v5455, 31
        %v5458 = vsub.s32 32, %v5457
        %v5459 = vshrl.u32 683565275, %v5458
        %v5460 = vshll.u32 683565275, %v5457
        %v5461 = vshrl.u32 2475754826, %v5458
        %v5462 = vor.u32 %v5460, %v5461
        %v5463 = vshll.u32 2475754826, %v5457
        %v5464 = vshrl.u32 2131351028, %v5458
        %v5465 = vor.u32 %v5463, %v5464
        %v5466 = vshll.u32 2131351028, %v5457
        %v5467 = vshrl.u32 2102212464, %v5458
        %v5468 = vor.u32 %v5466, %v5467
        %v5469 = vshll.u32 2102212464, %v5457
        %v5470 = vshrl.u32 920167782, %v5458
        %v5471 = vor.u32 %v5469, %v5470
        %v5472 = vshll.u32 920167782, %v5457
        %v5473 = vshrl.u32 1326507024, %v5458
        %v5474 = vor.u32 %v5472, %v5473
        %vm5475 = vcmp.lt.s32.totalorder %v5456, 1
        %vm5476 = vcmp.lt.s32.totalorder %v5456, 2
        %vm5477 = vcmp.lt.s32.totalorder %v5456, 3
        %vm5478 = vcmp.lt.s32.totalorder %v5456, 4
        %v5479 = vsel %vm5475, %v5459, %v5462
        %v5480 = vsel %vm5478, %v5468, 2102212464
        %v5481 = vsel %vm5477, %v5465, %v5480
        %v5482 = vsel %vm5476, %v5479, %v5481
        %v5483 = vsel %vm5475, %v5462, %v5465
        %v5484 = vsel %vm5478, %v5471, 920167782
        %v5485 = vsel %vm5477, %v5468, %v5484
        %v5486 = vsel %vm5476, %v5483, %v5485
        %v5487 = vsel %vm5475, %v5465, %v5468
        %v5488 = vsel %vm5478, %v5474, 1326507024
        %v5489 = vsel %vm5477, %v5471, %v5488
        %v5490 = vsel %vm5476, %v5487, %v5489
        %v5491 = vshll.u32 %v5451, 8
        %v5492 = vmul.u32.u64.compose %v5491, %v5490
        %v5493 = vextract.low.u32 %v5492
        %v5494 = vextract.high.u32 %v5492
        %v5495 = vmul.u32.u64.compose %v5491, %v5486
        %v5496 = vextract.low.u32 %v5495
        %v5497 = vextract.high.u32 %v5495
        %v5498 = vmul.u32 %v5491, %v5482
        %v5499 = vadd.s32 %v5494, %v5496
        %vm5500 = vc.u32 %v5494, %v5496
        %v5501 = vadd.s32 %v5497, 1
        %v5502 = vsel %vm5500, %v5501, %v5497
        %v5503 = vadd.s32 %v5498, %v5502
        %v5504 = vadd.s32 %v5503, 536870912
        %v5505 = vshrl.u32 %v5504, 30
        %v5506 = vshll.u32 %v5505, 30
        %v5507 = vsub.s32 %v5503, %v5506
        %vm5508 = vcmp.lt.s32.totalorder %v5507, 0
        %v5509 = vsub.s32 0, %v5507
        %v5510 = vsel %vm5508, %v5509, %v5507
        %v5511 = vclz %v5510
        %v5512 = vsub.s32 %v5511, 2
        %vm5513 = vcmp.gt.s32.totalorder 0, %v5512
        %v5514 = vsel %vm5513, 0, %v5512
        %v5515 = vsub.s32 32, %v5514
        %v5516 = vshll.u32 %v5507, %v5514
        %v5517 = vshrl.u32 %v5499, %v5515
        %v5518 = vor.u32 %v5516, %v5517
        %v5519 = vsub.s32 4294967266, %v5514
        %v5520 = vadd.s32 %v5519, 127
        %v5521 = vshll.u32 %v5520, 23
        %v5522 = vor.u32 4788187, %v5521
        %v5523 = vand.u32 2147483647, %v5522
        %v5525 = vcvt.s32.f32 %v5518
        %v5526 = vmul.f32 %v5525, %v5523
        %v5527 = vxor.u32 %v5526, 2147483648
        %v5528 = vsel %vm5445, %v5527, %v5526
        %v5529 = vsub.s32 4, %v5505
        %v5530 = vsel %vm5445, %v5529, %v5505
        %v5531 = vsel %vm5444, %v4823, %v5528
        %v5532 = vsel %vm5444, 0, %v5530
        %v5533 = vcosq.f32.pop %v5531
        %v5534 = vsinq.f32.pop %v5531
        %vm5535 = vweird.f32 %v4823
        %v5536 = vand.u32 %v5532, 3
        %vm5537 = vcmp.lt.s32.totalorder %v5536, 2
        %vm5538 = vcmp.eq.s32.totalorder %v5536, 0
        %v5539 = vxor.u32 %v5534, 2147483648
        %v5540 = vsel %vm5538, %v5533, %v5539
        %vm5541 = vcmp.eq.s32.totalorder %v5536, 2
        %v5542 = vxor.u32 %v5533, 2147483648
        %v5543 = vsel %vm5541, %v5542, %v5534
        %v5544 = vsel %vm5537, %v5540, %v5543
        %v5545 = vsel %vm5535, nan, %v5544
        %v5546 = vand.u32 2147483647, %v4824
        %vm5547 = vcmp.le.f32.partialorder %v5546, 0.7853982
        %vm5548 = vcmp.lt.s32.totalorder %v4824, 0
        %v5549 = vand.u32 %v4824, 2139095040
        %v5550 = vshrl.u32 %v5549, 23
        %v5551 = vsub.s32 %v5550, 127
        %v5552 = vand.u32 2147483647, %v4824
        %v5553 = vand.u32 %v5552, 8388607
        %v5554 = vor.u32 %v5553, 8388608
        %v5555 = vsub.s32 0, %v5554
        %v5556 = vadd.s32 %v5551, 1
        %vm5557 = vcmp.gt.s32.totalorder %v5556, 0
        %v5558 = vsel %vm5557, %v5556, 0
        %v5559 = vshrl.u32 %v5558, 5
        %v5560 = vand.u32 %v5558, 31
        %v5561 = vsub.s32 32, %v5560
        %v5562 = vshrl.u32 683565275, %v5561
        %v5563 = vshll.u32 683565275, %v5560
        %v5564 = vshrl.u32 2475754826, %v5561
        %v5565 = vor.u32 %v5563, %v5564
        %v5566 = vshll.u32 2475754826, %v5560
        %v5567 = vshrl.u32 2131351028, %v5561
        %v5568 = vor.u32 %v5566, %v5567
        %v5569 = vshll.u32 2131351028, %v5560
        %v5570 = vshrl.u32 2102212464, %v5561
        %v5571 = vor.u32 %v5569, %v5570
        %v5572 = vshll.u32 2102212464, %v5560
        %v5573 = vshrl.u32 920167782, %v5561
        %v5574 = vor.u32 %v5572, %v5573
        %v5575 = vshll.u32 920167782, %v5560
        %v5576 = vshrl.u32 1326507024, %v5561
        %v5577 = vor.u32 %v5575, %v5576
        %vm5578 = vcmp.lt.s32.totalorder %v5559, 1
        %vm5579 = vcmp.lt.s32.totalorder %v5559, 2
        %vm5580 = vcmp.lt.s32.totalorder %v5559, 3
        %vm5581 = vcmp.lt.s32.totalorder %v5559, 4
        %v5582 = vsel %vm5578, %v5562, %v5565
        %v5583 = vsel %vm5581, %v5571, 2102212464
        %v5584 = vsel %vm5580, %v5568, %v5583
        %v5585 = vsel %vm5579, %v5582, %v5584
        %v5586 = vsel %vm5578, %v5565, %v5568
        %v5587 = vsel %vm5581, %v5574, 920167782
        %v5588 = vsel %vm5580, %v5571, %v5587
        %v5589 = vsel %vm5579, %v5586, %v5588
        %v5590 = vsel %vm5578, %v5568, %v5571
        %v5591 = vsel %vm5581, %v5577, 1326507024
        %v5592 = vsel %vm5580, %v5574, %v5591
        %v5593 = vsel %vm5579, %v5590, %v5592
        %v5594 = vshll.u32 %v5554, 8
        %v5595 = vmul.u32.u64.compose %v5594, %v5593
        %v5596 = vextract.low.u32 %v5595
        %v5597 = vextract.high.u32 %v5595
        %v5598 = vmul.u32.u64.compose %v5594, %v5589
        %v5599 = vextract.low.u32 %v5598
        %v5600 = vextract.high.u32 %v5598
        %v5601 = vmul.u32 %v5594, %v5585
        %v5602 = vadd.s32 %v5597, %v5599
        %vm5603 = vc.u32 %v5597, %v5599
        %v5604 = vadd.s32 %v5600, 1
        %v5605 = vsel %vm5603, %v5604, %v5600
        %v5606 = vadd.s32 %v5601, %v5605
        %v5607 = vadd.s32 %v5606, 536870912
        %v5608 = vshrl.u32 %v5607, 30
        %v5609 = vshll.u32 %v5608, 30
        %v5610 = vsub.s32 %v5606, %v5609
        %vm5611 = vcmp.lt.s32.totalorder %v5610, 0
        %v5612 = vsub.s32 0, %v5610
        %v5613 = vsel %vm5611, %v5612, %v5610
        %v5614 = vclz %v5613
        %v5615 = vsub.s32 %v5614, 2
        %vm5616 = vcmp.gt.s32.totalorder 0, %v5615
        %v5617 = vsel %vm5616, 0, %v5615
        %v5618 = vsub.s32 32, %v5617
        %v5619 = vshll.u32 %v5610, %v5617
        %v5620 = vshrl.u32 %v5602, %v5618
        %v5621 = vor.u32 %v5619, %v5620
        %v5622 = vsub.s32 4294967266, %v5617
        %v5623 = vadd.s32 %v5622, 127
        %v5624 = vshll.u32 %v5623, 23
        %v5625 = vor.u32 4788187, %v5624
        %v5626 = vand.u32 2147483647, %v5625
        %v5628 = vcvt.s32.f32 %v5621
        %v5629 = vmul.f32 %v5628, %v5626
        %v5630 = vxor.u32 %v5629, 2147483648
        %v5631 = vsel %vm5548, %v5630, %v5629
        %v5632 = vsub.s32 4, %v5608
        %v5633 = vsel %vm5548, %v5632, %v5608
        %v5634 = vsel %vm5547, %v4824, %v5631
        %v5635 = vsel %vm5547, 0, %v5633
        %v5636 = vcosq.f32.pop %v5634
        %v5637 = vsinq.f32.pop %v5634
        %vm5638 = vweird.f32 %v4824
        %v5639 = vand.u32 %v5635, 3
        %vm5640 = vcmp.lt.s32.totalorder %v5639, 2
        %vm5641 = vcmp.eq.s32.totalorder %v5639, 0
        %v5642 = vxor.u32 %v5637, 2147483648
        %v5643 = vsel %vm5641, %v5636, %v5642
        %vm5644 = vcmp.eq.s32.totalorder %v5639, 2
        %v5645 = vxor.u32 %v5636, 2147483648
        %v5646 = vsel %vm5644, %v5645, %v5637
        %v5647 = vsel %vm5640, %v5643, %v5646
        %v5648 = vsel %vm5638, nan, %v5647
        %v5650 = vsel %vm1964, %v4927, 0
        %v5653 = vsel %vm1964, %v5030, 0
        %v5656 = vsel %vm1964, %v5133, 0
        %v5659 = vsel %vm1964, %v5236, 0
        %v5662 = vsel %vm1964, %v5339, 0
        %v5665 = vsel %vm1964, %v5442, 0
        %v5668 = vsel %vm1964, %v5545, 0
        %v5671 = vsel %vm1964, %v5648, 0
        %5673 = vmatprep.subr.mxu0 0.0
        %5674 = vmatpush1.msra.mxu0 %v687
        %5675 = vmatprep.subr.mxu0 0.0
        %5676 = vmatpush1.msra.mxu0 %v688
        %5677 = vmatprep.subr.mxu0 0.0
        %5678 = vmatpush1.msra.mxu0 0.0
        %5679 = vmatprep.subr.mxu0 0.0
        %5680 = vmatpush1.msra.mxu0 0.0
        %5681 = vmatprep.subr.mxu0 0.0
        %5682 = vmatpush1.msra.mxu0 0.0
        %5683 = vmatprep.subr.mxu0 0.0
        %5684 = vmatpush1.msra.mxu0 0.0
        %5685 = vmatprep.subr.mxu0 0.0
        %5686 = vmatpush1.msra.mxu0 0.0
        %5687 = vmatprep.subr.mxu0 0.0
        %5688 = vmatpush1.msra.mxu0 0.0
        %5689 = vmatprep.subr.mxu0 0.0
        %5690 = vmatpush1.msra.mxu0 0.0
        %5691 = vmatprep.subr.mxu0 0.0
        %5692 = vmatpush1.msra.mxu0 0.0
        %5693 = vmatprep.subr.mxu0 0.0
        %5694 = vmatpush1.msra.mxu0 0.0
        %5695 = vmatprep.subr.mxu0 0.0
        %5696 = vmatpush1.msra.mxu0 0.0
        %5697 = vmatprep.subr.mxu0 0.0
        %5698 = vmatpush1.msra.mxu0 0.0
        %5699 = vmatprep.subr.mxu0 0.0
        %5700 = vmatpush1.msra.mxu0 0.0
        %5701 = vmatprep.subr.mxu0 0.0
        %5702 = vmatpush1.msra.mxu0 0.0
        %5703 = vmatprep.subr.mxu0 0.0
        %5704 = vmatpush1.msra.mxu0 0.0
        %5705 = vmatprep.subr.mxu0 0.0
        %5706 = vmatpush1.msra.mxu0 0.0
        %5707 = vmatprep.subr.mxu0 0.0
        %5708 = vmatpush1.msra.mxu0 0.0
        %5709 = vmatprep.subr.mxu0 0.0
        %5710 = vmatpush1.msra.mxu0 0.0
        %5711 = vmatprep.subr.mxu0 0.0
        %5712 = vmatpush1.msra.mxu0 0.0
        %5713 = vmatprep.subr.mxu0 0.0
        %5714 = vmatpush1.msra.mxu0 0.0
        %5715 = vmatprep.subr.mxu0 0.0
        %5716 = vmatpush1.msra.mxu0 0.0
        %5717 = vmatprep.subr.mxu0 0.0
        %5718 = vmatpush1.msra.mxu0 0.0
        %5719 = vmatprep.subr.mxu0 0.0
        %5720 = vmatpush1.msra.mxu0 0.0
        %5721 = vmatprep.subr.mxu0 0.0
        %5722 = vmatpush1.msra.mxu0 0.0
        %5723 = vmatprep.subr.mxu0 0.0
        %5724 = vmatpush1.msra.mxu0 0.0
        %5725 = vmatprep.subr.mxu0 0.0
        %5726 = vmatpush1.msra.mxu0 0.0
        %5727 = vmatprep.subr.mxu0 0.0
        %5728 = vmatpush1.msra.mxu0 0.0
        %5729 = vmatprep.subr.mxu0 0.0
        %5730 = vmatpush1.msra.mxu0 0.0
        %5731 = vmatprep.subr.mxu0 0.0
        %5732 = vmatpush1.msra.mxu0 0.0
        %5733 = vmatprep.subr.mxu0 0.0
        %5734 = vmatpush1.msra.mxu0 0.0
        %5735 = vmatprep.subr.mxu0 0.0
        %5736 = vmatpush1.msra.mxu0 0.0
        %5737 = vmatprep.mubr.f32.mxu0 0.0
        %5738 = vmatmul.mubr.f32.gmra.mrb[0].mxu0 %v5650
        %v5739 = vpop.f32.mrb[0].mxu0
        %v5740 = vadd.f32 0.0, %v5739
        %v5741 = vpop.f32.mrb[0].mxu0
        %5742 = vmatprep.mubr.f32.mxu0 0.0
        %5743 = vmatmul.mubr.f32.gmra.mrb[0].mxu0 %v5653
        %v5744 = vpop.f32.mrb[0].mxu0
        %v5745 = vadd.f32 0.0, %v5744
        %v5746 = vpop.f32.mrb[0].mxu0
        %5747 = vmatprep.mubr.f32.mxu0 0.0
        %5748 = vmatmul.mubr.f32.gmra.mrb[0].mxu0 %v5656
        %v5749 = vpop.f32.mrb[0].mxu0
        %v5750 = vadd.f32 0.0, %v5749
        %v5751 = vpop.f32.mrb[0].mxu0
        %5752 = vmatprep.mubr.f32.mxu0 0.0
        %5753 = vmatmul.mubr.f32.gmra.mrb[0].mxu0 %v5659
        %v5754 = vpop.f32.mrb[0].mxu0
        %v5755 = vadd.f32 0.0, %v5754
        %v5756 = vpop.f32.mrb[0].mxu0
        %5757 = vmatprep.mubr.f32.mxu0 0.0
        %5758 = vmatmul.mubr.f32.gmra.mrb[0].mxu0 %v5662
        %v5759 = vpop.f32.mrb[0].mxu0
        %v5760 = vadd.f32 0.0, %v5759
        %v5761 = vpop.f32.mrb[0].mxu0
        %5762 = vmatprep.mubr.f32.mxu0 0.0
        %5763 = vmatmul.mubr.f32.gmra.mrb[0].mxu0 %v5665
        %v5764 = vpop.f32.mrb[0].mxu0
        %v5765 = vadd.f32 0.0, %v5764
        %v5766 = vpop.f32.mrb[0].mxu0
        %5767 = vmatprep.mubr.f32.mxu0 0.0
        %5768 = vmatmul.mubr.f32.gmra.mrb[0].mxu0 %v5668
        %v5769 = vpop.f32.mrb[0].mxu0
        %v5770 = vadd.f32 0.0, %v5769
        %v5771 = vpop.f32.mrb[0].mxu0
        %5772 = vmatprep.mubr.f32.mxu0 0.0
        %5773 = vmatmul.mubr.f32.gmra.mrb[0].mxu0 %v5671
        %v5774 = vpop.f32.mrb[0].mxu0
        %v5775 = vadd.f32 0.0, %v5774
        %v5776 = vpop.f32.mrb[0].mxu0
        %5777 = vdwg.mxu0
        %v5778 = vand.u32 2147483647, %v4817
        %vm5779 = vcmp.le.f32.partialorder %v5778, 0.7853982
        %vm5780 = vcmp.lt.s32.totalorder %v4817, 0
        %v5781 = vand.u32 %v4817, 2139095040
        %v5782 = vshrl.u32 %v5781, 23
        %v5783 = vsub.s32 %v5782, 127
        %v5784 = vand.u32 2147483647, %v4817
        %v5785 = vand.u32 %v5784, 8388607
        %v5786 = vor.u32 %v5785, 8388608
        %v5787 = vsub.s32 0, %v5786
        %v5788 = vadd.s32 %v5783, 1
        %vm5789 = vcmp.gt.s32.totalorder %v5788, 0
        %v5790 = vsel %vm5789, %v5788, 0
        %v5791 = vshrl.u32 %v5790, 5
        %v5792 = vand.u32 %v5790, 31
        %v5793 = vsub.s32 32, %v5792
        %v5794 = vshrl.u32 683565275, %v5793
        %v5795 = vshll.u32 683565275, %v5792
        %v5796 = vshrl.u32 2475754826, %v5793
        %v5797 = vor.u32 %v5795, %v5796
        %v5798 = vshll.u32 2475754826, %v5792
        %v5799 = vshrl.u32 2131351028, %v5793
        %v5800 = vor.u32 %v5798, %v5799
        %v5801 = vshll.u32 2131351028, %v5792
        %v5802 = vshrl.u32 2102212464, %v5793
        %v5803 = vor.u32 %v5801, %v5802
        %v5804 = vshll.u32 2102212464, %v5792
        %v5805 = vshrl.u32 920167782, %v5793
        %v5806 = vor.u32 %v5804, %v5805
        %v5807 = vshll.u32 920167782, %v5792
        %v5808 = vshrl.u32 1326507024, %v5793
        %v5809 = vor.u32 %v5807, %v5808
        %vm5810 = vcmp.lt.s32.totalorder %v5791, 1
        %vm5811 = vcmp.lt.s32.totalorder %v5791, 2
        %vm5812 = vcmp.lt.s32.totalorder %v5791, 3
        %vm5813 = vcmp.lt.s32.totalorder %v5791, 4
        %v5814 = vsel %vm5810, %v5794, %v5797
        %v5815 = vsel %vm5813, %v5803, 2102212464
        %v5816 = vsel %vm5812, %v5800, %v5815
        %v5817 = vsel %vm5811, %v5814, %v5816
        %v5818 = vsel %vm5810, %v5797, %v5800
        %v5819 = vsel %vm5813, %v5806, 920167782
        %v5820 = vsel %vm5812, %v5803, %v5819
        %v5821 = vsel %vm5811, %v5818, %v5820
        %v5822 = vsel %vm5810, %v5800, %v5803
        %v5823 = vsel %vm5813, %v5809, 1326507024
        %v5824 = vsel %vm5812, %v5806, %v5823
        %v5825 = vsel %vm5811, %v5822, %v5824
        %v5826 = vshll.u32 %v5786, 8
        %v5827 = vmul.u32.u64.compose %v5826, %v5825
        %v5828 = vextract.low.u32 %v5827
        %v5829 = vextract.high.u32 %v5827
        %v5830 = vmul.u32.u64.compose %v5826, %v5821
        %v5831 = vextract.low.u32 %v5830
        %v5832 = vextract.high.u32 %v5830
        %v5833 = vmul.u32 %v5826, %v5817
        %v5834 = vadd.s32 %v5829, %v5831
        %vm5835 = vc.u32 %v5829, %v5831
        %v5836 = vadd.s32 %v5832, 1
        %v5837 = vsel %vm5835, %v5836, %v5832
        %v5838 = vadd.s32 %v5833, %v5837
        %v5839 = vadd.s32 %v5838, 536870912
        %v5840 = vshrl.u32 %v5839, 30
        %v5841 = vshll.u32 %v5840, 30
        %v5842 = vsub.s32 %v5838, %v5841
        %vm5843 = vcmp.lt.s32.totalorder %v5842, 0
        %v5844 = vsub.s32 0, %v5842
        %v5845 = vsel %vm5843, %v5844, %v5842
        %v5846 = vclz %v5845
        %v5847 = vsub.s32 %v5846, 2
        %vm5848 = vcmp.gt.s32.totalorder 0, %v5847
        %v5849 = vsel %vm5848, 0, %v5847
        %v5850 = vsub.s32 32, %v5849
        %v5851 = vshll.u32 %v5842, %v5849
        %v5852 = vshrl.u32 %v5834, %v5850
        %v5853 = vor.u32 %v5851, %v5852
        %v5854 = vsub.s32 4294967266, %v5849
        %v5855 = vadd.s32 %v5854, 127
        %v5856 = vshll.u32 %v5855, 23
        %v5857 = vor.u32 4788187, %v5856
        %v5858 = vand.u32 2147483647, %v5857
        %v5860 = vcvt.s32.f32 %v5853
        %v5861 = vmul.f32 %v5860, %v5858
        %v5862 = vxor.u32 %v5861, 2147483648
        %v5863 = vsel %vm5780, %v5862, %v5861
        %v5864 = vsub.s32 4, %v5840
        %v5865 = vsel %vm5780, %v5864, %v5840
        %v5866 = vsel %vm5779, %v4817, %v5863
        %v5867 = vsel %vm5779, 0, %v5865
        %v5868 = vcosq.f32.pop %v5866
        %v5869 = vsinq.f32.pop %v5866
        %vm5870 = vweird.f32 %v4817
        %v5871 = vadd.s32 %v5867, 3
        %v5872 = vand.u32 %v5871, 3
        %vm5873 = vcmp.lt.s32.totalorder %v5872, 2
        %vm5874 = vcmp.eq.s32.totalorder %v5872, 0
        %v5875 = vxor.u32 %v5869, 2147483648
        %v5876 = vsel %vm5874, %v5868, %v5875
        %vm5877 = vcmp.eq.s32.totalorder %v5872, 2
        %v5878 = vxor.u32 %v5868, 2147483648
        %v5879 = vsel %vm5877, %v5878, %v5869
        %v5880 = vsel %vm5873, %v5876, %v5879
        %v5881 = vsel %vm5870, nan, %v5880
        %v5882 = vand.u32 2147483647, %v4818
        %vm5883 = vcmp.le.f32.partialorder %v5882, 0.7853982
        %vm5884 = vcmp.lt.s32.totalorder %v4818, 0
        %v5885 = vand.u32 %v4818, 2139095040
        %v5886 = vshrl.u32 %v5885, 23
        %v5887 = vsub.s32 %v5886, 127
        %v5888 = vand.u32 2147483647, %v4818
        %v5889 = vand.u32 %v5888, 8388607
        %v5890 = vor.u32 %v5889, 8388608
        %v5891 = vsub.s32 0, %v5890
        %v5892 = vadd.s32 %v5887, 1
        %vm5893 = vcmp.gt.s32.totalorder %v5892, 0
        %v5894 = vsel %vm5893, %v5892, 0
        %v5895 = vshrl.u32 %v5894, 5
        %v5896 = vand.u32 %v5894, 31
        %v5897 = vsub.s32 32, %v5896
        %v5898 = vshrl.u32 683565275, %v5897
        %v5899 = vshll.u32 683565275, %v5896
        %v5900 = vshrl.u32 2475754826, %v5897
        %v5901 = vor.u32 %v5899, %v5900
        %v5902 = vshll.u32 2475754826, %v5896
        %v5903 = vshrl.u32 2131351028, %v5897
        %v5904 = vor.u32 %v5902, %v5903
        %v5905 = vshll.u32 2131351028, %v5896
        %v5906 = vshrl.u32 2102212464, %v5897
        %v5907 = vor.u32 %v5905, %v5906
        %v5908 = vshll.u32 2102212464, %v5896
        %v5909 = vshrl.u32 920167782, %v5897
        %v5910 = vor.u32 %v5908, %v5909
        %v5911 = vshll.u32 920167782, %v5896
        %v5912 = vshrl.u32 1326507024, %v5897
        %v5913 = vor.u32 %v5911, %v5912
        %vm5914 = vcmp.lt.s32.totalorder %v5895, 1
        %vm5915 = vcmp.lt.s32.totalorder %v5895, 2
        %vm5916 = vcmp.lt.s32.totalorder %v5895, 3
        %vm5917 = vcmp.lt.s32.totalorder %v5895, 4
        %v5918 = vsel %vm5914, %v5898, %v5901
        %v5919 = vsel %vm5917, %v5907, 2102212464
        %v5920 = vsel %vm5916, %v5904, %v5919
        %v5921 = vsel %vm5915, %v5918, %v5920
        %v5922 = vsel %vm5914, %v5901, %v5904
        %v5923 = vsel %vm5917, %v5910, 920167782
        %v5924 = vsel %vm5916, %v5907, %v5923
        %v5925 = vsel %vm5915, %v5922, %v5924
        %v5926 = vsel %vm5914, %v5904, %v5907
        %v5927 = vsel %vm5917, %v5913, 1326507024
        %v5928 = vsel %vm5916, %v5910, %v5927
        %v5929 = vsel %vm5915, %v5926, %v5928
        %v5930 = vshll.u32 %v5890, 8
        %v5931 = vmul.u32.u64.compose %v5930, %v5929
        %v5932 = vextract.low.u32 %v5931
        %v5933 = vextract.high.u32 %v5931
        %v5934 = vmul.u32.u64.compose %v5930, %v5925
        %v5935 = vextract.low.u32 %v5934
        %v5936 = vextract.high.u32 %v5934
        %v5937 = vmul.u32 %v5930, %v5921
        %v5938 = vadd.s32 %v5933, %v5935
        %vm5939 = vc.u32 %v5933, %v5935
        %v5940 = vadd.s32 %v5936, 1
        %v5941 = vsel %vm5939, %v5940, %v5936
        %v5942 = vadd.s32 %v5937, %v5941
        %v5943 = vadd.s32 %v5942, 536870912
        %v5944 = vshrl.u32 %v5943, 30
        %v5945 = vshll.u32 %v5944, 30
        %v5946 = vsub.s32 %v5942, %v5945
        %vm5947 = vcmp.lt.s32.totalorder %v5946, 0
        %v5948 = vsub.s32 0, %v5946
        %v5949 = vsel %vm5947, %v5948, %v5946
        %v5950 = vclz %v5949
        %v5951 = vsub.s32 %v5950, 2
        %vm5952 = vcmp.gt.s32.totalorder 0, %v5951
        %v5953 = vsel %vm5952, 0, %v5951
        %v5954 = vsub.s32 32, %v5953
        %v5955 = vshll.u32 %v5946, %v5953
        %v5956 = vshrl.u32 %v5938, %v5954
        %v5957 = vor.u32 %v5955, %v5956
        %v5958 = vsub.s32 4294967266, %v5953
        %v5959 = vadd.s32 %v5958, 127
        %v5960 = vshll.u32 %v5959, 23
        %v5961 = vor.u32 4788187, %v5960
        %v5962 = vand.u32 2147483647, %v5961
        %v5964 = vcvt.s32.f32 %v5957
        %v5965 = vmul.f32 %v5964, %v5962
        %v5966 = vxor.u32 %v5965, 2147483648
        %v5967 = vsel %vm5884, %v5966, %v5965
        %v5968 = vsub.s32 4, %v5944
        %v5969 = vsel %vm5884, %v5968, %v5944
        %v5970 = vsel %vm5883, %v4818, %v5967
        %v5971 = vsel %vm5883, 0, %v5969
        %v5972 = vcosq.f32.pop %v5970
        %v5973 = vsinq.f32.pop %v5970
        %vm5974 = vweird.f32 %v4818
        %v5975 = vadd.s32 %v5971, 3
        %v5976 = vand.u32 %v5975, 3
        %vm5977 = vcmp.lt.s32.totalorder %v5976, 2
        %vm5978 = vcmp.eq.s32.totalorder %v5976, 0
        %v5979 = vxor.u32 %v5973, 2147483648
        %v5980 = vsel %vm5978, %v5972, %v5979
        %vm5981 = vcmp.eq.s32.totalorder %v5976, 2
        %v5982 = vxor.u32 %v5972, 2147483648
        %v5983 = vsel %vm5981, %v5982, %v5973
        %v5984 = vsel %vm5977, %v5980, %v5983
        %v5985 = vsel %vm5974, nan, %v5984
        %v5986 = vand.u32 2147483647, %v4819
        %vm5987 = vcmp.le.f32.partialorder %v5986, 0.7853982
        %vm5988 = vcmp.lt.s32.totalorder %v4819, 0
        %v5989 = vand.u32 %v4819, 2139095040
        %v5990 = vshrl.u32 %v5989, 23
        %v5991 = vsub.s32 %v5990, 127
        %v5992 = vand.u32 2147483647, %v4819
        %v5993 = vand.u32 %v5992, 8388607
        %v5994 = vor.u32 %v5993, 8388608
        %v5995 = vsub.s32 0, %v5994
        %v5996 = vadd.s32 %v5991, 1
        %vm5997 = vcmp.gt.s32.totalorder %v5996, 0
        %v5998 = vsel %vm5997, %v5996, 0
        %v5999 = vshrl.u32 %v5998, 5
        %v6000 = vand.u32 %v5998, 31
        %v6001 = vsub.s32 32, %v6000
        %v6002 = vshrl.u32 683565275, %v6001
        %v6003 = vshll.u32 683565275, %v6000
        %v6004 = vshrl.u32 2475754826, %v6001
        %v6005 = vor.u32 %v6003, %v6004
        %v6006 = vshll.u32 2475754826, %v6000
        %v6007 = vshrl.u32 2131351028, %v6001
        %v6008 = vor.u32 %v6006, %v6007
        %v6009 = vshll.u32 2131351028, %v6000
        %v6010 = vshrl.u32 2102212464, %v6001
        %v6011 = vor.u32 %v6009, %v6010
        %v6012 = vshll.u32 2102212464, %v6000
        %v6013 = vshrl.u32 920167782, %v6001
        %v6014 = vor.u32 %v6012, %v6013
        %v6015 = vshll.u32 920167782, %v6000
        %v6016 = vshrl.u32 1326507024, %v6001
        %v6017 = vor.u32 %v6015, %v6016
        %vm6018 = vcmp.lt.s32.totalorder %v5999, 1
        %vm6019 = vcmp.lt.s32.totalorder %v5999, 2
        %vm6020 = vcmp.lt.s32.totalorder %v5999, 3
        %vm6021 = vcmp.lt.s32.totalorder %v5999, 4
        %v6022 = vsel %vm6018, %v6002, %v6005
        %v6023 = vsel %vm6021, %v6011, 2102212464
        %v6024 = vsel %vm6020, %v6008, %v6023
        %v6025 = vsel %vm6019, %v6022, %v6024
        %v6026 = vsel %vm6018, %v6005, %v6008
        %v6027 = vsel %vm6021, %v6014, 920167782
        %v6028 = vsel %vm6020, %v6011, %v6027
        %v6029 = vsel %vm6019, %v6026, %v6028
        %v6030 = vsel %vm6018, %v6008, %v6011
        %v6031 = vsel %vm6021, %v6017, 1326507024
        %v6032 = vsel %vm6020, %v6014, %v6031
        %v6033 = vsel %vm6019, %v6030, %v6032
        %v6034 = vshll.u32 %v5994, 8
        %v6035 = vmul.u32.u64.compose %v6034, %v6033
        %v6036 = vextract.low.u32 %v6035
        %v6037 = vextract.high.u32 %v6035
        %v6038 = vmul.u32.u64.compose %v6034, %v6029
        %v6039 = vextract.low.u32 %v6038
        %v6040 = vextract.high.u32 %v6038
        %v6041 = vmul.u32 %v6034, %v6025
        %v6042 = vadd.s32 %v6037, %v6039
        %vm6043 = vc.u32 %v6037, %v6039
        %v6044 = vadd.s32 %v6040, 1
        %v6045 = vsel %vm6043, %v6044, %v6040
        %v6046 = vadd.s32 %v6041, %v6045
        %v6047 = vadd.s32 %v6046, 536870912
        %v6048 = vshrl.u32 %v6047, 30
        %v6049 = vshll.u32 %v6048, 30
        %v6050 = vsub.s32 %v6046, %v6049
        %vm6051 = vcmp.lt.s32.totalorder %v6050, 0
        %v6052 = vsub.s32 0, %v6050
        %v6053 = vsel %vm6051, %v6052, %v6050
        %v6054 = vclz %v6053
        %v6055 = vsub.s32 %v6054, 2
        %vm6056 = vcmp.gt.s32.totalorder 0, %v6055
        %v6057 = vsel %vm6056, 0, %v6055
        %v6058 = vsub.s32 32, %v6057
        %v6059 = vshll.u32 %v6050, %v6057
        %v6060 = vshrl.u32 %v6042, %v6058
        %v6061 = vor.u32 %v6059, %v6060
        %v6062 = vsub.s32 4294967266, %v6057
        %v6063 = vadd.s32 %v6062, 127
        %v6064 = vshll.u32 %v6063, 23
        %v6065 = vor.u32 4788187, %v6064
        %v6066 = vand.u32 2147483647, %v6065
        %v6068 = vcvt.s32.f32 %v6061
        %v6069 = vmul.f32 %v6068, %v6066
        %v6070 = vxor.u32 %v6069, 2147483648
        %v6071 = vsel %vm5988, %v6070, %v6069
        %v6072 = vsub.s32 4, %v6048
        %v6073 = vsel %vm5988, %v6072, %v6048
        %v6074 = vsel %vm5987, %v4819, %v6071
        %v6075 = vsel %vm5987, 0, %v6073
        %v6076 = vcosq.f32.pop %v6074
        %v6077 = vsinq.f32.pop %v6074
        %vm6078 = vweird.f32 %v4819
        %v6079 = vadd.s32 %v6075, 3
        %v6080 = vand.u32 %v6079, 3
        %vm6081 = vcmp.lt.s32.totalorder %v6080, 2
        %vm6082 = vcmp.eq.s32.totalorder %v6080, 0
        %v6083 = vxor.u32 %v6077, 2147483648
        %v6084 = vsel %vm6082, %v6076, %v6083
        %vm6085 = vcmp.eq.s32.totalorder %v6080, 2
        %v6086 = vxor.u32 %v6076, 2147483648
        %v6087 = vsel %vm6085, %v6086, %v6077
        %v6088 = vsel %vm6081, %v6084, %v6087
        %v6089 = vsel %vm6078, nan, %v6088
        %v6090 = vand.u32 2147483647, %v4820
        %vm6091 = vcmp.le.f32.partialorder %v6090, 0.7853982
        %vm6092 = vcmp.lt.s32.totalorder %v4820, 0
        %v6093 = vand.u32 %v4820, 2139095040
        %v6094 = vshrl.u32 %v6093, 23
        %v6095 = vsub.s32 %v6094, 127
        %v6096 = vand.u32 2147483647, %v4820
        %v6097 = vand.u32 %v6096, 8388607
        %v6098 = vor.u32 %v6097, 8388608
        %v6099 = vsub.s32 0, %v6098
        %v6100 = vadd.s32 %v6095, 1
        %vm6101 = vcmp.gt.s32.totalorder %v6100, 0
        %v6102 = vsel %vm6101, %v6100, 0
        %v6103 = vshrl.u32 %v6102, 5
        %v6104 = vand.u32 %v6102, 31
        %v6105 = vsub.s32 32, %v6104
        %v6106 = vshrl.u32 683565275, %v6105
        %v6107 = vshll.u32 683565275, %v6104
        %v6108 = vshrl.u32 2475754826, %v6105
        %v6109 = vor.u32 %v6107, %v6108
        %v6110 = vshll.u32 2475754826, %v6104
        %v6111 = vshrl.u32 2131351028, %v6105
        %v6112 = vor.u32 %v6110, %v6111
        %v6113 = vshll.u32 2131351028, %v6104
        %v6114 = vshrl.u32 2102212464, %v6105
        %v6115 = vor.u32 %v6113, %v6114
        %v6116 = vshll.u32 2102212464, %v6104
        %v6117 = vshrl.u32 920167782, %v6105
        %v6118 = vor.u32 %v6116, %v6117
        %v6119 = vshll.u32 920167782, %v6104
        %v6120 = vshrl.u32 1326507024, %v6105
        %v6121 = vor.u32 %v6119, %v6120
        %vm6122 = vcmp.lt.s32.totalorder %v6103, 1
        %vm6123 = vcmp.lt.s32.totalorder %v6103, 2
        %vm6124 = vcmp.lt.s32.totalorder %v6103, 3
        %vm6125 = vcmp.lt.s32.totalorder %v6103, 4
        %v6126 = vsel %vm6122, %v6106, %v6109
        %v6127 = vsel %vm6125, %v6115, 2102212464
        %v6128 = vsel %vm6124, %v6112, %v6127
        %v6129 = vsel %vm6123, %v6126, %v6128
        %v6130 = vsel %vm6122, %v6109, %v6112
        %v6131 = vsel %vm6125, %v6118, 920167782
        %v6132 = vsel %vm6124, %v6115, %v6131
        %v6133 = vsel %vm6123, %v6130, %v6132
        %v6134 = vsel %vm6122, %v6112, %v6115
        %v6135 = vsel %vm6125, %v6121, 1326507024
        %v6136 = vsel %vm6124, %v6118, %v6135
        %v6137 = vsel %vm6123, %v6134, %v6136
        %v6138 = vshll.u32 %v6098, 8
        %v6139 = vmul.u32.u64.compose %v6138, %v6137
        %v6140 = vextract.low.u32 %v6139
        %v6141 = vextract.high.u32 %v6139
        %v6142 = vmul.u32.u64.compose %v6138, %v6133
        %v6143 = vextract.low.u32 %v6142
        %v6144 = vextract.high.u32 %v6142
        %v6145 = vmul.u32 %v6138, %v6129
        %v6146 = vadd.s32 %v6141, %v6143
        %vm6147 = vc.u32 %v6141, %v6143
        %v6148 = vadd.s32 %v6144, 1
        %v6149 = vsel %vm6147, %v6148, %v6144
        %v6150 = vadd.s32 %v6145, %v6149
        %v6151 = vadd.s32 %v6150, 536870912
        %v6152 = vshrl.u32 %v6151, 30
        %v6153 = vshll.u32 %v6152, 30
        %v6154 = vsub.s32 %v6150, %v6153
        %vm6155 = vcmp.lt.s32.totalorder %v6154, 0
        %v6156 = vsub.s32 0, %v6154
        %v6157 = vsel %vm6155, %v6156, %v6154
        %v6158 = vclz %v6157
        %v6159 = vsub.s32 %v6158, 2
        %vm6160 = vcmp.gt.s32.totalorder 0, %v6159
        %v6161 = vsel %vm6160, 0, %v6159
        %v6162 = vsub.s32 32, %v6161
        %v6163 = vshll.u32 %v6154, %v6161
        %v6164 = vshrl.u32 %v6146, %v6162
        %v6165 = vor.u32 %v6163, %v6164
        %v6166 = vsub.s32 4294967266, %v6161
        %v6167 = vadd.s32 %v6166, 127
        %v6168 = vshll.u32 %v6167, 23
        %v6169 = vor.u32 4788187, %v6168
        %v6170 = vand.u32 2147483647, %v6169
        %v6172 = vcvt.s32.f32 %v6165
        %v6173 = vmul.f32 %v6172, %v6170
        %v6174 = vxor.u32 %v6173, 2147483648
        %v6175 = vsel %vm6092, %v6174, %v6173
        %v6176 = vsub.s32 4, %v6152
        %v6177 = vsel %vm6092, %v6176, %v6152
        %v6178 = vsel %vm6091, %v4820, %v6175
        %v6179 = vsel %vm6091, 0, %v6177
        %v6180 = vcosq.f32.pop %v6178
        %v6181 = vsinq.f32.pop %v6178
        %vm6182 = vweird.f32 %v4820
        %v6183 = vadd.s32 %v6179, 3
        %v6184 = vand.u32 %v6183, 3
        %vm6185 = vcmp.lt.s32.totalorder %v6184, 2
        %vm6186 = vcmp.eq.s32.totalorder %v6184, 0
        %v6187 = vxor.u32 %v6181, 2147483648
        %v6188 = vsel %vm6186, %v6180, %v6187
        %vm6189 = vcmp.eq.s32.totalorder %v6184, 2
        %v6190 = vxor.u32 %v6180, 2147483648
        %v6191 = vsel %vm6189, %v6190, %v6181
        %v6192 = vsel %vm6185, %v6188, %v6191
        %v6193 = vsel %vm6182, nan, %v6192
        %v6194 = vand.u32 2147483647, %v4821
        %vm6195 = vcmp.le.f32.partialorder %v6194, 0.7853982
        %vm6196 = vcmp.lt.s32.totalorder %v4821, 0
        %v6197 = vand.u32 %v4821, 2139095040
        %v6198 = vshrl.u32 %v6197, 23
        %v6199 = vsub.s32 %v6198, 127
        %v6200 = vand.u32 2147483647, %v4821
        %v6201 = vand.u32 %v6200, 8388607
        %v6202 = vor.u32 %v6201, 8388608
        %v6203 = vsub.s32 0, %v6202
        %v6204 = vadd.s32 %v6199, 1
        %vm6205 = vcmp.gt.s32.totalorder %v6204, 0
        %v6206 = vsel %vm6205, %v6204, 0
        %v6207 = vshrl.u32 %v6206, 5
        %v6208 = vand.u32 %v6206, 31
        %v6209 = vsub.s32 32, %v6208
        %v6210 = vshrl.u32 683565275, %v6209
        %v6211 = vshll.u32 683565275, %v6208
        %v6212 = vshrl.u32 2475754826, %v6209
        %v6213 = vor.u32 %v6211, %v6212
        %v6214 = vshll.u32 2475754826, %v6208
        %v6215 = vshrl.u32 2131351028, %v6209
        %v6216 = vor.u32 %v6214, %v6215
        %v6217 = vshll.u32 2131351028, %v6208
        %v6218 = vshrl.u32 2102212464, %v6209
        %v6219 = vor.u32 %v6217, %v6218
        %v6220 = vshll.u32 2102212464, %v6208
        %v6221 = vshrl.u32 920167782, %v6209
        %v6222 = vor.u32 %v6220, %v6221
        %v6223 = vshll.u32 920167782, %v6208
        %v6224 = vshrl.u32 1326507024, %v6209
        %v6225 = vor.u32 %v6223, %v6224
        %vm6226 = vcmp.lt.s32.totalorder %v6207, 1
        %vm6227 = vcmp.lt.s32.totalorder %v6207, 2
        %vm6228 = vcmp.lt.s32.totalorder %v6207, 3
        %vm6229 = vcmp.lt.s32.totalorder %v6207, 4
        %v6230 = vsel %vm6226, %v6210, %v6213
        %v6231 = vsel %vm6229, %v6219, 2102212464
        %v6232 = vsel %vm6228, %v6216, %v6231
        %v6233 = vsel %vm6227, %v6230, %v6232
        %v6234 = vsel %vm6226, %v6213, %v6216
        %v6235 = vsel %vm6229, %v6222, 920167782
        %v6236 = vsel %vm6228, %v6219, %v6235
        %v6237 = vsel %vm6227, %v6234, %v6236
        %v6238 = vsel %vm6226, %v6216, %v6219
        %v6239 = vsel %vm6229, %v6225, 1326507024
        %v6240 = vsel %vm6228, %v6222, %v6239
        %v6241 = vsel %vm6227, %v6238, %v6240
        %v6242 = vshll.u32 %v6202, 8
        %v6243 = vmul.u32.u64.compose %v6242, %v6241
        %v6244 = vextract.low.u32 %v6243
        %v6245 = vextract.high.u32 %v6243
        %v6246 = vmul.u32.u64.compose %v6242, %v6237
        %v6247 = vextract.low.u32 %v6246
        %v6248 = vextract.high.u32 %v6246
        %v6249 = vmul.u32 %v6242, %v6233
        %v6250 = vadd.s32 %v6245, %v6247
        %vm6251 = vc.u32 %v6245, %v6247
        %v6252 = vadd.s32 %v6248, 1
        %v6253 = vsel %vm6251, %v6252, %v6248
        %v6254 = vadd.s32 %v6249, %v6253
        %v6255 = vadd.s32 %v6254, 536870912
        %v6256 = vshrl.u32 %v6255, 30
        %v6257 = vshll.u32 %v6256, 30
        %v6258 = vsub.s32 %v6254, %v6257
        %vm6259 = vcmp.lt.s32.totalorder %v6258, 0
        %v6260 = vsub.s32 0, %v6258
        %v6261 = vsel %vm6259, %v6260, %v6258
        %v6262 = vclz %v6261
        %v6263 = vsub.s32 %v6262, 2
        %vm6264 = vcmp.gt.s32.totalorder 0, %v6263
        %v6265 = vsel %vm6264, 0, %v6263
        %v6266 = vsub.s32 32, %v6265
        %v6267 = vshll.u32 %v6258, %v6265
        %v6268 = vshrl.u32 %v6250, %v6266
        %v6269 = vor.u32 %v6267, %v6268
        %v6270 = vsub.s32 4294967266, %v6265
        %v6271 = vadd.s32 %v6270, 127
        %v6272 = vshll.u32 %v6271, 23
        %v6273 = vor.u32 4788187, %v6272
        %v6274 = vand.u32 2147483647, %v6273
        %v6276 = vcvt.s32.f32 %v6269
        %v6277 = vmul.f32 %v6276, %v6274
        %v6278 = vxor.u32 %v6277, 2147483648
        %v6279 = vsel %vm6196, %v6278, %v6277
        %v6280 = vsub.s32 4, %v6256
        %v6281 = vsel %vm6196, %v6280, %v6256
        %v6282 = vsel %vm6195, %v4821, %v6279
        %v6283 = vsel %vm6195, 0, %v6281
        %v6284 = vcosq.f32.pop %v6282
        %v6285 = vsinq.f32.pop %v6282
        %vm6286 = vweird.f32 %v4821
        %v6287 = vadd.s32 %v6283, 3
        %v6288 = vand.u32 %v6287, 3
        %vm6289 = vcmp.lt.s32.totalorder %v6288, 2
        %vm6290 = vcmp.eq.s32.totalorder %v6288, 0
        %v6291 = vxor.u32 %v6285, 2147483648
        %v6292 = vsel %vm6290, %v6284, %v6291
        %vm6293 = vcmp.eq.s32.totalorder %v6288, 2
        %v6294 = vxor.u32 %v6284, 2147483648
        %v6295 = vsel %vm6293, %v6294, %v6285
        %v6296 = vsel %vm6289, %v6292, %v6295
        %v6297 = vsel %vm6286, nan, %v6296
        %v6298 = vand.u32 2147483647, %v4822
        %vm6299 = vcmp.le.f32.partialorder %v6298, 0.7853982
        %vm6300 = vcmp.lt.s32.totalorder %v4822, 0
        %v6301 = vand.u32 %v4822, 2139095040
        %v6302 = vshrl.u32 %v6301, 23
        %v6303 = vsub.s32 %v6302, 127
        %v6304 = vand.u32 2147483647, %v4822
        %v6305 = vand.u32 %v6304, 8388607
        %v6306 = vor.u32 %v6305, 8388608
        %v6307 = vsub.s32 0, %v6306
        %v6308 = vadd.s32 %v6303, 1
        %vm6309 = vcmp.gt.s32.totalorder %v6308, 0
        %v6310 = vsel %vm6309, %v6308, 0
        %v6311 = vshrl.u32 %v6310, 5
        %v6312 = vand.u32 %v6310, 31
        %v6313 = vsub.s32 32, %v6312
        %v6314 = vshrl.u32 683565275, %v6313
        %v6315 = vshll.u32 683565275, %v6312
        %v6316 = vshrl.u32 2475754826, %v6313
        %v6317 = vor.u32 %v6315, %v6316
        %v6318 = vshll.u32 2475754826, %v6312
        %v6319 = vshrl.u32 2131351028, %v6313
        %v6320 = vor.u32 %v6318, %v6319
        %v6321 = vshll.u32 2131351028, %v6312
        %v6322 = vshrl.u32 2102212464, %v6313
        %v6323 = vor.u32 %v6321, %v6322
        %v6324 = vshll.u32 2102212464, %v6312
        %v6325 = vshrl.u32 920167782, %v6313
        %v6326 = vor.u32 %v6324, %v6325
        %v6327 = vshll.u32 920167782, %v6312
        %v6328 = vshrl.u32 1326507024, %v6313
        %v6329 = vor.u32 %v6327, %v6328
        %vm6330 = vcmp.lt.s32.totalorder %v6311, 1
        %vm6331 = vcmp.lt.s32.totalorder %v6311, 2
        %vm6332 = vcmp.lt.s32.totalorder %v6311, 3
        %vm6333 = vcmp.lt.s32.totalorder %v6311, 4
        %v6334 = vsel %vm6330, %v6314, %v6317
        %v6335 = vsel %vm6333, %v6323, 2102212464
        %v6336 = vsel %vm6332, %v6320, %v6335
        %v6337 = vsel %vm6331, %v6334, %v6336
        %v6338 = vsel %vm6330, %v6317, %v6320
        %v6339 = vsel %vm6333, %v6326, 920167782
        %v6340 = vsel %vm6332, %v6323, %v6339
        %v6341 = vsel %vm6331, %v6338, %v6340
        %v6342 = vsel %vm6330, %v6320, %v6323
        %v6343 = vsel %vm6333, %v6329, 1326507024
        %v6344 = vsel %vm6332, %v6326, %v6343
        %v6345 = vsel %vm6331, %v6342, %v6344
        %v6346 = vshll.u32 %v6306, 8
        %v6347 = vmul.u32.u64.compose %v6346, %v6345
        %v6348 = vextract.low.u32 %v6347
        %v6349 = vextract.high.u32 %v6347
        %v6350 = vmul.u32.u64.compose %v6346, %v6341
        %v6351 = vextract.low.u32 %v6350
        %v6352 = vextract.high.u32 %v6350
        %v6353 = vmul.u32 %v6346, %v6337
        %v6354 = vadd.s32 %v6349, %v6351
        %vm6355 = vc.u32 %v6349, %v6351
        %v6356 = vadd.s32 %v6352, 1
        %v6357 = vsel %vm6355, %v6356, %v6352
        %v6358 = vadd.s32 %v6353, %v6357
        %v6359 = vadd.s32 %v6358, 536870912
        %v6360 = vshrl.u32 %v6359, 30
        %v6361 = vshll.u32 %v6360, 30
        %v6362 = vsub.s32 %v6358, %v6361
        %vm6363 = vcmp.lt.s32.totalorder %v6362, 0
        %v6364 = vsub.s32 0, %v6362
        %v6365 = vsel %vm6363, %v6364, %v6362
        %v6366 = vclz %v6365
        %v6367 = vsub.s32 %v6366, 2
        %vm6368 = vcmp.gt.s32.totalorder 0, %v6367
        %v6369 = vsel %vm6368, 0, %v6367
        %v6370 = vsub.s32 32, %v6369
        %v6371 = vshll.u32 %v6362, %v6369
        %v6372 = vshrl.u32 %v6354, %v6370
        %v6373 = vor.u32 %v6371, %v6372
        %v6374 = vsub.s32 4294967266, %v6369
        %v6375 = vadd.s32 %v6374, 127
        %v6376 = vshll.u32 %v6375, 23
        %v6377 = vor.u32 4788187, %v6376
        %v6378 = vand.u32 2147483647, %v6377
        %v6380 = vcvt.s32.f32 %v6373
        %v6381 = vmul.f32 %v6380, %v6378
        %v6382 = vxor.u32 %v6381, 2147483648
        %v6383 = vsel %vm6300, %v6382, %v6381
        %v6384 = vsub.s32 4, %v6360
        %v6385 = vsel %vm6300, %v6384, %v6360
        %v6386 = vsel %vm6299, %v4822, %v6383
        %v6387 = vsel %vm6299, 0, %v6385
        %v6388 = vcosq.f32.pop %v6386
        %v6389 = vsinq.f32.pop %v6386
        %vm6390 = vweird.f32 %v4822
        %v6391 = vadd.s32 %v6387, 3
        %v6392 = vand.u32 %v6391, 3
        %vm6393 = vcmp.lt.s32.totalorder %v6392, 2
        %vm6394 = vcmp.eq.s32.totalorder %v6392, 0
        %v6395 = vxor.u32 %v6389, 2147483648
        %v6396 = vsel %vm6394, %v6388, %v6395
        %vm6397 = vcmp.eq.s32.totalorder %v6392, 2
        %v6398 = vxor.u32 %v6388, 2147483648
        %v6399 = vsel %vm6397, %v6398, %v6389
        %v6400 = vsel %vm6393, %v6396, %v6399
        %v6401 = vsel %vm6390, nan, %v6400
        %v6402 = vand.u32 2147483647, %v4823
        %vm6403 = vcmp.le.f32.partialorder %v6402, 0.7853982
        %vm6404 = vcmp.lt.s32.totalorder %v4823, 0
        %v6405 = vand.u32 %v4823, 2139095040
        %v6406 = vshrl.u32 %v6405, 23
        %v6407 = vsub.s32 %v6406, 127
        %v6408 = vand.u32 2147483647, %v4823
        %v6409 = vand.u32 %v6408, 8388607
        %v6410 = vor.u32 %v6409, 8388608
        %v6411 = vsub.s32 0, %v6410
        %v6412 = vadd.s32 %v6407, 1
        %vm6413 = vcmp.gt.s32.totalorder %v6412, 0
        %v6414 = vsel %vm6413, %v6412, 0
        %v6415 = vshrl.u32 %v6414, 5
        %v6416 = vand.u32 %v6414, 31
        %v6417 = vsub.s32 32, %v6416
        %v6418 = vshrl.u32 683565275, %v6417
        %v6419 = vshll.u32 683565275, %v6416
        %v6420 = vshrl.u32 2475754826, %v6417
        %v6421 = vor.u32 %v6419, %v6420
        %v6422 = vshll.u32 2475754826, %v6416
        %v6423 = vshrl.u32 2131351028, %v6417
        %v6424 = vor.u32 %v6422, %v6423
        %v6425 = vshll.u32 2131351028, %v6416
        %v6426 = vshrl.u32 2102212464, %v6417
        %v6427 = vor.u32 %v6425, %v6426
        %v6428 = vshll.u32 2102212464, %v6416
        %v6429 = vshrl.u32 920167782, %v6417
        %v6430 = vor.u32 %v6428, %v6429
        %v6431 = vshll.u32 920167782, %v6416
        %v6432 = vshrl.u32 1326507024, %v6417
        %v6433 = vor.u32 %v6431, %v6432
        %vm6434 = vcmp.lt.s32.totalorder %v6415, 1
        %vm6435 = vcmp.lt.s32.totalorder %v6415, 2
        %vm6436 = vcmp.lt.s32.totalorder %v6415, 3
        %vm6437 = vcmp.lt.s32.totalorder %v6415, 4
        %v6438 = vsel %vm6434, %v6418, %v6421
        %v6439 = vsel %vm6437, %v6427, 2102212464
        %v6440 = vsel %vm6436, %v6424, %v6439
        %v6441 = vsel %vm6435, %v6438, %v6440
        %v6442 = vsel %vm6434, %v6421, %v6424
        %v6443 = vsel %vm6437, %v6430, 920167782
        %v6444 = vsel %vm6436, %v6427, %v6443
        %v6445 = vsel %vm6435, %v6442, %v6444
        %v6446 = vsel %vm6434, %v6424, %v6427
        %v6447 = vsel %vm6437, %v6433, 1326507024
        %v6448 = vsel %vm6436, %v6430, %v6447
        %v6449 = vsel %vm6435, %v6446, %v6448
        %v6450 = vshll.u32 %v6410, 8
        %v6451 = vmul.u32.u64.compose %v6450, %v6449
        %v6452 = vextract.low.u32 %v6451
        %v6453 = vextract.high.u32 %v6451
        %v6454 = vmul.u32.u64.compose %v6450, %v6445
        %v6455 = vextract.low.u32 %v6454
        %v6456 = vextract.high.u32 %v6454
        %v6457 = vmul.u32 %v6450, %v6441
        %v6458 = vadd.s32 %v6453, %v6455
        %vm6459 = vc.u32 %v6453, %v6455
        %v6460 = vadd.s32 %v6456, 1
        %v6461 = vsel %vm6459, %v6460, %v6456
        %v6462 = vadd.s32 %v6457, %v6461
        %v6463 = vadd.s32 %v6462, 536870912
        %v6464 = vshrl.u32 %v6463, 30
        %v6465 = vshll.u32 %v6464, 30
        %v6466 = vsub.s32 %v6462, %v6465
        %vm6467 = vcmp.lt.s32.totalorder %v6466, 0
        %v6468 = vsub.s32 0, %v6466
        %v6469 = vsel %vm6467, %v6468, %v6466
        %v6470 = vclz %v6469
        %v6471 = vsub.s32 %v6470, 2
        %vm6472 = vcmp.gt.s32.totalorder 0, %v6471
        %v6473 = vsel %vm6472, 0, %v6471
        %v6474 = vsub.s32 32, %v6473
        %v6475 = vshll.u32 %v6466, %v6473
        %v6476 = vshrl.u32 %v6458, %v6474
        %v6477 = vor.u32 %v6475, %v6476
        %v6478 = vsub.s32 4294967266, %v6473
        %v6479 = vadd.s32 %v6478, 127
        %v6480 = vshll.u32 %v6479, 23
        %v6481 = vor.u32 4788187, %v6480
        %v6482 = vand.u32 2147483647, %v6481
        %v6484 = vcvt.s32.f32 %v6477
        %v6485 = vmul.f32 %v6484, %v6482
        %v6486 = vxor.u32 %v6485, 2147483648
        %v6487 = vsel %vm6404, %v6486, %v6485
        %v6488 = vsub.s32 4, %v6464
        %v6489 = vsel %vm6404, %v6488, %v6464
        %v6490 = vsel %vm6403, %v4823, %v6487
        %v6491 = vsel %vm6403, 0, %v6489
        %v6492 = vcosq.f32.pop %v6490
        %v6493 = vsinq.f32.pop %v6490
        %vm6494 = vweird.f32 %v4823
        %v6495 = vadd.s32 %v6491, 3
        %v6496 = vand.u32 %v6495, 3
        %vm6497 = vcmp.lt.s32.totalorder %v6496, 2
        %vm6498 = vcmp.eq.s32.totalorder %v6496, 0
        %v6499 = vxor.u32 %v6493, 2147483648
        %v6500 = vsel %vm6498, %v6492, %v6499
        %vm6501 = vcmp.eq.s32.totalorder %v6496, 2
        %v6502 = vxor.u32 %v6492, 2147483648
        %v6503 = vsel %vm6501, %v6502, %v6493
        %v6504 = vsel %vm6497, %v6500, %v6503
        %v6505 = vsel %vm6494, nan, %v6504
        %v6506 = vand.u32 2147483647, %v4824
        %vm6507 = vcmp.le.f32.partialorder %v6506, 0.7853982
        %vm6508 = vcmp.lt.s32.totalorder %v4824, 0
        %v6509 = vand.u32 %v4824, 2139095040
        %v6510 = vshrl.u32 %v6509, 23
        %v6511 = vsub.s32 %v6510, 127
        %v6512 = vand.u32 2147483647, %v4824
        %v6513 = vand.u32 %v6512, 8388607
        %v6514 = vor.u32 %v6513, 8388608
        %v6515 = vsub.s32 0, %v6514
        %v6516 = vadd.s32 %v6511, 1
        %vm6517 = vcmp.gt.s32.totalorder %v6516, 0
        %v6518 = vsel %vm6517, %v6516, 0
        %v6519 = vshrl.u32 %v6518, 5
        %v6520 = vand.u32 %v6518, 31
        %v6521 = vsub.s32 32, %v6520
        %v6522 = vshrl.u32 683565275, %v6521
        %v6523 = vshll.u32 683565275, %v6520
        %v6524 = vshrl.u32 2475754826, %v6521
        %v6525 = vor.u32 %v6523, %v6524
        %v6526 = vshll.u32 2475754826, %v6520
        %v6527 = vshrl.u32 2131351028, %v6521
        %v6528 = vor.u32 %v6526, %v6527
        %v6529 = vshll.u32 2131351028, %v6520
        %v6530 = vshrl.u32 2102212464, %v6521
        %v6531 = vor.u32 %v6529, %v6530
        %v6532 = vshll.u32 2102212464, %v6520
        %v6533 = vshrl.u32 920167782, %v6521
        %v6534 = vor.u32 %v6532, %v6533
        %v6535 = vshll.u32 920167782, %v6520
        %v6536 = vshrl.u32 1326507024, %v6521
        %v6537 = vor.u32 %v6535, %v6536
        %vm6538 = vcmp.lt.s32.totalorder %v6519, 1
        %vm6539 = vcmp.lt.s32.totalorder %v6519, 2
        %vm6540 = vcmp.lt.s32.totalorder %v6519, 3
        %vm6541 = vcmp.lt.s32.totalorder %v6519, 4
        %v6542 = vsel %vm6538, %v6522, %v6525
        %v6543 = vsel %vm6541, %v6531, 2102212464
        %v6544 = vsel %vm6540, %v6528, %v6543
        %v6545 = vsel %vm6539, %v6542, %v6544
        %v6546 = vsel %vm6538, %v6525, %v6528
        %v6547 = vsel %vm6541, %v6534, 920167782
        %v6548 = vsel %vm6540, %v6531, %v6547
        %v6549 = vsel %vm6539, %v6546, %v6548
        %v6550 = vsel %vm6538, %v6528, %v6531
        %v6551 = vsel %vm6541, %v6537, 1326507024
        %v6552 = vsel %vm6540, %v6534, %v6551
        %v6553 = vsel %vm6539, %v6550, %v6552
        %v6554 = vshll.u32 %v6514, 8
        %v6555 = vmul.u32.u64.compose %v6554, %v6553
        %v6556 = vextract.low.u32 %v6555
        %v6557 = vextract.high.u32 %v6555
        %v6558 = vmul.u32.u64.compose %v6554, %v6549
        %v6559 = vextract.low.u32 %v6558
        %v6560 = vextract.high.u32 %v6558
        %v6561 = vmul.u32 %v6554, %v6545
        %v6562 = vadd.s32 %v6557, %v6559
        %vm6563 = vc.u32 %v6557, %v6559
        %v6564 = vadd.s32 %v6560, 1
        %v6565 = vsel %vm6563, %v6564, %v6560
        %v6566 = vadd.s32 %v6561, %v6565
        %v6567 = vadd.s32 %v6566, 536870912
        %v6568 = vshrl.u32 %v6567, 30
        %v6569 = vshll.u32 %v6568, 30
        %v6570 = vsub.s32 %v6566, %v6569
        %vm6571 = vcmp.lt.s32.totalorder %v6570, 0
        %v6572 = vsub.s32 0, %v6570
        %v6573 = vsel %vm6571, %v6572, %v6570
        %v6574 = vclz %v6573
        %v6575 = vsub.s32 %v6574, 2
        %vm6576 = vcmp.gt.s32.totalorder 0, %v6575
        %v6577 = vsel %vm6576, 0, %v6575
        %v6578 = vsub.s32 32, %v6577
        %v6579 = vshll.u32 %v6570, %v6577
        %v6580 = vshrl.u32 %v6562, %v6578
        %v6581 = vor.u32 %v6579, %v6580
        %v6582 = vsub.s32 4294967266, %v6577
        %v6583 = vadd.s32 %v6582, 127
        %v6584 = vshll.u32 %v6583, 23
        %v6585 = vor.u32 4788187, %v6584
        %v6586 = vand.u32 2147483647, %v6585
        %v6588 = vcvt.s32.f32 %v6581
        %v6589 = vmul.f32 %v6588, %v6586
        %v6590 = vxor.u32 %v6589, 2147483648
        %v6591 = vsel %vm6508, %v6590, %v6589
        %v6592 = vsub.s32 4, %v6568
        %v6593 = vsel %vm6508, %v6592, %v6568
        %v6594 = vsel %vm6507, %v4824, %v6591
        %v6595 = vsel %vm6507, 0, %v6593
        %v6596 = vcosq.f32.pop %v6594
        %v6597 = vsinq.f32.pop %v6594
        %vm6598 = vweird.f32 %v4824
        %v6599 = vadd.s32 %v6595, 3
        %v6600 = vand.u32 %v6599, 3
        %vm6601 = vcmp.lt.s32.totalorder %v6600, 2
        %vm6602 = vcmp.eq.s32.totalorder %v6600, 0
        %v6603 = vxor.u32 %v6597, 2147483648
        %v6604 = vsel %vm6602, %v6596, %v6603
        %vm6605 = vcmp.eq.s32.totalorder %v6600, 2
        %v6606 = vxor.u32 %v6596, 2147483648
        %v6607 = vsel %vm6605, %v6606, %v6597
        %v6608 = vsel %vm6601, %v6604, %v6607
        %v6609 = vsel %vm6598, nan, %v6608
        %v6611 = vsel %vm1964, %v5881, 0
        %v6614 = vsel %vm1964, %v5985, 0
        %v6617 = vsel %vm1964, %v6089, 0
        %v6620 = vsel %vm1964, %v6193, 0
        %v6623 = vsel %vm1964, %v6297, 0
        %v6626 = vsel %vm1964, %v6401, 0
        %v6629 = vsel %vm1964, %v6505, 0
        %v6632 = vsel %vm1964, %v6609, 0
        %6634 = vmatprep.subr.mxu0 0.0
        %6635 = vmatpush1.msra.mxu0 %v687
        %6636 = vmatprep.subr.mxu0 0.0
        %6637 = vmatpush1.msra.mxu0 %v688
        %6638 = vmatprep.subr.mxu0 0.0
        %6639 = vmatpush1.msra.mxu0 0.0
        %6640 = vmatprep.subr.mxu0 0.0
        %6641 = vmatpush1.msra.mxu0 0.0
        %6642 = vmatprep.subr.mxu0 0.0
        %6643 = vmatpush1.msra.mxu0 0.0
        %6644 = vmatprep.subr.mxu0 0.0
        %6645 = vmatpush1.msra.mxu0 0.0
        %6646 = vmatprep.subr.mxu0 0.0
        %6647 = vmatpush1.msra.mxu0 0.0
        %6648 = vmatprep.subr.mxu0 0.0
        %6649 = vmatpush1.msra.mxu0 0.0
        %6650 = vmatprep.subr.mxu0 0.0
        %6651 = vmatpush1.msra.mxu0 0.0
        %6652 = vmatprep.subr.mxu0 0.0
        %6653 = vmatpush1.msra.mxu0 0.0
        %6654 = vmatprep.subr.mxu0 0.0
        %6655 = vmatpush1.msra.mxu0 0.0
        %6656 = vmatprep.subr.mxu0 0.0
        %6657 = vmatpush1.msra.mxu0 0.0
        %6658 = vmatprep.subr.mxu0 0.0
        %6659 = vmatpush1.msra.mxu0 0.0
        %6660 = vmatprep.subr.mxu0 0.0
        %6661 = vmatpush1.msra.mxu0 0.0
        %6662 = vmatprep.subr.mxu0 0.0
        %6663 = vmatpush1.msra.mxu0 0.0
        %6664 = vmatprep.subr.mxu0 0.0
        %6665 = vmatpush1.msra.mxu0 0.0
        %6666 = vmatprep.subr.mxu0 0.0
        %6667 = vmatpush1.msra.mxu0 0.0
        %6668 = vmatprep.subr.mxu0 0.0
        %6669 = vmatpush1.msra.mxu0 0.0
        %6670 = vmatprep.subr.mxu0 0.0
        %6671 = vmatpush1.msra.mxu0 0.0
        %6672 = vmatprep.subr.mxu0 0.0
        %6673 = vmatpush1.msra.mxu0 0.0
        %6674 = vmatprep.subr.mxu0 0.0
        %6675 = vmatpush1.msra.mxu0 0.0
        %6676 = vmatprep.subr.mxu0 0.0
        %6677 = vmatpush1.msra.mxu0 0.0
        %6678 = vmatprep.subr.mxu0 0.0
        %6679 = vmatpush1.msra.mxu0 0.0
        %6680 = vmatprep.subr.mxu0 0.0
        %6681 = vmatpush1.msra.mxu0 0.0
        %6682 = vmatprep.subr.mxu0 0.0
        %6683 = vmatpush1.msra.mxu0 0.0
        %6684 = vmatprep.subr.mxu0 0.0
        %6685 = vmatpush1.msra.mxu0 0.0
        %6686 = vmatprep.subr.mxu0 0.0
        %6687 = vmatpush1.msra.mxu0 0.0
        %6688 = vmatprep.subr.mxu0 0.0
        %6689 = vmatpush1.msra.mxu0 0.0
        %6690 = vmatprep.subr.mxu0 0.0
        %6691 = vmatpush1.msra.mxu0 0.0
        %6692 = vmatprep.subr.mxu0 0.0
        %6693 = vmatpush1.msra.mxu0 0.0
        %6694 = vmatprep.subr.mxu0 0.0
        %6695 = vmatpush1.msra.mxu0 0.0
        %6696 = vmatprep.subr.mxu0 0.0
        %6697 = vmatpush1.msra.mxu0 0.0
        %6698 = vmatprep.mubr.f32.mxu0 0.0
        %6699 = vmatmul.mubr.f32.gmra.mrb[0].mxu0 %v6611
        %v6700 = vpop.f32.mrb[0].mxu0
        %v6701 = vadd.f32 0.0, %v6700
        %v6702 = vpop.f32.mrb[0].mxu0
        %6703 = vmatprep.mubr.f32.mxu0 0.0
        %6704 = vmatmul.mubr.f32.gmra.mrb[0].mxu0 %v6614
        %v6705 = vpop.f32.mrb[0].mxu0
        %v6706 = vadd.f32 0.0, %v6705
        %v6707 = vpop.f32.mrb[0].mxu0
        %6708 = vmatprep.mubr.f32.mxu0 0.0
        %6709 = vmatmul.mubr.f32.gmra.mrb[0].mxu0 %v6617
        %v6710 = vpop.f32.mrb[0].mxu0
        %v6711 = vadd.f32 0.0, %v6710
        %v6712 = vpop.f32.mrb[0].mxu0
        %6713 = vmatprep.mubr.f32.mxu0 0.0
        %6714 = vmatmul.mubr.f32.gmra.mrb[0].mxu0 %v6620
        %v6715 = vpop.f32.mrb[0].mxu0
        %v6716 = vadd.f32 0.0, %v6715
        %v6717 = vpop.f32.mrb[0].mxu0
        %6718 = vmatprep.mubr.f32.mxu0 0.0
        %6719 = vmatmul.mubr.f32.gmra.mrb[0].mxu0 %v6623
        %v6720 = vpop.f32.mrb[0].mxu0
        %v6721 = vadd.f32 0.0, %v6720
        %v6722 = vpop.f32.mrb[0].mxu0
        %6723 = vmatprep.mubr.f32.mxu0 0.0
        %6724 = vmatmul.mubr.f32.gmra.mrb[0].mxu0 %v6626
        %v6725 = vpop.f32.mrb[0].mxu0
        %v6726 = vadd.f32 0.0, %v6725
        %v6727 = vpop.f32.mrb[0].mxu0
        %6728 = vmatprep.mubr.f32.mxu0 0.0
        %6729 = vmatmul.mubr.f32.gmra.mrb[0].mxu0 %v6629
        %v6730 = vpop.f32.mrb[0].mxu0
        %v6731 = vadd.f32 0.0, %v6730
        %v6732 = vpop.f32.mrb[0].mxu0
        %6733 = vmatprep.mubr.f32.mxu0 0.0
        %6734 = vmatmul.mubr.f32.gmra.mrb[0].mxu0 %v6632
        %v6735 = vpop.f32.mrb[0].mxu0
        %v6736 = vadd.f32 0.0, %v6735
        %v6737 = vpop.f32.mrb[0].mxu0
        %6738 = vdwg.mxu0
        %v6740 = vcombine.high %v4519, %v4519
        %v6742 = vunpack.c.l.s4 1966171168
        %v6743 = vunpack.c.0.s8 %v6742
        %v6744 = vlaneseq
        %v6745 = vshrl.u32 %v6744, 7
        %v6746 = vsub.s32 %v6743, %v6745
        %v6747 = vrot.slane %v4519, %v6746
        %v6749 = vunpack.c.l.s4 1966171168
        %v6750 = vunpack.c.0.s8 %v6749
        %v6751 = vlaneseq
        %v6752 = vshrl.u32 %v6751, 7
        %v6753 = vsub.s32 %v6750, %v6752
        %v6754 = vrot.slane %v6740, %v6753
        %v6755 = vcombine.high %v6747, %v6747
        %v6756 = vcombine.high %v6754, %v6754
        %v6758 = vunpack.c.l.s4 1966171168
        %v6759 = vunpack.c.0.s8 %v6758
        %v6760 = vlaneseq
        %v6761 = vshrl.u32 %v6760, 7
        %v6762 = vsub.s32 %v6759, %v6761
        %v6763 = vrot.slane %v6747, %v6762
        %v6765 = vunpack.c.l.s4 1966171168
        %v6766 = vunpack.c.0.s8 %v6765
        %v6767 = vlaneseq
        %v6768 = vshrl.u32 %v6767, 7
        %v6769 = vsub.s32 %v6766, %v6768
        %v6770 = vrot.slane %v6754, %v6769
        %v6772 = vunpack.c.l.s4 1966171168
        %v6773 = vunpack.c.0.s8 %v6772
        %v6774 = vlaneseq
        %v6775 = vshrl.u32 %v6774, 7
        %v6776 = vsub.s32 %v6773, %v6775
        %v6777 = vrot.slane %v6755, %v6776
        %v6779 = vunpack.c.l.s4 1966171168
        %v6780 = vunpack.c.0.s8 %v6779
        %v6781 = vlaneseq
        %v6782 = vshrl.u32 %v6781, 7
        %v6783 = vsub.s32 %v6780, %v6782
        %v6784 = vrot.slane %v6756, %v6783
        %v6785 = vcombine.high %v6763, %v6763
        %v6786 = vcombine.high %v6770, %v6770
        %v6787 = vcombine.high %v6777, %v6777
        %v6788 = vcombine.high %v6784, %v6784
        %v6789 = vlaneseq
        %v6790 = vshrl.u32 %v6789, 7
        %v6791 = vsub.s32 0, %v6790
        %v6792 = vrot.slane %v6763, %v6791
        %v6793 = vlaneseq
        %v6794 = vshrl.u32 %v6793, 7
        %v6795 = vsub.s32 0, %v6794
        %v6796 = vrot.slane %v6777, %v6795
        %v6797 = vlaneseq
        %v6798 = vshrl.u32 %v6797, 7
        %v6799 = vsub.s32 0, %v6798
        %v6800 = vrot.slane %v6785, %v6799
        %v6801 = vlaneseq
        %v6802 = vshrl.u32 %v6801, 7
        %v6803 = vsub.s32 0, %v6802
        %v6804 = vrot.slane %v6787, %v6803
        %v6805 = vlaneseq
        %v6806 = vshrl.u32 %v6805, 7
        %v6807 = vsub.s32 0, %v6806
        %v6808 = vrot.slane %v6770, %v6807
        %v6809 = vlaneseq
        %v6810 = vshrl.u32 %v6809, 7
        %v6811 = vsub.s32 0, %v6810
        %v6812 = vrot.slane %v6784, %v6811
        %v6813 = vlaneseq
        %v6814 = vshrl.u32 %v6813, 7
        %v6815 = vsub.s32 0, %v6814
        %v6816 = vrot.slane %v6786, %v6815
        %v6817 = vlaneseq
        %v6818 = vshrl.u32 %v6817, 7
        %v6819 = vsub.s32 0, %v6818
        %v6820 = vrot.slane %v6788, %v6819
        %v6829 = vmul.f32 %v6792, %v5740
        %v6830 = vmul.f32 %v6796, %v5745
        %v6831 = vmul.f32 %v6800, %v5750
        %v6832 = vmul.f32 %v6804, %v5755
        %v6833 = vmul.f32 %v6808, %v5760
        %v6834 = vmul.f32 %v6812, %v5765
        %v6835 = vmul.f32 %v6816, %v5770
        %v6836 = vmul.f32 %v6820, %v5775
        %v6838 = vcombine.high %v4660, %v4660
        %v6840 = vunpack.c.l.s4 1966171168
        %v6841 = vunpack.c.0.s8 %v6840
        %v6842 = vlaneseq
        %v6843 = vshrl.u32 %v6842, 7
        %v6844 = vsub.s32 %v6841, %v6843
        %v6845 = vrot.slane %v4660, %v6844
        %v6847 = vunpack.c.l.s4 1966171168
        %v6848 = vunpack.c.0.s8 %v6847
        %v6849 = vlaneseq
        %v6850 = vshrl.u32 %v6849, 7
        %v6851 = vsub.s32 %v6848, %v6850
        %v6852 = vrot.slane %v6838, %v6851
        %v6853 = vcombine.high %v6845, %v6845
        %v6854 = vcombine.high %v6852, %v6852
        %v6856 = vunpack.c.l.s4 1966171168
        %v6857 = vunpack.c.0.s8 %v6856
        %v6858 = vlaneseq
        %v6859 = vshrl.u32 %v6858, 7
        %v6860 = vsub.s32 %v6857, %v6859
        %v6861 = vrot.slane %v6845, %v6860
        %v6863 = vunpack.c.l.s4 1966171168
        %v6864 = vunpack.c.0.s8 %v6863
        %v6865 = vlaneseq
        %v6866 = vshrl.u32 %v6865, 7
        %v6867 = vsub.s32 %v6864, %v6866
        %v6868 = vrot.slane %v6852, %v6867
        %v6870 = vunpack.c.l.s4 1966171168
        %v6871 = vunpack.c.0.s8 %v6870
        %v6872 = vlaneseq
        %v6873 = vshrl.u32 %v6872, 7
        %v6874 = vsub.s32 %v6871, %v6873
        %v6875 = vrot.slane %v6853, %v6874
        %v6877 = vunpack.c.l.s4 1966171168
        %v6878 = vunpack.c.0.s8 %v6877
        %v6879 = vlaneseq
        %v6880 = vshrl.u32 %v6879, 7
        %v6881 = vsub.s32 %v6878, %v6880
        %v6882 = vrot.slane %v6854, %v6881
        %v6883 = vcombine.high %v6861, %v6861
        %v6884 = vcombine.high %v6868, %v6868
        %v6885 = vcombine.high %v6875, %v6875
        %v6886 = vcombine.high %v6882, %v6882
        %v6887 = vlaneseq
        %v6888 = vshrl.u32 %v6887, 7
        %v6889 = vsub.s32 0, %v6888
        %v6890 = vrot.slane %v6861, %v6889
        %v6891 = vlaneseq
        %v6892 = vshrl.u32 %v6891, 7
        %v6893 = vsub.s32 0, %v6892
        %v6894 = vrot.slane %v6875, %v6893
        %v6895 = vlaneseq
        %v6896 = vshrl.u32 %v6895, 7
        %v6897 = vsub.s32 0, %v6896
        %v6898 = vrot.slane %v6883, %v6897
        %v6899 = vlaneseq
        %v6900 = vshrl.u32 %v6899, 7
        %v6901 = vsub.s32 0, %v6900
        %v6902 = vrot.slane %v6885, %v6901
        %v6903 = vlaneseq
        %v6904 = vshrl.u32 %v6903, 7
        %v6905 = vsub.s32 0, %v6904
        %v6906 = vrot.slane %v6868, %v6905
        %v6907 = vlaneseq
        %v6908 = vshrl.u32 %v6907, 7
        %v6909 = vsub.s32 0, %v6908
        %v6910 = vrot.slane %v6882, %v6909
        %v6911 = vlaneseq
        %v6912 = vshrl.u32 %v6911, 7
        %v6913 = vsub.s32 0, %v6912
        %v6914 = vrot.slane %v6884, %v6913
        %v6915 = vlaneseq
        %v6916 = vshrl.u32 %v6915, 7
        %v6917 = vsub.s32 0, %v6916
        %v6918 = vrot.slane %v6886, %v6917
        %v6927 = vmul.f32 %v6890, %v6701
        %v6928 = vmul.f32 %v6894, %v6706
        %v6929 = vmul.f32 %v6898, %v6711
        %v6930 = vmul.f32 %v6902, %v6716
        %v6931 = vmul.f32 %v6906, %v6721
        %v6932 = vmul.f32 %v6910, %v6726
        %v6933 = vmul.f32 %v6914, %v6731
        %v6934 = vmul.f32 %v6918, %v6736
        %v6935 = vadd.f32 %v6829, %v6927
        %v6936 = vadd.f32 %v6830, %v6928
        %v6937 = vadd.f32 %v6831, %v6929
        %v6938 = vadd.f32 %v6832, %v6930
        %v6939 = vadd.f32 %v6833, %v6931
        %v6940 = vadd.f32 %v6834, %v6932
        %v6941 = vadd.f32 %v6835, %v6933
        %v6942 = vadd.f32 %v6836, %v6934
        %v6943 = vmul.f32 %v6935, %v4521
        %v6944 = vmul.f32 %v6936, %v4521
        %v6945 = vmul.f32 %v6937, %v4521
        %v6946 = vmul.f32 %v6938, %v4521
        %v6947 = vmul.f32 %v6939, %v4521
        %v6948 = vmul.f32 %v6940, %v4521
        %v6949 = vmul.f32 %v6941, %v4521
        %v6950 = vmul.f32 %v6942, %v4521
        %6951 = vmatprep.subr.mxu0 0.0
        %6952 = vmatpush1.msra.mxu0 %v655
        %6953 = vmatprep.subr.mxu0 0.0
        %6954 = vmatpush1.msra.mxu0 %v656
        %6955 = vmatprep.subr.mxu0 0.0
        %6956 = vmatpush1.msra.mxu0 %v657
        %6957 = vmatprep.subr.mxu0 0.0
        %6958 = vmatpush1.msra.mxu0 %v658
        %6959 = vmatprep.subr.mxu0 0.0
        %6960 = vmatpush1.msra.mxu0 %v659
        %6961 = vmatprep.subr.mxu0 0.0
        %6962 = vmatpush1.msra.mxu0 %v660
        %6963 = vmatprep.subr.mxu0 0.0
        %6964 = vmatpush1.msra.mxu0 %v661
        %6965 = vmatprep.subr.mxu0 0.0
        %6966 = vmatpush1.msra.mxu0 %v662
        %6967 = vmatprep.subr.mxu0 0.0
        %6968 = vmatpush1.msra.mxu0 %v663
        %6969 = vmatprep.subr.mxu0 0.0
        %6970 = vmatpush1.msra.mxu0 %v664
        %6971 = vmatprep.subr.mxu0 0.0
        %6972 = vmatpush1.msra.mxu0 %v665
        %6973 = vmatprep.subr.mxu0 0.0
        %6974 = vmatpush1.msra.mxu0 %v666
        %6975 = vmatprep.subr.mxu0 0.0
        %6976 = vmatpush1.msra.mxu0 %v667
        %6977 = vmatprep.subr.mxu0 0.0
        %6978 = vmatpush1.msra.mxu0 %v668
        %6979 = vmatprep.subr.mxu0 0.0
        %6980 = vmatpush1.msra.mxu0 %v669
        %6981 = vmatprep.subr.mxu0 0.0
        %6982 = vmatpush1.msra.mxu0 %v670
        %6983 = vmatprep.subr.mxu0 0.0
        %6984 = vmatpush1.msra.mxu0 0.0
        %6985 = vmatprep.subr.mxu0 0.0
        %6986 = vmatpush1.msra.mxu0 0.0
        %6987 = vmatprep.subr.mxu0 0.0
        %6988 = vmatpush1.msra.mxu0 0.0
        %6989 = vmatprep.subr.mxu0 0.0
        %6990 = vmatpush1.msra.mxu0 0.0
        %6991 = vmatprep.subr.mxu0 0.0
        %6992 = vmatpush1.msra.mxu0 0.0
        %6993 = vmatprep.subr.mxu0 0.0
        %6994 = vmatpush1.msra.mxu0 0.0
        %6995 = vmatprep.subr.mxu0 0.0
        %6996 = vmatpush1.msra.mxu0 0.0
        %6997 = vmatprep.subr.mxu0 0.0
        %6998 = vmatpush1.msra.mxu0 0.0
        %6999 = vmatprep.subr.mxu0 0.0
        %7000 = vmatpush1.msra.mxu0 0.0
        %7001 = vmatprep.subr.mxu0 0.0
        %7002 = vmatpush1.msra.mxu0 0.0
        %7003 = vmatprep.subr.mxu0 0.0
        %7004 = vmatpush1.msra.mxu0 0.0
        %7005 = vmatprep.subr.mxu0 0.0
        %7006 = vmatpush1.msra.mxu0 0.0
        %7007 = vmatprep.subr.mxu0 0.0
        %7008 = vmatpush1.msra.mxu0 0.0
        %7009 = vmatprep.subr.mxu0 0.0
        %7010 = vmatpush1.msra.mxu0 0.0
        %7011 = vmatprep.subr.mxu0 0.0
        %7012 = vmatpush1.msra.mxu0 0.0
        %7013 = vmatprep.subr.mxu0 0.0
        %7014 = vmatpush1.msra.mxu0 0.0
        %7015 = vmatprep.mubr.f32.mxu0 0.0
        %7016 = vmatmul.mubr.f32.gmra.mrb[0].mxu0 %v6943
        %v7017 = vpop.f32.mrb[0].mxu0
        %v7018 = vadd.f32 0.0, %v7017
        %v7019 = vpop.f32.mrb[0].mxu0
        %7020 = vmatprep.mubr.f32.mxu0 0.0
        %7021 = vmatmul.mubr.f32.gmra.mrb[0].mxu0 %v6944
        %v7022 = vpop.f32.mrb[0].mxu0
        %v7023 = vadd.f32 0.0, %v7022
        %v7024 = vpop.f32.mrb[0].mxu0
        %7025 = vmatprep.mubr.f32.mxu0 0.0
        %7026 = vmatmul.mubr.f32.gmra.mrb[0].mxu0 %v6945
        %v7027 = vpop.f32.mrb[0].mxu0
        %v7028 = vadd.f32 0.0, %v7027
        %v7029 = vpop.f32.mrb[0].mxu0
        %7030 = vmatprep.mubr.f32.mxu0 0.0
        %7031 = vmatmul.mubr.f32.gmra.mrb[0].mxu0 %v6946
        %v7032 = vpop.f32.mrb[0].mxu0
        %v7033 = vadd.f32 0.0, %v7032
        %v7034 = vpop.f32.mrb[0].mxu0
        %7035 = vmatprep.mubr.f32.mxu0 0.0
        %7036 = vmatmul.mubr.f32.gmra.mrb[0].mxu0 %v6947
        %v7037 = vpop.f32.mrb[0].mxu0
        %v7038 = vadd.f32 0.0, %v7037
        %v7039 = vpop.f32.mrb[0].mxu0
        %7040 = vmatprep.mubr.f32.mxu0 0.0
        %7041 = vmatmul.mubr.f32.gmra.mrb[0].mxu0 %v6948
        %v7042 = vpop.f32.mrb[0].mxu0
        %v7043 = vadd.f32 0.0, %v7042
        %v7044 = vpop.f32.mrb[0].mxu0
        %7045 = vmatprep.mubr.f32.mxu0 0.0
        %7046 = vmatmul.mubr.f32.gmra.mrb[0].mxu0 %v6949
        %v7047 = vpop.f32.mrb[0].mxu0
        %v7048 = vadd.f32 0.0, %v7047
        %v7049 = vpop.f32.mrb[0].mxu0
        %7050 = vmatprep.mubr.f32.mxu0 0.0
        %7051 = vmatmul.mubr.f32.gmra.mrb[0].mxu0 %v6950
        %v7052 = vpop.f32.mrb[0].mxu0
        %v7053 = vadd.f32 0.0, %v7052
        %v7054 = vpop.f32.mrb[0].mxu0
        %7055 = vdwg.mxu0
        %v7056 = vrot.slane %v7018, 4
        %v7057 = vmax.f32 %v7018, %v7056
        %v7058 = vrot.slane %v7057, 2
        %v7059 = vmax.f32 %v7057, %v7058
        %v7060 = vrot.slane %v7059, 1
        %v7061 = vmax.f32 %v7059, %v7060
        %v7062 = vrot.slane %v7023, 4
        %v7063 = vmax.f32 %v7023, %v7062
        %v7064 = vrot.slane %v7063, 2
        %v7065 = vmax.f32 %v7063, %v7064
        %v7066 = vrot.slane %v7065, 1
        %v7067 = vmax.f32 %v7065, %v7066
        %v7068 = vrot.slane %v7028, 4
        %v7069 = vmax.f32 %v7028, %v7068
        %v7070 = vrot.slane %v7069, 2
        %v7071 = vmax.f32 %v7069, %v7070
        %v7072 = vrot.slane %v7071, 1
        %v7073 = vmax.f32 %v7071, %v7072
        %v7074 = vrot.slane %v7033, 4
        %v7075 = vmax.f32 %v7033, %v7074
        %v7076 = vrot.slane %v7075, 2
        %v7077 = vmax.f32 %v7075, %v7076
        %v7078 = vrot.slane %v7077, 1
        %v7079 = vmax.f32 %v7077, %v7078
        %v7080 = vrot.slane %v7038, 4
        %v7081 = vmax.f32 %v7038, %v7080
        %v7082 = vrot.slane %v7081, 2
        %v7083 = vmax.f32 %v7081, %v7082
        %v7084 = vrot.slane %v7083, 1
        %v7085 = vmax.f32 %v7083, %v7084
        %v7086 = vrot.slane %v7043, 4
        %v7087 = vmax.f32 %v7043, %v7086
        %v7088 = vrot.slane %v7087, 2
        %v7089 = vmax.f32 %v7087, %v7088
        %v7090 = vrot.slane %v7089, 1
        %v7091 = vmax.f32 %v7089, %v7090
        %v7092 = vrot.slane %v7048, 4
        %v7093 = vmax.f32 %v7048, %v7092
        %v7094 = vrot.slane %v7093, 2
        %v7095 = vmax.f32 %v7093, %v7094
        %v7096 = vrot.slane %v7095, 1
        %v7097 = vmax.f32 %v7095, %v7096
        %v7098 = vrot.slane %v7053, 4
        %v7099 = vmax.f32 %v7053, %v7098
        %v7100 = vrot.slane %v7099, 2
        %v7101 = vmax.f32 %v7099, %v7100
        %v7102 = vrot.slane %v7101, 1
        %v7103 = vmax.f32 %v7101, %v7102
        %v7104 = vsub.f32 %v7018, %v7061
        %v7105 = vsub.f32 %v7023, %v7067
        %v7106 = vsub.f32 %v7028, %v7073
        %v7107 = vsub.f32 %v7033, %v7079
        %v7108 = vsub.f32 %v7038, %v7085
        %v7109 = vsub.f32 %v7043, %v7091
        %v7110 = vsub.f32 %v7048, %v7097
        %v7111 = vsub.f32 %v7053, %v7103
        %v7112 = vmul.f32 %v7104, 1.442695
        %v7113 = vpow.pop %v7112
        %v7114 = vmul.f32 %v7105, 1.442695
        %v7115 = vpow.pop %v7114
        %v7116 = vmul.f32 %v7106, 1.442695
        %v7117 = vpow.pop %v7116
        %v7118 = vmul.f32 %v7107, 1.442695
        %v7119 = vpow.pop %v7118
        %v7120 = vmul.f32 %v7108, 1.442695
        %v7121 = vpow.pop %v7120
        %v7122 = vmul.f32 %v7109, 1.442695
        %v7123 = vpow.pop %v7122
        %v7124 = vmul.f32 %v7110, 1.442695
        %v7125 = vpow.pop %v7124
        %v7126 = vmul.f32 %v7111, 1.442695
        %v7127 = vpow.pop %v7126
        %v7128 = vrot.slane %v7113, 4
        %v7129 = vadd.f32 %v7113, %v7128
        %v7130 = vrot.slane %v7129, 2
        %v7131 = vadd.f32 %v7129, %v7130
        %v7132 = vrot.slane %v7131, 1
        %v7133 = vadd.f32 %v7131, %v7132
        %v7134 = vrot.slane %v7115, 4
        %v7135 = vadd.f32 %v7115, %v7134
        %v7136 = vrot.slane %v7135, 2
        %v7137 = vadd.f32 %v7135, %v7136
        %v7138 = vrot.slane %v7137, 1
        %v7139 = vadd.f32 %v7137, %v7138
        %v7140 = vrot.slane %v7117, 4
        %v7141 = vadd.f32 %v7117, %v7140
        %v7142 = vrot.slane %v7141, 2
        %v7143 = vadd.f32 %v7141, %v7142
        %v7144 = vrot.slane %v7143, 1
        %v7145 = vadd.f32 %v7143, %v7144
        %v7146 = vrot.slane %v7119, 4
        %v7147 = vadd.f32 %v7119, %v7146
        %v7148 = vrot.slane %v7147, 2
        %v7149 = vadd.f32 %v7147, %v7148
        %v7150 = vrot.slane %v7149, 1
        %v7151 = vadd.f32 %v7149, %v7150
        %v7152 = vrot.slane %v7121, 4
        %v7153 = vadd.f32 %v7121, %v7152
        %v7154 = vrot.slane %v7153, 2
        %v7155 = vadd.f32 %v7153, %v7154
        %v7156 = vrot.slane %v7155, 1
        %v7157 = vadd.f32 %v7155, %v7156
        %v7158 = vrot.slane %v7123, 4
        %v7159 = vadd.f32 %v7123, %v7158
        %v7160 = vrot.slane %v7159, 2
        %v7161 = vadd.f32 %v7159, %v7160
        %v7162 = vrot.slane %v7161, 1
        %v7163 = vadd.f32 %v7161, %v7162
        %v7164 = vrot.slane %v7125, 4
        %v7165 = vadd.f32 %v7125, %v7164
        %v7166 = vrot.slane %v7165, 2
        %v7167 = vadd.f32 %v7165, %v7166
        %v7168 = vrot.slane %v7167, 1
        %v7169 = vadd.f32 %v7167, %v7168
        %v7170 = vrot.slane %v7127, 4
        %v7171 = vadd.f32 %v7127, %v7170
        %v7172 = vrot.slane %v7171, 2
        %v7173 = vadd.f32 %v7171, %v7172
        %v7174 = vrot.slane %v7173, 1
        %v7175 = vadd.f32 %v7173, %v7174
        %v7176 = vrcp.pop %v7133
        %v7177 = vrcp.pop %v7139
        %v7178 = vrcp.pop %v7145
        %v7179 = vrcp.pop %v7151
        %v7180 = vrcp.pop %v7157
        %v7181 = vrcp.pop %v7163
        %v7182 = vrcp.pop %v7169
        %v7183 = vrcp.pop %v7175
        %v7184 = vmul.f32 %v7113, %v7176
        %v7185 = vmul.f32 %v7115, %v7177
        %v7186 = vmul.f32 %v7117, %v7178
        %v7187 = vmul.f32 %v7119, %v7179
        %v7188 = vmul.f32 %v7121, %v7180
        %v7189 = vmul.f32 %v7123, %v7181
        %v7190 = vmul.f32 %v7125, %v7182
        %v7191 = vmul.f32 %v7127, %v7183
        %v7192 = vmul.f32 %v7184, %v4590
        %v7193 = vmul.f32 %v7185, %v4590
        %v7194 = vmul.f32 %v7186, %v4590
        %v7195 = vmul.f32 %v7187, %v4590
        %v7196 = vmul.f32 %v7188, %v4590
        %v7197 = vmul.f32 %v7189, %v4590
        %v7198 = vmul.f32 %v7190, %v4590
        %v7199 = vmul.f32 %v7191, %v4590
        %v7200 = vrot.slane %v7192, 4
        %v7201 = vadd.f32 %v7192, %v7200
        %v7202 = vrot.slane %v7201, 2
        %v7203 = vadd.f32 %v7201, %v7202
        %v7204 = vrot.slane %v7203, 1
        %v7205 = vadd.f32 %v7203, %v7204
        %v7206 = vrot.slane %v7193, 4
        %v7207 = vadd.f32 %v7193, %v7206
        %v7208 = vrot.slane %v7207, 2
        %v7209 = vadd.f32 %v7207, %v7208
        %v7210 = vrot.slane %v7209, 1
        %v7211 = vadd.f32 %v7209, %v7210
        %v7212 = vrot.slane %v7194, 4
        %v7213 = vadd.f32 %v7194, %v7212
        %v7214 = vrot.slane %v7213, 2
        %v7215 = vadd.f32 %v7213, %v7214
        %v7216 = vrot.slane %v7215, 1
        %v7217 = vadd.f32 %v7215, %v7216
        %v7218 = vrot.slane %v7195, 4
        %v7219 = vadd.f32 %v7195, %v7218
        %v7220 = vrot.slane %v7219, 2
        %v7221 = vadd.f32 %v7219, %v7220
        %v7222 = vrot.slane %v7221, 1
        %v7223 = vadd.f32 %v7221, %v7222
        %v7224 = vrot.slane %v7196, 4
        %v7225 = vadd.f32 %v7196, %v7224
        %v7226 = vrot.slane %v7225, 2
        %v7227 = vadd.f32 %v7225, %v7226
        %v7228 = vrot.slane %v7227, 1
        %v7229 = vadd.f32 %v7227, %v7228
        %v7230 = vrot.slane %v7197, 4
        %v7231 = vadd.f32 %v7197, %v7230
        %v7232 = vrot.slane %v7231, 2
        %v7233 = vadd.f32 %v7231, %v7232
        %v7234 = vrot.slane %v7233, 1
        %v7235 = vadd.f32 %v7233, %v7234
        %v7236 = vrot.slane %v7198, 4
        %v7237 = vadd.f32 %v7198, %v7236
        %v7238 = vrot.slane %v7237, 2
        %v7239 = vadd.f32 %v7237, %v7238
        %v7240 = vrot.slane %v7239, 1
        %v7241 = vadd.f32 %v7239, %v7240
        %v7242 = vrot.slane %v7199, 4
        %v7243 = vadd.f32 %v7199, %v7242
        %v7244 = vrot.slane %v7243, 2
        %v7245 = vadd.f32 %v7243, %v7244
        %v7246 = vrot.slane %v7245, 1
        %v7247 = vadd.f32 %v7245, %v7246
        %s7248 = scalar_lea.vmem %s9, 128
        %v7249 = vld [vmem:[%s7248] sm:$0xff]
        %v7250 = vld [vmem:[%s7248 + $0x8] sm:$0xff]
        %v7251 = vld [vmem:[%s7248 + $0x10] sm:$0xff]
        %v7252 = vld [vmem:[%s7248 + $0x18] sm:$0xff]
        %v7253 = vld [vmem:[%s7248 + $0x20] sm:$0xff]
        %v7254 = vld [vmem:[%s7248 + $0x28] sm:$0xff]
        %v7255 = vld [vmem:[%s7248 + $0x30] sm:$0xff]
        %v7256 = vld [vmem:[%s7248 + $0x38] sm:$0xff]
        %v7257 = vld [vmem:[%s7248 + $0x40] sm:$0xff]
        %v7258 = vld [vmem:[%s7248 + $0x48] sm:$0xff]
        %v7259 = vld [vmem:[%s7248 + $0x50] sm:$0xff]
        %v7260 = vld [vmem:[%s7248 + $0x58] sm:$0xff]
        %v7261 = vld [vmem:[%s7248 + $0x60] sm:$0xff]
        %v7262 = vld [vmem:[%s7248 + $0x68] sm:$0xff]
        %v7263 = vld [vmem:[%s7248 + $0x70] sm:$0xff]
        %v7264 = vld [vmem:[%s7248 + $0x78] sm:$0xff]
        %v7273 = vsel %vm1047, %v7211, %v7205
        %v7274 = vsel %vm1048, %v7217, %v7273
        %v7275 = vsel %vm1050, %v7223, %v7274
        %v7276 = vsel %vm1052, %v7229, %v7275
        %v7277 = vsel %vm1054, %v7235, %v7276
        %v7278 = vsel %vm1056, %v7241, %v7277
        %v7279 = vsel %vm1058, %v7247, %v7278
        %7281 = vmatprep.subr.mxu0 0.0
        %7282 = vmatpush1.msra.mxu0 %v7249
        %7283 = vmatprep.subr.mxu0 0.0
        %7284 = vmatpush1.msra.mxu0 %v7250
        %7285 = vmatprep.subr.mxu0 0.0
        %7286 = vmatpush1.msra.mxu0 %v7251
        %7287 = vmatprep.subr.mxu0 0.0
        %7288 = vmatpush1.msra.mxu0 %v7252
        %7289 = vmatprep.subr.mxu0 0.0
        %7290 = vmatpush1.msra.mxu0 %v7253
        %7291 = vmatprep.subr.mxu0 0.0
        %7292 = vmatpush1.msra.mxu0 %v7254
        %7293 = vmatprep.subr.mxu0 0.0
        %7294 = vmatpush1.msra.mxu0 %v7255
        %7295 = vmatprep.subr.mxu0 0.0
        %7296 = vmatpush1.msra.mxu0 %v7256
        %7297 = vmatprep.subr.mxu0 0.0
        %7298 = vmatpush1.msra.mxu0 %v7257
        %7299 = vmatprep.subr.mxu0 0.0
        %7300 = vmatpush1.msra.mxu0 %v7258
        %7301 = vmatprep.subr.mxu0 0.0
        %7302 = vmatpush1.msra.mxu0 %v7259
        %7303 = vmatprep.subr.mxu0 0.0
        %7304 = vmatpush1.msra.mxu0 %v7260
        %7305 = vmatprep.subr.mxu0 0.0
        %7306 = vmatpush1.msra.mxu0 %v7261
        %7307 = vmatprep.subr.mxu0 0.0
        %7308 = vmatpush1.msra.mxu0 %v7262
        %7309 = vmatprep.subr.mxu0 0.0
        %7310 = vmatpush1.msra.mxu0 %v7263
        %7311 = vmatprep.subr.mxu0 0.0
        %7312 = vmatpush1.msra.mxu0 %v7264
        %7313 = vmatprep.subr.mxu0 0.0
        %7314 = vmatpush1.msra.mxu0 0.0
        %7315 = vmatprep.subr.mxu0 0.0
        %7316 = vmatpush1.msra.mxu0 0.0
        %7317 = vmatprep.subr.mxu0 0.0
        %7318 = vmatpush1.msra.mxu0 0.0
        %7319 = vmatprep.subr.mxu0 0.0
        %7320 = vmatpush1.msra.mxu0 0.0
        %7321 = vmatprep.subr.mxu0 0.0
        %7322 = vmatpush1.msra.mxu0 0.0
        %7323 = vmatprep.subr.mxu0 0.0
        %7324 = vmatpush1.msra.mxu0 0.0
        %7325 = vmatprep.subr.mxu0 0.0
        %7326 = vmatpush1.msra.mxu0 0.0
        %7327 = vmatprep.subr.mxu0 0.0
        %7328 = vmatpush1.msra.mxu0 0.0
        %7329 = vmatprep.subr.mxu0 0.0
        %7330 = vmatpush1.msra.mxu0 0.0
        %7331 = vmatprep.subr.mxu0 0.0
        %7332 = vmatpush1.msra.mxu0 0.0
        %7333 = vmatprep.subr.mxu0 0.0
        %7334 = vmatpush1.msra.mxu0 0.0
        %7335 = vmatprep.subr.mxu0 0.0
        %7336 = vmatpush1.msra.mxu0 0.0
        %7337 = vmatprep.subr.mxu0 0.0
        %7338 = vmatpush1.msra.mxu0 0.0
        %7339 = vmatprep.subr.mxu0 0.0
        %7340 = vmatpush1.msra.mxu0 0.0
        %7341 = vmatprep.subr.mxu0 0.0
        %7342 = vmatpush1.msra.mxu0 0.0
        %7343 = vmatprep.subr.mxu0 0.0
        %7344 = vmatpush1.msra.mxu0 0.0
        %7345 = vmatprep.mubr.f32.mxu0 0.0
        %7346 = vmatmul.mubr.f32.gmra.mrb[0].mxu0 %v7279
        %v7347 = vpop.f32.mrb[0].mxu0
        %v7348 = vadd.f32 0.0, %v7347
        %v7349 = vpop.f32.mrb[0].mxu0
        %7350 = vdwg.mxu0
        %v7351 = vadd.f32 %v4392, %v7348
        %s7352 = scalar_lea.vmem %s10, 1
        %v7353 = vld [vmem:[%s7352] sm:$0x1]
        %v7355 = vlaneseq
        %v7356 = vshrl.u32 %v7355, 7
        %v7357 = vsub.s32 0, %v7356
        %v7358 = vrot.slane %v7353, %v7357
        %v7360 = vadd.f32 %v7351, %v7358
        %s7361 = scalar_lea.vmem %s11, 128
        %v7362 = vld [vmem:[%s7361] sm:$0xff]
        %v7363 = vld [vmem:[%s7361 + $0x8] sm:$0xff]
        %v7364 = vld [vmem:[%s7361 + $0x10] sm:$0xff]
        %v7365 = vld [vmem:[%s7361 + $0x18] sm:$0xff]
        %v7366 = vld [vmem:[%s7361 + $0x20] sm:$0xff]
        %v7367 = vld [vmem:[%s7361 + $0x28] sm:$0xff]
        %v7368 = vld [vmem:[%s7361 + $0x30] sm:$0xff]
        %v7369 = vld [vmem:[%s7361 + $0x38] sm:$0xff]
        %v7370 = vld [vmem:[%s7361 + $0x40] sm:$0xff]
        %v7371 = vld [vmem:[%s7361 + $0x48] sm:$0xff]
        %v7372 = vld [vmem:[%s7361 + $0x50] sm:$0xff]
        %v7373 = vld [vmem:[%s7361 + $0x58] sm:$0xff]
        %v7374 = vld [vmem:[%s7361 + $0x60] sm:$0xff]
        %v7375 = vld [vmem:[%s7361 + $0x68] sm:$0xff]
        %v7376 = vld [vmem:[%s7361 + $0x70] sm:$0xff]
        %v7377 = vld [vmem:[%s7361 + $0x78] sm:$0xff]
        %7378 = vmatprep.subr.mxu0 0.0
        %7379 = vmatpush1.msra.mxu0 %v7362
        %7380 = vmatprep.subr.mxu0 0.0
        %7381 = vmatpush1.msra.mxu0 %v7363
        %7382 = vmatprep.subr.mxu0 0.0
        %7383 = vmatpush1.msra.mxu0 %v7364
        %7384 = vmatprep.subr.mxu0 0.0
        %7385 = vmatpush1.msra.mxu0 %v7365
        %7386 = vmatprep.subr.mxu0 0.0
        %7387 = vmatpush1.msra.mxu0 %v7366
        %7388 = vmatprep.subr.mxu0 0.0
        %7389 = vmatpush1.msra.mxu0 %v7367
        %7390 = vmatprep.subr.mxu0 0.0
        %7391 = vmatpush1.msra.mxu0 %v7368
        %7392 = vmatprep.subr.mxu0 0.0
        %7393 = vmatpush1.msra.mxu0 %v7369
        %7394 = vmatprep.subr.mxu0 0.0
        %7395 = vmatpush1.msra.mxu0 %v7370
        %7396 = vmatprep.subr.mxu0 0.0
        %7397 = vmatpush1.msra.mxu0 %v7371
        %7398 = vmatprep.subr.mxu0 0.0
        %7399 = vmatpush1.msra.mxu0 %v7372
        %7400 = vmatprep.subr.mxu0 0.0
        %7401 = vmatpush1.msra.mxu0 %v7373
        %7402 = vmatprep.subr.mxu0 0.0
        %7403 = vmatpush1.msra.mxu0 %v7374
        %7404 = vmatprep.subr.mxu0 0.0
        %7405 = vmatpush1.msra.mxu0 %v7375
        %7406 = vmatprep.subr.mxu0 0.0
        %7407 = vmatpush1.msra.mxu0 %v7376
        %7408 = vmatprep.subr.mxu0 0.0
        %7409 = vmatpush1.msra.mxu0 %v7377
        %7410 = vmatprep.subr.mxu0 0.0
        %7411 = vmatpush1.msra.mxu0 0.0
        %7412 = vmatprep.subr.mxu0 0.0
        %7413 = vmatpush1.msra.mxu0 0.0
        %7414 = vmatprep.subr.mxu0 0.0
        %7415 = vmatpush1.msra.mxu0 0.0
        %7416 = vmatprep.subr.mxu0 0.0
        %7417 = vmatpush1.msra.mxu0 0.0
        %7418 = vmatprep.subr.mxu0 0.0
        %7419 = vmatpush1.msra.mxu0 0.0
        %7420 = vmatprep.subr.mxu0 0.0
        %7421 = vmatpush1.msra.mxu0 0.0
        %7422 = vmatprep.subr.mxu0 0.0
        %7423 = vmatpush1.msra.mxu0 0.0
        %7424 = vmatprep.subr.mxu0 0.0
        %7425 = vmatpush1.msra.mxu0 0.0
        %7426 = vmatprep.subr.mxu0 0.0
        %7427 = vmatpush1.msra.mxu0 0.0
        %7428 = vmatprep.subr.mxu0 0.0
        %7429 = vmatpush1.msra.mxu0 0.0
        %7430 = vmatprep.subr.mxu0 0.0
        %7431 = vmatpush1.msra.mxu0 0.0
        %7432 = vmatprep.subr.mxu0 0.0
        %7433 = vmatpush1.msra.mxu0 0.0
        %7434 = vmatprep.subr.mxu0 0.0
        %7435 = vmatpush1.msra.mxu0 0.0
        %7436 = vmatprep.subr.mxu0 0.0
        %7437 = vmatpush1.msra.mxu0 0.0
        %7438 = vmatprep.subr.mxu0 0.0
        %7439 = vmatpush1.msra.mxu0 0.0
        %7440 = vmatprep.subr.mxu0 0.0
        %7441 = vmatpush1.msra.mxu0 0.0
        %7442 = vmatprep.mubr.f32.mxu0 0.0
        %7443 = vmatmul.mubr.f32.gmra.mrb[0].mxu0 %v7018
        %v7444 = vpop.f32.mrb[0].mxu0
        %v7445 = vadd.f32 0.0, %v7444
        %v7446 = vpop.f32.mrb[0].mxu0
        %7447 = vmatprep.mubr.f32.mxu0 0.0
        %7448 = vmatmul.mubr.f32.gmra.mrb[0].mxu0 %v7023
        %v7449 = vpop.f32.mrb[0].mxu0
        %v7450 = vadd.f32 0.0, %v7449
        %v7451 = vpop.f32.mrb[0].mxu0
        %7452 = vmatprep.mubr.f32.mxu0 0.0
        %7453 = vmatmul.mubr.f32.gmra.mrb[0].mxu0 %v7028
        %v7454 = vpop.f32.mrb[0].mxu0
        %v7455 = vadd.f32 0.0, %v7454
        %v7456 = vpop.f32.mrb[0].mxu0
        %7457 = vmatprep.mubr.f32.mxu0 0.0
        %7458 = vmatmul.mubr.f32.gmra.mrb[0].mxu0 %v7033
        %v7459 = vpop.f32.mrb[0].mxu0
        %v7460 = vadd.f32 0.0, %v7459
        %v7461 = vpop.f32.mrb[0].mxu0
        %7462 = vmatprep.mubr.f32.mxu0 0.0
        %7463 = vmatmul.mubr.f32.gmra.mrb[0].mxu0 %v7038
        %v7464 = vpop.f32.mrb[0].mxu0
        %v7465 = vadd.f32 0.0, %v7464
        %v7466 = vpop.f32.mrb[0].mxu0
        %7467 = vmatprep.mubr.f32.mxu0 0.0
        %7468 = vmatmul.mubr.f32.gmra.mrb[0].mxu0 %v7043
        %v7469 = vpop.f32.mrb[0].mxu0
        %v7470 = vadd.f32 0.0, %v7469
        %v7471 = vpop.f32.mrb[0].mxu0
        %7472 = vmatprep.mubr.f32.mxu0 0.0
        %7473 = vmatmul.mubr.f32.gmra.mrb[0].mxu0 %v7048
        %v7474 = vpop.f32.mrb[0].mxu0
        %v7475 = vadd.f32 0.0, %v7474
        %v7476 = vpop.f32.mrb[0].mxu0
        %7477 = vmatprep.mubr.f32.mxu0 0.0
        %7478 = vmatmul.mubr.f32.gmra.mrb[0].mxu0 %v7053
        %v7479 = vpop.f32.mrb[0].mxu0
        %v7480 = vadd.f32 0.0, %v7479
        %v7481 = vpop.f32.mrb[0].mxu0
        %7482 = vdwg.mxu0
        %v7483 = vmul.f32 %v7445, 0.5
        %v7484 = vmul.f32 %v7450, 0.5
        %v7485 = vmul.f32 %v7455, 0.5
        %v7486 = vmul.f32 %v7460, 0.5
        %v7487 = vmul.f32 %v7465, 0.5
        %v7488 = vmul.f32 %v7470, 0.5
        %v7489 = vmul.f32 %v7475, 0.5
        %v7490 = vmul.f32 %v7480, 0.5
        %v7491 = vmul.f32 %v7445, 0.044715
        %v7492 = vmul.f32 %v7450, 0.044715
        %v7493 = vmul.f32 %v7455, 0.044715
        %v7494 = vmul.f32 %v7460, 0.044715
        %v7495 = vmul.f32 %v7465, 0.044715
        %v7496 = vmul.f32 %v7470, 0.044715
        %v7497 = vmul.f32 %v7475, 0.044715
        %v7498 = vmul.f32 %v7480, 0.044715
        %v7499 = vmul.f32 %v7491, %v7445
        %v7500 = vmul.f32 %v7492, %v7450
        %v7501 = vmul.f32 %v7493, %v7455
        %v7502 = vmul.f32 %v7494, %v7460
        %v7503 = vmul.f32 %v7495, %v7465
        %v7504 = vmul.f32 %v7496, %v7470
        %v7505 = vmul.f32 %v7497, %v7475
        %v7506 = vmul.f32 %v7498, %v7480
        %v7507 = vmul.f32 %v7499, %v7445
        %v7508 = vmul.f32 %v7500, %v7450
        %v7509 = vmul.f32 %v7501, %v7455
        %v7510 = vmul.f32 %v7502, %v7460
        %v7511 = vmul.f32 %v7503, %v7465
        %v7512 = vmul.f32 %v7504, %v7470
        %v7513 = vmul.f32 %v7505, %v7475
        %v7514 = vmul.f32 %v7506, %v7480
        %v7515 = vadd.f32 %v7445, %v7507
        %v7516 = vadd.f32 %v7450, %v7508
        %v7517 = vadd.f32 %v7455, %v7509
        %v7518 = vadd.f32 %v7460, %v7510
        %v7519 = vadd.f32 %v7465, %v7511
        %v7520 = vadd.f32 %v7470, %v7512
        %v7521 = vadd.f32 %v7475, %v7513
        %v7522 = vadd.f32 %v7480, %v7514
        %v7523 = vmul.f32 %v7515, 0.7978846
        %v7524 = vmul.f32 %v7516, 0.7978846
        %v7525 = vmul.f32 %v7517, 0.7978846
        %v7526 = vmul.f32 %v7518, 0.7978846
        %v7527 = vmul.f32 %v7519, 0.7978846
        %v7528 = vmul.f32 %v7520, 0.7978846
        %v7529 = vmul.f32 %v7521, 0.7978846
        %v7530 = vmul.f32 %v7522, 0.7978846
        %v7531 = vtanh.pop %v7523
        %v7532 = vtanh.pop %v7524
        %v7533 = vtanh.pop %v7525
        %v7534 = vtanh.pop %v7526
        %v7535 = vtanh.pop %v7527
        %v7536 = vtanh.pop %v7528
        %v7537 = vtanh.pop %v7529
        %v7538 = vtanh.pop %v7530
        %v7539 = vadd.f32 %v7531, 1.0
        %v7540 = vadd.f32 %v7532, 1.0
        %v7541 = vadd.f32 %v7533, 1.0
        %v7542 = vadd.f32 %v7534, 1.0
        %v7543 = vadd.f32 %v7535, 1.0
        %v7544 = vadd.f32 %v7536, 1.0
        %v7545 = vadd.f32 %v7537, 1.0
        %v7546 = vadd.f32 %v7538, 1.0
        %v7547 = vmul.f32 %v7483, %v7539
        %v7548 = vmul.f32 %v7484, %v7540
        %v7549 = vmul.f32 %v7485, %v7541
        %v7550 = vmul.f32 %v7486, %v7542
        %v7551 = vmul.f32 %v7487, %v7543
        %v7552 = vmul.f32 %v7488, %v7544
        %v7553 = vmul.f32 %v7489, %v7545
        %v7554 = vmul.f32 %v7490, %v7546
        %s7555 = scalar_lea.vmem %s12, 1
        %v7556 = vld [vmem:[%s7555] sm:$0x1]
        %v7558 = vlaneseq
        %v7559 = vshrl.u32 %v7558, 7
        %v7560 = vsub.s32 0, %v7559
        %v7561 = vrot.slane %v7556, %v7560
        %v7563 = vmul.f32 %v7547, %v7561
        %v7564 = vmul.f32 %v7548, %v7561
        %v7565 = vmul.f32 %v7549, %v7561
        %v7566 = vmul.f32 %v7550, %v7561
        %v7567 = vmul.f32 %v7551, %v7561
        %v7568 = vmul.f32 %v7552, %v7561
        %v7569 = vmul.f32 %v7553, %v7561
        %v7570 = vmul.f32 %v7554, %v7561
        %v7571 = vsel %vm1964, %v7563, 0.0
        %7572 = vadd.xlane.f32.xlu0 %v7571
        %v7573 = vpop.xlane.xlu0 %7572
        %v7574 = vsel %vm1964, %v7564, 0.0
        %7575 = vadd.xlane.f32.xlu0 %v7574
        %v7576 = vpop.xlane.xlu0 %7575
        %v7577 = vsel %vm1964, %v7565, 0.0
        %7578 = vadd.xlane.f32.xlu0 %v7577
        %v7579 = vpop.xlane.xlu0 %7578
        %v7580 = vsel %vm1964, %v7566, 0.0
        %7581 = vadd.xlane.f32.xlu0 %v7580
        %v7582 = vpop.xlane.xlu0 %7581
        %v7583 = vsel %vm1964, %v7567, 0.0
        %7584 = vadd.xlane.f32.xlu0 %v7583
        %v7585 = vpop.xlane.xlu0 %7584
        %v7586 = vsel %vm1964, %v7568, 0.0
        %7587 = vadd.xlane.f32.xlu0 %v7586
        %v7588 = vpop.xlane.xlu0 %7587
        %v7589 = vsel %vm1964, %v7569, 0.0
        %7590 = vadd.xlane.f32.xlu0 %v7589
        %v7591 = vpop.xlane.xlu0 %7590
        %v7592 = vsel %vm1964, %v7570, 0.0
        %7593 = vadd.xlane.f32.xlu0 %v7592
        %v7594 = vpop.xlane.xlu0 %7593
        %v7596 = vlaneseq
        %v7597 = vshrl.u32 %v7596, 7
        %v7598 = vsub.s32 0, %v7597
        %v7599 = vrot.slane %v4756, %v7598
        %7601 = vbcast.lane.b32.xlu0 %v7599, 256
        %v7602 = vpop.permute.xlu0 %7601
        %v7603 = vlaneseq
        %v7604 = vshrl.u32 %v7603, 7
        %v7605 = vsub.s32 1, %v7604
        %v7606 = vrot.slane %v4756, %v7605
        %7608 = vbcast.lane.b32.xlu0 %v7606, 256
        %v7609 = vpop.permute.xlu0 %7608
        %v7610 = vlaneseq
        %v7611 = vshrl.u32 %v7610, 7
        %v7612 = vsub.s32 2, %v7611
        %v7613 = vrot.slane %v4756, %v7612
        %7615 = vbcast.lane.b32.xlu0 %v7613, 256
        %v7616 = vpop.permute.xlu0 %7615
        %v7617 = vlaneseq
        %v7618 = vshrl.u32 %v7617, 7
        %v7619 = vsub.s32 3, %v7618
        %v7620 = vrot.slane %v4756, %v7619
        %7622 = vbcast.lane.b32.xlu0 %v7620, 256
        %v7623 = vpop.permute.xlu0 %7622
        %v7624 = vlaneseq
        %v7625 = vshrl.u32 %v7624, 7
        %v7626 = vsub.s32 4, %v7625
        %v7627 = vrot.slane %v4756, %v7626
        %7629 = vbcast.lane.b32.xlu0 %v7627, 256
        %v7630 = vpop.permute.xlu0 %7629
        %v7631 = vlaneseq
        %v7632 = vshrl.u32 %v7631, 7
        %v7633 = vsub.s32 5, %v7632
        %v7634 = vrot.slane %v4756, %v7633
        %7636 = vbcast.lane.b32.xlu0 %v7634, 256
        %v7637 = vpop.permute.xlu0 %7636
        %v7638 = vlaneseq
        %v7639 = vshrl.u32 %v7638, 7
        %v7640 = vsub.s32 6, %v7639
        %v7641 = vrot.slane %v4756, %v7640
        %7643 = vbcast.lane.b32.xlu0 %v7641, 256
        %v7644 = vpop.permute.xlu0 %7643
        %v7645 = vlaneseq
        %v7646 = vshrl.u32 %v7645, 7
        %v7647 = vsub.s32 7, %v7646
        %v7648 = vrot.slane %v4756, %v7647
        %7650 = vbcast.lane.b32.xlu0 %v7648, 256
        %v7651 = vpop.permute.xlu0 %7650
        %v7660 = vmul.f32 %v7573, %v7602
        %v7661 = vmul.f32 %v7576, %v7609
        %v7662 = vmul.f32 %v7579, %v7616
        %v7663 = vmul.f32 %v7582, %v7623
        %v7664 = vmul.f32 %v7585, %v7630
        %v7665 = vmul.f32 %v7588, %v7637
        %v7666 = vmul.f32 %v7591, %v7644
        %v7667 = vmul.f32 %v7594, %v7651
        %7676 = vset.pattern.permute.xlu0 0
        %7677 = vperm.xlu0 %7676, %v7660
        %v7678 = vpop.permute.xlu0 %7677
        %7679 = vset.pattern.permute.xlu0 0
        %7680 = vperm.xlu0 %7679, %v7661
        %v7681 = vpop.permute.xlu0 %7680
        %7682 = vset.pattern.permute.xlu0 0
        %7683 = vperm.xlu0 %7682, %v7662
        %v7684 = vpop.permute.xlu0 %7683
        %7685 = vset.pattern.permute.xlu0 0
        %7686 = vperm.xlu0 %7685, %v7663
        %v7687 = vpop.permute.xlu0 %7686
        %7688 = vset.pattern.permute.xlu0 0
        %7689 = vperm.xlu0 %7688, %v7664
        %v7690 = vpop.permute.xlu0 %7689
        %7691 = vset.pattern.permute.xlu0 0
        %7692 = vperm.xlu0 %7691, %v7665
        %v7693 = vpop.permute.xlu0 %7692
        %7694 = vset.pattern.permute.xlu0 0
        %7695 = vperm.xlu0 %7694, %v7666
        %v7696 = vpop.permute.xlu0 %7695
        %7697 = vset.pattern.permute.xlu0 0
        %7698 = vperm.xlu0 %7697, %v7667
        %v7699 = vpop.permute.xlu0 %7698
        %v7700 = vlaneseq
        %v7701 = vshrl.u32 %v7700, 7
        %v7702 = vsub.s32 %v693, %v7701
        %v7703 = vrot.slane %v7678, %v7702
        %v7704 = vlaneseq
        %v7705 = vshrl.u32 %v7704, 7
        %v7706 = vsub.s32 %v693, %v7705
        %v7707 = vrot.slane %v7681, %v7706
        %v7708 = vlaneseq
        %v7709 = vshrl.u32 %v7708, 7
        %v7710 = vsub.s32 %v693, %v7709
        %v7711 = vrot.slane %v7684, %v7710
        %v7712 = vlaneseq
        %v7713 = vshrl.u32 %v7712, 7
        %v7714 = vsub.s32 %v693, %v7713
        %v7715 = vrot.slane %v7687, %v7714
        %v7716 = vlaneseq
        %v7717 = vshrl.u32 %v7716, 7
        %v7718 = vsub.s32 %v693, %v7717
        %v7719 = vrot.slane %v7690, %v7718
        %v7720 = vlaneseq
        %v7721 = vshrl.u32 %v7720, 7
        %v7722 = vsub.s32 %v693, %v7721
        %v7723 = vrot.slane %v7693, %v7722
        %v7724 = vlaneseq
        %v7725 = vshrl.u32 %v7724, 7
        %v7726 = vsub.s32 %v693, %v7725
        %v7727 = vrot.slane %v7696, %v7726
        %v7728 = vlaneseq
        %v7729 = vshrl.u32 %v7728, 7
        %v7730 = vsub.s32 %v693, %v7729
        %v7731 = vrot.slane %v7699, %v7730
        %v7732 = vsel %vm1047, %v7707, %v7703
        %v7733 = vsel %vm1048, %v7711, %v7732
        %v7734 = vsel %vm1050, %v7715, %v7733
        %v7735 = vsel %vm1052, %v7719, %v7734
        %v7736 = vsel %vm1054, %v7723, %v7735
        %v7737 = vsel %vm1056, %v7727, %v7736
        %v7738 = vsel %vm1058, %v7731, %v7737
        %v7740 = vsel %vm694, 0.0, %v7738
        %v7741 = vsel %vm4053, %v7740, 0.0
        %7742 = vadd.xlane.f32.xlu0 %v7741
        %v7743 = vpop.xlane.xlu0 %7742
        %v7744 = vmul.f32 %v4132, %v7743
        %v7745 = vadd.f32 %v4132, %v7744
        %v7747 = vsel %vm4053, %v7740, 0
        %7749 = vmatprep.subr.mxu0 0.0
        %7750 = vmatpush1.msra.mxu0 %v4132
        %7751 = vmatprep.subr.mxu0 0.0
        %7752 = vmatpush1.msra.mxu0 0.0
        %7753 = vmatprep.subr.mxu0 0.0
        %7754 = vmatpush1.msra.mxu0 0.0
        %7755 = vmatprep.subr.mxu0 0.0
        %7756 = vmatpush1.msra.mxu0 0.0
        %7757 = vmatprep.subr.mxu0 0.0
        %7758 = vmatpush1.msra.mxu0 0.0
        %7759 = vmatprep.subr.mxu0 0.0
        %7760 = vmatpush1.msra.mxu0 0.0
        %7761 = vmatprep.subr.mxu0 0.0
        %7762 = vmatpush1.msra.mxu0 0.0
        %7763 = vmatprep.subr.mxu0 0.0
        %7764 = vmatpush1.msra.mxu0 0.0
        %7765 = vmatprep.subr.mxu0 0.0
        %7766 = vmatpush1.msra.mxu0 0.0
        %7767 = vmatprep.subr.mxu0 0.0
        %7768 = vmatpush1.msra.mxu0 0.0
        %7769 = vmatprep.subr.mxu0 0.0
        %7770 = vmatpush1.msra.mxu0 0.0
        %7771 = vmatprep.subr.mxu0 0.0
        %7772 = vmatpush1.msra.mxu0 0.0
        %7773 = vmatprep.subr.mxu0 0.0
        %7774 = vmatpush1.msra.mxu0 0.0
        %7775 = vmatprep.subr.mxu0 0.0
        %7776 = vmatpush1.msra.mxu0 0.0
        %7777 = vmatprep.subr.mxu0 0.0
        %7778 = vmatpush1.msra.mxu0 0.0
        %7779 = vmatprep.subr.mxu0 0.0
        %7780 = vmatpush1.msra.mxu0 0.0
        %7781 = vmatprep.subr.mxu0 0.0
        %7782 = vmatpush1.msra.mxu0 0.0
        %7783 = vmatprep.subr.mxu0 0.0
        %7784 = vmatpush1.msra.mxu0 0.0
        %7785 = vmatprep.subr.mxu0 0.0
        %7786 = vmatpush1.msra.mxu0 0.0
        %7787 = vmatprep.subr.mxu0 0.0
        %7788 = vmatpush1.msra.mxu0 0.0
        %7789 = vmatprep.subr.mxu0 0.0
        %7790 = vmatpush1.msra.mxu0 0.0
        %7791 = vmatprep.subr.mxu0 0.0
        %7792 = vmatpush1.msra.mxu0 0.0
        %7793 = vmatprep.subr.mxu0 0.0
        %7794 = vmatpush1.msra.mxu0 0.0
        %7795 = vmatprep.subr.mxu0 0.0
        %7796 = vmatpush1.msra.mxu0 0.0
        %7797 = vmatprep.subr.mxu0 0.0
        %7798 = vmatpush1.msra.mxu0 0.0
        %7799 = vmatprep.subr.mxu0 0.0
        %7800 = vmatpush1.msra.mxu0 0.0
        %7801 = vmatprep.subr.mxu0 0.0
        %7802 = vmatpush1.msra.mxu0 0.0
        %7803 = vmatprep.subr.mxu0 0.0
        %7804 = vmatpush1.msra.mxu0 0.0
        %7805 = vmatprep.subr.mxu0 0.0
        %7806 = vmatpush1.msra.mxu0 0.0
        %7807 = vmatprep.subr.mxu0 0.0
        %7808 = vmatpush1.msra.mxu0 0.0
        %7809 = vmatprep.subr.mxu0 0.0
        %7810 = vmatpush1.msra.mxu0 0.0
        %7811 = vmatprep.subr.mxu0 0.0
        %7812 = vmatpush1.msra.mxu0 0.0
        %7813 = vmatprep.mubr.f32.mxu0 0.0
        %7814 = vmatmul.mubr.f32.gmra.mrb[0].mxu0 %v7747
        %v7815 = vpop.f32.mrb[0].mxu0
        %v7816 = vadd.f32 0.0, %v7815
        %v7817 = vpop.f32.mrb[0].mxu0
        %7818 = vdwg.mxu0
        %v7819 = vsub.f32 %v7745, %v7816
        %s7820 = scalar_lea.vmem %s13, 1
        %v7821 = vld [vmem:[%s7820] sm:$0x1]
        %s7822 = scalar_lea.vmem %s14, 1
        %v7823 = vld [vmem:[%s7822] sm:$0x1]
        %v7824 = vsel %vm697, %v7360, 0.0
        %7825 = vadd.xlane.f32.xlu0 %v7824
        %v7826 = vpop.xlane.xlu0 %7825
        %v7827 = vmul.f32 %v7826, %v701
        %v7828 = vsub.f32 %v7360, %v7827
        %v7829 = vmul.f32 %v7828, %v7828
        %v7830 = vsel %vm697, %v7829, 0.0
        %7831 = vadd.xlane.f32.xlu0 %v7830
        %v7832 = vpop.xlane.xlu0 %7831
        %v7833 = vmul.f32 %v7832, %v701
        %v7834 = vadd.f32 %v7833, 1e-05
        %v7835 = vrsqrt.pop %v7834
        %v7836 = vmul.f32 %v7828, %v7835
        %v7838 = vlaneseq
        %v7839 = vshrl.u32 %v7838, 7
        %v7840 = vsub.s32 0, %v7839
        %v7841 = vrot.slane %v7821, %v7840
        %v7843 = vmul.f32 %v7836, %v7841
        %v7845 = vlaneseq
        %v7846 = vshrl.u32 %v7845, 7
        %v7847 = vsub.s32 0, %v7846
        %v7848 = vrot.slane %v7823, %v7847
        %v7850 = vadd.f32 %v7843, %v7848
        %s7851 = scalar_lea.vmem %s15, 128
        %v7852 = vld [vmem:[%s7851] sm:$0xff]
        %v7853 = vld [vmem:[%s7851 + $0x8] sm:$0xff]
        %v7854 = vld [vmem:[%s7851 + $0x10] sm:$0xff]
        %v7855 = vld [vmem:[%s7851 + $0x18] sm:$0xff]
        %v7856 = vld [vmem:[%s7851 + $0x20] sm:$0xff]
        %v7857 = vld [vmem:[%s7851 + $0x28] sm:$0xff]
        %v7858 = vld [vmem:[%s7851 + $0x30] sm:$0xff]
        %v7859 = vld [vmem:[%s7851 + $0x38] sm:$0xff]
        %v7860 = vld [vmem:[%s7851 + $0x40] sm:$0xff]
        %v7861 = vld [vmem:[%s7851 + $0x48] sm:$0xff]
        %v7862 = vld [vmem:[%s7851 + $0x50] sm:$0xff]
        %v7863 = vld [vmem:[%s7851 + $0x58] sm:$0xff]
        %v7864 = vld [vmem:[%s7851 + $0x60] sm:$0xff]
        %v7865 = vld [vmem:[%s7851 + $0x68] sm:$0xff]
        %v7866 = vld [vmem:[%s7851 + $0x70] sm:$0xff]
        %v7867 = vld [vmem:[%s7851 + $0x78] sm:$0xff]
        %s7868 = scalar_lea.vmem %s16, 2
        %v7869 = vld [vmem:[%s7868] sm:$0x3]
        %v7871 = vlaneseq
        %v7872 = vshrl.u32 %v7871, 7
        %v7873 = vsub.s32 0, %v7872
        %v7874 = vrot.slane %v7869, %v7873
        %v7875 = vlaneseq
        %v7876 = vshrl.u32 %v7875, 7
        %v7877 = vsub.s32 1, %v7876
        %v7878 = vrot.slane %v7869, %v7877
        %v7882 = vsel %vm697, %v7850, 0
        %7884 = vmatprep.subr.mxu0 %v7853
        %7885 = vmatpush1.msra.mxu0 %v7852
        %7886 = vmatprep.subr.mxu0 %v7855
        %7887 = vmatpush1.msra.mxu0 %v7854
        %7888 = vmatprep.subr.mxu0 %v7857
        %7889 = vmatpush1.msra.mxu0 %v7856
        %7890 = vmatprep.subr.mxu0 %v7859
        %7891 = vmatpush1.msra.mxu0 %v7858
        %7892 = vmatprep.subr.mxu0 %v7861
        %7893 = vmatpush1.msra.mxu0 %v7860
        %7894 = vmatprep.subr.mxu0 %v7863
        %7895 = vmatpush1.msra.mxu0 %v7862
        %7896 = vmatprep.subr.mxu0 %v7865
        %7897 = vmatpush1.msra.mxu0 %v7864
        %7898 = vmatprep.subr.mxu0 %v7867
        %7899 = vmatpush1.msra.mxu0 %v7866
        %7900 = vmatprep.subr.mxu0 0.0
        %7901 = vmatpush1.msra.mxu0 0.0
        %7902 = vmatprep.subr.mxu0 0.0
        %7903 = vmatpush1.msra.mxu0 0.0
        %7904 = vmatprep.subr.mxu0 0.0
        %7905 = vmatpush1.msra.mxu0 0.0
        %7906 = vmatprep.subr.mxu0 0.0
        %7907 = vmatpush1.msra.mxu0 0.0
        %7908 = vmatprep.subr.mxu0 0.0
        %7909 = vmatpush1.msra.mxu0 0.0
        %7910 = vmatprep.subr.mxu0 0.0
        %7911 = vmatpush1.msra.mxu0 0.0
        %7912 = vmatprep.subr.mxu0 0.0
        %7913 = vmatpush1.msra.mxu0 0.0
        %7914 = vmatprep.subr.mxu0 0.0
        %7915 = vmatpush1.msra.mxu0 0.0
        %7916 = vmatprep.subr.mxu0 0.0
        %7917 = vmatpush1.msra.mxu0 0.0
        %7918 = vmatprep.subr.mxu0 0.0
        %7919 = vmatpush1.msra.mxu0 0.0
        %7920 = vmatprep.subr.mxu0 0.0
        %7921 = vmatpush1.msra.mxu0 0.0
        %7922 = vmatprep.subr.mxu0 0.0
        %7923 = vmatpush1.msra.mxu0 0.0
        %7924 = vmatprep.subr.mxu0 0.0
        %7925 = vmatpush1.msra.mxu0 0.0
        %7926 = vmatprep.subr.mxu0 0.0
        %7927 = vmatpush1.msra.mxu0 0.0
        %7928 = vmatprep.subr.mxu0 0.0
        %7929 = vmatpush1.msra.mxu0 0.0
        %7930 = vmatprep.subr.mxu0 0.0
        %7931 = vmatpush1.msra.mxu0 0.0
        %7932 = vmatprep.subr.mxu0 0.0
        %7933 = vmatpush1.msra.mxu0 0.0
        %7934 = vmatprep.subr.mxu0 0.0
        %7935 = vmatpush1.msra.mxu0 0.0
        %7936 = vmatprep.subr.mxu0 0.0
        %7937 = vmatpush1.msra.mxu0 0.0
        %7938 = vmatprep.subr.mxu0 0.0
        %7939 = vmatpush1.msra.mxu0 0.0
        %7940 = vmatprep.subr.mxu0 0.0
        %7941 = vmatpush1.msra.mxu0 0.0
        %7942 = vmatprep.subr.mxu0 0.0
        %7943 = vmatpush1.msra.mxu0 0.0
        %7944 = vmatprep.subr.mxu0 0.0
        %7945 = vmatpush1.msra.mxu0 0.0
        %7946 = vmatprep.subr.mxu0 0.0
        %7947 = vmatpush1.msra.mxu0 0.0
        %7948 = vmatprep.mubr.f32.mxu0 0.0
        %7949 = vmatmul.mubr.f32.gmra.mrb[0].mxu0 %v7882
        %v7950 = vpop.f32.mrb[0].mxu0
        %v7951 = vadd.f32 %v7874, %v7950
        %v7952 = vpop.f32.mrb[0].mxu0
        %v7953 = vadd.f32 %v7878, %v7952
        %7954 = vdwg.mxu0
        %v7955 = vmul.f32 %v7951, 0.5
        %v7956 = vmul.f32 %v7953, 0.5
        %v7957 = vmul.f32 %v7951, 0.044715
        %v7958 = vmul.f32 %v7953, 0.044715
        %v7959 = vmul.f32 %v7957, %v7951
        %v7960 = vmul.f32 %v7958, %v7953
        %v7961 = vmul.f32 %v7959, %v7951
        %v7962 = vmul.f32 %v7960, %v7953
        %v7963 = vadd.f32 %v7951, %v7961
        %v7964 = vadd.f32 %v7953, %v7962
        %v7965 = vmul.f32 %v7963, 0.7978846
        %v7966 = vmul.f32 %v7964, 0.7978846
        %v7967 = vtanh.pop %v7965
        %v7968 = vtanh.pop %v7966
        %v7969 = vadd.f32 %v7967, 1.0
        %v7970 = vadd.f32 %v7968, 1.0
        %v7971 = vmul.f32 %v7955, %v7969
        %v7972 = vmul.f32 %v7956, %v7970
        %s7973 = scalar_lea.vmem %s17, 256
        %v7974 = vld [vmem:[%s7973] sm:$0xff]
        %v7975 = vld [vmem:[%s7973 + $0x8] sm:$0xff]
        %v7976 = vld [vmem:[%s7973 + $0x10] sm:$0xff]
        %v7977 = vld [vmem:[%s7973 + $0x18] sm:$0xff]
        %v7978 = vld [vmem:[%s7973 + $0x20] sm:$0xff]
        %v7979 = vld [vmem:[%s7973 + $0x28] sm:$0xff]
        %v7980 = vld [vmem:[%s7973 + $0x30] sm:$0xff]
        %v7981 = vld [vmem:[%s7973 + $0x38] sm:$0xff]
        %v7982 = vld [vmem:[%s7973 + $0x40] sm:$0xff]
        %v7983 = vld [vmem:[%s7973 + $0x48] sm:$0xff]
        %v7984 = vld [vmem:[%s7973 + $0x50] sm:$0xff]
        %v7985 = vld [vmem:[%s7973 + $0x58] sm:$0xff]
        %v7986 = vld [vmem:[%s7973 + $0x60] sm:$0xff]
        %v7987 = vld [vmem:[%s7973 + $0x68] sm:$0xff]
        %v7988 = vld [vmem:[%s7973 + $0x70] sm:$0xff]
        %v7989 = vld [vmem:[%s7973 + $0x78] sm:$0xff]
        %v7990 = vld [vmem:[%s7973 + $0x80] sm:$0xff]
        %v7991 = vld [vmem:[%s7973 + $0x88] sm:$0xff]
        %v7992 = vld [vmem:[%s7973 + $0x90] sm:$0xff]
        %v7993 = vld [vmem:[%s7973 + $0x98] sm:$0xff]
        %v7994 = vld [vmem:[%s7973 + $0xa0] sm:$0xff]
        %v7995 = vld [vmem:[%s7973 + $0xa8] sm:$0xff]
        %v7996 = vld [vmem:[%s7973 + $0xb0] sm:$0xff]
        %v7997 = vld [vmem:[%s7973 + $0xb8] sm:$0xff]
        %v7998 = vld [vmem:[%s7973 + $0xc0] sm:$0xff]
        %v7999 = vld [vmem:[%s7973 + $0xc8] sm:$0xff]
        %v8000 = vld [vmem:[%s7973 + $0xd0] sm:$0xff]
        %v8001 = vld [vmem:[%s7973 + $0xd8] sm:$0xff]
        %v8002 = vld [vmem:[%s7973 + $0xe0] sm:$0xff]
        %v8003 = vld [vmem:[%s7973 + $0xe8] sm:$0xff]
        %v8004 = vld [vmem:[%s7973 + $0xf0] sm:$0xff]
        %v8005 = vld [vmem:[%s7973 + $0xf8] sm:$0xff]
        %8006 = vmatprep.subr.mxu0 0.0
        %8007 = vmatpush1.msra.mxu0 %v7974
        %8008 = vmatprep.subr.mxu0 0.0
        %8009 = vmatpush1.msra.mxu0 %v7975
        %8010 = vmatprep.subr.mxu0 0.0
        %8011 = vmatpush1.msra.mxu0 %v7976
        %8012 = vmatprep.subr.mxu0 0.0
        %8013 = vmatpush1.msra.mxu0 %v7977
        %8014 = vmatprep.subr.mxu0 0.0
        %8015 = vmatpush1.msra.mxu0 %v7978
        %8016 = vmatprep.subr.mxu0 0.0
        %8017 = vmatpush1.msra.mxu0 %v7979
        %8018 = vmatprep.subr.mxu0 0.0
        %8019 = vmatpush1.msra.mxu0 %v7980
        %8020 = vmatprep.subr.mxu0 0.0
        %8021 = vmatpush1.msra.mxu0 %v7981
        %8022 = vmatprep.subr.mxu0 0.0
        %8023 = vmatpush1.msra.mxu0 %v7982
        %8024 = vmatprep.subr.mxu0 0.0
        %8025 = vmatpush1.msra.mxu0 %v7983
        %8026 = vmatprep.subr.mxu0 0.0
        %8027 = vmatpush1.msra.mxu0 %v7984
        %8028 = vmatprep.subr.mxu0 0.0
        %8029 = vmatpush1.msra.mxu0 %v7985
        %8030 = vmatprep.subr.mxu0 0.0
        %8031 = vmatpush1.msra.mxu0 %v7986
        %8032 = vmatprep.subr.mxu0 0.0
        %8033 = vmatpush1.msra.mxu0 %v7987
        %8034 = vmatprep.subr.mxu0 0.0
        %8035 = vmatpush1.msra.mxu0 %v7988
        %8036 = vmatprep.subr.mxu0 0.0
        %8037 = vmatpush1.msra.mxu0 %v7989
        %8038 = vmatprep.subr.mxu0 0.0
        %8039 = vmatpush1.msra.mxu0 %v7990
        %8040 = vmatprep.subr.mxu0 0.0
        %8041 = vmatpush1.msra.mxu0 %v7991
        %8042 = vmatprep.subr.mxu0 0.0
        %8043 = vmatpush1.msra.mxu0 %v7992
        %8044 = vmatprep.subr.mxu0 0.0
        %8045 = vmatpush1.msra.mxu0 %v7993
        %8046 = vmatprep.subr.mxu0 0.0
        %8047 = vmatpush1.msra.mxu0 %v7994
        %8048 = vmatprep.subr.mxu0 0.0
        %8049 = vmatpush1.msra.mxu0 %v7995
        %8050 = vmatprep.subr.mxu0 0.0
        %8051 = vmatpush1.msra.mxu0 %v7996
        %8052 = vmatprep.subr.mxu0 0.0
        %8053 = vmatpush1.msra.mxu0 %v7997
        %8054 = vmatprep.subr.mxu0 0.0
        %8055 = vmatpush1.msra.mxu0 %v7998
        %8056 = vmatprep.subr.mxu0 0.0
        %8057 = vmatpush1.msra.mxu0 %v7999
        %8058 = vmatprep.subr.mxu0 0.0
        %8059 = vmatpush1.msra.mxu0 %v8000
        %8060 = vmatprep.subr.mxu0 0.0
        %8061 = vmatpush1.msra.mxu0 %v8001
        %8062 = vmatprep.subr.mxu0 0.0
        %8063 = vmatpush1.msra.mxu0 %v8002
        %8064 = vmatprep.subr.mxu0 0.0
        %8065 = vmatpush1.msra.mxu0 %v8003
        %8066 = vmatprep.subr.mxu0 0.0
        %8067 = vmatpush1.msra.mxu0 %v8004
        %8068 = vmatprep.subr.mxu0 0.0
        %8069 = vmatpush1.msra.mxu0 %v8005
        %8070 = vmatprep.mubr.f32.mxu0 %v7972
        %8071 = vmatmul.mubr.f32.gmra.mrb[0].mxu0 %v7971
        %v8072 = vpop.f32.mrb[0].mxu0
        %v8073 = vadd.f32 0.0, %v8072
        %v8074 = vpop.f32.mrb[0].mxu0
        %8075 = vdwg.mxu0
        %v8076 = vadd.f32 %v7360, %v8073
        %s8077 = scalar_lea.vmem %s18, 1
        %v8078 = vld [vmem:[%s8077] sm:$0x1]
        %v8080 = vlaneseq
        %v8081 = vshrl.u32 %v8080, 7
        %v8082 = vsub.s32 0, %v8081
        %v8083 = vrot.slane %v8078, %v8082
        %v8085 = vadd.f32 %v8076, %v8083
        %8086 = vst.msk [vmem:[%s634] sm:$0xff] %vm697, %v8085
        %8087 = vst.msk [vmem:[%s652] sm:$0xff] %vm964, %v7819
        %s8088 = sand.u32 %s452, 1
        %s8089 = scalar_lea.sflag [#allocation3], %s8088
        %s8090 = sand.u32 %s452, 1
        %s8091 = smul.addr %s8090, 8
        %s8092 = scalar_lea.vmem [#allocation2], %s8091
        %p8093 = scmp.lt.s32.totalorder %s35, 1
        %s8094 = scalar_select %p8093, %s35, 1
        %s8095 = smul.addr %s8094, 8
        %s8096 = scalar_lea.vmem %s20, %s8095
        // Predicated region
        $region97: #{tpu_custom_call.1} parent=95 // pred_check
          %p8097 = pneg %p462
        $region98: #{tpu_custom_call.1} parent=95 // pred_check_branch
          %8099 = sbr.rel (%p8097) target = $region100
        $region99: #{tpu_custom_call.1} parent=95 // pred_region
          %s8101 = ssub.s32 128, 128
          %8102 = vsyncadd %s8089, %s8101
          %s8103 = smul.addr %s35, 128
          %s8104 = scalar_lea.hbm %s19, %s8103
          %s8106 = sshll.u32 %s8092, 4
          %s8107 = int_to_ptr.vmem [resolvable:$true] %s8106
          %8109 = dma.vmem_to_hbm [thread:$0]  %s8107, 128, %s8104, %s8089
        $region100: #{tpu_custom_call.1} parent=95 // pred_fallthru
          _
        // Predicated region
        $region101: #{tpu_custom_call.1} parent=95 // pred_check
          %p8110 = pneg %p488
        $region102: #{tpu_custom_call.1} parent=95 // pred_check_branch
          %8112 = sbr.rel (%p8110) target = $region104
        $region103: #{tpu_custom_call.1} parent=95 // pred_region
          _
        $region104: #{tpu_custom_call.1} parent=95 // pred_fallthru
          _
      $region96: #{tpu_custom_call.1} parent=5 // pred_fallthru
        _
      %p8113 = scmp.le.s32.totalorder 2, %s30
      // Predicated region
      $region105: #{tpu_custom_call.1} parent=5 // pred_check
        %p8114 = pneg %p8113
      $region106: #{tpu_custom_call.1} parent=5 // pred_check_branch
        %8116 = sbr.rel (%p8114) target = $region108
      $region107: #{tpu_custom_call.1} parent=5 // pred_region
        %s8117 = ssub.s32 %s30, 2
        // Predicated region
        $region109: #{tpu_custom_call.1} parent=107 // pred_check
          %p8118 = pneg %p468
        $region110: #{tpu_custom_call.1} parent=107 // pred_check_branch
          %8120 = sbr.rel (%p8118) target = $region112
        $region111: #{tpu_custom_call.1} parent=107 // pred_region
          %s8121 = sand.u32 %s453, 1
          %s8122 = scalar_lea.sflag [#allocation3], %s8121
          %s8123 = sand.u32 %s453, 1
          %s8124 = smul.addr %s8123, 8
          %s8125 = scalar_lea.vmem [#allocation2], %s8124
          %8126 = dma.done %s8122, 128
        $region112: #{tpu_custom_call.1} parent=107 // pred_fallthru
          _
        // Predicated region
        $region113: #{tpu_custom_call.1} parent=107 // pred_check
          %p8127 = pneg %p494
        $region114: #{tpu_custom_call.1} parent=107 // pred_check_branch
          %8129 = sbr.rel (%p8127) target = $region116
        $region115: #{tpu_custom_call.1} parent=107 // pred_region
          %p8130 = scmp.lt.s32.totalorder %s36, 1
          %s8131 = scalar_select %p8130, %s36, 1
          %s8132 = smul.addr %s8131, 8
          %s8133 = scalar_lea.vmem %s20, %s8132
        $region116: #{tpu_custom_call.1} parent=107 // pred_fallthru
          _
      $region108: #{tpu_custom_call.1} parent=5 // pred_fallthru
        _
    $region6: #{tpu_custom_call.1} parent=1 // loop_footer
      %s34 = sadd.s32 1, %s30
    $region7: #{tpu_custom_call.1} parent=1 // loop_footer_branch
      %29 = sbr.rel target = $region3
    $region8: #{tpu_custom_call.1} parent=1 // loop_exit
      _
    %8134 = vsyncpa [#allocation3], 1
    %s8135 = scalar_lea.sflag [#allocation3], 1
    %8136 = vsyncpa %s8135, 1

</llo_original>
